<compile_context>
chip_gen: v7x
topology: tpu7x:2x2x1
jax: 0.10.0
libtpu: 0.0.40
codegen_flags: <defaults>
</compile_context>

<pallas_src>
import functools

import jax
import jax.numpy as jnp
from jax.experimental import pallas as pl
from jax.experimental.pallas import tpu as pltpu


MAX_PAD = 5  # largest halo needed: 3x3 conv with dilation 5 -> pad = 5


# ---------------------------------------------------------------------------
# Fused Pallas kernel (one batch image per grid step)
# ---------------------------------------------------------------------------
def _das_block_kernel(x_ref,                    # (1, H, W, C)
                      w_d1_ref, b_d1_ref,       # (9C, 3C), (1, 3C)  merged d=1
                      w2a_ref, b2a_ref,         # (9C, C), (1, C)    3x3 d=3 on x
                      w3b_ref, b3b_ref,         # (9C, C), (1, C)    3x3 d=3
                      w4b_ref, b4b_ref,         # (9C, C), (1, C)    3x3 d=3
                      w4c_ref, b4c_ref,         # (9C, C), (1, C)    3x3 d=5
                      w1x1_ref, b1x1_ref,       # (3C, C), (1, C)    merged 1x1
                      o_ref,                    # (1, H, W, C)
                      pad_ref,                  # VMEM (H+2*MAX_PAD, W+2*MAX_PAD, C)
                      *, H, W, C):
    HW = H * W

    def dconv3x3(src_hwc, w_ref, b_ref, d):
        """'same' 3x3 conv with dilation d as one (HW, 9C)x(9C, Cout) matmul."""
        # zero the halo buffer, drop the source at offset (d, d)
        pad_ref[...] = jnp.zeros_like(pad_ref)
        pad_ref[d:d + H, d:d + W, :] = src_hwc
        taps = []
        for kh in range(3):
            for kw in range(3):
                taps.append(
                    pad_ref[kh * d:kh * d + H, kw * d:kw * d + W, :]
                    .reshape(HW, C))
        patch = jnp.concatenate(taps, axis=-1)          # (HW, 9C)
        return jnp.dot(patch, w_ref[...],
                       preferred_element_type=jnp.float32) + b_ref[...]

    x = x_ref[0].astype(jnp.float32)                    # (H, W, C)

    # merged first layer: [conv1 | conv3[0] | conv4[0]]  (3x3, d=1, Cout=3C)
    y = dconv3x3(x, w_d1_ref, b_d1_ref, 1)              # (HW, 3C)
    out1 = y[:, :C]                                     # conv1(x)
    y3 = y[:, C:2 * C].reshape(H, W, C)                 # conv3[0](x)
    y4 = y[:, 2 * C:3 * C].reshape(H, W, C)             # conv4[0](x)

    p2 = dconv3x3(x, w2a_ref, b2a_ref, 3)               # conv2[0](x)
    q3 = dconv3x3(y3, w3b_ref, b3b_ref, 3)              # conv3[1]
    q4 = dconv3x3(y4, w4b_ref, b4b_ref, 3)              # conv4[1]
    r4 = dconv3x3(q4.reshape(H, W, C), w4c_ref, b4c_ref, 5)   # conv4[2]

    # merged trailing 1x1s:  out2 + out3 + out4 = [p2|q3|r4] @ [w2b;w3c;w4d] + Σb
    cat = jnp.concatenate([p2, q3, r4], axis=-1)        # (HW, 3C)
    s = jnp.dot(cat, w1x1_ref[...],
                preferred_element_type=jnp.float32) + b1x1_ref[...]

    out = out1 + s + x.reshape(HW, C)                   # + residual x
    o_ref[...] = out.reshape(1, H, W, C).astype(o_ref.dtype)


# ---------------------------------------------------------------------------
# Wrapper: pack/merge weights + single pallas_call
# ---------------------------------------------------------------------------
def das_block_forward(params, x):
    """x: (N, H, W, C) NHWC."""
    N, H, W, C = x.shape

    def flat(w):  # (3, 3, Cin, Cout) -> (9*Cin, Cout), row order (kh, kw, cin)
        return w.reshape(-1, w.shape[-1]).astype(jnp.float32)

    def bvec(b):
        return b.reshape(1, -1).astype(jnp.float32)

    w1, b1 = params["conv1"]
    (w2a, b2a), (w2b, b2b) = params["conv2"]
    (w3a, b3a), (w3b, b3b), (w3c, b3c) = params["conv3"]
    (w4a, b4a), (w4b, b4b), (w4c, b4c), (w4d, b4d) = params["conv4"]

    # merge the three 3x3 d=1 convs that all read x  (stack along Cout)
    w_d1 = flat(jnp.concatenate([w1, w3a, w4a], axis=-1))          # (9C, 3C)
    b_d1 = bvec(jnp.concatenate([b1, b3a, b4a]))                   # (1, 3C)

    # merge the three trailing 1x1 convs (stack along the contraction axis)
    w1x1 = jnp.concatenate(
        [w2b.reshape(C, C), w3c.reshape(C, C), w4d.reshape(C, C)],
        axis=0).astype(jnp.float32)                                # (3C, C)
    b1x1 = bvec(b2b + b3c + b4d)                                   # (1, C)

    args = (x,
            w_d1, b_d1,
            flat(w2a), bvec(b2a),
            flat(w3b), bvec(b3b),
            flat(w4b), bvec(b4b),
            flat(w4c), bvec(b4c),
            w1x1, b1x1)

    def const_spec(a):
        return pl.BlockSpec(a.shape, lambda n, _nd=a.ndim: (0,) * _nd)

    in_specs = [pl.BlockSpec((1, H, W, C), lambda n: (n, 0, 0, 0))]
    in_specs += [const_spec(a) for a in args[1:]]

    kernel = functools.partial(_das_block_kernel, H=H, W=W, C=C)
    return pl.pallas_call(
        kernel,
        out_shape=jax.ShapeDtypeStruct((N, H, W, C), x.dtype),
        grid=(N,),
        in_specs=in_specs,
        out_specs=pl.BlockSpec((1, H, W, C), lambda n: (n, 0, 0, 0)),
        scratch_shapes=[
            pltpu.VMEM((H + 2 * MAX_PAD, W + 2 * MAX_PAD, C), jnp.float32)],
        compiler_params=pltpu.CompilerParams(
            dimension_semantics=("parallel",)),
    )(*args)


# ---------------------------------------------------------------------------
# DAS_block parameters
# ---------------------------------------------------------------------------
def init_das_params(key, channel):
    """Deterministic synthetic parameters.  Conv weight layout: (kH,kW,Cin,Cout)."""
    def conv_param(key, k):
        kw_key, kb_key = jax.random.split(key)
        w = 0.1 * jax.random.normal(kw_key, (k, k, channel, channel),
                                    jnp.float32)
        b = 0.1 * jax.random.normal(kb_key, (channel,), jnp.float32)
        return w, b

    keys = jax.random.split(key, 10)
    params = {
        "conv1": conv_param(keys[0], 3),                       # 3x3 d=1
        "conv2": [conv_param(keys[1], 3),                      # 3x3 d=3
                  conv_param(keys[2], 1)],                     # 1x1
        "conv3": [conv_param(keys[3], 3),                      # 3x3 d=1
                  conv_param(keys[4], 3),                      # 3x3 d=3
                  conv_param(keys[5], 1)],                     # 1x1
        "conv4": [conv_param(keys[6], 3),                      # 3x3 d=1
                  conv_param(keys[7], 3),                      # 3x3 d=3
                  conv_param(keys[8], 3),                      # 3x3 d=5
                  conv_param(keys[9], 1)],                     # 1x1
    }
    return params


# ---------------------------------------------------------------------------
# Reference (plain JAX) for correctness check
# ---------------------------------------------------------------------------
def conv2d_ref(x, w, b, *, dilation=1):
    K = w.shape[0]
    pad = dilation * (K - 1) // 2
    y = jax.lax.conv_general_dilated(
        x, w,
        window_strides=(1, 1),
        padding=[(pad, pad), (pad, pad)],
        rhs_dilation=(dilation, dilation),
        dimension_numbers=("NHWC", "HWIO", "NHWC"),
    )
    return y + b.reshape(1, 1, 1, -1)


def das_block_ref(params, x):
    w, b = params["conv1"]
    out1 = conv2d_ref(x, w, b, dilation=1)
    (w2a, b2a), (w2b, b2b) = params["conv2"]
    out2 = conv2d_ref(conv2d_ref(x, w2a, b2a, dilation=3), w2b, b2b)
    (w3a, b3a), (w3b, b3b), (w3c, b3c) = params["conv3"]
    out3 = conv2d_ref(conv2d_ref(conv2d_ref(x, w3a, b3a, dilation=1),
                                 w3b, b3b, dilation=3), w3c, b3c)
    (w4a, b4a), (w4b, b4b), (w4c, b4c), (w4d, b4d) = params["conv4"]
    out4 = conv2d_ref(conv2d_ref(conv2d_ref(conv2d_ref(
        x, w4a, b4a, dilation=1), w4b, b4b, dilation=3),
        w4c, b4c, dilation=5), w4d, b4d)
    return out1 + out2 + out3 + out4 + x


# ---------------------------------------------------------------------------
if __name__ == "__main__":
    N, C, H, W = 2, 8, 16, 16          # PyTorch NCHW equivalent: (2, 8, 16, 16)
    key = jax.random.PRNGKey(0)
    k_x, k_p = jax.random.split(key)

    # Build NCHW like the PyTorch module would see, then transpose to NHWC.
    x_nchw = jax.random.normal(k_x, (N, C, H, W), jnp.float32)
    x = jnp.transpose(x_nchw, (0, 2, 3, 1))   # NHWC

    params = init_das_params(k_p, C)

    out = das_block_forward(params, x)
    out = jax.block_until_ready(out)

    ref = das_block_ref(params, x)
    assert out.shape == (N, H, W, C)
    assert jnp.allclose(out, ref, atol=1e-4, rtol=1e-4), "mismatch vs reference"

    print("KERNEL_OK")
</pallas_src>

<mosaic_0001>
module attributes {stable_mosaic.version = 11 : i64} {
  func.func @_das_block_kernel(%arg0: i32, %arg1: memref<1x16x16x8xf32, #tpu.memory_space<vmem>>, %arg2: memref<72x24xf32, #tpu.memory_space<vmem>>, %arg3: memref<1x24xf32, #tpu.memory_space<vmem>>, %arg4: memref<72x8xf32, #tpu.memory_space<vmem>>, %arg5: memref<1x8xf32, #tpu.memory_space<vmem>>, %arg6: memref<72x8xf32, #tpu.memory_space<vmem>>, %arg7: memref<1x8xf32, #tpu.memory_space<vmem>>, %arg8: memref<72x8xf32, #tpu.memory_space<vmem>>, %arg9: memref<1x8xf32, #tpu.memory_space<vmem>>, %arg10: memref<72x8xf32, #tpu.memory_space<vmem>>, %arg11: memref<1x8xf32, #tpu.memory_space<vmem>>, %arg12: memref<24x8xf32, #tpu.memory_space<vmem>>, %arg13: memref<1x8xf32, #tpu.memory_space<vmem>>, %arg14: memref<1x16x16x8xf32, #tpu.memory_space<vmem>>, %arg15: memref<26x26x8xf32, #tpu.memory_space<vmem>>) attributes {dimension_semantics = [#tpu.dimension_semantics<parallel>], iteration_bounds = array<i64: 2>, scalar_prefetch = 0 : i64, scratch_operands = 1 : i64, tpu.core_type = #tpu.core_type<tc>, window_params = [{transform_indices = @transform_0, window_bounds = array<i64: 1, 16, 16, 8>}, {pipeline_mode = #tpu.pipeline_mode<synchronous>, transform_indices = @transform_1, window_bounds = array<i64: 72, 24>}, {pipeline_mode = #tpu.pipeline_mode<synchronous>, transform_indices = @transform_2, window_bounds = array<i64: 1, 24>}, {pipeline_mode = #tpu.pipeline_mode<synchronous>, transform_indices = @transform_3, window_bounds = array<i64: 72, 8>}, {pipeline_mode = #tpu.pipeline_mode<synchronous>, transform_indices = @transform_4, window_bounds = array<i64: 1, 8>}, {pipeline_mode = #tpu.pipeline_mode<synchronous>, transform_indices = @transform_5, window_bounds = array<i64: 72, 8>}, {pipeline_mode = #tpu.pipeline_mode<synchronous>, transform_indices = @transform_6, window_bounds = array<i64: 1, 8>}, {pipeline_mode = #tpu.pipeline_mode<synchronous>, transform_indices = @transform_7, window_bounds = array<i64: 72, 8>}, {pipeline_mode = #tpu.pipeline_mode<synchronous>, transform_indices = @transform_8, window_bounds = array<i64: 1, 8>}, {pipeline_mode = #tpu.pipeline_mode<synchronous>, transform_indices = @transform_9, window_bounds = array<i64: 72, 8>}, {pipeline_mode = #tpu.pipeline_mode<synchronous>, transform_indices = @transform_10, window_bounds = array<i64: 1, 8>}, {pipeline_mode = #tpu.pipeline_mode<synchronous>, transform_indices = @transform_11, window_bounds = array<i64: 24, 8>}, {pipeline_mode = #tpu.pipeline_mode<synchronous>, transform_indices = @transform_12, window_bounds = array<i64: 1, 8>}, {transform_indices = @transform_13, window_bounds = array<i64: 1, 16, 16, 8>}]} {
    %c0 = arith.constant 0 : index
    %c0_0 = arith.constant 0 : index
    %c0_1 = arith.constant 0 : index
    %c0_2 = arith.constant 0 : index
    %0 = vector.load %arg1[%c0, %c0_0, %c0_1, %c0_2] : memref<1x16x16x8xf32, #tpu.memory_space<vmem>>, vector<1x16x16x8xf32>
    %1 = vector.shape_cast %0 : vector<1x16x16x8xf32> to vector<16x16x8xf32>
    %cst = arith.constant 0.000000e+00 : f32
    %2 = vector.broadcast %cst : f32 to vector<26x26x8xf32>
    %c0_3 = arith.constant 0 : index
    %c0_4 = arith.constant 0 : index
    %c0_5 = arith.constant 0 : index
    %3 = vector.load %arg15[%c0_3, %c0_4, %c0_5] : memref<26x26x8xf32, #tpu.memory_space<vmem>>, vector<26x26x8xf32>
    tpu.vector_store %arg15[%c0_3, %c0_4, %c0_5], %2 {strides = array<i32>} : memref<26x26x8xf32, #tpu.memory_space<vmem>>, vector<26x26x8xf32>,
    %c1 = arith.constant 1 : index
    %c1_6 = arith.constant 1 : index
    %c0_7 = arith.constant 0 : index
    %4 = vector.load %arg15[%c1, %c1_6, %c0_7] : memref<26x26x8xf32, #tpu.memory_space<vmem>>, vector<16x16x8xf32>
    tpu.vector_store %arg15[%c1, %c1_6, %c0_7], %1 {strides = array<i32>} : memref<26x26x8xf32, #tpu.memory_space<vmem>>, vector<16x16x8xf32>,
    %c0_8 = arith.constant 0 : index
    %c0_9 = arith.constant 0 : index
    %c0_10 = arith.constant 0 : index
    %5 = vector.load %arg15[%c0_8, %c0_9, %c0_10] : memref<26x26x8xf32, #tpu.memory_space<vmem>>, vector<16x16x8xf32>
    %6 = vector.shape_cast %5 : vector<16x16x8xf32> to vector<256x8xf32>
    %c0_11 = arith.constant 0 : index
    %c1_12 = arith.constant 1 : index
    %c0_13 = arith.constant 0 : index
    %7 = vector.load %arg15[%c0_11, %c1_12, %c0_13] : memref<26x26x8xf32, #tpu.memory_space<vmem>>, vector<16x16x8xf32>
    %8 = vector.shape_cast %7 : vector<16x16x8xf32> to vector<256x8xf32>
    %c0_14 = arith.constant 0 : index
    %c2 = arith.constant 2 : index
    %c0_15 = arith.constant 0 : index
    %9 = vector.load %arg15[%c0_14, %c2, %c0_15] : memref<26x26x8xf32, #tpu.memory_space<vmem>>, vector<16x16x8xf32>
    %10 = vector.shape_cast %9 : vector<16x16x8xf32> to vector<256x8xf32>
    %c1_16 = arith.constant 1 : index
    %c0_17 = arith.constant 0 : index
    %c0_18 = arith.constant 0 : index
    %11 = vector.load %arg15[%c1_16, %c0_17, %c0_18] : memref<26x26x8xf32, #tpu.memory_space<vmem>>, vector<16x16x8xf32>
    %12 = vector.shape_cast %11 : vector<16x16x8xf32> to vector<256x8xf32>
    %c1_19 = arith.constant 1 : index
    %c1_20 = arith.constant 1 : index
    %c0_21 = arith.constant 0 : index
    %13 = vector.load %arg15[%c1_19, %c1_20, %c0_21] : memref<26x26x8xf32, #tpu.memory_space<vmem>>, vector<16x16x8xf32>
    %14 = vector.shape_cast %13 : vector<16x16x8xf32> to vector<256x8xf32>
    %c1_22 = arith.constant 1 : index
    %c2_23 = arith.constant 2 : index
    %c0_24 = arith.constant 0 : index
    %15 = vector.load %arg15[%c1_22, %c2_23, %c0_24] : memref<26x26x8xf32, #tpu.memory_space<vmem>>, vector<16x16x8xf32>
    %16 = vector.shape_cast %15 : vector<16x16x8xf32> to vector<256x8xf32>
    %c2_25 = arith.constant 2 : index
    %c0_26 = arith.constant 0 : index
    %c0_27 = arith.constant 0 : index
    %17 = vector.load %arg15[%c2_25, %c0_26, %c0_27] : memref<26x26x8xf32, #tpu.memory_space<vmem>>, vector<16x16x8xf32>
    %18 = vector.shape_cast %17 : vector<16x16x8xf32> to vector<256x8xf32>
    %c2_28 = arith.constant 2 : index
    %c1_29 = arith.constant 1 : index
    %c0_30 = arith.constant 0 : index
    %19 = vector.load %arg15[%c2_28, %c1_29, %c0_30] : memref<26x26x8xf32, #tpu.memory_space<vmem>>, vector<16x16x8xf32>
    %20 = vector.shape_cast %19 : vector<16x16x8xf32> to vector<256x8xf32>
    %c2_31 = arith.constant 2 : index
    %c2_32 = arith.constant 2 : index
    %c0_33 = arith.constant 0 : index
    %21 = vector.load %arg15[%c2_31, %c2_32, %c0_33] : memref<26x26x8xf32, #tpu.memory_space<vmem>>, vector<16x16x8xf32>
    %22 = vector.shape_cast %21 : vector<16x16x8xf32> to vector<256x8xf32>
    %23 = tpu.concatenate %6, %8, %10, %12, %14, %16, %18, %20, %22 in 1 : vector<256x8xf32>, vector<256x8xf32>, vector<256x8xf32>, vector<256x8xf32>, vector<256x8xf32>, vector<256x8xf32>, vector<256x8xf32>, vector<256x8xf32>, vector<256x8xf32> -> vector<256x72xf32>
    %c0_34 = arith.constant 0 : index
    %c0_35 = arith.constant 0 : index
    %24 = vector.load %arg2[%c0_34, %c0_35] : memref<72x24xf32, #tpu.memory_space<vmem>>, vector<72x24xf32>
    %cst_36 = arith.constant dense<0.000000e+00> : vector<256x24xf32>
    %25 = tpu.matmul %23, %24, %cst_36 {dimension_numbers = #tpu.dot_dimension_numbers<[1], [0], [0], [1], [0, 0, 1, 1], [], []>} : vector<256x72xf32>, vector<72x24xf32>, vector<256x24xf32> -> vector<256x24xf32>
    %c0_37 = arith.constant 0 : index
    %c0_38 = arith.constant 0 : index
    %26 = vector.load %arg3[%c0_37, %c0_38] : memref<1x24xf32, #tpu.memory_space<vmem>>, vector<1x24xf32>
    %27 = vector.broadcast %26 : vector<1x24xf32> to vector<256x24xf32>
    %28 = arith.addf %25, %27 : vector<256x24xf32>
    %29 = vector.extract_strided_slice %28 {offsets = [0, 0], sizes = [256, 8], strides = [1, 1]} : vector<256x24xf32> to vector<256x8xf32>
    %30 = vector.extract_strided_slice %28 {offsets = [0, 8], sizes = [256, 8], strides = [1, 1]} : vector<256x24xf32> to vector<256x8xf32>
    %31 = vector.shape_cast %30 : vector<256x8xf32> to vector<16x16x8xf32>
    %32 = vector.extract_strided_slice %28 {offsets = [0, 16], sizes = [256, 8], strides = [1, 1]} : vector<256x24xf32> to vector<256x8xf32>
    %33 = vector.shape_cast %32 : vector<256x8xf32> to vector<16x16x8xf32>
    %cst_39 = arith.constant 0.000000e+00 : f32
    %34 = vector.broadcast %cst_39 : f32 to vector<26x26x8xf32>
    %c0_40 = arith.constant 0 : index
    %c0_41 = arith.constant 0 : index
    %c0_42 = arith.constant 0 : index
    %35 = vector.load %arg15[%c0_40, %c0_41, %c0_42] : memref<26x26x8xf32, #tpu.memory_space<vmem>>, vector<26x26x8xf32>
    tpu.vector_store %arg15[%c0_40, %c0_41, %c0_42], %34 {strides = array<i32>} : memref<26x26x8xf32, #tpu.memory_space<vmem>>, vector<26x26x8xf32>,
    %c3 = arith.constant 3 : index
    %c3_43 = arith.constant 3 : index
    %c0_44 = arith.constant 0 : index
    %36 = vector.load %arg15[%c3, %c3_43, %c0_44] : memref<26x26x8xf32, #tpu.memory_space<vmem>>, vector<16x16x8xf32>
    tpu.vector_store %arg15[%c3, %c3_43, %c0_44], %1 {strides = array<i32>} : memref<26x26x8xf32, #tpu.memory_space<vmem>>, vector<16x16x8xf32>,
    %c0_45 = arith.constant 0 : index
    %c0_46 = arith.constant 0 : index
    %c0_47 = arith.constant 0 : index
    %37 = vector.load %arg15[%c0_45, %c0_46, %c0_47] : memref<26x26x8xf32, #tpu.memory_space<vmem>>, vector<16x16x8xf32>
    %38 = vector.shape_cast %37 : vector<16x16x8xf32> to vector<256x8xf32>
    %c0_48 = arith.constant 0 : index
    %c3_49 = arith.constant 3 : index
    %c0_50 = arith.constant 0 : index
    %39 = vector.load %arg15[%c0_48, %c3_49, %c0_50] : memref<26x26x8xf32, #tpu.memory_space<vmem>>, vector<16x16x8xf32>
    %40 = vector.shape_cast %39 : vector<16x16x8xf32> to vector<256x8xf32>
    %c0_51 = arith.constant 0 : index
    %c6 = arith.constant 6 : index
    %c0_52 = arith.constant 0 : index
    %41 = vector.load %arg15[%c0_51, %c6, %c0_52] : memref<26x26x8xf32, #tpu.memory_space<vmem>>, vector<16x16x8xf32>
    %42 = vector.shape_cast %41 : vector<16x16x8xf32> to vector<256x8xf32>
    %c3_53 = arith.constant 3 : index
    %c0_54 = arith.constant 0 : index
    %c0_55 = arith.constant 0 : index
    %43 = vector.load %arg15[%c3_53, %c0_54, %c0_55] : memref<26x26x8xf32, #tpu.memory_space<vmem>>, vector<16x16x8xf32>
    %44 = vector.shape_cast %43 : vector<16x16x8xf32> to vector<256x8xf32>
    %c3_56 = arith.constant 3 : index
    %c3_57 = arith.constant 3 : index
    %c0_58 = arith.constant 0 : index
    %45 = vector.load %arg15[%c3_56, %c3_57, %c0_58] : memref<26x26x8xf32, #tpu.memory_space<vmem>>, vector<16x16x8xf32>
    %46 = vector.shape_cast %45 : vector<16x16x8xf32> to vector<256x8xf32>
    %c3_59 = arith.constant 3 : index
    %c6_60 = arith.constant 6 : index
    %c0_61 = arith.constant 0 : index
    %47 = vector.load %arg15[%c3_59, %c6_60, %c0_61] : memref<26x26x8xf32, #tpu.memory_space<vmem>>, vector<16x16x8xf32>
    %48 = vector.shape_cast %47 : vector<16x16x8xf32> to vector<256x8xf32>
    %c6_62 = arith.constant 6 : index
    %c0_63 = arith.constant 0 : index
    %c0_64 = arith.constant 0 : index
    %49 = vector.load %arg15[%c6_62, %c0_63, %c0_64] : memref<26x26x8xf32, #tpu.memory_space<vmem>>, vector<16x16x8xf32>
    %50 = vector.shape_cast %49 : vector<16x16x8xf32> to vector<256x8xf32>
    %c6_65 = arith.constant 6 : index
    %c3_66 = arith.constant 3 : index
    %c0_67 = arith.constant 0 : index
    %51 = vector.load %arg15[%c6_65, %c3_66, %c0_67] : memref<26x26x8xf32, #tpu.memory_space<vmem>>, vector<16x16x8xf32>
    %52 = vector.shape_cast %51 : vector<16x16x8xf32> to vector<256x8xf32>
    %c6_68 = arith.constant 6 : index
    %c6_69 = arith.constant 6 : index
    %c0_70 = arith.constant 0 : index
    %53 = vector.load %arg15[%c6_68, %c6_69, %c0_70] : memref<26x26x8xf32, #tpu.memory_space<vmem>>, vector<16x16x8xf32>
    %54 = vector.shape_cast %53 : vector<16x16x8xf32> to vector<256x8xf32>
    %55 = tpu.concatenate %38, %40, %42, %44, %46, %48, %50, %52, %54 in 1 : vector<256x8xf32>, vector<256x8xf32>, vector<256x8xf32>, vector<256x8xf32>, vector<256x8xf32>, vector<256x8xf32>, vector<256x8xf32>, vector<256x8xf32>, vector<256x8xf32> -> vector<256x72xf32>
    %c0_71 = arith.constant 0 : index
    %c0_72 = arith.constant 0 : index
    %56 = vector.load %arg4[%c0_71, %c0_72] : memref<72x8xf32, #tpu.memory_space<vmem>>, vector<72x8xf32>
    %cst_73 = arith.constant dense<0.000000e+00> : vector<256x8xf32>
    %57 = tpu.matmul %55, %56, %cst_73 {dimension_numbers = #tpu.dot_dimension_numbers<[1], [0], [0], [1], [0, 0, 1, 1], [], []>} : vector<256x72xf32>, vector<72x8xf32>, vector<256x8xf32> -> vector<256x8xf32>
    %c0_74 = arith.constant 0 : index
    %c0_75 = arith.constant 0 : index
    %58 = vector.load %arg5[%c0_74, %c0_75] : memref<1x8xf32, #tpu.memory_space<vmem>>, vector<1x8xf32>
    %59 = vector.broadcast %58 : vector<1x8xf32> to vector<256x8xf32>
    %60 = arith.addf %57, %59 : vector<256x8xf32>
    %cst_76 = arith.constant 0.000000e+00 : f32
    %61 = vector.broadcast %cst_76 : f32 to vector<26x26x8xf32>
    %c0_77 = arith.constant 0 : index
    %c0_78 = arith.constant 0 : index
    %c0_79 = arith.constant 0 : index
    %62 = vector.load %arg15[%c0_77, %c0_78, %c0_79] : memref<26x26x8xf32, #tpu.memory_space<vmem>>, vector<26x26x8xf32>
    tpu.vector_store %arg15[%c0_77, %c0_78, %c0_79], %61 {strides = array<i32>} : memref<26x26x8xf32, #tpu.memory_space<vmem>>, vector<26x26x8xf32>,
    %c3_80 = arith.constant 3 : index
    %c3_81 = arith.constant 3 : index
    %c0_82 = arith.constant 0 : index
    %63 = vector.load %arg15[%c3_80, %c3_81, %c0_82] : memref<26x26x8xf32, #tpu.memory_space<vmem>>, vector<16x16x8xf32>
    tpu.vector_store %arg15[%c3_80, %c3_81, %c0_82], %31 {strides = array<i32>} : memref<26x26x8xf32, #tpu.memory_space<vmem>>, vector<16x16x8xf32>,
    %c0_83 = arith.constant 0 : index
    %c0_84 = arith.constant 0 : index
    %c0_85 = arith.constant 0 : index
    %64 = vector.load %arg15[%c0_83, %c0_84, %c0_85] : memref<26x26x8xf32, #tpu.memory_space<vmem>>, vector<16x16x8xf32>
    %65 = vector.shape_cast %64 : vector<16x16x8xf32> to vector<256x8xf32>
    %c0_86 = arith.constant 0 : index
    %c3_87 = arith.constant 3 : index
    %c0_88 = arith.constant 0 : index
    %66 = vector.load %arg15[%c0_86, %c3_87, %c0_88] : memref<26x26x8xf32, #tpu.memory_space<vmem>>, vector<16x16x8xf32>
    %67 = vector.shape_cast %66 : vector<16x16x8xf32> to vector<256x8xf32>
    %c0_89 = arith.constant 0 : index
    %c6_90 = arith.constant 6 : index
    %c0_91 = arith.constant 0 : index
    %68 = vector.load %arg15[%c0_89, %c6_90, %c0_91] : memref<26x26x8xf32, #tpu.memory_space<vmem>>, vector<16x16x8xf32>
    %69 = vector.shape_cast %68 : vector<16x16x8xf32> to vector<256x8xf32>
    %c3_92 = arith.constant 3 : index
    %c0_93 = arith.constant 0 : index
    %c0_94 = arith.constant 0 : index
    %70 = vector.load %arg15[%c3_92, %c0_93, %c0_94] : memref<26x26x8xf32, #tpu.memory_space<vmem>>, vector<16x16x8xf32>
    %71 = vector.shape_cast %70 : vector<16x16x8xf32> to vector<256x8xf32>
    %c3_95 = arith.constant 3 : index
    %c3_96 = arith.constant 3 : index
    %c0_97 = arith.constant 0 : index
    %72 = vector.load %arg15[%c3_95, %c3_96, %c0_97] : memref<26x26x8xf32, #tpu.memory_space<vmem>>, vector<16x16x8xf32>
    %73 = vector.shape_cast %72 : vector<16x16x8xf32> to vector<256x8xf32>
    %c3_98 = arith.constant 3 : index
    %c6_99 = arith.constant 6 : index
    %c0_100 = arith.constant 0 : index
    %74 = vector.load %arg15[%c3_98, %c6_99, %c0_100] : memref<26x26x8xf32, #tpu.memory_space<vmem>>, vector<16x16x8xf32>
    %75 = vector.shape_cast %74 : vector<16x16x8xf32> to vector<256x8xf32>
    %c6_101 = arith.constant 6 : index
    %c0_102 = arith.constant 0 : index
    %c0_103 = arith.constant 0 : index
    %76 = vector.load %arg15[%c6_101, %c0_102, %c0_103] : memref<26x26x8xf32, #tpu.memory_space<vmem>>, vector<16x16x8xf32>
    %77 = vector.shape_cast %76 : vector<16x16x8xf32> to vector<256x8xf32>
    %c6_104 = arith.constant 6 : index
    %c3_105 = arith.constant 3 : index
    %c0_106 = arith.constant 0 : index
    %78 = vector.load %arg15[%c6_104, %c3_105, %c0_106] : memref<26x26x8xf32, #tpu.memory_space<vmem>>, vector<16x16x8xf32>
    %79 = vector.shape_cast %78 : vector<16x16x8xf32> to vector<256x8xf32>
    %c6_107 = arith.constant 6 : index
    %c6_108 = arith.constant 6 : index
    %c0_109 = arith.constant 0 : index
    %80 = vector.load %arg15[%c6_107, %c6_108, %c0_109] : memref<26x26x8xf32, #tpu.memory_space<vmem>>, vector<16x16x8xf32>
    %81 = vector.shape_cast %80 : vector<16x16x8xf32> to vector<256x8xf32>
    %82 = tpu.concatenate %65, %67, %69, %71, %73, %75, %77, %79, %81 in 1 : vector<256x8xf32>, vector<256x8xf32>, vector<256x8xf32>, vector<256x8xf32>, vector<256x8xf32>, vector<256x8xf32>, vector<256x8xf32>, vector<256x8xf32>, vector<256x8xf32> -> vector<256x72xf32>
    %c0_110 = arith.constant 0 : index
    %c0_111 = arith.constant 0 : index
    %83 = vector.load %arg6[%c0_110, %c0_111] : memref<72x8xf32, #tpu.memory_space<vmem>>, vector<72x8xf32>
    %cst_112 = arith.constant dense<0.000000e+00> : vector<256x8xf32>
    %84 = tpu.matmul %82, %83, %cst_112 {dimension_numbers = #tpu.dot_dimension_numbers<[1], [0], [0], [1], [0, 0, 1, 1], [], []>} : vector<256x72xf32>, vector<72x8xf32>, vector<256x8xf32> -> vector<256x8xf32>
    %c0_113 = arith.constant 0 : index
    %c0_114 = arith.constant 0 : index
    %85 = vector.load %arg7[%c0_113, %c0_114] : memref<1x8xf32, #tpu.memory_space<vmem>>, vector<1x8xf32>
    %86 = vector.broadcast %85 : vector<1x8xf32> to vector<256x8xf32>
    %87 = arith.addf %84, %86 : vector<256x8xf32>
    %cst_115 = arith.constant 0.000000e+00 : f32
    %88 = vector.broadcast %cst_115 : f32 to vector<26x26x8xf32>
    %c0_116 = arith.constant 0 : index
    %c0_117 = arith.constant 0 : index
    %c0_118 = arith.constant 0 : index
    %89 = vector.load %arg15[%c0_116, %c0_117, %c0_118] : memref<26x26x8xf32, #tpu.memory_space<vmem>>, vector<26x26x8xf32>
    tpu.vector_store %arg15[%c0_116, %c0_117, %c0_118], %88 {strides = array<i32>} : memref<26x26x8xf32, #tpu.memory_space<vmem>>, vector<26x26x8xf32>,
    %c3_119 = arith.constant 3 : index
    %c3_120 = arith.constant 3 : index
    %c0_121 = arith.constant 0 : index
    %90 = vector.load %arg15[%c3_119, %c3_120, %c0_121] : memref<26x26x8xf32, #tpu.memory_space<vmem>>, vector<16x16x8xf32>
    tpu.vector_store %arg15[%c3_119, %c3_120, %c0_121], %33 {strides = array<i32>} : memref<26x26x8xf32, #tpu.memory_space<vmem>>, vector<16x16x8xf32>,
    %c0_122 = arith.constant 0 : index
    %c0_123 = arith.constant 0 : index
    %c0_124 = arith.constant 0 : index
    %91 = vector.load %arg15[%c0_122, %c0_123, %c0_124] : memref<26x26x8xf32, #tpu.memory_space<vmem>>, vector<16x16x8xf32>
    %92 = vector.shape_cast %91 : vector<16x16x8xf32> to vector<256x8xf32>
    %c0_125 = arith.constant 0 : index
    %c3_126 = arith.constant 3 : index
    %c0_127 = arith.constant 0 : index
    %93 = vector.load %arg15[%c0_125, %c3_126, %c0_127] : memref<26x26x8xf32, #tpu.memory_space<vmem>>, vector<16x16x8xf32>
    %94 = vector.shape_cast %93 : vector<16x16x8xf32> to vector<256x8xf32>
    %c0_128 = arith.constant 0 : index
    %c6_129 = arith.constant 6 : index
    %c0_130 = arith.constant 0 : index
    %95 = vector.load %arg15[%c0_128, %c6_129, %c0_130] : memref<26x26x8xf32, #tpu.memory_space<vmem>>, vector<16x16x8xf32>
    %96 = vector.shape_cast %95 : vector<16x16x8xf32> to vector<256x8xf32>
    %c3_131 = arith.constant 3 : index
    %c0_132 = arith.constant 0 : index
    %c0_133 = arith.constant 0 : index
    %97 = vector.load %arg15[%c3_131, %c0_132, %c0_133] : memref<26x26x8xf32, #tpu.memory_space<vmem>>, vector<16x16x8xf32>
    %98 = vector.shape_cast %97 : vector<16x16x8xf32> to vector<256x8xf32>
    %c3_134 = arith.constant 3 : index
    %c3_135 = arith.constant 3 : index
    %c0_136 = arith.constant 0 : index
    %99 = vector.load %arg15[%c3_134, %c3_135, %c0_136] : memref<26x26x8xf32, #tpu.memory_space<vmem>>, vector<16x16x8xf32>
    %100 = vector.shape_cast %99 : vector<16x16x8xf32> to vector<256x8xf32>
    %c3_137 = arith.constant 3 : index
    %c6_138 = arith.constant 6 : index
    %c0_139 = arith.constant 0 : index
    %101 = vector.load %arg15[%c3_137, %c6_138, %c0_139] : memref<26x26x8xf32, #tpu.memory_space<vmem>>, vector<16x16x8xf32>
    %102 = vector.shape_cast %101 : vector<16x16x8xf32> to vector<256x8xf32>
    %c6_140 = arith.constant 6 : index
    %c0_141 = arith.constant 0 : index
    %c0_142 = arith.constant 0 : index
    %103 = vector.load %arg15[%c6_140, %c0_141, %c0_142] : memref<26x26x8xf32, #tpu.memory_space<vmem>>, vector<16x16x8xf32>
    %104 = vector.shape_cast %103 : vector<16x16x8xf32> to vector<256x8xf32>
    %c6_143 = arith.constant 6 : index
    %c3_144 = arith.constant 3 : index
    %c0_145 = arith.constant 0 : index
    %105 = vector.load %arg15[%c6_143, %c3_144, %c0_145] : memref<26x26x8xf32, #tpu.memory_space<vmem>>, vector<16x16x8xf32>
    %106 = vector.shape_cast %105 : vector<16x16x8xf32> to vector<256x8xf32>
    %c6_146 = arith.constant 6 : index
    %c6_147 = arith.constant 6 : index
    %c0_148 = arith.constant 0 : index
    %107 = vector.load %arg15[%c6_146, %c6_147, %c0_148] : memref<26x26x8xf32, #tpu.memory_space<vmem>>, vector<16x16x8xf32>
    %108 = vector.shape_cast %107 : vector<16x16x8xf32> to vector<256x8xf32>
    %109 = tpu.concatenate %92, %94, %96, %98, %100, %102, %104, %106, %108 in 1 : vector<256x8xf32>, vector<256x8xf32>, vector<256x8xf32>, vector<256x8xf32>, vector<256x8xf32>, vector<256x8xf32>, vector<256x8xf32>, vector<256x8xf32>, vector<256x8xf32> -> vector<256x72xf32>
    %c0_149 = arith.constant 0 : index
    %c0_150 = arith.constant 0 : index
    %110 = vector.load %arg8[%c0_149, %c0_150] : memref<72x8xf32, #tpu.memory_space<vmem>>, vector<72x8xf32>
    %cst_151 = arith.constant dense<0.000000e+00> : vector<256x8xf32>
    %111 = tpu.matmul %109, %110, %cst_151 {dimension_numbers = #tpu.dot_dimension_numbers<[1], [0], [0], [1], [0, 0, 1, 1], [], []>} : vector<256x72xf32>, vector<72x8xf32>, vector<256x8xf32> -> vector<256x8xf32>
    %c0_152 = arith.constant 0 : index
    %c0_153 = arith.constant 0 : index
    %112 = vector.load %arg9[%c0_152, %c0_153] : memref<1x8xf32, #tpu.memory_space<vmem>>, vector<1x8xf32>
    %113 = vector.broadcast %112 : vector<1x8xf32> to vector<256x8xf32>
    %114 = arith.addf %111, %113 : vector<256x8xf32>
    %115 = vector.shape_cast %114 : vector<256x8xf32> to vector<16x16x8xf32>
    %cst_154 = arith.constant 0.000000e+00 : f32
    %116 = vector.broadcast %cst_154 : f32 to vector<26x26x8xf32>
    %c0_155 = arith.constant 0 : index
    %c0_156 = arith.constant 0 : index
    %c0_157 = arith.constant 0 : index
    %117 = vector.load %arg15[%c0_155, %c0_156, %c0_157] : memref<26x26x8xf32, #tpu.memory_space<vmem>>, vector<26x26x8xf32>
    tpu.vector_store %arg15[%c0_155, %c0_156, %c0_157], %116 {strides = array<i32>} : memref<26x26x8xf32, #tpu.memory_space<vmem>>, vector<26x26x8xf32>,
    %c5 = arith.constant 5 : index
    %c5_158 = arith.constant 5 : index
    %c0_159 = arith.constant 0 : index
    %118 = vector.load %arg15[%c5, %c5_158, %c0_159] : memref<26x26x8xf32, #tpu.memory_space<vmem>>, vector<16x16x8xf32>
    tpu.vector_store %arg15[%c5, %c5_158, %c0_159], %115 {strides = array<i32>} : memref<26x26x8xf32, #tpu.memory_space<vmem>>, vector<16x16x8xf32>,
    %c0_160 = arith.constant 0 : index
    %c0_161 = arith.constant 0 : index
    %c0_162 = arith.constant 0 : index
    %119 = vector.load %arg15[%c0_160, %c0_161, %c0_162] : memref<26x26x8xf32, #tpu.memory_space<vmem>>, vector<16x16x8xf32>
    %120 = vector.shape_cast %119 : vector<16x16x8xf32> to vector<256x8xf32>
    %c0_163 = arith.constant 0 : index
    %c5_164 = arith.constant 5 : index
    %c0_165 = arith.constant 0 : index
    %121 = vector.load %arg15[%c0_163, %c5_164, %c0_165] : memref<26x26x8xf32, #tpu.memory_space<vmem>>, vector<16x16x8xf32>
    %122 = vector.shape_cast %121 : vector<16x16x8xf32> to vector<256x8xf32>
    %c0_166 = arith.constant 0 : index
    %c10 = arith.constant 10 : index
    %c0_167 = arith.constant 0 : index
    %123 = vector.load %arg15[%c0_166, %c10, %c0_167] : memref<26x26x8xf32, #tpu.memory_space<vmem>>, vector<16x16x8xf32>
    %124 = vector.shape_cast %123 : vector<16x16x8xf32> to vector<256x8xf32>
    %c5_168 = arith.constant 5 : index
    %c0_169 = arith.constant 0 : index
    %c0_170 = arith.constant 0 : index
    %125 = vector.load %arg15[%c5_168, %c0_169, %c0_170] : memref<26x26x8xf32, #tpu.memory_space<vmem>>, vector<16x16x8xf32>
    %126 = vector.shape_cast %125 : vector<16x16x8xf32> to vector<256x8xf32>
    %c5_171 = arith.constant 5 : index
    %c5_172 = arith.constant 5 : index
    %c0_173 = arith.constant 0 : index
    %127 = vector.load %arg15[%c5_171, %c5_172, %c0_173] : memref<26x26x8xf32, #tpu.memory_space<vmem>>, vector<16x16x8xf32>
    %128 = vector.shape_cast %127 : vector<16x16x8xf32> to vector<256x8xf32>
    %c5_174 = arith.constant 5 : index
    %c10_175 = arith.constant 10 : index
    %c0_176 = arith.constant 0 : index
    %129 = vector.load %arg15[%c5_174, %c10_175, %c0_176] : memref<26x26x8xf32, #tpu.memory_space<vmem>>, vector<16x16x8xf32>
    %130 = vector.shape_cast %129 : vector<16x16x8xf32> to vector<256x8xf32>
    %c10_177 = arith.constant 10 : index
    %c0_178 = arith.constant 0 : index
    %c0_179 = arith.constant 0 : index
    %131 = vector.load %arg15[%c10_177, %c0_178, %c0_179] : memref<26x26x8xf32, #tpu.memory_space<vmem>>, vector<16x16x8xf32>
    %132 = vector.shape_cast %131 : vector<16x16x8xf32> to vector<256x8xf32>
    %c10_180 = arith.constant 10 : index
    %c5_181 = arith.constant 5 : index
    %c0_182 = arith.constant 0 : index
    %133 = vector.load %arg15[%c10_180, %c5_181, %c0_182] : memref<26x26x8xf32, #tpu.memory_space<vmem>>, vector<16x16x8xf32>
    %134 = vector.shape_cast %133 : vector<16x16x8xf32> to vector<256x8xf32>
    %c10_183 = arith.constant 10 : index
    %c10_184 = arith.constant 10 : index
    %c0_185 = arith.constant 0 : index
    %135 = vector.load %arg15[%c10_183, %c10_184, %c0_185] : memref<26x26x8xf32, #tpu.memory_space<vmem>>, vector<16x16x8xf32>
    %136 = vector.shape_cast %135 : vector<16x16x8xf32> to vector<256x8xf32>
    %137 = tpu.concatenate %120, %122, %124, %126, %128, %130, %132, %134, %136 in 1 : vector<256x8xf32>, vector<256x8xf32>, vector<256x8xf32>, vector<256x8xf32>, vector<256x8xf32>, vector<256x8xf32>, vector<256x8xf32>, vector<256x8xf32>, vector<256x8xf32> -> vector<256x72xf32>
    %c0_186 = arith.constant 0 : index
    %c0_187 = arith.constant 0 : index
    %138 = vector.load %arg10[%c0_186, %c0_187] : memref<72x8xf32, #tpu.memory_space<vmem>>, vector<72x8xf32>
    %cst_188 = arith.constant dense<0.000000e+00> : vector<256x8xf32>
    %139 = tpu.matmul %137, %138, %cst_188 {dimension_numbers = #tpu.dot_dimension_numbers<[1], [0], [0], [1], [0, 0, 1, 1], [], []>} : vector<256x72xf32>, vector<72x8xf32>, vector<256x8xf32> -> vector<256x8xf32>
    %c0_189 = arith.constant 0 : index
    %c0_190 = arith.constant 0 : index
    %140 = vector.load %arg11[%c0_189, %c0_190] : memref<1x8xf32, #tpu.memory_space<vmem>>, vector<1x8xf32>
    %141 = vector.broadcast %140 : vector<1x8xf32> to vector<256x8xf32>
    %142 = arith.addf %139, %141 : vector<256x8xf32>
    %143 = tpu.concatenate %60, %87, %142 in 1 : vector<256x8xf32>, vector<256x8xf32>, vector<256x8xf32> -> vector<256x24xf32>
    %c0_191 = arith.constant 0 : index
    %c0_192 = arith.constant 0 : index
    %144 = vector.load %arg12[%c0_191, %c0_192] : memref<24x8xf32, #tpu.memory_space<vmem>>, vector<24x8xf32>
    %cst_193 = arith.constant dense<0.000000e+00> : vector<256x8xf32>
    %145 = tpu.matmul %143, %144, %cst_193 {dimension_numbers = #tpu.dot_dimension_numbers<[1], [0], [0], [1], [0, 0, 1, 1], [], []>} : vector<256x24xf32>, vector<24x8xf32>, vector<256x8xf32> -> vector<256x8xf32>
    %c0_194 = arith.constant 0 : index
    %c0_195 = arith.constant 0 : index
    %146 = vector.load %arg13[%c0_194, %c0_195] : memref<1x8xf32, #tpu.memory_space<vmem>>, vector<1x8xf32>
    %147 = vector.broadcast %146 : vector<1x8xf32> to vector<256x8xf32>
    %148 = arith.addf %145, %147 : vector<256x8xf32>
    %149 = arith.addf %29, %148 : vector<256x8xf32>
    %150 = vector.shape_cast %1 : vector<16x16x8xf32> to vector<256x8xf32>
    %151 = arith.addf %149, %150 : vector<256x8xf32>
    %152 = vector.shape_cast %151 : vector<256x8xf32> to vector<1x16x16x8xf32>
    %c0_196 = arith.constant 0 : index
    %c0_197 = arith.constant 0 : index
    %c0_198 = arith.constant 0 : index
    %c0_199 = arith.constant 0 : index
    %153 = vector.load %arg14[%c0_196, %c0_197, %c0_198, %c0_199] : memref<1x16x16x8xf32, #tpu.memory_space<vmem>>, vector<1x16x16x8xf32>
    tpu.vector_store %arg14[%c0_196, %c0_197, %c0_198, %c0_199], %152 {strides = array<i32>} : memref<1x16x16x8xf32, #tpu.memory_space<vmem>>, vector<1x16x16x8xf32>,
    return
  }
  func.func @transform_0(%arg0: i32) -> (i32, i32, i32, i32) {
    %c0_i32 = arith.constant 0 : i32
    %c0_i32_0 = arith.constant 0 : i32
    %c0_i32_1 = arith.constant 0 : i32
    %c0_i32_2 = arith.constant 0 : i32
    return %arg0, %c0_i32, %c0_i32_0, %c0_i32_1 : i32, i32, i32, i32
  }
  func.func @transform_1(%arg0: i32) -> (i32, i32) {
    %c0_i32 = arith.constant 0 : i32
    %c0_i32_0 = arith.constant 0 : i32
    %c0_i32_1 = arith.constant 0 : i32
    return %c0_i32, %c0_i32_0 : i32, i32
  }
  func.func @transform_2(%arg0: i32) -> (i32, i32) {
    %c0_i32 = arith.constant 0 : i32
    %c0_i32_0 = arith.constant 0 : i32
    %c0_i32_1 = arith.constant 0 : i32
    return %c0_i32, %c0_i32_0 : i32, i32
  }
  func.func @transform_3(%arg0: i32) -> (i32, i32) {
    %c0_i32 = arith.constant 0 : i32
    %c0_i32_0 = arith.constant 0 : i32
    %c0_i32_1 = arith.constant 0 : i32
    return %c0_i32, %c0_i32_0 : i32, i32
  }
  func.func @transform_4(%arg0: i32) -> (i32, i32) {
    %c0_i32 = arith.constant 0 : i32
    %c0_i32_0 = arith.constant 0 : i32
    %c0_i32_1 = arith.constant 0 : i32
    return %c0_i32, %c0_i32_0 : i32, i32
  }
  func.func @transform_5(%arg0: i32) -> (i32, i32) {
    %c0_i32 = arith.constant 0 : i32
    %c0_i32_0 = arith.constant 0 : i32
    %c0_i32_1 = arith.constant 0 : i32
    return %c0_i32, %c0_i32_0 : i32, i32
  }
  func.func @transform_6(%arg0: i32) -> (i32, i32) {
    %c0_i32 = arith.constant 0 : i32
    %c0_i32_0 = arith.constant 0 : i32
    %c0_i32_1 = arith.constant 0 : i32
    return %c0_i32, %c0_i32_0 : i32, i32
  }
  func.func @transform_7(%arg0: i32) -> (i32, i32) {
    %c0_i32 = arith.constant 0 : i32
    %c0_i32_0 = arith.constant 0 : i32
    %c0_i32_1 = arith.constant 0 : i32
    return %c0_i32, %c0_i32_0 : i32, i32
  }
  func.func @transform_8(%arg0: i32) -> (i32, i32) {
    %c0_i32 = arith.constant 0 : i32
    %c0_i32_0 = arith.constant 0 : i32
    %c0_i32_1 = arith.constant 0 : i32
    return %c0_i32, %c0_i32_0 : i32, i32
  }
  func.func @transform_9(%arg0: i32) -> (i32, i32) {
    %c0_i32 = arith.constant 0 : i32
    %c0_i32_0 = arith.constant 0 : i32
    %c0_i32_1 = arith.constant 0 : i32
    return %c0_i32, %c0_i32_0 : i32, i32
  }
  func.func @transform_10(%arg0: i32) -> (i32, i32) {
    %c0_i32 = arith.constant 0 : i32
    %c0_i32_0 = arith.constant 0 : i32
    %c0_i32_1 = arith.constant 0 : i32
    return %c0_i32, %c0_i32_0 : i32, i32
  }
  func.func @transform_11(%arg0: i32) -> (i32, i32) {
    %c0_i32 = arith.constant 0 : i32
    %c0_i32_0 = arith.constant 0 : i32
    %c0_i32_1 = arith.constant 0 : i32
    return %c0_i32, %c0_i32_0 : i32, i32
  }
  func.func @transform_12(%arg0: i32) -> (i32, i32) {
    %c0_i32 = arith.constant 0 : i32
    %c0_i32_0 = arith.constant 0 : i32
    %c0_i32_1 = arith.constant 0 : i32
    return %c0_i32, %c0_i32_0 : i32, i32
  }
  func.func @transform_13(%arg0: i32) -> (i32, i32, i32, i32) {
    %c0_i32 = arith.constant 0 : i32
    %c0_i32_0 = arith.constant 0 : i32
    %c0_i32_1 = arith.constant 0 : i32
    %c0_i32_2 = arith.constant 0 : i32
    return %arg0, %c0_i32, %c0_i32_0, %c0_i32_1 : i32, i32, i32, i32
  }
}

</mosaic_0001>

<llo_original>
// kernel: tpu_custom_call.1
$region0: #{tpu_custom_call.1}
  #allocation0 [shape = 'u32[]', space=smem, size = 0x4, offset = 0x4, fixed_abs, tag = 'smem constant byte address 0x4 - core index']
  #allocation1 [shape = 'u32[144,128]{1,0:T(1,128)}', space=vmem, size = 0x12000, scoped, tag = 'internal scratch']
  #allocation2 [shape = 'f32[26,26,8]{2,1,0:T(8,128)}', space=vmem, size = 0x68000, scoped, tag = 'scratch operand']
  %s0 = inlined_call_operand.vmem [shape: f32[2,16,16,8], index: 0, kind: input, shape index: {}]
  %s1 = inlined_call_operand.vmem [shape: f32[72,24], index: 1, kind: input, shape index: {}]
  %s2 = inlined_call_operand.vmem [shape: f32[1,24], index: 2, kind: input, shape index: {}]
  %s3 = inlined_call_operand.vmem [shape: f32[72,8], index: 3, kind: input, shape index: {}]
  %s4 = inlined_call_operand.vmem [shape: f32[1,8], index: 4, kind: input, shape index: {}]
  %s5 = inlined_call_operand.vmem [shape: f32[72,8], index: 5, kind: input, shape index: {}]
  %s6 = inlined_call_operand.vmem [shape: f32[1,8], index: 6, kind: input, shape index: {}]
  %s7 = inlined_call_operand.vmem [shape: f32[72,8], index: 7, kind: input, shape index: {}]
  %s8 = inlined_call_operand.vmem [shape: f32[1,8], index: 8, kind: input, shape index: {}]
  %s9 = inlined_call_operand.vmem [shape: f32[72,8], index: 9, kind: input, shape index: {}]
  %s10 = inlined_call_operand.vmem [shape: f32[1,8], index: 10, kind: input, shape index: {}]
  %s11 = inlined_call_operand.vmem [shape: f32[24,8], index: 11, kind: input, shape index: {}]
  %s12 = inlined_call_operand.vmem [shape: f32[1,8], index: 12, kind: input, shape index: {}]
  %s13 = inlined_call_operand.vmem [shape: f32[2,16,16,8], index: 13, kind: output, shape index: {}]
  %s14 = sld [smem:[#allocation0]]
  $region85: #{tpu_custom_call.1} parent=0
    _
  %s16 = ssub.s32 1, %s14
  %s17 = scalar_select 0, %s16, %s14
  loop: start=0, step=1, limit=4
  $region2: #{tpu_custom_call.1} parent=0 // loop_pre_header
    _
  $region3: #{tpu_custom_call.1} parent=0 // loop_header
    %s19 = sphi 0, %s23
    %p20 = scmp.ge.s32.totalorder %s19, 4
    %s29 = sphi 0, %s31
    %s32 = sphi 0, %s29
    %s33 = sphi 0, %s32
    %s49 = sphi 0, %s33
    %s53 = sphi 0, %s53
    %s55 = sphi 0, %s53
    %s56 = sphi 0, %s55
    %s70 = sphi 0, %s56
    %s74 = sphi 0, %s74
    %s76 = sphi 0, %s74
    %s77 = sphi 0, %s76
    %s91 = sphi 0, %s77
    %s95 = sphi 0, %s95
    %s97 = sphi 0, %s95
    %s98 = sphi 0, %s97
    %s112 = sphi 0, %s98
    %s116 = sphi 0, %s116
    %s118 = sphi 0, %s116
    %s119 = sphi 0, %s118
    %s133 = sphi 0, %s119
    %s137 = sphi 0, %s137
    %s139 = sphi 0, %s137
    %s140 = sphi 0, %s139
    %s154 = sphi 0, %s140
    %s158 = sphi 0, %s158
    %s160 = sphi 0, %s158
    %s161 = sphi 0, %s160
    %s175 = sphi 0, %s161
    %s179 = sphi 0, %s179
    %s181 = sphi 0, %s179
    %s182 = sphi 0, %s181
    %s196 = sphi 0, %s182
    %s200 = sphi 0, %s200
    %s202 = sphi 0, %s200
    %s203 = sphi 0, %s202
    %s217 = sphi 0, %s203
    %s221 = sphi 0, %s221
    %s223 = sphi 0, %s221
    %s224 = sphi 0, %s223
    %s238 = sphi 0, %s224
    %s242 = sphi 0, %s242
    %s244 = sphi 0, %s242
    %s245 = sphi 0, %s244
    %s259 = sphi 0, %s245
    %s263 = sphi 0, %s263
    %s265 = sphi 0, %s263
    %s266 = sphi 0, %s265
    %s280 = sphi 0, %s266
    %s284 = sphi 0, %s284
    %s286 = sphi 0, %s284
    %s287 = sphi 0, %s286
    %s301 = sphi 0, %s287
    %s307 = sphi 0, %s309
    %s310 = sphi 0, %s307
    %s311 = sphi 0, %s310
    %s327 = sphi 0, %s311
  $region4: #{tpu_custom_call.1} parent=0 // loop_header_branch
    %22 = sbr.rel (%p20) target = $region8
  $region5: #{tpu_custom_call.1} parent=0 // loop_body
    %s24 = ssub.s32 %s19, 1
    %s25 = ssub.s32 %s19, 2
    %s26 = sadd.s32 %s19, 1
    %s27 = ssub.s32 %s19, %s26
    %p28 = scmp.eq.s32.totalorder %s27, 0
    %s30 = sadd.s32 %s29, 1
    %s31 = scalar_select %p28, %s29, %s30
    %p34 = pneg %p28
    %p35 = scmp.eq.s32.totalorder %s19, 1
    %p36 = por %p34, %p35
    %p37 = scmp.ne.s32.totalorder %s29, %s32
    %p38 = scmp.eq.s32.totalorder %s19, 0
    %p39 = por %p37, %p38
    %p40 = scmp.ne.s32.totalorder %s29, %s32
    %p41 = scmp.eq.s32.totalorder %s24, 1
    %p42 = por %p40, %p41
    %p43 = scmp.ne.s32.totalorder %s32, %s33
    %p44 = scmp.eq.s32.totalorder %s24, 0
    %p45 = por %p43, %p44
    %p46 = scmp.ne.s32.totalorder %s32, %s33
    %p47 = scmp.eq.s32.totalorder %s25, 1
    %p48 = por %p46, %p47
    %p50 = scmp.ne.s32.totalorder %s33, %s49
    %p51 = scmp.eq.s32.totalorder %s25, 0
    %p52 = por %p50, %p51
    %s54 = sadd.s32 %s53, 1
    %p57 = scmp.eq.s32.totalorder %s19, 1
    %p58 = scmp.ne.s32.totalorder %s53, %s55
    %p59 = scmp.eq.s32.totalorder %s19, 0
    %p60 = por %p58, %p59
    %p61 = scmp.ne.s32.totalorder %s53, %s55
    %p62 = scmp.eq.s32.totalorder %s24, 1
    %p63 = por %p61, %p62
    %p64 = scmp.ne.s32.totalorder %s55, %s56
    %p65 = scmp.eq.s32.totalorder %s24, 0
    %p66 = por %p64, %p65
    %p67 = scmp.ne.s32.totalorder %s55, %s56
    %p68 = scmp.eq.s32.totalorder %s25, 1
    %p69 = por %p67, %p68
    %p71 = scmp.ne.s32.totalorder %s56, %s70
    %p72 = scmp.eq.s32.totalorder %s25, 0
    %p73 = por %p71, %p72
    %s75 = sadd.s32 %s74, 1
    %p78 = scmp.eq.s32.totalorder %s19, 1
    %p79 = scmp.ne.s32.totalorder %s74, %s76
    %p80 = scmp.eq.s32.totalorder %s19, 0
    %p81 = por %p79, %p80
    %p82 = scmp.ne.s32.totalorder %s74, %s76
    %p83 = scmp.eq.s32.totalorder %s24, 1
    %p84 = por %p82, %p83
    %p85 = scmp.ne.s32.totalorder %s76, %s77
    %p86 = scmp.eq.s32.totalorder %s24, 0
    %p87 = por %p85, %p86
    %p88 = scmp.ne.s32.totalorder %s76, %s77
    %p89 = scmp.eq.s32.totalorder %s25, 1
    %p90 = por %p88, %p89
    %p92 = scmp.ne.s32.totalorder %s77, %s91
    %p93 = scmp.eq.s32.totalorder %s25, 0
    %p94 = por %p92, %p93
    %s96 = sadd.s32 %s95, 1
    %p99 = scmp.eq.s32.totalorder %s19, 1
    %p100 = scmp.ne.s32.totalorder %s95, %s97
    %p101 = scmp.eq.s32.totalorder %s19, 0
    %p102 = por %p100, %p101
    %p103 = scmp.ne.s32.totalorder %s95, %s97
    %p104 = scmp.eq.s32.totalorder %s24, 1
    %p105 = por %p103, %p104
    %p106 = scmp.ne.s32.totalorder %s97, %s98
    %p107 = scmp.eq.s32.totalorder %s24, 0
    %p108 = por %p106, %p107
    %p109 = scmp.ne.s32.totalorder %s97, %s98
    %p110 = scmp.eq.s32.totalorder %s25, 1
    %p111 = por %p109, %p110
    %p113 = scmp.ne.s32.totalorder %s98, %s112
    %p114 = scmp.eq.s32.totalorder %s25, 0
    %p115 = por %p113, %p114
    %s117 = sadd.s32 %s116, 1
    %p120 = scmp.eq.s32.totalorder %s19, 1
    %p121 = scmp.ne.s32.totalorder %s116, %s118
    %p122 = scmp.eq.s32.totalorder %s19, 0
    %p123 = por %p121, %p122
    %p124 = scmp.ne.s32.totalorder %s116, %s118
    %p125 = scmp.eq.s32.totalorder %s24, 1
    %p126 = por %p124, %p125
    %p127 = scmp.ne.s32.totalorder %s118, %s119
    %p128 = scmp.eq.s32.totalorder %s24, 0
    %p129 = por %p127, %p128
    %p130 = scmp.ne.s32.totalorder %s118, %s119
    %p131 = scmp.eq.s32.totalorder %s25, 1
    %p132 = por %p130, %p131
    %p134 = scmp.ne.s32.totalorder %s119, %s133
    %p135 = scmp.eq.s32.totalorder %s25, 0
    %p136 = por %p134, %p135
    %s138 = sadd.s32 %s137, 1
    %p141 = scmp.eq.s32.totalorder %s19, 1
    %p142 = scmp.ne.s32.totalorder %s137, %s139
    %p143 = scmp.eq.s32.totalorder %s19, 0
    %p144 = por %p142, %p143
    %p145 = scmp.ne.s32.totalorder %s137, %s139
    %p146 = scmp.eq.s32.totalorder %s24, 1
    %p147 = por %p145, %p146
    %p148 = scmp.ne.s32.totalorder %s139, %s140
    %p149 = scmp.eq.s32.totalorder %s24, 0
    %p150 = por %p148, %p149
    %p151 = scmp.ne.s32.totalorder %s139, %s140
    %p152 = scmp.eq.s32.totalorder %s25, 1
    %p153 = por %p151, %p152
    %p155 = scmp.ne.s32.totalorder %s140, %s154
    %p156 = scmp.eq.s32.totalorder %s25, 0
    %p157 = por %p155, %p156
    %s159 = sadd.s32 %s158, 1
    %p162 = scmp.eq.s32.totalorder %s19, 1
    %p163 = scmp.ne.s32.totalorder %s158, %s160
    %p164 = scmp.eq.s32.totalorder %s19, 0
    %p165 = por %p163, %p164
    %p166 = scmp.ne.s32.totalorder %s158, %s160
    %p167 = scmp.eq.s32.totalorder %s24, 1
    %p168 = por %p166, %p167
    %p169 = scmp.ne.s32.totalorder %s160, %s161
    %p170 = scmp.eq.s32.totalorder %s24, 0
    %p171 = por %p169, %p170
    %p172 = scmp.ne.s32.totalorder %s160, %s161
    %p173 = scmp.eq.s32.totalorder %s25, 1
    %p174 = por %p172, %p173
    %p176 = scmp.ne.s32.totalorder %s161, %s175
    %p177 = scmp.eq.s32.totalorder %s25, 0
    %p178 = por %p176, %p177
    %s180 = sadd.s32 %s179, 1
    %p183 = scmp.eq.s32.totalorder %s19, 1
    %p184 = scmp.ne.s32.totalorder %s179, %s181
    %p185 = scmp.eq.s32.totalorder %s19, 0
    %p186 = por %p184, %p185
    %p187 = scmp.ne.s32.totalorder %s179, %s181
    %p188 = scmp.eq.s32.totalorder %s24, 1
    %p189 = por %p187, %p188
    %p190 = scmp.ne.s32.totalorder %s181, %s182
    %p191 = scmp.eq.s32.totalorder %s24, 0
    %p192 = por %p190, %p191
    %p193 = scmp.ne.s32.totalorder %s181, %s182
    %p194 = scmp.eq.s32.totalorder %s25, 1
    %p195 = por %p193, %p194
    %p197 = scmp.ne.s32.totalorder %s182, %s196
    %p198 = scmp.eq.s32.totalorder %s25, 0
    %p199 = por %p197, %p198
    %s201 = sadd.s32 %s200, 1
    %p204 = scmp.eq.s32.totalorder %s19, 1
    %p205 = scmp.ne.s32.totalorder %s200, %s202
    %p206 = scmp.eq.s32.totalorder %s19, 0
    %p207 = por %p205, %p206
    %p208 = scmp.ne.s32.totalorder %s200, %s202
    %p209 = scmp.eq.s32.totalorder %s24, 1
    %p210 = por %p208, %p209
    %p211 = scmp.ne.s32.totalorder %s202, %s203
    %p212 = scmp.eq.s32.totalorder %s24, 0
    %p213 = por %p211, %p212
    %p214 = scmp.ne.s32.totalorder %s202, %s203
    %p215 = scmp.eq.s32.totalorder %s25, 1
    %p216 = por %p214, %p215
    %p218 = scmp.ne.s32.totalorder %s203, %s217
    %p219 = scmp.eq.s32.totalorder %s25, 0
    %p220 = por %p218, %p219
    %s222 = sadd.s32 %s221, 1
    %p225 = scmp.eq.s32.totalorder %s19, 1
    %p226 = scmp.ne.s32.totalorder %s221, %s223
    %p227 = scmp.eq.s32.totalorder %s19, 0
    %p228 = por %p226, %p227
    %p229 = scmp.ne.s32.totalorder %s221, %s223
    %p230 = scmp.eq.s32.totalorder %s24, 1
    %p231 = por %p229, %p230
    %p232 = scmp.ne.s32.totalorder %s223, %s224
    %p233 = scmp.eq.s32.totalorder %s24, 0
    %p234 = por %p232, %p233
    %p235 = scmp.ne.s32.totalorder %s223, %s224
    %p236 = scmp.eq.s32.totalorder %s25, 1
    %p237 = por %p235, %p236
    %p239 = scmp.ne.s32.totalorder %s224, %s238
    %p240 = scmp.eq.s32.totalorder %s25, 0
    %p241 = por %p239, %p240
    %s243 = sadd.s32 %s242, 1
    %p246 = scmp.eq.s32.totalorder %s19, 1
    %p247 = scmp.ne.s32.totalorder %s242, %s244
    %p248 = scmp.eq.s32.totalorder %s19, 0
    %p249 = por %p247, %p248
    %p250 = scmp.ne.s32.totalorder %s242, %s244
    %p251 = scmp.eq.s32.totalorder %s24, 1
    %p252 = por %p250, %p251
    %p253 = scmp.ne.s32.totalorder %s244, %s245
    %p254 = scmp.eq.s32.totalorder %s24, 0
    %p255 = por %p253, %p254
    %p256 = scmp.ne.s32.totalorder %s244, %s245
    %p257 = scmp.eq.s32.totalorder %s25, 1
    %p258 = por %p256, %p257
    %p260 = scmp.ne.s32.totalorder %s245, %s259
    %p261 = scmp.eq.s32.totalorder %s25, 0
    %p262 = por %p260, %p261
    %s264 = sadd.s32 %s263, 1
    %p267 = scmp.eq.s32.totalorder %s19, 1
    %p268 = scmp.ne.s32.totalorder %s263, %s265
    %p269 = scmp.eq.s32.totalorder %s19, 0
    %p270 = por %p268, %p269
    %p271 = scmp.ne.s32.totalorder %s263, %s265
    %p272 = scmp.eq.s32.totalorder %s24, 1
    %p273 = por %p271, %p272
    %p274 = scmp.ne.s32.totalorder %s265, %s266
    %p275 = scmp.eq.s32.totalorder %s24, 0
    %p276 = por %p274, %p275
    %p277 = scmp.ne.s32.totalorder %s265, %s266
    %p278 = scmp.eq.s32.totalorder %s25, 1
    %p279 = por %p277, %p278
    %p281 = scmp.ne.s32.totalorder %s266, %s280
    %p282 = scmp.eq.s32.totalorder %s25, 0
    %p283 = por %p281, %p282
    %s285 = sadd.s32 %s284, 1
    %p288 = scmp.eq.s32.totalorder %s19, 1
    %p289 = scmp.ne.s32.totalorder %s284, %s286
    %p290 = scmp.eq.s32.totalorder %s19, 0
    %p291 = por %p289, %p290
    %p292 = scmp.ne.s32.totalorder %s284, %s286
    %p293 = scmp.eq.s32.totalorder %s24, 1
    %p294 = por %p292, %p293
    %p295 = scmp.ne.s32.totalorder %s286, %s287
    %p296 = scmp.eq.s32.totalorder %s24, 0
    %p297 = por %p295, %p296
    %p298 = scmp.ne.s32.totalorder %s286, %s287
    %p299 = scmp.eq.s32.totalorder %s25, 1
    %p300 = por %p298, %p299
    %p302 = scmp.ne.s32.totalorder %s287, %s301
    %p303 = scmp.eq.s32.totalorder %s25, 0
    %p304 = por %p302, %p303
    %s305 = ssub.s32 %s19, %s26
    %p306 = scmp.eq.s32.totalorder %s305, 0
    %s308 = sadd.s32 %s307, 1
    %s309 = scalar_select %p306, %s307, %s308
    %p312 = pneg %p306
    %p313 = scmp.eq.s32.totalorder %s19, 1
    %p314 = por %p312, %p313
    %p315 = scmp.ne.s32.totalorder %s307, %s310
    %p316 = scmp.eq.s32.totalorder %s19, 0
    %p317 = por %p315, %p316
    %p318 = scmp.ne.s32.totalorder %s307, %s310
    %p319 = scmp.eq.s32.totalorder %s24, 1
    %p320 = por %p318, %p319
    %p321 = scmp.ne.s32.totalorder %s310, %s311
    %p322 = scmp.eq.s32.totalorder %s24, 0
    %p323 = por %p321, %p322
    %p324 = scmp.ne.s32.totalorder %s310, %s311
    %p325 = scmp.eq.s32.totalorder %s25, 1
    %p326 = por %p324, %p325
    %p328 = scmp.ne.s32.totalorder %s311, %s327
    %p329 = scmp.eq.s32.totalorder %s25, 0
    %p330 = por %p328, %p329
    %p331 = scmp.le.s32.totalorder 1, %s19
    %p332 = scmp.lt.s32.totalorder %s19, 3
    %p333 = pnand %p331, %p332
    %p334 = pneg %p333
    // Predicated region
    $region9: #{tpu_custom_call.1} parent=5 // pred_check
      _
    $region10: #{tpu_custom_call.1} parent=5 // pred_check_branch
      %336 = sbr.rel (%p333) target = $region12
    $region11: #{tpu_custom_call.1} parent=5 // pred_region
      %s337 = ssub.s32 %s19, 1
      // Predicated region
      $region13: #{tpu_custom_call.1} parent=11 // pred_check
        %p338 = pneg %p66
      $region14: #{tpu_custom_call.1} parent=11 // pred_check_branch
        %340 = sbr.rel (%p338) target = $region16
      $region15: #{tpu_custom_call.1} parent=11 // pred_region
        _
      $region16: #{tpu_custom_call.1} parent=11 // pred_fallthru
        _
      // Predicated region
      $region17: #{tpu_custom_call.1} parent=11 // pred_check
        %p341 = pneg %p87
      $region18: #{tpu_custom_call.1} parent=11 // pred_check_branch
        %343 = sbr.rel (%p341) target = $region20
      $region19: #{tpu_custom_call.1} parent=11 // pred_region
        _
      $region20: #{tpu_custom_call.1} parent=11 // pred_fallthru
        _
      // Predicated region
      $region21: #{tpu_custom_call.1} parent=11 // pred_check
        %p344 = pneg %p108
      $region22: #{tpu_custom_call.1} parent=11 // pred_check_branch
        %346 = sbr.rel (%p344) target = $region24
      $region23: #{tpu_custom_call.1} parent=11 // pred_region
        _
      $region24: #{tpu_custom_call.1} parent=11 // pred_fallthru
        _
      // Predicated region
      $region25: #{tpu_custom_call.1} parent=11 // pred_check
        %p347 = pneg %p129
      $region26: #{tpu_custom_call.1} parent=11 // pred_check_branch
        %349 = sbr.rel (%p347) target = $region28
      $region27: #{tpu_custom_call.1} parent=11 // pred_region
        _
      $region28: #{tpu_custom_call.1} parent=11 // pred_fallthru
        _
      // Predicated region
      $region29: #{tpu_custom_call.1} parent=11 // pred_check
        %p350 = pneg %p150
      $region30: #{tpu_custom_call.1} parent=11 // pred_check_branch
        %352 = sbr.rel (%p350) target = $region32
      $region31: #{tpu_custom_call.1} parent=11 // pred_region
        _
      $region32: #{tpu_custom_call.1} parent=11 // pred_fallthru
        _
      // Predicated region
      $region33: #{tpu_custom_call.1} parent=11 // pred_check
        %p353 = pneg %p171
      $region34: #{tpu_custom_call.1} parent=11 // pred_check_branch
        %355 = sbr.rel (%p353) target = $region36
      $region35: #{tpu_custom_call.1} parent=11 // pred_region
        _
      $region36: #{tpu_custom_call.1} parent=11 // pred_fallthru
        _
      // Predicated region
      $region37: #{tpu_custom_call.1} parent=11 // pred_check
        %p356 = pneg %p192
      $region38: #{tpu_custom_call.1} parent=11 // pred_check_branch
        %358 = sbr.rel (%p356) target = $region40
      $region39: #{tpu_custom_call.1} parent=11 // pred_region
        _
      $region40: #{tpu_custom_call.1} parent=11 // pred_fallthru
        _
      // Predicated region
      $region41: #{tpu_custom_call.1} parent=11 // pred_check
        %p359 = pneg %p213
      $region42: #{tpu_custom_call.1} parent=11 // pred_check_branch
        %361 = sbr.rel (%p359) target = $region44
      $region43: #{tpu_custom_call.1} parent=11 // pred_region
        _
      $region44: #{tpu_custom_call.1} parent=11 // pred_fallthru
        _
      // Predicated region
      $region45: #{tpu_custom_call.1} parent=11 // pred_check
        %p362 = pneg %p234
      $region46: #{tpu_custom_call.1} parent=11 // pred_check_branch
        %364 = sbr.rel (%p362) target = $region48
      $region47: #{tpu_custom_call.1} parent=11 // pred_region
        _
      $region48: #{tpu_custom_call.1} parent=11 // pred_fallthru
        _
      // Predicated region
      $region49: #{tpu_custom_call.1} parent=11 // pred_check
        %p365 = pneg %p255
      $region50: #{tpu_custom_call.1} parent=11 // pred_check_branch
        %367 = sbr.rel (%p365) target = $region52
      $region51: #{tpu_custom_call.1} parent=11 // pred_region
        _
      $region52: #{tpu_custom_call.1} parent=11 // pred_fallthru
        _
      // Predicated region
      $region53: #{tpu_custom_call.1} parent=11 // pred_check
        %p368 = pneg %p276
      $region54: #{tpu_custom_call.1} parent=11 // pred_check_branch
        %370 = sbr.rel (%p368) target = $region56
      $region55: #{tpu_custom_call.1} parent=11 // pred_region
        _
      $region56: #{tpu_custom_call.1} parent=11 // pred_fallthru
        _
      // Predicated region
      $region57: #{tpu_custom_call.1} parent=11 // pred_check
        %p371 = pneg %p297
      $region58: #{tpu_custom_call.1} parent=11 // pred_check_branch
        %373 = sbr.rel (%p371) target = $region60
      $region59: #{tpu_custom_call.1} parent=11 // pred_region
        _
      $region60: #{tpu_custom_call.1} parent=11 // pred_fallthru
        _
    $region12: #{tpu_custom_call.1} parent=5 // pred_fallthru
      _
    %p374 = scmp.lt.s32.totalorder %s19, 2
    // Predicated region
    $region61: #{tpu_custom_call.1} parent=5 // pred_check
      %p375 = pneg %p374
    $region62: #{tpu_custom_call.1} parent=5 // pred_check_branch
      %377 = sbr.rel (%p375) target = $region64
    $region63: #{tpu_custom_call.1} parent=5 // pred_region
      // Predicated region
      $region65: #{tpu_custom_call.1} parent=63 // pred_check
        %p378 = pneg %p39
      $region66: #{tpu_custom_call.1} parent=63 // pred_check_branch
        %380 = sbr.rel (%p378) target = $region68
      $region67: #{tpu_custom_call.1} parent=63 // pred_region
        %p381 = scmp.lt.s32.totalorder %s19, 1
        %s382 = scalar_select %p381, %s19, 1
        %s383 = smul.addr %s382, 32
        %s384 = smul.addr %s383, 8
        %s385 = scalar_lea.vmem %s0, %s384
      $region68: #{tpu_custom_call.1} parent=63 // pred_fallthru
        _
    $region64: #{tpu_custom_call.1} parent=5 // pred_fallthru
      _
    %p386 = scmp.le.s32.totalorder 1, %s19
    %p387 = scmp.lt.s32.totalorder %s19, 3
    %p388 = pnand %p386, %p387
    %p389 = pneg %p388
    // Predicated region
    $region69: #{tpu_custom_call.1} parent=5 // pred_check
      _
    $region70: #{tpu_custom_call.1} parent=5 // pred_check_branch
      %391 = sbr.rel (%p388) target = $region72
    $region71: #{tpu_custom_call.1} parent=5 // pred_region
      %s392 = ssub.s32 %s19, 1
      %p393 = scmp.lt.s32.totalorder %s24, 1
      %s394 = scalar_select %p393, %s24, 1
      %s395 = smul.addr %s394, 32
      %s396 = smul.addr %s395, 8
      %s397 = scalar_lea.vmem %s0, %s396
      %p398 = pneg %p45
      %p399 = pneg %p42
      %p400 = pneg %p66
      %p401 = pneg %p63
      %p402 = pneg %p87
      %p403 = pneg %p84
      %p404 = pneg %p108
      %p405 = pneg %p105
      %p406 = pneg %p129
      %p407 = pneg %p126
      %p408 = pneg %p150
      %p409 = pneg %p147
      %p410 = pneg %p171
      %p411 = pneg %p168
      %p412 = pneg %p192
      %p413 = pneg %p189
      %p414 = pneg %p213
      %p415 = pneg %p210
      %p416 = pneg %p234
      %p417 = pneg %p231
      %p418 = pneg %p255
      %p419 = pneg %p252
      %p420 = pneg %p276
      %p421 = pneg %p273
      %p422 = pneg %p297
      %p423 = pneg %p294
      %p424 = pneg %p323
      %p425 = pneg %p320
      %p426 = scmp.lt.s32.totalorder %s24, 1
      %s427 = scalar_select %p426, %s24, 1
      %s428 = smul.addr %s427, 32
      %s429 = smul.addr %s428, 8
      %s430 = scalar_lea.vmem %s13, %s429
      %p431 = scmp.lt.s32.totalorder %s24, 1
      %s432 = scalar_select %p431, %s24, 1
      %s433 = smul.addr %s432, 32
      %s434 = smul.addr %s433, 8
      %s435 = scalar_lea.vmem %s0, %s434
      %p436 = scmp.lt.s32.totalorder %s24, 1
      %s437 = scalar_select %p436, %s24, 1
      %s438 = smul.addr %s437, 32
      %s439 = smul.addr %s438, 8
      %s440 = scalar_lea.vmem %s13, %s439
      %v441 = vld [vmem:[%s435] sm:$0xff]
      %v442 = vld [vmem:[%s435 + $0x8] sm:$0xff]
      %v443 = vld [vmem:[%s435 + $0x10] sm:$0xff]
      %v444 = vld [vmem:[%s435 + $0x18] sm:$0xff]
      %v445 = vld [vmem:[%s435 + $0x20] sm:$0xff]
      %v446 = vld [vmem:[%s435 + $0x28] sm:$0xff]
      %v447 = vld [vmem:[%s435 + $0x30] sm:$0xff]
      %v448 = vld [vmem:[%s435 + $0x38] sm:$0xff]
      %v449 = vld [vmem:[%s435 + $0x40] sm:$0xff]
      %v450 = vld [vmem:[%s435 + $0x48] sm:$0xff]
      %v451 = vld [vmem:[%s435 + $0x50] sm:$0xff]
      %v452 = vld [vmem:[%s435 + $0x58] sm:$0xff]
      %v453 = vld [vmem:[%s435 + $0x60] sm:$0xff]
      %v454 = vld [vmem:[%s435 + $0x68] sm:$0xff]
      %v455 = vld [vmem:[%s435 + $0x70] sm:$0xff]
      %v456 = vld [vmem:[%s435 + $0x78] sm:$0xff]
      %v457 = vld [vmem:[%s435 + $0x80] sm:$0xff]
      %v458 = vld [vmem:[%s435 + $0x88] sm:$0xff]
      %v459 = vld [vmem:[%s435 + $0x90] sm:$0xff]
      %v460 = vld [vmem:[%s435 + $0x98] sm:$0xff]
      %v461 = vld [vmem:[%s435 + $0xa0] sm:$0xff]
      %v462 = vld [vmem:[%s435 + $0xa8] sm:$0xff]
      %v463 = vld [vmem:[%s435 + $0xb0] sm:$0xff]
      %v464 = vld [vmem:[%s435 + $0xb8] sm:$0xff]
      %v465 = vld [vmem:[%s435 + $0xc0] sm:$0xff]
      %v466 = vld [vmem:[%s435 + $0xc8] sm:$0xff]
      %v467 = vld [vmem:[%s435 + $0xd0] sm:$0xff]
      %v468 = vld [vmem:[%s435 + $0xd8] sm:$0xff]
      %v469 = vld [vmem:[%s435 + $0xe0] sm:$0xff]
      %v470 = vld [vmem:[%s435 + $0xe8] sm:$0xff]
      %v471 = vld [vmem:[%s435 + $0xf0] sm:$0xff]
      %v472 = vld [vmem:[%s435 + $0xf8] sm:$0xff]
      %vm473 = vcmask 64512
      %474 = vst.msk [vmem:[#allocation2] sm:$0xff] %vm473, 0.0
      %475 = vst.msk [vmem:[#allocation2 + $0x8] sm:$0xff] %vm473, 0.0
      %476 = vst.msk [vmem:[#allocation2 + $0x10] sm:$0xff] %vm473, 0.0
      %vm477 = vcmask 58368
      %478 = vst.msk [vmem:[#allocation2 + $0x18] sm:$0x3] %vm477, 0.0
      %479 = vst.msk [vmem:[#allocation2 + $0x20] sm:$0xff] %vm473, 0.0
      %480 = vst.msk [vmem:[#allocation2 + $0x28] sm:$0xff] %vm473, 0.0
      %481 = vst.msk [vmem:[#allocation2 + $0x30] sm:$0xff] %vm473, 0.0
      %482 = vst.msk [vmem:[#allocation2 + $0x38] sm:$0x3] %vm477, 0.0
      %483 = vst.msk [vmem:[#allocation2 + $0x40] sm:$0xff] %vm473, 0.0
      %484 = vst.msk [vmem:[#allocation2 + $0x48] sm:$0xff] %vm473, 0.0
      %485 = vst.msk [vmem:[#allocation2 + $0x50] sm:$0xff] %vm473, 0.0
      %486 = vst.msk [vmem:[#allocation2 + $0x58] sm:$0x3] %vm477, 0.0
      %487 = vst.msk [vmem:[#allocation2 + $0x60] sm:$0xff] %vm473, 0.0
      %488 = vst.msk [vmem:[#allocation2 + $0x68] sm:$0xff] %vm473, 0.0
      %489 = vst.msk [vmem:[#allocation2 + $0x70] sm:$0xff] %vm473, 0.0
      %490 = vst.msk [vmem:[#allocation2 + $0x78] sm:$0x3] %vm477, 0.0
      %491 = vst.msk [vmem:[#allocation2 + $0x80] sm:$0xff] %vm473, 0.0
      %492 = vst.msk [vmem:[#allocation2 + $0x88] sm:$0xff] %vm473, 0.0
      %493 = vst.msk [vmem:[#allocation2 + $0x90] sm:$0xff] %vm473, 0.0
      %494 = vst.msk [vmem:[#allocation2 + $0x98] sm:$0x3] %vm477, 0.0
      %495 = vst.msk [vmem:[#allocation2 + $0xa0] sm:$0xff] %vm473, 0.0
      %496 = vst.msk [vmem:[#allocation2 + $0xa8] sm:$0xff] %vm473, 0.0
      %497 = vst.msk [vmem:[#allocation2 + $0xb0] sm:$0xff] %vm473, 0.0
      %498 = vst.msk [vmem:[#allocation2 + $0xb8] sm:$0x3] %vm477, 0.0
      %499 = vst.msk [vmem:[#allocation2 + $0xc0] sm:$0xff] %vm473, 0.0
      %500 = vst.msk [vmem:[#allocation2 + $0xc8] sm:$0xff] %vm473, 0.0
      %501 = vst.msk [vmem:[#allocation2 + $0xd0] sm:$0xff] %vm473, 0.0
      %502 = vst.msk [vmem:[#allocation2 + $0xd8] sm:$0x3] %vm477, 0.0
      %503 = vst.msk [vmem:[#allocation2 + $0xe0] sm:$0xff] %vm473, 0.0
      %504 = vst.msk [vmem:[#allocation2 + $0xe8] sm:$0xff] %vm473, 0.0
      %505 = vst.msk [vmem:[#allocation2 + $0xf0] sm:$0xff] %vm473, 0.0
      %506 = vst.msk [vmem:[#allocation2 + $0xf8] sm:$0x3] %vm477, 0.0
      %507 = vst.msk [vmem:[#allocation2 + $0x100] sm:$0xff] %vm473, 0.0
      %508 = vst.msk [vmem:[#allocation2 + $0x108] sm:$0xff] %vm473, 0.0
      %509 = vst.msk [vmem:[#allocation2 + $0x110] sm:$0xff] %vm473, 0.0
      %510 = vst.msk [vmem:[#allocation2 + $0x118] sm:$0x3] %vm477, 0.0
      %511 = vst.msk [vmem:[#allocation2 + $0x120] sm:$0xff] %vm473, 0.0
      %512 = vst.msk [vmem:[#allocation2 + $0x128] sm:$0xff] %vm473, 0.0
      %513 = vst.msk [vmem:[#allocation2 + $0x130] sm:$0xff] %vm473, 0.0
      %514 = vst.msk [vmem:[#allocation2 + $0x138] sm:$0x3] %vm477, 0.0
      %515 = vst.msk [vmem:[#allocation2 + $0x140] sm:$0xff] %vm473, 0.0
      %516 = vst.msk [vmem:[#allocation2 + $0x148] sm:$0xff] %vm473, 0.0
      %517 = vst.msk [vmem:[#allocation2 + $0x150] sm:$0xff] %vm473, 0.0
      %518 = vst.msk [vmem:[#allocation2 + $0x158] sm:$0x3] %vm477, 0.0
      %519 = vst.msk [vmem:[#allocation2 + $0x160] sm:$0xff] %vm473, 0.0
      %520 = vst.msk [vmem:[#allocation2 + $0x168] sm:$0xff] %vm473, 0.0
      %521 = vst.msk [vmem:[#allocation2 + $0x170] sm:$0xff] %vm473, 0.0
      %522 = vst.msk [vmem:[#allocation2 + $0x178] sm:$0x3] %vm477, 0.0
      %523 = vst.msk [vmem:[#allocation2 + $0x180] sm:$0xff] %vm473, 0.0
      %524 = vst.msk [vmem:[#allocation2 + $0x188] sm:$0xff] %vm473, 0.0
      %525 = vst.msk [vmem:[#allocation2 + $0x190] sm:$0xff] %vm473, 0.0
      %526 = vst.msk [vmem:[#allocation2 + $0x198] sm:$0x3] %vm477, 0.0
      %527 = vst.msk [vmem:[#allocation2 + $0x1a0] sm:$0xff] %vm473, 0.0
      %528 = vst.msk [vmem:[#allocation2 + $0x1a8] sm:$0xff] %vm473, 0.0
      %529 = vst.msk [vmem:[#allocation2 + $0x1b0] sm:$0xff] %vm473, 0.0
      %530 = vst.msk [vmem:[#allocation2 + $0x1b8] sm:$0x3] %vm477, 0.0
      %531 = vst.msk [vmem:[#allocation2 + $0x1c0] sm:$0xff] %vm473, 0.0
      %532 = vst.msk [vmem:[#allocation2 + $0x1c8] sm:$0xff] %vm473, 0.0
      %533 = vst.msk [vmem:[#allocation2 + $0x1d0] sm:$0xff] %vm473, 0.0
      %534 = vst.msk [vmem:[#allocation2 + $0x1d8] sm:$0x3] %vm477, 0.0
      %535 = vst.msk [vmem:[#allocation2 + $0x1e0] sm:$0xff] %vm473, 0.0
      %536 = vst.msk [vmem:[#allocation2 + $0x1e8] sm:$0xff] %vm473, 0.0
      %537 = vst.msk [vmem:[#allocation2 + $0x1f0] sm:$0xff] %vm473, 0.0
      %538 = vst.msk [vmem:[#allocation2 + $0x1f8] sm:$0x3] %vm477, 0.0
      %539 = vst.msk [vmem:[#allocation2 + $0x200] sm:$0xff] %vm473, 0.0
      %540 = vst.msk [vmem:[#allocation2 + $0x208] sm:$0xff] %vm473, 0.0
      %541 = vst.msk [vmem:[#allocation2 + $0x210] sm:$0xff] %vm473, 0.0
      %542 = vst.msk [vmem:[#allocation2 + $0x218] sm:$0x3] %vm477, 0.0
      %543 = vst.msk [vmem:[#allocation2 + $0x220] sm:$0xff] %vm473, 0.0
      %544 = vst.msk [vmem:[#allocation2 + $0x228] sm:$0xff] %vm473, 0.0
      %545 = vst.msk [vmem:[#allocation2 + $0x230] sm:$0xff] %vm473, 0.0
      %546 = vst.msk [vmem:[#allocation2 + $0x238] sm:$0x3] %vm477, 0.0
      %547 = vst.msk [vmem:[#allocation2 + $0x240] sm:$0xff] %vm473, 0.0
      %548 = vst.msk [vmem:[#allocation2 + $0x248] sm:$0xff] %vm473, 0.0
      %549 = vst.msk [vmem:[#allocation2 + $0x250] sm:$0xff] %vm473, 0.0
      %550 = vst.msk [vmem:[#allocation2 + $0x258] sm:$0x3] %vm477, 0.0
      %551 = vst.msk [vmem:[#allocation2 + $0x260] sm:$0xff] %vm473, 0.0
      %552 = vst.msk [vmem:[#allocation2 + $0x268] sm:$0xff] %vm473, 0.0
      %553 = vst.msk [vmem:[#allocation2 + $0x270] sm:$0xff] %vm473, 0.0
      %554 = vst.msk [vmem:[#allocation2 + $0x278] sm:$0x3] %vm477, 0.0
      %555 = vst.msk [vmem:[#allocation2 + $0x280] sm:$0xff] %vm473, 0.0
      %556 = vst.msk [vmem:[#allocation2 + $0x288] sm:$0xff] %vm473, 0.0
      %557 = vst.msk [vmem:[#allocation2 + $0x290] sm:$0xff] %vm473, 0.0
      %558 = vst.msk [vmem:[#allocation2 + $0x298] sm:$0x3] %vm477, 0.0
      %559 = vst.msk [vmem:[#allocation2 + $0x2a0] sm:$0xff] %vm473, 0.0
      %560 = vst.msk [vmem:[#allocation2 + $0x2a8] sm:$0xff] %vm473, 0.0
      %561 = vst.msk [vmem:[#allocation2 + $0x2b0] sm:$0xff] %vm473, 0.0
      %562 = vst.msk [vmem:[#allocation2 + $0x2b8] sm:$0x3] %vm477, 0.0
      %563 = vst.msk [vmem:[#allocation2 + $0x2c0] sm:$0xff] %vm473, 0.0
      %564 = vst.msk [vmem:[#allocation2 + $0x2c8] sm:$0xff] %vm473, 0.0
      %565 = vst.msk [vmem:[#allocation2 + $0x2d0] sm:$0xff] %vm473, 0.0
      %566 = vst.msk [vmem:[#allocation2 + $0x2d8] sm:$0x3] %vm477, 0.0
      %567 = vst.msk [vmem:[#allocation2 + $0x2e0] sm:$0xff] %vm473, 0.0
      %568 = vst.msk [vmem:[#allocation2 + $0x2e8] sm:$0xff] %vm473, 0.0
      %569 = vst.msk [vmem:[#allocation2 + $0x2f0] sm:$0xff] %vm473, 0.0
      %570 = vst.msk [vmem:[#allocation2 + $0x2f8] sm:$0x3] %vm477, 0.0
      %571 = vst.msk [vmem:[#allocation2 + $0x300] sm:$0xff] %vm473, 0.0
      %572 = vst.msk [vmem:[#allocation2 + $0x308] sm:$0xff] %vm473, 0.0
      %573 = vst.msk [vmem:[#allocation2 + $0x310] sm:$0xff] %vm473, 0.0
      %574 = vst.msk [vmem:[#allocation2 + $0x318] sm:$0x3] %vm477, 0.0
      %575 = vst.msk [vmem:[#allocation2 + $0x320] sm:$0xff] %vm473, 0.0
      %576 = vst.msk [vmem:[#allocation2 + $0x328] sm:$0xff] %vm473, 0.0
      %577 = vst.msk [vmem:[#allocation2 + $0x330] sm:$0xff] %vm473, 0.0
      %578 = vst.msk [vmem:[#allocation2 + $0x338] sm:$0x3] %vm477, 0.0
      %s579 = scalar_lea.vmem [#allocation2], 32
      %580 = vst.msk [vmem:[%s579 + $0x1] sm:$0xff] %vm473, %v441
      %581 = vst.msk [vmem:[%s579 + $0x9] sm:$0xff] %vm473, %v442
      %582 = vst.msk [vmem:[%s579 + $0x21] sm:$0xff] %vm473, %v443
      %583 = vst.msk [vmem:[%s579 + $0x29] sm:$0xff] %vm473, %v444
      %584 = vst.msk [vmem:[%s579 + $0x41] sm:$0xff] %vm473, %v445
      %585 = vst.msk [vmem:[%s579 + $0x49] sm:$0xff] %vm473, %v446
      %586 = vst.msk [vmem:[%s579 + $0x61] sm:$0xff] %vm473, %v447
      %587 = vst.msk [vmem:[%s579 + $0x69] sm:$0xff] %vm473, %v448
      %588 = vst.msk [vmem:[%s579 + $0x81] sm:$0xff] %vm473, %v449
      %589 = vst.msk [vmem:[%s579 + $0x89] sm:$0xff] %vm473, %v450
      %590 = vst.msk [vmem:[%s579 + $0xa1] sm:$0xff] %vm473, %v451
      %591 = vst.msk [vmem:[%s579 + $0xa9] sm:$0xff] %vm473, %v452
      %592 = vst.msk [vmem:[%s579 + $0xc1] sm:$0xff] %vm473, %v453
      %593 = vst.msk [vmem:[%s579 + $0xc9] sm:$0xff] %vm473, %v454
      %594 = vst.msk [vmem:[%s579 + $0xe1] sm:$0xff] %vm473, %v455
      %595 = vst.msk [vmem:[%s579 + $0xe9] sm:$0xff] %vm473, %v456
      %596 = vst.msk [vmem:[%s579 + $0x101] sm:$0xff] %vm473, %v457
      %597 = vst.msk [vmem:[%s579 + $0x109] sm:$0xff] %vm473, %v458
      %598 = vst.msk [vmem:[%s579 + $0x121] sm:$0xff] %vm473, %v459
      %599 = vst.msk [vmem:[%s579 + $0x129] sm:$0xff] %vm473, %v460
      %600 = vst.msk [vmem:[%s579 + $0x141] sm:$0xff] %vm473, %v461
      %601 = vst.msk [vmem:[%s579 + $0x149] sm:$0xff] %vm473, %v462
      %602 = vst.msk [vmem:[%s579 + $0x161] sm:$0xff] %vm473, %v463
      %603 = vst.msk [vmem:[%s579 + $0x169] sm:$0xff] %vm473, %v464
      %604 = vst.msk [vmem:[%s579 + $0x181] sm:$0xff] %vm473, %v465
      %605 = vst.msk [vmem:[%s579 + $0x189] sm:$0xff] %vm473, %v466
      %606 = vst.msk [vmem:[%s579 + $0x1a1] sm:$0xff] %vm473, %v467
      %607 = vst.msk [vmem:[%s579 + $0x1a9] sm:$0xff] %vm473, %v468
      %608 = vst.msk [vmem:[%s579 + $0x1c1] sm:$0xff] %vm473, %v469
      %609 = vst.msk [vmem:[%s579 + $0x1c9] sm:$0xff] %vm473, %v470
      %610 = vst.msk [vmem:[%s579 + $0x1e1] sm:$0xff] %vm473, %v471
      %611 = vst.msk [vmem:[%s579 + $0x1e9] sm:$0xff] %vm473, %v472
      %v612 = vld [vmem:[#allocation2] sm:$0xff]
      %v613 = vld [vmem:[#allocation2 + $0x8] sm:$0xff]
      %v614 = vld [vmem:[#allocation2 + $0x20] sm:$0xff]
      %v615 = vld [vmem:[#allocation2 + $0x28] sm:$0xff]
      %v616 = vld [vmem:[#allocation2 + $0x40] sm:$0xff]
      %v617 = vld [vmem:[#allocation2 + $0x48] sm:$0xff]
      %v618 = vld [vmem:[#allocation2 + $0x60] sm:$0xff]
      %v619 = vld [vmem:[#allocation2 + $0x68] sm:$0xff]
      %v620 = vld [vmem:[#allocation2 + $0x80] sm:$0xff]
      %v621 = vld [vmem:[#allocation2 + $0x88] sm:$0xff]
      %v622 = vld [vmem:[#allocation2 + $0xa0] sm:$0xff]
      %v623 = vld [vmem:[#allocation2 + $0xa8] sm:$0xff]
      %v624 = vld [vmem:[#allocation2 + $0xc0] sm:$0xff]
      %v625 = vld [vmem:[#allocation2 + $0xc8] sm:$0xff]
      %v626 = vld [vmem:[#allocation2 + $0xe0] sm:$0xff]
      %v627 = vld [vmem:[#allocation2 + $0xe8] sm:$0xff]
      %v628 = vld [vmem:[#allocation2 + $0x100] sm:$0xff]
      %v629 = vld [vmem:[#allocation2 + $0x108] sm:$0xff]
      %v630 = vld [vmem:[#allocation2 + $0x120] sm:$0xff]
      %v631 = vld [vmem:[#allocation2 + $0x128] sm:$0xff]
      %v632 = vld [vmem:[#allocation2 + $0x140] sm:$0xff]
      %v633 = vld [vmem:[#allocation2 + $0x148] sm:$0xff]
      %v634 = vld [vmem:[#allocation2 + $0x160] sm:$0xff]
      %v635 = vld [vmem:[#allocation2 + $0x168] sm:$0xff]
      %v636 = vld [vmem:[#allocation2 + $0x180] sm:$0xff]
      %v637 = vld [vmem:[#allocation2 + $0x188] sm:$0xff]
      %v638 = vld [vmem:[#allocation2 + $0x1a0] sm:$0xff]
      %v639 = vld [vmem:[#allocation2 + $0x1a8] sm:$0xff]
      %v640 = vld [vmem:[#allocation2 + $0x1c0] sm:$0xff]
      %v641 = vld [vmem:[#allocation2 + $0x1c8] sm:$0xff]
      %v642 = vld [vmem:[#allocation2 + $0x1e0] sm:$0xff]
      %v643 = vld [vmem:[#allocation2 + $0x1e8] sm:$0xff]
      %v644 = vld [vmem:[#allocation2 + $0x1] sm:$0xff]
      %v645 = vld [vmem:[#allocation2 + $0x9] sm:$0xff]
      %v646 = vld [vmem:[#allocation2 + $0x21] sm:$0xff]
      %v647 = vld [vmem:[#allocation2 + $0x29] sm:$0xff]
      %v648 = vld [vmem:[#allocation2 + $0x41] sm:$0xff]
      %v649 = vld [vmem:[#allocation2 + $0x49] sm:$0xff]
      %v650 = vld [vmem:[#allocation2 + $0x61] sm:$0xff]
      %v651 = vld [vmem:[#allocation2 + $0x69] sm:$0xff]
      %v652 = vld [vmem:[#allocation2 + $0x81] sm:$0xff]
      %v653 = vld [vmem:[#allocation2 + $0x89] sm:$0xff]
      %v654 = vld [vmem:[#allocation2 + $0xa1] sm:$0xff]
      %v655 = vld [vmem:[#allocation2 + $0xa9] sm:$0xff]
      %v656 = vld [vmem:[#allocation2 + $0xc1] sm:$0xff]
      %v657 = vld [vmem:[#allocation2 + $0xc9] sm:$0xff]
      %v658 = vld [vmem:[#allocation2 + $0xe1] sm:$0xff]
      %v659 = vld [vmem:[#allocation2 + $0xe9] sm:$0xff]
      %v660 = vld [vmem:[#allocation2 + $0x101] sm:$0xff]
      %v661 = vld [vmem:[#allocation2 + $0x109] sm:$0xff]
      %v662 = vld [vmem:[#allocation2 + $0x121] sm:$0xff]
      %v663 = vld [vmem:[#allocation2 + $0x129] sm:$0xff]
      %v664 = vld [vmem:[#allocation2 + $0x141] sm:$0xff]
      %v665 = vld [vmem:[#allocation2 + $0x149] sm:$0xff]
      %v666 = vld [vmem:[#allocation2 + $0x161] sm:$0xff]
      %v667 = vld [vmem:[#allocation2 + $0x169] sm:$0xff]
      %v668 = vld [vmem:[#allocation2 + $0x181] sm:$0xff]
      %v669 = vld [vmem:[#allocation2 + $0x189] sm:$0xff]
      %v670 = vld [vmem:[#allocation2 + $0x1a1] sm:$0xff]
      %v671 = vld [vmem:[#allocation2 + $0x1a9] sm:$0xff]
      %v672 = vld [vmem:[#allocation2 + $0x1c1] sm:$0xff]
      %v673 = vld [vmem:[#allocation2 + $0x1c9] sm:$0xff]
      %v674 = vld [vmem:[#allocation2 + $0x1e1] sm:$0xff]
      %v675 = vld [vmem:[#allocation2 + $0x1e9] sm:$0xff]
      %v676 = vld [vmem:[#allocation2 + $0x2] sm:$0xff]
      %v677 = vld [vmem:[#allocation2 + $0xa] sm:$0xff]
      %v678 = vld [vmem:[#allocation2 + $0x22] sm:$0xff]
      %v679 = vld [vmem:[#allocation2 + $0x2a] sm:$0xff]
      %v680 = vld [vmem:[#allocation2 + $0x42] sm:$0xff]
      %v681 = vld [vmem:[#allocation2 + $0x4a] sm:$0xff]
      %v682 = vld [vmem:[#allocation2 + $0x62] sm:$0xff]
      %v683 = vld [vmem:[#allocation2 + $0x6a] sm:$0xff]
      %v684 = vld [vmem:[#allocation2 + $0x82] sm:$0xff]
      %v685 = vld [vmem:[#allocation2 + $0x8a] sm:$0xff]
      %v686 = vld [vmem:[#allocation2 + $0xa2] sm:$0xff]
      %v687 = vld [vmem:[#allocation2 + $0xaa] sm:$0xff]
      %v688 = vld [vmem:[#allocation2 + $0xc2] sm:$0xff]
      %v689 = vld [vmem:[#allocation2 + $0xca] sm:$0xff]
      %v690 = vld [vmem:[#allocation2 + $0xe2] sm:$0xff]
      %v691 = vld [vmem:[#allocation2 + $0xea] sm:$0xff]
      %v692 = vld [vmem:[#allocation2 + $0x102] sm:$0xff]
      %v693 = vld [vmem:[#allocation2 + $0x10a] sm:$0xff]
      %v694 = vld [vmem:[#allocation2 + $0x122] sm:$0xff]
      %v695 = vld [vmem:[#allocation2 + $0x12a] sm:$0xff]
      %v696 = vld [vmem:[#allocation2 + $0x142] sm:$0xff]
      %v697 = vld [vmem:[#allocation2 + $0x14a] sm:$0xff]
      %v698 = vld [vmem:[#allocation2 + $0x162] sm:$0xff]
      %v699 = vld [vmem:[#allocation2 + $0x16a] sm:$0xff]
      %v700 = vld [vmem:[#allocation2 + $0x182] sm:$0xff]
      %v701 = vld [vmem:[#allocation2 + $0x18a] sm:$0xff]
      %v702 = vld [vmem:[#allocation2 + $0x1a2] sm:$0xff]
      %v703 = vld [vmem:[#allocation2 + $0x1aa] sm:$0xff]
      %v704 = vld [vmem:[#allocation2 + $0x1c2] sm:$0xff]
      %v705 = vld [vmem:[#allocation2 + $0x1ca] sm:$0xff]
      %v706 = vld [vmem:[#allocation2 + $0x1e2] sm:$0xff]
      %v707 = vld [vmem:[#allocation2 + $0x1ea] sm:$0xff]
      %v708 = vld [vmem:[%s579] sm:$0xff]
      %v709 = vld [vmem:[%s579 + $0x8] sm:$0xff]
      %v710 = vld [vmem:[%s579 + $0x20] sm:$0xff]
      %v711 = vld [vmem:[%s579 + $0x28] sm:$0xff]
      %v712 = vld [vmem:[%s579 + $0x40] sm:$0xff]
      %v713 = vld [vmem:[%s579 + $0x48] sm:$0xff]
      %v714 = vld [vmem:[%s579 + $0x60] sm:$0xff]
      %v715 = vld [vmem:[%s579 + $0x68] sm:$0xff]
      %v716 = vld [vmem:[%s579 + $0x80] sm:$0xff]
      %v717 = vld [vmem:[%s579 + $0x88] sm:$0xff]
      %v718 = vld [vmem:[%s579 + $0xa0] sm:$0xff]
      %v719 = vld [vmem:[%s579 + $0xa8] sm:$0xff]
      %v720 = vld [vmem:[%s579 + $0xc0] sm:$0xff]
      %v721 = vld [vmem:[%s579 + $0xc8] sm:$0xff]
      %v722 = vld [vmem:[%s579 + $0xe0] sm:$0xff]
      %v723 = vld [vmem:[%s579 + $0xe8] sm:$0xff]
      %v724 = vld [vmem:[%s579 + $0x100] sm:$0xff]
      %v725 = vld [vmem:[%s579 + $0x108] sm:$0xff]
      %v726 = vld [vmem:[%s579 + $0x120] sm:$0xff]
      %v727 = vld [vmem:[%s579 + $0x128] sm:$0xff]
      %v728 = vld [vmem:[%s579 + $0x140] sm:$0xff]
      %v729 = vld [vmem:[%s579 + $0x148] sm:$0xff]
      %v730 = vld [vmem:[%s579 + $0x160] sm:$0xff]
      %v731 = vld [vmem:[%s579 + $0x168] sm:$0xff]
      %v732 = vld [vmem:[%s579 + $0x180] sm:$0xff]
      %v733 = vld [vmem:[%s579 + $0x188] sm:$0xff]
      %v734 = vld [vmem:[%s579 + $0x1a0] sm:$0xff]
      %v735 = vld [vmem:[%s579 + $0x1a8] sm:$0xff]
      %v736 = vld [vmem:[%s579 + $0x1c0] sm:$0xff]
      %v737 = vld [vmem:[%s579 + $0x1c8] sm:$0xff]
      %v738 = vld [vmem:[%s579 + $0x1e0] sm:$0xff]
      %v739 = vld [vmem:[%s579 + $0x1e8] sm:$0xff]
      %v740 = vld [vmem:[%s579 + $0x1] sm:$0xff]
      %v741 = vld [vmem:[%s579 + $0x9] sm:$0xff]
      %v742 = vld [vmem:[%s579 + $0x21] sm:$0xff]
      %v743 = vld [vmem:[%s579 + $0x29] sm:$0xff]
      %v744 = vld [vmem:[%s579 + $0x41] sm:$0xff]
      %v745 = vld [vmem:[%s579 + $0x49] sm:$0xff]
      %v746 = vld [vmem:[%s579 + $0x61] sm:$0xff]
      %v747 = vld [vmem:[%s579 + $0x69] sm:$0xff]
      %v748 = vld [vmem:[%s579 + $0x81] sm:$0xff]
      %v749 = vld [vmem:[%s579 + $0x89] sm:$0xff]
      %v750 = vld [vmem:[%s579 + $0xa1] sm:$0xff]
      %v751 = vld [vmem:[%s579 + $0xa9] sm:$0xff]
      %v752 = vld [vmem:[%s579 + $0xc1] sm:$0xff]
      %v753 = vld [vmem:[%s579 + $0xc9] sm:$0xff]
      %v754 = vld [vmem:[%s579 + $0xe1] sm:$0xff]
      %v755 = vld [vmem:[%s579 + $0xe9] sm:$0xff]
      %v756 = vld [vmem:[%s579 + $0x101] sm:$0xff]
      %v757 = vld [vmem:[%s579 + $0x109] sm:$0xff]
      %v758 = vld [vmem:[%s579 + $0x121] sm:$0xff]
      %v759 = vld [vmem:[%s579 + $0x129] sm:$0xff]
      %v760 = vld [vmem:[%s579 + $0x141] sm:$0xff]
      %v761 = vld [vmem:[%s579 + $0x149] sm:$0xff]
      %v762 = vld [vmem:[%s579 + $0x161] sm:$0xff]
      %v763 = vld [vmem:[%s579 + $0x169] sm:$0xff]
      %v764 = vld [vmem:[%s579 + $0x181] sm:$0xff]
      %v765 = vld [vmem:[%s579 + $0x189] sm:$0xff]
      %v766 = vld [vmem:[%s579 + $0x1a1] sm:$0xff]
      %v767 = vld [vmem:[%s579 + $0x1a9] sm:$0xff]
      %v768 = vld [vmem:[%s579 + $0x1c1] sm:$0xff]
      %v769 = vld [vmem:[%s579 + $0x1c9] sm:$0xff]
      %v770 = vld [vmem:[%s579 + $0x1e1] sm:$0xff]
      %v771 = vld [vmem:[%s579 + $0x1e9] sm:$0xff]
      %v772 = vld [vmem:[%s579 + $0x2] sm:$0xff]
      %v773 = vld [vmem:[%s579 + $0xa] sm:$0xff]
      %v774 = vld [vmem:[%s579 + $0x22] sm:$0xff]
      %v775 = vld [vmem:[%s579 + $0x2a] sm:$0xff]
      %v776 = vld [vmem:[%s579 + $0x42] sm:$0xff]
      %v777 = vld [vmem:[%s579 + $0x4a] sm:$0xff]
      %v778 = vld [vmem:[%s579 + $0x62] sm:$0xff]
      %v779 = vld [vmem:[%s579 + $0x6a] sm:$0xff]
      %v780 = vld [vmem:[%s579 + $0x82] sm:$0xff]
      %v781 = vld [vmem:[%s579 + $0x8a] sm:$0xff]
      %v782 = vld [vmem:[%s579 + $0xa2] sm:$0xff]
      %v783 = vld [vmem:[%s579 + $0xaa] sm:$0xff]
      %v784 = vld [vmem:[%s579 + $0xc2] sm:$0xff]
      %v785 = vld [vmem:[%s579 + $0xca] sm:$0xff]
      %v786 = vld [vmem:[%s579 + $0xe2] sm:$0xff]
      %v787 = vld [vmem:[%s579 + $0xea] sm:$0xff]
      %v788 = vld [vmem:[%s579 + $0x102] sm:$0xff]
      %v789 = vld [vmem:[%s579 + $0x10a] sm:$0xff]
      %v790 = vld [vmem:[%s579 + $0x122] sm:$0xff]
      %v791 = vld [vmem:[%s579 + $0x12a] sm:$0xff]
      %v792 = vld [vmem:[%s579 + $0x142] sm:$0xff]
      %v793 = vld [vmem:[%s579 + $0x14a] sm:$0xff]
      %v794 = vld [vmem:[%s579 + $0x162] sm:$0xff]
      %v795 = vld [vmem:[%s579 + $0x16a] sm:$0xff]
      %v796 = vld [vmem:[%s579 + $0x182] sm:$0xff]
      %v797 = vld [vmem:[%s579 + $0x18a] sm:$0xff]
      %v798 = vld [vmem:[%s579 + $0x1a2] sm:$0xff]
      %v799 = vld [vmem:[%s579 + $0x1aa] sm:$0xff]
      %v800 = vld [vmem:[%s579 + $0x1c2] sm:$0xff]
      %v801 = vld [vmem:[%s579 + $0x1ca] sm:$0xff]
      %v802 = vld [vmem:[%s579 + $0x1e2] sm:$0xff]
      %v803 = vld [vmem:[%s579 + $0x1ea] sm:$0xff]
      %s804 = scalar_lea.vmem [#allocation2], 64
      %v805 = vld [vmem:[%s804] sm:$0xff]
      %v806 = vld [vmem:[%s804 + $0x8] sm:$0xff]
      %v807 = vld [vmem:[%s804 + $0x20] sm:$0xff]
      %v808 = vld [vmem:[%s804 + $0x28] sm:$0xff]
      %v809 = vld [vmem:[%s804 + $0x40] sm:$0xff]
      %v810 = vld [vmem:[%s804 + $0x48] sm:$0xff]
      %v811 = vld [vmem:[%s804 + $0x60] sm:$0xff]
      %v812 = vld [vmem:[%s804 + $0x68] sm:$0xff]
      %v813 = vld [vmem:[%s804 + $0x80] sm:$0xff]
      %v814 = vld [vmem:[%s804 + $0x88] sm:$0xff]
      %v815 = vld [vmem:[%s804 + $0xa0] sm:$0xff]
      %v816 = vld [vmem:[%s804 + $0xa8] sm:$0xff]
      %v817 = vld [vmem:[%s804 + $0xc0] sm:$0xff]
      %v818 = vld [vmem:[%s804 + $0xc8] sm:$0xff]
      %v819 = vld [vmem:[%s804 + $0xe0] sm:$0xff]
      %v820 = vld [vmem:[%s804 + $0xe8] sm:$0xff]
      %v821 = vld [vmem:[%s804 + $0x100] sm:$0xff]
      %v822 = vld [vmem:[%s804 + $0x108] sm:$0xff]
      %v823 = vld [vmem:[%s804 + $0x120] sm:$0xff]
      %v824 = vld [vmem:[%s804 + $0x128] sm:$0xff]
      %v825 = vld [vmem:[%s804 + $0x140] sm:$0xff]
      %v826 = vld [vmem:[%s804 + $0x148] sm:$0xff]
      %v827 = vld [vmem:[%s804 + $0x160] sm:$0xff]
      %v828 = vld [vmem:[%s804 + $0x168] sm:$0xff]
      %v829 = vld [vmem:[%s804 + $0x180] sm:$0xff]
      %v830 = vld [vmem:[%s804 + $0x188] sm:$0xff]
      %v831 = vld [vmem:[%s804 + $0x1a0] sm:$0xff]
      %v832 = vld [vmem:[%s804 + $0x1a8] sm:$0xff]
      %v833 = vld [vmem:[%s804 + $0x1c0] sm:$0xff]
      %v834 = vld [vmem:[%s804 + $0x1c8] sm:$0xff]
      %v835 = vld [vmem:[%s804 + $0x1e0] sm:$0xff]
      %v836 = vld [vmem:[%s804 + $0x1e8] sm:$0xff]
      %v837 = vld [vmem:[%s804 + $0x1] sm:$0xff]
      %v838 = vld [vmem:[%s804 + $0x9] sm:$0xff]
      %v839 = vld [vmem:[%s804 + $0x21] sm:$0xff]
      %v840 = vld [vmem:[%s804 + $0x29] sm:$0xff]
      %v841 = vld [vmem:[%s804 + $0x41] sm:$0xff]
      %v842 = vld [vmem:[%s804 + $0x49] sm:$0xff]
      %v843 = vld [vmem:[%s804 + $0x61] sm:$0xff]
      %v844 = vld [vmem:[%s804 + $0x69] sm:$0xff]
      %v845 = vld [vmem:[%s804 + $0x81] sm:$0xff]
      %v846 = vld [vmem:[%s804 + $0x89] sm:$0xff]
      %v847 = vld [vmem:[%s804 + $0xa1] sm:$0xff]
      %v848 = vld [vmem:[%s804 + $0xa9] sm:$0xff]
      %v849 = vld [vmem:[%s804 + $0xc1] sm:$0xff]
      %v850 = vld [vmem:[%s804 + $0xc9] sm:$0xff]
      %v851 = vld [vmem:[%s804 + $0xe1] sm:$0xff]
      %v852 = vld [vmem:[%s804 + $0xe9] sm:$0xff]
      %v853 = vld [vmem:[%s804 + $0x101] sm:$0xff]
      %v854 = vld [vmem:[%s804 + $0x109] sm:$0xff]
      %v855 = vld [vmem:[%s804 + $0x121] sm:$0xff]
      %v856 = vld [vmem:[%s804 + $0x129] sm:$0xff]
      %v857 = vld [vmem:[%s804 + $0x141] sm:$0xff]
      %v858 = vld [vmem:[%s804 + $0x149] sm:$0xff]
      %v859 = vld [vmem:[%s804 + $0x161] sm:$0xff]
      %v860 = vld [vmem:[%s804 + $0x169] sm:$0xff]
      %v861 = vld [vmem:[%s804 + $0x181] sm:$0xff]
      %v862 = vld [vmem:[%s804 + $0x189] sm:$0xff]
      %v863 = vld [vmem:[%s804 + $0x1a1] sm:$0xff]
      %v864 = vld [vmem:[%s804 + $0x1a9] sm:$0xff]
      %v865 = vld [vmem:[%s804 + $0x1c1] sm:$0xff]
      %v866 = vld [vmem:[%s804 + $0x1c9] sm:$0xff]
      %v867 = vld [vmem:[%s804 + $0x1e1] sm:$0xff]
      %v868 = vld [vmem:[%s804 + $0x1e9] sm:$0xff]
      %v869 = vld [vmem:[%s804 + $0x2] sm:$0xff]
      %v870 = vld [vmem:[%s804 + $0xa] sm:$0xff]
      %v871 = vld [vmem:[%s804 + $0x22] sm:$0xff]
      %v872 = vld [vmem:[%s804 + $0x2a] sm:$0xff]
      %v873 = vld [vmem:[%s804 + $0x42] sm:$0xff]
      %v874 = vld [vmem:[%s804 + $0x4a] sm:$0xff]
      %v875 = vld [vmem:[%s804 + $0x62] sm:$0xff]
      %v876 = vld [vmem:[%s804 + $0x6a] sm:$0xff]
      %v877 = vld [vmem:[%s804 + $0x82] sm:$0xff]
      %v878 = vld [vmem:[%s804 + $0x8a] sm:$0xff]
      %v879 = vld [vmem:[%s804 + $0xa2] sm:$0xff]
      %v880 = vld [vmem:[%s804 + $0xaa] sm:$0xff]
      %v881 = vld [vmem:[%s804 + $0xc2] sm:$0xff]
      %v882 = vld [vmem:[%s804 + $0xca] sm:$0xff]
      %v883 = vld [vmem:[%s804 + $0xe2] sm:$0xff]
      %v884 = vld [vmem:[%s804 + $0xea] sm:$0xff]
      %v885 = vld [vmem:[%s804 + $0x102] sm:$0xff]
      %v886 = vld [vmem:[%s804 + $0x10a] sm:$0xff]
      %v887 = vld [vmem:[%s804 + $0x122] sm:$0xff]
      %v888 = vld [vmem:[%s804 + $0x12a] sm:$0xff]
      %v889 = vld [vmem:[%s804 + $0x142] sm:$0xff]
      %v890 = vld [vmem:[%s804 + $0x14a] sm:$0xff]
      %v891 = vld [vmem:[%s804 + $0x162] sm:$0xff]
      %v892 = vld [vmem:[%s804 + $0x16a] sm:$0xff]
      %v893 = vld [vmem:[%s804 + $0x182] sm:$0xff]
      %v894 = vld [vmem:[%s804 + $0x18a] sm:$0xff]
      %v895 = vld [vmem:[%s804 + $0x1a2] sm:$0xff]
      %v896 = vld [vmem:[%s804 + $0x1aa] sm:$0xff]
      %v897 = vld [vmem:[%s804 + $0x1c2] sm:$0xff]
      %v898 = vld [vmem:[%s804 + $0x1ca] sm:$0xff]
      %v899 = vld [vmem:[%s804 + $0x1e2] sm:$0xff]
      %v900 = vld [vmem:[%s804 + $0x1ea] sm:$0xff]
      %933 = vrot.lane.b32.xlu0 %v644, 8
      %v934 = vpop.permute.xlu0 %933
      %935 = vrot.lane.b32.xlu0 %v645, 8
      %v936 = vpop.permute.xlu0 %935
      %937 = vrot.lane.b32.xlu0 %v646, 8
      %v938 = vpop.permute.xlu0 %937
      %939 = vrot.lane.b32.xlu0 %v647, 8
      %v940 = vpop.permute.xlu0 %939
      %941 = vrot.lane.b32.xlu0 %v648, 8
      %v942 = vpop.permute.xlu0 %941
      %943 = vrot.lane.b32.xlu0 %v649, 8
      %v944 = vpop.permute.xlu0 %943
      %945 = vrot.lane.b32.xlu0 %v650, 8
      %v946 = vpop.permute.xlu0 %945
      %947 = vrot.lane.b32.xlu0 %v651, 8
      %v948 = vpop.permute.xlu0 %947
      %949 = vrot.lane.b32.xlu0 %v652, 8
      %v950 = vpop.permute.xlu0 %949
      %951 = vrot.lane.b32.xlu0 %v653, 8
      %v952 = vpop.permute.xlu0 %951
      %953 = vrot.lane.b32.xlu0 %v654, 8
      %v954 = vpop.permute.xlu0 %953
      %955 = vrot.lane.b32.xlu0 %v655, 8
      %v956 = vpop.permute.xlu0 %955
      %957 = vrot.lane.b32.xlu0 %v656, 8
      %v958 = vpop.permute.xlu0 %957
      %959 = vrot.lane.b32.xlu0 %v657, 8
      %v960 = vpop.permute.xlu0 %959
      %961 = vrot.lane.b32.xlu0 %v658, 8
      %v962 = vpop.permute.xlu0 %961
      %963 = vrot.lane.b32.xlu0 %v659, 8
      %v964 = vpop.permute.xlu0 %963
      %965 = vrot.lane.b32.xlu0 %v660, 8
      %v966 = vpop.permute.xlu0 %965
      %967 = vrot.lane.b32.xlu0 %v661, 8
      %v968 = vpop.permute.xlu0 %967
      %969 = vrot.lane.b32.xlu0 %v662, 8
      %v970 = vpop.permute.xlu0 %969
      %971 = vrot.lane.b32.xlu0 %v663, 8
      %v972 = vpop.permute.xlu0 %971
      %973 = vrot.lane.b32.xlu0 %v664, 8
      %v974 = vpop.permute.xlu0 %973
      %975 = vrot.lane.b32.xlu0 %v665, 8
      %v976 = vpop.permute.xlu0 %975
      %977 = vrot.lane.b32.xlu0 %v666, 8
      %v978 = vpop.permute.xlu0 %977
      %979 = vrot.lane.b32.xlu0 %v667, 8
      %v980 = vpop.permute.xlu0 %979
      %981 = vrot.lane.b32.xlu0 %v668, 8
      %v982 = vpop.permute.xlu0 %981
      %983 = vrot.lane.b32.xlu0 %v669, 8
      %v984 = vpop.permute.xlu0 %983
      %985 = vrot.lane.b32.xlu0 %v670, 8
      %v986 = vpop.permute.xlu0 %985
      %987 = vrot.lane.b32.xlu0 %v671, 8
      %v988 = vpop.permute.xlu0 %987
      %989 = vrot.lane.b32.xlu0 %v672, 8
      %v990 = vpop.permute.xlu0 %989
      %991 = vrot.lane.b32.xlu0 %v673, 8
      %v992 = vpop.permute.xlu0 %991
      %993 = vrot.lane.b32.xlu0 %v674, 8
      %v994 = vpop.permute.xlu0 %993
      %995 = vrot.lane.b32.xlu0 %v675, 8
      %v996 = vpop.permute.xlu0 %995
      %1061 = vrot.lane.b32.xlu0 %v676, 16
      %v1062 = vpop.permute.xlu0 %1061
      %1063 = vrot.lane.b32.xlu0 %v677, 16
      %v1064 = vpop.permute.xlu0 %1063
      %1065 = vrot.lane.b32.xlu0 %v678, 16
      %v1066 = vpop.permute.xlu0 %1065
      %1067 = vrot.lane.b32.xlu0 %v679, 16
      %v1068 = vpop.permute.xlu0 %1067
      %1069 = vrot.lane.b32.xlu0 %v680, 16
      %v1070 = vpop.permute.xlu0 %1069
      %1071 = vrot.lane.b32.xlu0 %v681, 16
      %v1072 = vpop.permute.xlu0 %1071
      %1073 = vrot.lane.b32.xlu0 %v682, 16
      %v1074 = vpop.permute.xlu0 %1073
      %1075 = vrot.lane.b32.xlu0 %v683, 16
      %v1076 = vpop.permute.xlu0 %1075
      %1077 = vrot.lane.b32.xlu0 %v684, 16
      %v1078 = vpop.permute.xlu0 %1077
      %1079 = vrot.lane.b32.xlu0 %v685, 16
      %v1080 = vpop.permute.xlu0 %1079
      %1081 = vrot.lane.b32.xlu0 %v686, 16
      %v1082 = vpop.permute.xlu0 %1081
      %1083 = vrot.lane.b32.xlu0 %v687, 16
      %v1084 = vpop.permute.xlu0 %1083
      %1085 = vrot.lane.b32.xlu0 %v688, 16
      %v1086 = vpop.permute.xlu0 %1085
      %1087 = vrot.lane.b32.xlu0 %v689, 16
      %v1088 = vpop.permute.xlu0 %1087
      %1089 = vrot.lane.b32.xlu0 %v690, 16
      %v1090 = vpop.permute.xlu0 %1089
      %1091 = vrot.lane.b32.xlu0 %v691, 16
      %v1092 = vpop.permute.xlu0 %1091
      %1093 = vrot.lane.b32.xlu0 %v692, 16
      %v1094 = vpop.permute.xlu0 %1093
      %1095 = vrot.lane.b32.xlu0 %v693, 16
      %v1096 = vpop.permute.xlu0 %1095
      %1097 = vrot.lane.b32.xlu0 %v694, 16
      %v1098 = vpop.permute.xlu0 %1097
      %1099 = vrot.lane.b32.xlu0 %v695, 16
      %v1100 = vpop.permute.xlu0 %1099
      %1101 = vrot.lane.b32.xlu0 %v696, 16
      %v1102 = vpop.permute.xlu0 %1101
      %1103 = vrot.lane.b32.xlu0 %v697, 16
      %v1104 = vpop.permute.xlu0 %1103
      %1105 = vrot.lane.b32.xlu0 %v698, 16
      %v1106 = vpop.permute.xlu0 %1105
      %1107 = vrot.lane.b32.xlu0 %v699, 16
      %v1108 = vpop.permute.xlu0 %1107
      %1109 = vrot.lane.b32.xlu0 %v700, 16
      %v1110 = vpop.permute.xlu0 %1109
      %1111 = vrot.lane.b32.xlu0 %v701, 16
      %v1112 = vpop.permute.xlu0 %1111
      %1113 = vrot.lane.b32.xlu0 %v702, 16
      %v1114 = vpop.permute.xlu0 %1113
      %1115 = vrot.lane.b32.xlu0 %v703, 16
      %v1116 = vpop.permute.xlu0 %1115
      %1117 = vrot.lane.b32.xlu0 %v704, 16
      %v1118 = vpop.permute.xlu0 %1117
      %1119 = vrot.lane.b32.xlu0 %v705, 16
      %v1120 = vpop.permute.xlu0 %1119
      %1121 = vrot.lane.b32.xlu0 %v706, 16
      %v1122 = vpop.permute.xlu0 %1121
      %1123 = vrot.lane.b32.xlu0 %v707, 16
      %v1124 = vpop.permute.xlu0 %1123
      %1189 = vrot.lane.b32.xlu0 %v708, 24
      %v1190 = vpop.permute.xlu0 %1189
      %1191 = vrot.lane.b32.xlu0 %v709, 24
      %v1192 = vpop.permute.xlu0 %1191
      %1193 = vrot.lane.b32.xlu0 %v710, 24
      %v1194 = vpop.permute.xlu0 %1193
      %1195 = vrot.lane.b32.xlu0 %v711, 24
      %v1196 = vpop.permute.xlu0 %1195
      %1197 = vrot.lane.b32.xlu0 %v712, 24
      %v1198 = vpop.permute.xlu0 %1197
      %1199 = vrot.lane.b32.xlu0 %v713, 24
      %v1200 = vpop.permute.xlu0 %1199
      %1201 = vrot.lane.b32.xlu0 %v714, 24
      %v1202 = vpop.permute.xlu0 %1201
      %1203 = vrot.lane.b32.xlu0 %v715, 24
      %v1204 = vpop.permute.xlu0 %1203
      %1205 = vrot.lane.b32.xlu0 %v716, 24
      %v1206 = vpop.permute.xlu0 %1205
      %1207 = vrot.lane.b32.xlu0 %v717, 24
      %v1208 = vpop.permute.xlu0 %1207
      %1209 = vrot.lane.b32.xlu0 %v718, 24
      %v1210 = vpop.permute.xlu0 %1209
      %1211 = vrot.lane.b32.xlu0 %v719, 24
      %v1212 = vpop.permute.xlu0 %1211
      %1213 = vrot.lane.b32.xlu0 %v720, 24
      %v1214 = vpop.permute.xlu0 %1213
      %1215 = vrot.lane.b32.xlu0 %v721, 24
      %v1216 = vpop.permute.xlu0 %1215
      %1217 = vrot.lane.b32.xlu0 %v722, 24
      %v1218 = vpop.permute.xlu0 %1217
      %1219 = vrot.lane.b32.xlu0 %v723, 24
      %v1220 = vpop.permute.xlu0 %1219
      %1221 = vrot.lane.b32.xlu0 %v724, 24
      %v1222 = vpop.permute.xlu0 %1221
      %1223 = vrot.lane.b32.xlu0 %v725, 24
      %v1224 = vpop.permute.xlu0 %1223
      %1225 = vrot.lane.b32.xlu0 %v726, 24
      %v1226 = vpop.permute.xlu0 %1225
      %1227 = vrot.lane.b32.xlu0 %v727, 24
      %v1228 = vpop.permute.xlu0 %1227
      %1229 = vrot.lane.b32.xlu0 %v728, 24
      %v1230 = vpop.permute.xlu0 %1229
      %1231 = vrot.lane.b32.xlu0 %v729, 24
      %v1232 = vpop.permute.xlu0 %1231
      %1233 = vrot.lane.b32.xlu0 %v730, 24
      %v1234 = vpop.permute.xlu0 %1233
      %1235 = vrot.lane.b32.xlu0 %v731, 24
      %v1236 = vpop.permute.xlu0 %1235
      %1237 = vrot.lane.b32.xlu0 %v732, 24
      %v1238 = vpop.permute.xlu0 %1237
      %1239 = vrot.lane.b32.xlu0 %v733, 24
      %v1240 = vpop.permute.xlu0 %1239
      %1241 = vrot.lane.b32.xlu0 %v734, 24
      %v1242 = vpop.permute.xlu0 %1241
      %1243 = vrot.lane.b32.xlu0 %v735, 24
      %v1244 = vpop.permute.xlu0 %1243
      %1245 = vrot.lane.b32.xlu0 %v736, 24
      %v1246 = vpop.permute.xlu0 %1245
      %1247 = vrot.lane.b32.xlu0 %v737, 24
      %v1248 = vpop.permute.xlu0 %1247
      %1249 = vrot.lane.b32.xlu0 %v738, 24
      %v1250 = vpop.permute.xlu0 %1249
      %1251 = vrot.lane.b32.xlu0 %v739, 24
      %v1252 = vpop.permute.xlu0 %1251
      %1317 = vrot.lane.b32.xlu0 %v740, 32
      %v1318 = vpop.permute.xlu0 %1317
      %1319 = vrot.lane.b32.xlu0 %v741, 32
      %v1320 = vpop.permute.xlu0 %1319
      %1321 = vrot.lane.b32.xlu0 %v742, 32
      %v1322 = vpop.permute.xlu0 %1321
      %1323 = vrot.lane.b32.xlu0 %v743, 32
      %v1324 = vpop.permute.xlu0 %1323
      %1325 = vrot.lane.b32.xlu0 %v744, 32
      %v1326 = vpop.permute.xlu0 %1325
      %1327 = vrot.lane.b32.xlu0 %v745, 32
      %v1328 = vpop.permute.xlu0 %1327
      %1329 = vrot.lane.b32.xlu0 %v746, 32
      %v1330 = vpop.permute.xlu0 %1329
      %1331 = vrot.lane.b32.xlu0 %v747, 32
      %v1332 = vpop.permute.xlu0 %1331
      %1333 = vrot.lane.b32.xlu0 %v748, 32
      %v1334 = vpop.permute.xlu0 %1333
      %1335 = vrot.lane.b32.xlu0 %v749, 32
      %v1336 = vpop.permute.xlu0 %1335
      %1337 = vrot.lane.b32.xlu0 %v750, 32
      %v1338 = vpop.permute.xlu0 %1337
      %1339 = vrot.lane.b32.xlu0 %v751, 32
      %v1340 = vpop.permute.xlu0 %1339
      %1341 = vrot.lane.b32.xlu0 %v752, 32
      %v1342 = vpop.permute.xlu0 %1341
      %1343 = vrot.lane.b32.xlu0 %v753, 32
      %v1344 = vpop.permute.xlu0 %1343
      %1345 = vrot.lane.b32.xlu0 %v754, 32
      %v1346 = vpop.permute.xlu0 %1345
      %1347 = vrot.lane.b32.xlu0 %v755, 32
      %v1348 = vpop.permute.xlu0 %1347
      %1349 = vrot.lane.b32.xlu0 %v756, 32
      %v1350 = vpop.permute.xlu0 %1349
      %1351 = vrot.lane.b32.xlu0 %v757, 32
      %v1352 = vpop.permute.xlu0 %1351
      %1353 = vrot.lane.b32.xlu0 %v758, 32
      %v1354 = vpop.permute.xlu0 %1353
      %1355 = vrot.lane.b32.xlu0 %v759, 32
      %v1356 = vpop.permute.xlu0 %1355
      %1357 = vrot.lane.b32.xlu0 %v760, 32
      %v1358 = vpop.permute.xlu0 %1357
      %1359 = vrot.lane.b32.xlu0 %v761, 32
      %v1360 = vpop.permute.xlu0 %1359
      %1361 = vrot.lane.b32.xlu0 %v762, 32
      %v1362 = vpop.permute.xlu0 %1361
      %1363 = vrot.lane.b32.xlu0 %v763, 32
      %v1364 = vpop.permute.xlu0 %1363
      %1365 = vrot.lane.b32.xlu0 %v764, 32
      %v1366 = vpop.permute.xlu0 %1365
      %1367 = vrot.lane.b32.xlu0 %v765, 32
      %v1368 = vpop.permute.xlu0 %1367
      %1369 = vrot.lane.b32.xlu0 %v766, 32
      %v1370 = vpop.permute.xlu0 %1369
      %1371 = vrot.lane.b32.xlu0 %v767, 32
      %v1372 = vpop.permute.xlu0 %1371
      %1373 = vrot.lane.b32.xlu0 %v768, 32
      %v1374 = vpop.permute.xlu0 %1373
      %1375 = vrot.lane.b32.xlu0 %v769, 32
      %v1376 = vpop.permute.xlu0 %1375
      %1377 = vrot.lane.b32.xlu0 %v770, 32
      %v1378 = vpop.permute.xlu0 %1377
      %1379 = vrot.lane.b32.xlu0 %v771, 32
      %v1380 = vpop.permute.xlu0 %1379
      %1445 = vrot.lane.b32.xlu0 %v772, 40
      %v1446 = vpop.permute.xlu0 %1445
      %1447 = vrot.lane.b32.xlu0 %v773, 40
      %v1448 = vpop.permute.xlu0 %1447
      %1449 = vrot.lane.b32.xlu0 %v774, 40
      %v1450 = vpop.permute.xlu0 %1449
      %1451 = vrot.lane.b32.xlu0 %v775, 40
      %v1452 = vpop.permute.xlu0 %1451
      %1453 = vrot.lane.b32.xlu0 %v776, 40
      %v1454 = vpop.permute.xlu0 %1453
      %1455 = vrot.lane.b32.xlu0 %v777, 40
      %v1456 = vpop.permute.xlu0 %1455
      %1457 = vrot.lane.b32.xlu0 %v778, 40
      %v1458 = vpop.permute.xlu0 %1457
      %1459 = vrot.lane.b32.xlu0 %v779, 40
      %v1460 = vpop.permute.xlu0 %1459
      %1461 = vrot.lane.b32.xlu0 %v780, 40
      %v1462 = vpop.permute.xlu0 %1461
      %1463 = vrot.lane.b32.xlu0 %v781, 40
      %v1464 = vpop.permute.xlu0 %1463
      %1465 = vrot.lane.b32.xlu0 %v782, 40
      %v1466 = vpop.permute.xlu0 %1465
      %1467 = vrot.lane.b32.xlu0 %v783, 40
      %v1468 = vpop.permute.xlu0 %1467
      %1469 = vrot.lane.b32.xlu0 %v784, 40
      %v1470 = vpop.permute.xlu0 %1469
      %1471 = vrot.lane.b32.xlu0 %v785, 40
      %v1472 = vpop.permute.xlu0 %1471
      %1473 = vrot.lane.b32.xlu0 %v786, 40
      %v1474 = vpop.permute.xlu0 %1473
      %1475 = vrot.lane.b32.xlu0 %v787, 40
      %v1476 = vpop.permute.xlu0 %1475
      %1477 = vrot.lane.b32.xlu0 %v788, 40
      %v1478 = vpop.permute.xlu0 %1477
      %1479 = vrot.lane.b32.xlu0 %v789, 40
      %v1480 = vpop.permute.xlu0 %1479
      %1481 = vrot.lane.b32.xlu0 %v790, 40
      %v1482 = vpop.permute.xlu0 %1481
      %1483 = vrot.lane.b32.xlu0 %v791, 40
      %v1484 = vpop.permute.xlu0 %1483
      %1485 = vrot.lane.b32.xlu0 %v792, 40
      %v1486 = vpop.permute.xlu0 %1485
      %1487 = vrot.lane.b32.xlu0 %v793, 40
      %v1488 = vpop.permute.xlu0 %1487
      %1489 = vrot.lane.b32.xlu0 %v794, 40
      %v1490 = vpop.permute.xlu0 %1489
      %1491 = vrot.lane.b32.xlu0 %v795, 40
      %v1492 = vpop.permute.xlu0 %1491
      %1493 = vrot.lane.b32.xlu0 %v796, 40
      %v1494 = vpop.permute.xlu0 %1493
      %1495 = vrot.lane.b32.xlu0 %v797, 40
      %v1496 = vpop.permute.xlu0 %1495
      %1497 = vrot.lane.b32.xlu0 %v798, 40
      %v1498 = vpop.permute.xlu0 %1497
      %1499 = vrot.lane.b32.xlu0 %v799, 40
      %v1500 = vpop.permute.xlu0 %1499
      %1501 = vrot.lane.b32.xlu0 %v800, 40
      %v1502 = vpop.permute.xlu0 %1501
      %1503 = vrot.lane.b32.xlu0 %v801, 40
      %v1504 = vpop.permute.xlu0 %1503
      %1505 = vrot.lane.b32.xlu0 %v802, 40
      %v1506 = vpop.permute.xlu0 %1505
      %1507 = vrot.lane.b32.xlu0 %v803, 40
      %v1508 = vpop.permute.xlu0 %1507
      %1573 = vrot.lane.b32.xlu0 %v805, 48
      %v1574 = vpop.permute.xlu0 %1573
      %1575 = vrot.lane.b32.xlu0 %v806, 48
      %v1576 = vpop.permute.xlu0 %1575
      %1577 = vrot.lane.b32.xlu0 %v807, 48
      %v1578 = vpop.permute.xlu0 %1577
      %1579 = vrot.lane.b32.xlu0 %v808, 48
      %v1580 = vpop.permute.xlu0 %1579
      %1581 = vrot.lane.b32.xlu0 %v809, 48
      %v1582 = vpop.permute.xlu0 %1581
      %1583 = vrot.lane.b32.xlu0 %v810, 48
      %v1584 = vpop.permute.xlu0 %1583
      %1585 = vrot.lane.b32.xlu0 %v811, 48
      %v1586 = vpop.permute.xlu0 %1585
      %1587 = vrot.lane.b32.xlu0 %v812, 48
      %v1588 = vpop.permute.xlu0 %1587
      %1589 = vrot.lane.b32.xlu0 %v813, 48
      %v1590 = vpop.permute.xlu0 %1589
      %1591 = vrot.lane.b32.xlu0 %v814, 48
      %v1592 = vpop.permute.xlu0 %1591
      %1593 = vrot.lane.b32.xlu0 %v815, 48
      %v1594 = vpop.permute.xlu0 %1593
      %1595 = vrot.lane.b32.xlu0 %v816, 48
      %v1596 = vpop.permute.xlu0 %1595
      %1597 = vrot.lane.b32.xlu0 %v817, 48
      %v1598 = vpop.permute.xlu0 %1597
      %1599 = vrot.lane.b32.xlu0 %v818, 48
      %v1600 = vpop.permute.xlu0 %1599
      %1601 = vrot.lane.b32.xlu0 %v819, 48
      %v1602 = vpop.permute.xlu0 %1601
      %1603 = vrot.lane.b32.xlu0 %v820, 48
      %v1604 = vpop.permute.xlu0 %1603
      %1605 = vrot.lane.b32.xlu0 %v821, 48
      %v1606 = vpop.permute.xlu0 %1605
      %1607 = vrot.lane.b32.xlu0 %v822, 48
      %v1608 = vpop.permute.xlu0 %1607
      %1609 = vrot.lane.b32.xlu0 %v823, 48
      %v1610 = vpop.permute.xlu0 %1609
      %1611 = vrot.lane.b32.xlu0 %v824, 48
      %v1612 = vpop.permute.xlu0 %1611
      %1613 = vrot.lane.b32.xlu0 %v825, 48
      %v1614 = vpop.permute.xlu0 %1613
      %1615 = vrot.lane.b32.xlu0 %v826, 48
      %v1616 = vpop.permute.xlu0 %1615
      %1617 = vrot.lane.b32.xlu0 %v827, 48
      %v1618 = vpop.permute.xlu0 %1617
      %1619 = vrot.lane.b32.xlu0 %v828, 48
      %v1620 = vpop.permute.xlu0 %1619
      %1621 = vrot.lane.b32.xlu0 %v829, 48
      %v1622 = vpop.permute.xlu0 %1621
      %1623 = vrot.lane.b32.xlu0 %v830, 48
      %v1624 = vpop.permute.xlu0 %1623
      %1625 = vrot.lane.b32.xlu0 %v831, 48
      %v1626 = vpop.permute.xlu0 %1625
      %1627 = vrot.lane.b32.xlu0 %v832, 48
      %v1628 = vpop.permute.xlu0 %1627
      %1629 = vrot.lane.b32.xlu0 %v833, 48
      %v1630 = vpop.permute.xlu0 %1629
      %1631 = vrot.lane.b32.xlu0 %v834, 48
      %v1632 = vpop.permute.xlu0 %1631
      %1633 = vrot.lane.b32.xlu0 %v835, 48
      %v1634 = vpop.permute.xlu0 %1633
      %1635 = vrot.lane.b32.xlu0 %v836, 48
      %v1636 = vpop.permute.xlu0 %1635
      %1701 = vrot.lane.b32.xlu0 %v837, 56
      %v1702 = vpop.permute.xlu0 %1701
      %1703 = vrot.lane.b32.xlu0 %v838, 56
      %v1704 = vpop.permute.xlu0 %1703
      %1705 = vrot.lane.b32.xlu0 %v839, 56
      %v1706 = vpop.permute.xlu0 %1705
      %1707 = vrot.lane.b32.xlu0 %v840, 56
      %v1708 = vpop.permute.xlu0 %1707
      %1709 = vrot.lane.b32.xlu0 %v841, 56
      %v1710 = vpop.permute.xlu0 %1709
      %1711 = vrot.lane.b32.xlu0 %v842, 56
      %v1712 = vpop.permute.xlu0 %1711
      %1713 = vrot.lane.b32.xlu0 %v843, 56
      %v1714 = vpop.permute.xlu0 %1713
      %1715 = vrot.lane.b32.xlu0 %v844, 56
      %v1716 = vpop.permute.xlu0 %1715
      %1717 = vrot.lane.b32.xlu0 %v845, 56
      %v1718 = vpop.permute.xlu0 %1717
      %1719 = vrot.lane.b32.xlu0 %v846, 56
      %v1720 = vpop.permute.xlu0 %1719
      %1721 = vrot.lane.b32.xlu0 %v847, 56
      %v1722 = vpop.permute.xlu0 %1721
      %1723 = vrot.lane.b32.xlu0 %v848, 56
      %v1724 = vpop.permute.xlu0 %1723
      %1725 = vrot.lane.b32.xlu0 %v849, 56
      %v1726 = vpop.permute.xlu0 %1725
      %1727 = vrot.lane.b32.xlu0 %v850, 56
      %v1728 = vpop.permute.xlu0 %1727
      %1729 = vrot.lane.b32.xlu0 %v851, 56
      %v1730 = vpop.permute.xlu0 %1729
      %1731 = vrot.lane.b32.xlu0 %v852, 56
      %v1732 = vpop.permute.xlu0 %1731
      %1733 = vrot.lane.b32.xlu0 %v853, 56
      %v1734 = vpop.permute.xlu0 %1733
      %1735 = vrot.lane.b32.xlu0 %v854, 56
      %v1736 = vpop.permute.xlu0 %1735
      %1737 = vrot.lane.b32.xlu0 %v855, 56
      %v1738 = vpop.permute.xlu0 %1737
      %1739 = vrot.lane.b32.xlu0 %v856, 56
      %v1740 = vpop.permute.xlu0 %1739
      %1741 = vrot.lane.b32.xlu0 %v857, 56
      %v1742 = vpop.permute.xlu0 %1741
      %1743 = vrot.lane.b32.xlu0 %v858, 56
      %v1744 = vpop.permute.xlu0 %1743
      %1745 = vrot.lane.b32.xlu0 %v859, 56
      %v1746 = vpop.permute.xlu0 %1745
      %1747 = vrot.lane.b32.xlu0 %v860, 56
      %v1748 = vpop.permute.xlu0 %1747
      %1749 = vrot.lane.b32.xlu0 %v861, 56
      %v1750 = vpop.permute.xlu0 %1749
      %1751 = vrot.lane.b32.xlu0 %v862, 56
      %v1752 = vpop.permute.xlu0 %1751
      %1753 = vrot.lane.b32.xlu0 %v863, 56
      %v1754 = vpop.permute.xlu0 %1753
      %1755 = vrot.lane.b32.xlu0 %v864, 56
      %v1756 = vpop.permute.xlu0 %1755
      %1757 = vrot.lane.b32.xlu0 %v865, 56
      %v1758 = vpop.permute.xlu0 %1757
      %1759 = vrot.lane.b32.xlu0 %v866, 56
      %v1760 = vpop.permute.xlu0 %1759
      %1761 = vrot.lane.b32.xlu0 %v867, 56
      %v1762 = vpop.permute.xlu0 %1761
      %1763 = vrot.lane.b32.xlu0 %v868, 56
      %v1764 = vpop.permute.xlu0 %1763
      %1829 = vrot.lane.b32.xlu0 %v869, 64
      %v1830 = vpop.permute.xlu0 %1829
      %1831 = vrot.lane.b32.xlu0 %v870, 64
      %v1832 = vpop.permute.xlu0 %1831
      %1833 = vrot.lane.b32.xlu0 %v871, 64
      %v1834 = vpop.permute.xlu0 %1833
      %1835 = vrot.lane.b32.xlu0 %v872, 64
      %v1836 = vpop.permute.xlu0 %1835
      %1837 = vrot.lane.b32.xlu0 %v873, 64
      %v1838 = vpop.permute.xlu0 %1837
      %1839 = vrot.lane.b32.xlu0 %v874, 64
      %v1840 = vpop.permute.xlu0 %1839
      %1841 = vrot.lane.b32.xlu0 %v875, 64
      %v1842 = vpop.permute.xlu0 %1841
      %1843 = vrot.lane.b32.xlu0 %v876, 64
      %v1844 = vpop.permute.xlu0 %1843
      %1845 = vrot.lane.b32.xlu0 %v877, 64
      %v1846 = vpop.permute.xlu0 %1845
      %1847 = vrot.lane.b32.xlu0 %v878, 64
      %v1848 = vpop.permute.xlu0 %1847
      %1849 = vrot.lane.b32.xlu0 %v879, 64
      %v1850 = vpop.permute.xlu0 %1849
      %1851 = vrot.lane.b32.xlu0 %v880, 64
      %v1852 = vpop.permute.xlu0 %1851
      %1853 = vrot.lane.b32.xlu0 %v881, 64
      %v1854 = vpop.permute.xlu0 %1853
      %1855 = vrot.lane.b32.xlu0 %v882, 64
      %v1856 = vpop.permute.xlu0 %1855
      %1857 = vrot.lane.b32.xlu0 %v883, 64
      %v1858 = vpop.permute.xlu0 %1857
      %1859 = vrot.lane.b32.xlu0 %v884, 64
      %v1860 = vpop.permute.xlu0 %1859
      %1861 = vrot.lane.b32.xlu0 %v885, 64
      %v1862 = vpop.permute.xlu0 %1861
      %1863 = vrot.lane.b32.xlu0 %v886, 64
      %v1864 = vpop.permute.xlu0 %1863
      %1865 = vrot.lane.b32.xlu0 %v887, 64
      %v1866 = vpop.permute.xlu0 %1865
      %1867 = vrot.lane.b32.xlu0 %v888, 64
      %v1868 = vpop.permute.xlu0 %1867
      %1869 = vrot.lane.b32.xlu0 %v889, 64
      %v1870 = vpop.permute.xlu0 %1869
      %1871 = vrot.lane.b32.xlu0 %v890, 64
      %v1872 = vpop.permute.xlu0 %1871
      %1873 = vrot.lane.b32.xlu0 %v891, 64
      %v1874 = vpop.permute.xlu0 %1873
      %1875 = vrot.lane.b32.xlu0 %v892, 64
      %v1876 = vpop.permute.xlu0 %1875
      %1877 = vrot.lane.b32.xlu0 %v893, 64
      %v1878 = vpop.permute.xlu0 %1877
      %1879 = vrot.lane.b32.xlu0 %v894, 64
      %v1880 = vpop.permute.xlu0 %1879
      %1881 = vrot.lane.b32.xlu0 %v895, 64
      %v1882 = vpop.permute.xlu0 %1881
      %1883 = vrot.lane.b32.xlu0 %v896, 64
      %v1884 = vpop.permute.xlu0 %1883
      %1885 = vrot.lane.b32.xlu0 %v897, 64
      %v1886 = vpop.permute.xlu0 %1885
      %1887 = vrot.lane.b32.xlu0 %v898, 64
      %v1888 = vpop.permute.xlu0 %1887
      %1889 = vrot.lane.b32.xlu0 %v899, 64
      %v1890 = vpop.permute.xlu0 %1889
      %1891 = vrot.lane.b32.xlu0 %v900, 64
      %v1892 = vpop.permute.xlu0 %1891
      %v1925 = vsel %vm473, %v612, %v934
      %v1926 = vsel %vm473, %v613, %v936
      %v1927 = vsel %vm473, %v614, %v938
      %v1928 = vsel %vm473, %v615, %v940
      %v1929 = vsel %vm473, %v616, %v942
      %v1930 = vsel %vm473, %v617, %v944
      %v1931 = vsel %vm473, %v618, %v946
      %v1932 = vsel %vm473, %v619, %v948
      %v1933 = vsel %vm473, %v620, %v950
      %v1934 = vsel %vm473, %v621, %v952
      %v1935 = vsel %vm473, %v622, %v954
      %v1936 = vsel %vm473, %v623, %v956
      %v1937 = vsel %vm473, %v624, %v958
      %v1938 = vsel %vm473, %v625, %v960
      %v1939 = vsel %vm473, %v626, %v962
      %v1940 = vsel %vm473, %v627, %v964
      %v1941 = vsel %vm473, %v628, %v966
      %v1942 = vsel %vm473, %v629, %v968
      %v1943 = vsel %vm473, %v630, %v970
      %v1944 = vsel %vm473, %v631, %v972
      %v1945 = vsel %vm473, %v632, %v974
      %v1946 = vsel %vm473, %v633, %v976
      %v1947 = vsel %vm473, %v634, %v978
      %v1948 = vsel %vm473, %v635, %v980
      %v1949 = vsel %vm473, %v636, %v982
      %v1950 = vsel %vm473, %v637, %v984
      %v1951 = vsel %vm473, %v638, %v986
      %v1952 = vsel %vm473, %v639, %v988
      %v1953 = vsel %vm473, %v640, %v990
      %v1954 = vsel %vm473, %v641, %v992
      %v1955 = vsel %vm473, %v642, %v994
      %v1956 = vsel %vm473, %v643, %v996
      %vm1957 = vcmask 130048
      %v1958 = vsel %vm1957, %v1925, %v1062
      %v1959 = vsel %vm1957, %v1926, %v1064
      %v1960 = vsel %vm1957, %v1927, %v1066
      %v1961 = vsel %vm1957, %v1928, %v1068
      %v1962 = vsel %vm1957, %v1929, %v1070
      %v1963 = vsel %vm1957, %v1930, %v1072
      %v1964 = vsel %vm1957, %v1931, %v1074
      %v1965 = vsel %vm1957, %v1932, %v1076
      %v1966 = vsel %vm1957, %v1933, %v1078
      %v1967 = vsel %vm1957, %v1934, %v1080
      %v1968 = vsel %vm1957, %v1935, %v1082
      %v1969 = vsel %vm1957, %v1936, %v1084
      %v1970 = vsel %vm1957, %v1937, %v1086
      %v1971 = vsel %vm1957, %v1938, %v1088
      %v1972 = vsel %vm1957, %v1939, %v1090
      %v1973 = vsel %vm1957, %v1940, %v1092
      %v1974 = vsel %vm1957, %v1941, %v1094
      %v1975 = vsel %vm1957, %v1942, %v1096
      %v1976 = vsel %vm1957, %v1943, %v1098
      %v1977 = vsel %vm1957, %v1944, %v1100
      %v1978 = vsel %vm1957, %v1945, %v1102
      %v1979 = vsel %vm1957, %v1946, %v1104
      %v1980 = vsel %vm1957, %v1947, %v1106
      %v1981 = vsel %vm1957, %v1948, %v1108
      %v1982 = vsel %vm1957, %v1949, %v1110
      %v1983 = vsel %vm1957, %v1950, %v1112
      %v1984 = vsel %vm1957, %v1951, %v1114
      %v1985 = vsel %vm1957, %v1952, %v1116
      %v1986 = vsel %vm1957, %v1953, %v1118
      %v1987 = vsel %vm1957, %v1954, %v1120
      %v1988 = vsel %vm1957, %v1955, %v1122
      %v1989 = vsel %vm1957, %v1956, %v1124
      %vm1990 = vcmask 195584
      %v1991 = vsel %vm1990, %v1958, %v1190
      %v1992 = vsel %vm1990, %v1959, %v1192
      %v1993 = vsel %vm1990, %v1960, %v1194
      %v1994 = vsel %vm1990, %v1961, %v1196
      %v1995 = vsel %vm1990, %v1962, %v1198
      %v1996 = vsel %vm1990, %v1963, %v1200
      %v1997 = vsel %vm1990, %v1964, %v1202
      %v1998 = vsel %vm1990, %v1965, %v1204
      %v1999 = vsel %vm1990, %v1966, %v1206
      %v2000 = vsel %vm1990, %v1967, %v1208
      %v2001 = vsel %vm1990, %v1968, %v1210
      %v2002 = vsel %vm1990, %v1969, %v1212
      %v2003 = vsel %vm1990, %v1970, %v1214
      %v2004 = vsel %vm1990, %v1971, %v1216
      %v2005 = vsel %vm1990, %v1972, %v1218
      %v2006 = vsel %vm1990, %v1973, %v1220
      %v2007 = vsel %vm1990, %v1974, %v1222
      %v2008 = vsel %vm1990, %v1975, %v1224
      %v2009 = vsel %vm1990, %v1976, %v1226
      %v2010 = vsel %vm1990, %v1977, %v1228
      %v2011 = vsel %vm1990, %v1978, %v1230
      %v2012 = vsel %vm1990, %v1979, %v1232
      %v2013 = vsel %vm1990, %v1980, %v1234
      %v2014 = vsel %vm1990, %v1981, %v1236
      %v2015 = vsel %vm1990, %v1982, %v1238
      %v2016 = vsel %vm1990, %v1983, %v1240
      %v2017 = vsel %vm1990, %v1984, %v1242
      %v2018 = vsel %vm1990, %v1985, %v1244
      %v2019 = vsel %vm1990, %v1986, %v1246
      %v2020 = vsel %vm1990, %v1987, %v1248
      %v2021 = vsel %vm1990, %v1988, %v1250
      %v2022 = vsel %vm1990, %v1989, %v1252
      %vm2023 = vcmask 261120
      %v2024 = vsel %vm2023, %v1991, %v1318
      %v2025 = vsel %vm2023, %v1992, %v1320
      %v2026 = vsel %vm2023, %v1993, %v1322
      %v2027 = vsel %vm2023, %v1994, %v1324
      %v2028 = vsel %vm2023, %v1995, %v1326
      %v2029 = vsel %vm2023, %v1996, %v1328
      %v2030 = vsel %vm2023, %v1997, %v1330
      %v2031 = vsel %vm2023, %v1998, %v1332
      %v2032 = vsel %vm2023, %v1999, %v1334
      %v2033 = vsel %vm2023, %v2000, %v1336
      %v2034 = vsel %vm2023, %v2001, %v1338
      %v2035 = vsel %vm2023, %v2002, %v1340
      %v2036 = vsel %vm2023, %v2003, %v1342
      %v2037 = vsel %vm2023, %v2004, %v1344
      %v2038 = vsel %vm2023, %v2005, %v1346
      %v2039 = vsel %vm2023, %v2006, %v1348
      %v2040 = vsel %vm2023, %v2007, %v1350
      %v2041 = vsel %vm2023, %v2008, %v1352
      %v2042 = vsel %vm2023, %v2009, %v1354
      %v2043 = vsel %vm2023, %v2010, %v1356
      %v2044 = vsel %vm2023, %v2011, %v1358
      %v2045 = vsel %vm2023, %v2012, %v1360
      %v2046 = vsel %vm2023, %v2013, %v1362
      %v2047 = vsel %vm2023, %v2014, %v1364
      %v2048 = vsel %vm2023, %v2015, %v1366
      %v2049 = vsel %vm2023, %v2016, %v1368
      %v2050 = vsel %vm2023, %v2017, %v1370
      %v2051 = vsel %vm2023, %v2018, %v1372
      %v2052 = vsel %vm2023, %v2019, %v1374
      %v2053 = vsel %vm2023, %v2020, %v1376
      %v2054 = vsel %vm2023, %v2021, %v1378
      %v2055 = vsel %vm2023, %v2022, %v1380
      %vm2056 = vcmask 326656
      %v2057 = vsel %vm2056, %v2024, %v1446
      %v2058 = vsel %vm2056, %v2025, %v1448
      %v2059 = vsel %vm2056, %v2026, %v1450
      %v2060 = vsel %vm2056, %v2027, %v1452
      %v2061 = vsel %vm2056, %v2028, %v1454
      %v2062 = vsel %vm2056, %v2029, %v1456
      %v2063 = vsel %vm2056, %v2030, %v1458
      %v2064 = vsel %vm2056, %v2031, %v1460
      %v2065 = vsel %vm2056, %v2032, %v1462
      %v2066 = vsel %vm2056, %v2033, %v1464
      %v2067 = vsel %vm2056, %v2034, %v1466
      %v2068 = vsel %vm2056, %v2035, %v1468
      %v2069 = vsel %vm2056, %v2036, %v1470
      %v2070 = vsel %vm2056, %v2037, %v1472
      %v2071 = vsel %vm2056, %v2038, %v1474
      %v2072 = vsel %vm2056, %v2039, %v1476
      %v2073 = vsel %vm2056, %v2040, %v1478
      %v2074 = vsel %vm2056, %v2041, %v1480
      %v2075 = vsel %vm2056, %v2042, %v1482
      %v2076 = vsel %vm2056, %v2043, %v1484
      %v2077 = vsel %vm2056, %v2044, %v1486
      %v2078 = vsel %vm2056, %v2045, %v1488
      %v2079 = vsel %vm2056, %v2046, %v1490
      %v2080 = vsel %vm2056, %v2047, %v1492
      %v2081 = vsel %vm2056, %v2048, %v1494
      %v2082 = vsel %vm2056, %v2049, %v1496
      %v2083 = vsel %vm2056, %v2050, %v1498
      %v2084 = vsel %vm2056, %v2051, %v1500
      %v2085 = vsel %vm2056, %v2052, %v1502
      %v2086 = vsel %vm2056, %v2053, %v1504
      %v2087 = vsel %vm2056, %v2054, %v1506
      %v2088 = vsel %vm2056, %v2055, %v1508
      %vm2089 = vcmask 392192
      %v2090 = vsel %vm2089, %v2057, %v1574
      %v2091 = vsel %vm2089, %v2058, %v1576
      %v2092 = vsel %vm2089, %v2059, %v1578
      %v2093 = vsel %vm2089, %v2060, %v1580
      %v2094 = vsel %vm2089, %v2061, %v1582
      %v2095 = vsel %vm2089, %v2062, %v1584
      %v2096 = vsel %vm2089, %v2063, %v1586
      %v2097 = vsel %vm2089, %v2064, %v1588
      %v2098 = vsel %vm2089, %v2065, %v1590
      %v2099 = vsel %vm2089, %v2066, %v1592
      %v2100 = vsel %vm2089, %v2067, %v1594
      %v2101 = vsel %vm2089, %v2068, %v1596
      %v2102 = vsel %vm2089, %v2069, %v1598
      %v2103 = vsel %vm2089, %v2070, %v1600
      %v2104 = vsel %vm2089, %v2071, %v1602
      %v2105 = vsel %vm2089, %v2072, %v1604
      %v2106 = vsel %vm2089, %v2073, %v1606
      %v2107 = vsel %vm2089, %v2074, %v1608
      %v2108 = vsel %vm2089, %v2075, %v1610
      %v2109 = vsel %vm2089, %v2076, %v1612
      %v2110 = vsel %vm2089, %v2077, %v1614
      %v2111 = vsel %vm2089, %v2078, %v1616
      %v2112 = vsel %vm2089, %v2079, %v1618
      %v2113 = vsel %vm2089, %v2080, %v1620
      %v2114 = vsel %vm2089, %v2081, %v1622
      %v2115 = vsel %vm2089, %v2082, %v1624
      %v2116 = vsel %vm2089, %v2083, %v1626
      %v2117 = vsel %vm2089, %v2084, %v1628
      %v2118 = vsel %vm2089, %v2085, %v1630
      %v2119 = vsel %vm2089, %v2086, %v1632
      %v2120 = vsel %vm2089, %v2087, %v1634
      %v2121 = vsel %vm2089, %v2088, %v1636
      %vm2122 = vcmask 457728
      %v2123 = vsel %vm2122, %v2090, %v1702
      %v2124 = vsel %vm2122, %v2091, %v1704
      %v2125 = vsel %vm2122, %v2092, %v1706
      %v2126 = vsel %vm2122, %v2093, %v1708
      %v2127 = vsel %vm2122, %v2094, %v1710
      %v2128 = vsel %vm2122, %v2095, %v1712
      %v2129 = vsel %vm2122, %v2096, %v1714
      %v2130 = vsel %vm2122, %v2097, %v1716
      %v2131 = vsel %vm2122, %v2098, %v1718
      %v2132 = vsel %vm2122, %v2099, %v1720
      %v2133 = vsel %vm2122, %v2100, %v1722
      %v2134 = vsel %vm2122, %v2101, %v1724
      %v2135 = vsel %vm2122, %v2102, %v1726
      %v2136 = vsel %vm2122, %v2103, %v1728
      %v2137 = vsel %vm2122, %v2104, %v1730
      %v2138 = vsel %vm2122, %v2105, %v1732
      %v2139 = vsel %vm2122, %v2106, %v1734
      %v2140 = vsel %vm2122, %v2107, %v1736
      %v2141 = vsel %vm2122, %v2108, %v1738
      %v2142 = vsel %vm2122, %v2109, %v1740
      %v2143 = vsel %vm2122, %v2110, %v1742
      %v2144 = vsel %vm2122, %v2111, %v1744
      %v2145 = vsel %vm2122, %v2112, %v1746
      %v2146 = vsel %vm2122, %v2113, %v1748
      %v2147 = vsel %vm2122, %v2114, %v1750
      %v2148 = vsel %vm2122, %v2115, %v1752
      %v2149 = vsel %vm2122, %v2116, %v1754
      %v2150 = vsel %vm2122, %v2117, %v1756
      %v2151 = vsel %vm2122, %v2118, %v1758
      %v2152 = vsel %vm2122, %v2119, %v1760
      %v2153 = vsel %vm2122, %v2120, %v1762
      %v2154 = vsel %vm2122, %v2121, %v1764
      %vm2155 = vcmask 523264
      %v2156 = vsel %vm2155, %v2123, %v1830
      %v2157 = vsel %vm2155, %v2124, %v1832
      %v2158 = vsel %vm2155, %v2125, %v1834
      %v2159 = vsel %vm2155, %v2126, %v1836
      %v2160 = vsel %vm2155, %v2127, %v1838
      %v2161 = vsel %vm2155, %v2128, %v1840
      %v2162 = vsel %vm2155, %v2129, %v1842
      %v2163 = vsel %vm2155, %v2130, %v1844
      %v2164 = vsel %vm2155, %v2131, %v1846
      %v2165 = vsel %vm2155, %v2132, %v1848
      %v2166 = vsel %vm2155, %v2133, %v1850
      %v2167 = vsel %vm2155, %v2134, %v1852
      %v2168 = vsel %vm2155, %v2135, %v1854
      %v2169 = vsel %vm2155, %v2136, %v1856
      %v2170 = vsel %vm2155, %v2137, %v1858
      %v2171 = vsel %vm2155, %v2138, %v1860
      %v2172 = vsel %vm2155, %v2139, %v1862
      %v2173 = vsel %vm2155, %v2140, %v1864
      %v2174 = vsel %vm2155, %v2141, %v1866
      %v2175 = vsel %vm2155, %v2142, %v1868
      %v2176 = vsel %vm2155, %v2143, %v1870
      %v2177 = vsel %vm2155, %v2144, %v1872
      %v2178 = vsel %vm2155, %v2145, %v1874
      %v2179 = vsel %vm2155, %v2146, %v1876
      %v2180 = vsel %vm2155, %v2147, %v1878
      %v2181 = vsel %vm2155, %v2148, %v1880
      %v2182 = vsel %vm2155, %v2149, %v1882
      %v2183 = vsel %vm2155, %v2150, %v1884
      %v2184 = vsel %vm2155, %v2151, %v1886
      %v2185 = vsel %vm2155, %v2152, %v1888
      %v2186 = vsel %vm2155, %v2153, %v1890
      %v2187 = vsel %vm2155, %v2154, %v1892
      %v2188 = vld [vmem:[%s1] sm:$0xff]
      %v2189 = vld [vmem:[%s1 + $0x8] sm:$0xff]
      %v2190 = vld [vmem:[%s1 + $0x10] sm:$0xff]
      %v2191 = vld [vmem:[%s1 + $0x18] sm:$0xff]
      %v2192 = vld [vmem:[%s1 + $0x20] sm:$0xff]
      %v2193 = vld [vmem:[%s1 + $0x28] sm:$0xff]
      %v2194 = vld [vmem:[%s1 + $0x30] sm:$0xff]
      %v2195 = vld [vmem:[%s1 + $0x38] sm:$0xff]
      %v2196 = vld [vmem:[%s1 + $0x40] sm:$0xff]
      %v2197 = vld [vmem:[%s2] sm:$0x1]
      %v2199 = vlaneseq
      %v2200 = vshrl.u32 %v2199, 7
      %v2201 = vsub.s32 0, %v2200
      %v2202 = vrot.slane %v2197, %v2201
      %vm2204 = vcmask 588800
      %v2206 = vsel %vm2204, %v2156, 0
      %v2209 = vsel %vm2204, %v2157, 0
      %v2212 = vsel %vm2204, %v2158, 0
      %v2215 = vsel %vm2204, %v2159, 0
      %v2218 = vsel %vm2204, %v2160, 0
      %v2221 = vsel %vm2204, %v2161, 0
      %v2224 = vsel %vm2204, %v2162, 0
      %v2227 = vsel %vm2204, %v2163, 0
      %v2230 = vsel %vm2204, %v2164, 0
      %v2233 = vsel %vm2204, %v2165, 0
      %v2236 = vsel %vm2204, %v2166, 0
      %v2239 = vsel %vm2204, %v2167, 0
      %v2242 = vsel %vm2204, %v2168, 0
      %v2245 = vsel %vm2204, %v2169, 0
      %v2248 = vsel %vm2204, %v2170, 0
      %v2251 = vsel %vm2204, %v2171, 0
      %v2254 = vsel %vm2204, %v2172, 0
      %v2257 = vsel %vm2204, %v2173, 0
      %v2260 = vsel %vm2204, %v2174, 0
      %v2263 = vsel %vm2204, %v2175, 0
      %v2266 = vsel %vm2204, %v2176, 0
      %v2269 = vsel %vm2204, %v2177, 0
      %v2272 = vsel %vm2204, %v2178, 0
      %v2275 = vsel %vm2204, %v2179, 0
      %v2278 = vsel %vm2204, %v2180, 0
      %v2281 = vsel %vm2204, %v2181, 0
      %v2284 = vsel %vm2204, %v2182, 0
      %v2287 = vsel %vm2204, %v2183, 0
      %v2290 = vsel %vm2204, %v2184, 0
      %v2293 = vsel %vm2204, %v2185, 0
      %v2296 = vsel %vm2204, %v2186, 0
      %v2299 = vsel %vm2204, %v2187, 0
      %2301 = vmatprep.subr.mxu0 0.0
      %2302 = vmatpush1.msra.mxu0 %v2188
      %2303 = vmatprep.subr.mxu0 0.0
      %2304 = vmatpush1.msra.mxu0 %v2189
      %2305 = vmatprep.subr.mxu0 0.0
      %2306 = vmatpush1.msra.mxu0 %v2190
      %2307 = vmatprep.subr.mxu0 0.0
      %2308 = vmatpush1.msra.mxu0 %v2191
      %2309 = vmatprep.subr.mxu0 0.0
      %2310 = vmatpush1.msra.mxu0 %v2192
      %2311 = vmatprep.subr.mxu0 0.0
      %2312 = vmatpush1.msra.mxu0 %v2193
      %2313 = vmatprep.subr.mxu0 0.0
      %2314 = vmatpush1.msra.mxu0 %v2194
      %2315 = vmatprep.subr.mxu0 0.0
      %2316 = vmatpush1.msra.mxu0 %v2195
      %2317 = vmatprep.subr.mxu0 0.0
      %2318 = vmatpush1.msra.mxu0 %v2196
      %2319 = vmatprep.subr.mxu0 0.0
      %2320 = vmatpush1.msra.mxu0 0.0
      %2321 = vmatprep.subr.mxu0 0.0
      %2322 = vmatpush1.msra.mxu0 0.0
      %2323 = vmatprep.subr.mxu0 0.0
      %2324 = vmatpush1.msra.mxu0 0.0
      %2325 = vmatprep.subr.mxu0 0.0
      %2326 = vmatpush1.msra.mxu0 0.0
      %2327 = vmatprep.subr.mxu0 0.0
      %2328 = vmatpush1.msra.mxu0 0.0
      %2329 = vmatprep.subr.mxu0 0.0
      %2330 = vmatpush1.msra.mxu0 0.0
      %2331 = vmatprep.subr.mxu0 0.0
      %2332 = vmatpush1.msra.mxu0 0.0
      %2333 = vmatprep.subr.mxu0 0.0
      %2334 = vmatpush1.msra.mxu0 0.0
      %2335 = vmatprep.subr.mxu0 0.0
      %2336 = vmatpush1.msra.mxu0 0.0
      %2337 = vmatprep.subr.mxu0 0.0
      %2338 = vmatpush1.msra.mxu0 0.0
      %2339 = vmatprep.subr.mxu0 0.0
      %2340 = vmatpush1.msra.mxu0 0.0
      %2341 = vmatprep.subr.mxu0 0.0
      %2342 = vmatpush1.msra.mxu0 0.0
      %2343 = vmatprep.subr.mxu0 0.0
      %2344 = vmatpush1.msra.mxu0 0.0
      %2345 = vmatprep.subr.mxu0 0.0
      %2346 = vmatpush1.msra.mxu0 0.0
      %2347 = vmatprep.subr.mxu0 0.0
      %2348 = vmatpush1.msra.mxu0 0.0
      %2349 = vmatprep.subr.mxu0 0.0
      %2350 = vmatpush1.msra.mxu0 0.0
      %2351 = vmatprep.subr.mxu0 0.0
      %2352 = vmatpush1.msra.mxu0 0.0
      %2353 = vmatprep.subr.mxu0 0.0
      %2354 = vmatpush1.msra.mxu0 0.0
      %2355 = vmatprep.subr.mxu0 0.0
      %2356 = vmatpush1.msra.mxu0 0.0
      %2357 = vmatprep.subr.mxu0 0.0
      %2358 = vmatpush1.msra.mxu0 0.0
      %2359 = vmatprep.subr.mxu0 0.0
      %2360 = vmatpush1.msra.mxu0 0.0
      %2361 = vmatprep.subr.mxu0 0.0
      %2362 = vmatpush1.msra.mxu0 0.0
      %2363 = vmatprep.subr.mxu0 0.0
      %2364 = vmatpush1.msra.mxu0 0.0
      %2365 = vmatprep.mubr.f32.mxu0 0.0
      %2366 = vmatmul.mubr.f32.gmra.mrb[0].mxu0 %v2206
      %v2367 = vpop.f32.mrb[0].mxu0
      %v2368 = vadd.f32 %v2202, %v2367
      %v2369 = vpop.f32.mrb[0].mxu0
      %2370 = vmatprep.mubr.f32.mxu0 0.0
      %2371 = vmatmul.mubr.f32.gmra.mrb[0].mxu0 %v2209
      %v2372 = vpop.f32.mrb[0].mxu0
      %v2373 = vadd.f32 %v2202, %v2372
      %v2374 = vpop.f32.mrb[0].mxu0
      %2375 = vmatprep.mubr.f32.mxu0 0.0
      %2376 = vmatmul.mubr.f32.gmra.mrb[0].mxu0 %v2212
      %v2377 = vpop.f32.mrb[0].mxu0
      %v2378 = vadd.f32 %v2202, %v2377
      %v2379 = vpop.f32.mrb[0].mxu0
      %2380 = vmatprep.mubr.f32.mxu0 0.0
      %2381 = vmatmul.mubr.f32.gmra.mrb[0].mxu0 %v2215
      %v2382 = vpop.f32.mrb[0].mxu0
      %v2383 = vadd.f32 %v2202, %v2382
      %v2384 = vpop.f32.mrb[0].mxu0
      %2385 = vmatprep.mubr.f32.mxu0 0.0
      %2386 = vmatmul.mubr.f32.gmra.mrb[0].mxu0 %v2218
      %v2387 = vpop.f32.mrb[0].mxu0
      %v2388 = vadd.f32 %v2202, %v2387
      %v2389 = vpop.f32.mrb[0].mxu0
      %2390 = vmatprep.mubr.f32.mxu0 0.0
      %2391 = vmatmul.mubr.f32.gmra.mrb[0].mxu0 %v2221
      %v2392 = vpop.f32.mrb[0].mxu0
      %v2393 = vadd.f32 %v2202, %v2392
      %v2394 = vpop.f32.mrb[0].mxu0
      %2395 = vmatprep.mubr.f32.mxu0 0.0
      %2396 = vmatmul.mubr.f32.gmra.mrb[0].mxu0 %v2224
      %v2397 = vpop.f32.mrb[0].mxu0
      %v2398 = vadd.f32 %v2202, %v2397
      %v2399 = vpop.f32.mrb[0].mxu0
      %2400 = vmatprep.mubr.f32.mxu0 0.0
      %2401 = vmatmul.mubr.f32.gmra.mrb[0].mxu0 %v2227
      %v2402 = vpop.f32.mrb[0].mxu0
      %v2403 = vadd.f32 %v2202, %v2402
      %v2404 = vpop.f32.mrb[0].mxu0
      %2405 = vmatprep.mubr.f32.mxu0 0.0
      %2406 = vmatmul.mubr.f32.gmra.mrb[0].mxu0 %v2230
      %v2407 = vpop.f32.mrb[0].mxu0
      %v2408 = vadd.f32 %v2202, %v2407
      %v2409 = vpop.f32.mrb[0].mxu0
      %2410 = vmatprep.mubr.f32.mxu0 0.0
      %2411 = vmatmul.mubr.f32.gmra.mrb[0].mxu0 %v2233
      %v2412 = vpop.f32.mrb[0].mxu0
      %v2413 = vadd.f32 %v2202, %v2412
      %v2414 = vpop.f32.mrb[0].mxu0
      %2415 = vmatprep.mubr.f32.mxu0 0.0
      %2416 = vmatmul.mubr.f32.gmra.mrb[0].mxu0 %v2236
      %v2417 = vpop.f32.mrb[0].mxu0
      %v2418 = vadd.f32 %v2202, %v2417
      %v2419 = vpop.f32.mrb[0].mxu0
      %2420 = vmatprep.mubr.f32.mxu0 0.0
      %2421 = vmatmul.mubr.f32.gmra.mrb[0].mxu0 %v2239
      %v2422 = vpop.f32.mrb[0].mxu0
      %v2423 = vadd.f32 %v2202, %v2422
      %v2424 = vpop.f32.mrb[0].mxu0
      %2425 = vmatprep.mubr.f32.mxu0 0.0
      %2426 = vmatmul.mubr.f32.gmra.mrb[0].mxu0 %v2242
      %v2427 = vpop.f32.mrb[0].mxu0
      %v2428 = vadd.f32 %v2202, %v2427
      %v2429 = vpop.f32.mrb[0].mxu0
      %2430 = vmatprep.mubr.f32.mxu0 0.0
      %2431 = vmatmul.mubr.f32.gmra.mrb[0].mxu0 %v2245
      %v2432 = vpop.f32.mrb[0].mxu0
      %v2433 = vadd.f32 %v2202, %v2432
      %v2434 = vpop.f32.mrb[0].mxu0
      %2435 = vmatprep.mubr.f32.mxu0 0.0
      %2436 = vmatmul.mubr.f32.gmra.mrb[0].mxu0 %v2248
      %v2437 = vpop.f32.mrb[0].mxu0
      %v2438 = vadd.f32 %v2202, %v2437
      %v2439 = vpop.f32.mrb[0].mxu0
      %2440 = vmatprep.mubr.f32.mxu0 0.0
      %2441 = vmatmul.mubr.f32.gmra.mrb[0].mxu0 %v2251
      %v2442 = vpop.f32.mrb[0].mxu0
      %v2443 = vadd.f32 %v2202, %v2442
      %v2444 = vpop.f32.mrb[0].mxu0
      %2445 = vmatprep.mubr.f32.mxu0 0.0
      %2446 = vmatmul.mubr.f32.gmra.mrb[0].mxu0 %v2254
      %v2447 = vpop.f32.mrb[0].mxu0
      %v2448 = vadd.f32 %v2202, %v2447
      %v2449 = vpop.f32.mrb[0].mxu0
      %2450 = vmatprep.mubr.f32.mxu0 0.0
      %2451 = vmatmul.mubr.f32.gmra.mrb[0].mxu0 %v2257
      %v2452 = vpop.f32.mrb[0].mxu0
      %v2453 = vadd.f32 %v2202, %v2452
      %v2454 = vpop.f32.mrb[0].mxu0
      %2455 = vmatprep.mubr.f32.mxu0 0.0
      %2456 = vmatmul.mubr.f32.gmra.mrb[0].mxu0 %v2260
      %v2457 = vpop.f32.mrb[0].mxu0
      %v2458 = vadd.f32 %v2202, %v2457
      %v2459 = vpop.f32.mrb[0].mxu0
      %2460 = vmatprep.mubr.f32.mxu0 0.0
      %2461 = vmatmul.mubr.f32.gmra.mrb[0].mxu0 %v2263
      %v2462 = vpop.f32.mrb[0].mxu0
      %v2463 = vadd.f32 %v2202, %v2462
      %v2464 = vpop.f32.mrb[0].mxu0
      %2465 = vmatprep.mubr.f32.mxu0 0.0
      %2466 = vmatmul.mubr.f32.gmra.mrb[0].mxu0 %v2266
      %v2467 = vpop.f32.mrb[0].mxu0
      %v2468 = vadd.f32 %v2202, %v2467
      %v2469 = vpop.f32.mrb[0].mxu0
      %2470 = vmatprep.mubr.f32.mxu0 0.0
      %2471 = vmatmul.mubr.f32.gmra.mrb[0].mxu0 %v2269
      %v2472 = vpop.f32.mrb[0].mxu0
      %v2473 = vadd.f32 %v2202, %v2472
      %v2474 = vpop.f32.mrb[0].mxu0
      %2475 = vmatprep.mubr.f32.mxu0 0.0
      %2476 = vmatmul.mubr.f32.gmra.mrb[0].mxu0 %v2272
      %v2477 = vpop.f32.mrb[0].mxu0
      %v2478 = vadd.f32 %v2202, %v2477
      %v2479 = vpop.f32.mrb[0].mxu0
      %2480 = vmatprep.mubr.f32.mxu0 0.0
      %2481 = vmatmul.mubr.f32.gmra.mrb[0].mxu0 %v2275
      %v2482 = vpop.f32.mrb[0].mxu0
      %v2483 = vadd.f32 %v2202, %v2482
      %v2484 = vpop.f32.mrb[0].mxu0
      %2485 = vmatprep.mubr.f32.mxu0 0.0
      %2486 = vmatmul.mubr.f32.gmra.mrb[0].mxu0 %v2278
      %v2487 = vpop.f32.mrb[0].mxu0
      %v2488 = vadd.f32 %v2202, %v2487
      %v2489 = vpop.f32.mrb[0].mxu0
      %2490 = vmatprep.mubr.f32.mxu0 0.0
      %2491 = vmatmul.mubr.f32.gmra.mrb[0].mxu0 %v2281
      %v2492 = vpop.f32.mrb[0].mxu0
      %v2493 = vadd.f32 %v2202, %v2492
      %v2494 = vpop.f32.mrb[0].mxu0
      %2495 = vmatprep.mubr.f32.mxu0 0.0
      %2496 = vmatmul.mubr.f32.gmra.mrb[0].mxu0 %v2284
      %v2497 = vpop.f32.mrb[0].mxu0
      %v2498 = vadd.f32 %v2202, %v2497
      %v2499 = vpop.f32.mrb[0].mxu0
      %2500 = vmatprep.mubr.f32.mxu0 0.0
      %2501 = vmatmul.mubr.f32.gmra.mrb[0].mxu0 %v2287
      %v2502 = vpop.f32.mrb[0].mxu0
      %v2503 = vadd.f32 %v2202, %v2502
      %v2504 = vpop.f32.mrb[0].mxu0
      %2505 = vmatprep.mubr.f32.mxu0 0.0
      %2506 = vmatmul.mubr.f32.gmra.mrb[0].mxu0 %v2290
      %v2507 = vpop.f32.mrb[0].mxu0
      %v2508 = vadd.f32 %v2202, %v2507
      %v2509 = vpop.f32.mrb[0].mxu0
      %2510 = vmatprep.mubr.f32.mxu0 0.0
      %2511 = vmatmul.mubr.f32.gmra.mrb[0].mxu0 %v2293
      %v2512 = vpop.f32.mrb[0].mxu0
      %v2513 = vadd.f32 %v2202, %v2512
      %v2514 = vpop.f32.mrb[0].mxu0
      %2515 = vmatprep.mubr.f32.mxu0 0.0
      %2516 = vmatmul.mubr.f32.gmra.mrb[0].mxu0 %v2296
      %v2517 = vpop.f32.mrb[0].mxu0
      %v2518 = vadd.f32 %v2202, %v2517
      %v2519 = vpop.f32.mrb[0].mxu0
      %2520 = vmatprep.mubr.f32.mxu0 0.0
      %2521 = vmatmul.mubr.f32.gmra.mrb[0].mxu0 %v2299
      %v2522 = vpop.f32.mrb[0].mxu0
      %v2523 = vadd.f32 %v2202, %v2522
      %v2524 = vpop.f32.mrb[0].mxu0
      %2525 = vdwg.mxu0
      %2526 = vst.msk [vmem:[#allocation2] sm:$0xff] %vm473, 0.0
      %2527 = vst.msk [vmem:[#allocation2 + $0x8] sm:$0xff] %vm473, 0.0
      %2528 = vst.msk [vmem:[#allocation2 + $0x10] sm:$0xff] %vm473, 0.0
      %2529 = vst.msk [vmem:[#allocation2 + $0x18] sm:$0x3] %vm477, 0.0
      %2530 = vst.msk [vmem:[#allocation2 + $0x20] sm:$0xff] %vm473, 0.0
      %2531 = vst.msk [vmem:[#allocation2 + $0x28] sm:$0xff] %vm473, 0.0
      %2532 = vst.msk [vmem:[#allocation2 + $0x30] sm:$0xff] %vm473, 0.0
      %2533 = vst.msk [vmem:[#allocation2 + $0x38] sm:$0x3] %vm477, 0.0
      %2534 = vst.msk [vmem:[#allocation2 + $0x40] sm:$0xff] %vm473, 0.0
      %2535 = vst.msk [vmem:[#allocation2 + $0x48] sm:$0xff] %vm473, 0.0
      %2536 = vst.msk [vmem:[#allocation2 + $0x50] sm:$0xff] %vm473, 0.0
      %2537 = vst.msk [vmem:[#allocation2 + $0x58] sm:$0x3] %vm477, 0.0
      %2538 = vst.msk [vmem:[#allocation2 + $0x60] sm:$0xff] %vm473, 0.0
      %2539 = vst.msk [vmem:[#allocation2 + $0x68] sm:$0xff] %vm473, 0.0
      %2540 = vst.msk [vmem:[#allocation2 + $0x70] sm:$0xff] %vm473, 0.0
      %2541 = vst.msk [vmem:[#allocation2 + $0x78] sm:$0x3] %vm477, 0.0
      %2542 = vst.msk [vmem:[#allocation2 + $0x80] sm:$0xff] %vm473, 0.0
      %2543 = vst.msk [vmem:[#allocation2 + $0x88] sm:$0xff] %vm473, 0.0
      %2544 = vst.msk [vmem:[#allocation2 + $0x90] sm:$0xff] %vm473, 0.0
      %2545 = vst.msk [vmem:[#allocation2 + $0x98] sm:$0x3] %vm477, 0.0
      %2546 = vst.msk [vmem:[#allocation2 + $0xa0] sm:$0xff] %vm473, 0.0
      %2547 = vst.msk [vmem:[#allocation2 + $0xa8] sm:$0xff] %vm473, 0.0
      %2548 = vst.msk [vmem:[#allocation2 + $0xb0] sm:$0xff] %vm473, 0.0
      %2549 = vst.msk [vmem:[#allocation2 + $0xb8] sm:$0x3] %vm477, 0.0
      %2550 = vst.msk [vmem:[#allocation2 + $0xc0] sm:$0xff] %vm473, 0.0
      %2551 = vst.msk [vmem:[#allocation2 + $0xc8] sm:$0xff] %vm473, 0.0
      %2552 = vst.msk [vmem:[#allocation2 + $0xd0] sm:$0xff] %vm473, 0.0
      %2553 = vst.msk [vmem:[#allocation2 + $0xd8] sm:$0x3] %vm477, 0.0
      %2554 = vst.msk [vmem:[#allocation2 + $0xe0] sm:$0xff] %vm473, 0.0
      %2555 = vst.msk [vmem:[#allocation2 + $0xe8] sm:$0xff] %vm473, 0.0
      %2556 = vst.msk [vmem:[#allocation2 + $0xf0] sm:$0xff] %vm473, 0.0
      %2557 = vst.msk [vmem:[#allocation2 + $0xf8] sm:$0x3] %vm477, 0.0
      %2558 = vst.msk [vmem:[#allocation2 + $0x100] sm:$0xff] %vm473, 0.0
      %2559 = vst.msk [vmem:[#allocation2 + $0x108] sm:$0xff] %vm473, 0.0
      %2560 = vst.msk [vmem:[#allocation2 + $0x110] sm:$0xff] %vm473, 0.0
      %2561 = vst.msk [vmem:[#allocation2 + $0x118] sm:$0x3] %vm477, 0.0
      %2562 = vst.msk [vmem:[#allocation2 + $0x120] sm:$0xff] %vm473, 0.0
      %2563 = vst.msk [vmem:[#allocation2 + $0x128] sm:$0xff] %vm473, 0.0
      %2564 = vst.msk [vmem:[#allocation2 + $0x130] sm:$0xff] %vm473, 0.0
      %2565 = vst.msk [vmem:[#allocation2 + $0x138] sm:$0x3] %vm477, 0.0
      %2566 = vst.msk [vmem:[#allocation2 + $0x140] sm:$0xff] %vm473, 0.0
      %2567 = vst.msk [vmem:[#allocation2 + $0x148] sm:$0xff] %vm473, 0.0
      %2568 = vst.msk [vmem:[#allocation2 + $0x150] sm:$0xff] %vm473, 0.0
      %2569 = vst.msk [vmem:[#allocation2 + $0x158] sm:$0x3] %vm477, 0.0
      %2570 = vst.msk [vmem:[#allocation2 + $0x160] sm:$0xff] %vm473, 0.0
      %2571 = vst.msk [vmem:[#allocation2 + $0x168] sm:$0xff] %vm473, 0.0
      %2572 = vst.msk [vmem:[#allocation2 + $0x170] sm:$0xff] %vm473, 0.0
      %2573 = vst.msk [vmem:[#allocation2 + $0x178] sm:$0x3] %vm477, 0.0
      %2574 = vst.msk [vmem:[#allocation2 + $0x180] sm:$0xff] %vm473, 0.0
      %2575 = vst.msk [vmem:[#allocation2 + $0x188] sm:$0xff] %vm473, 0.0
      %2576 = vst.msk [vmem:[#allocation2 + $0x190] sm:$0xff] %vm473, 0.0
      %2577 = vst.msk [vmem:[#allocation2 + $0x198] sm:$0x3] %vm477, 0.0
      %2578 = vst.msk [vmem:[#allocation2 + $0x1a0] sm:$0xff] %vm473, 0.0
      %2579 = vst.msk [vmem:[#allocation2 + $0x1a8] sm:$0xff] %vm473, 0.0
      %2580 = vst.msk [vmem:[#allocation2 + $0x1b0] sm:$0xff] %vm473, 0.0
      %2581 = vst.msk [vmem:[#allocation2 + $0x1b8] sm:$0x3] %vm477, 0.0
      %2582 = vst.msk [vmem:[#allocation2 + $0x1c0] sm:$0xff] %vm473, 0.0
      %2583 = vst.msk [vmem:[#allocation2 + $0x1c8] sm:$0xff] %vm473, 0.0
      %2584 = vst.msk [vmem:[#allocation2 + $0x1d0] sm:$0xff] %vm473, 0.0
      %2585 = vst.msk [vmem:[#allocation2 + $0x1d8] sm:$0x3] %vm477, 0.0
      %2586 = vst.msk [vmem:[#allocation2 + $0x1e0] sm:$0xff] %vm473, 0.0
      %2587 = vst.msk [vmem:[#allocation2 + $0x1e8] sm:$0xff] %vm473, 0.0
      %2588 = vst.msk [vmem:[#allocation2 + $0x1f0] sm:$0xff] %vm473, 0.0
      %2589 = vst.msk [vmem:[#allocation2 + $0x1f8] sm:$0x3] %vm477, 0.0
      %2590 = vst.msk [vmem:[#allocation2 + $0x200] sm:$0xff] %vm473, 0.0
      %2591 = vst.msk [vmem:[#allocation2 + $0x208] sm:$0xff] %vm473, 0.0
      %2592 = vst.msk [vmem:[#allocation2 + $0x210] sm:$0xff] %vm473, 0.0
      %2593 = vst.msk [vmem:[#allocation2 + $0x218] sm:$0x3] %vm477, 0.0
      %2594 = vst.msk [vmem:[#allocation2 + $0x220] sm:$0xff] %vm473, 0.0
      %2595 = vst.msk [vmem:[#allocation2 + $0x228] sm:$0xff] %vm473, 0.0
      %2596 = vst.msk [vmem:[#allocation2 + $0x230] sm:$0xff] %vm473, 0.0
      %2597 = vst.msk [vmem:[#allocation2 + $0x238] sm:$0x3] %vm477, 0.0
      %2598 = vst.msk [vmem:[#allocation2 + $0x240] sm:$0xff] %vm473, 0.0
      %2599 = vst.msk [vmem:[#allocation2 + $0x248] sm:$0xff] %vm473, 0.0
      %2600 = vst.msk [vmem:[#allocation2 + $0x250] sm:$0xff] %vm473, 0.0
      %2601 = vst.msk [vmem:[#allocation2 + $0x258] sm:$0x3] %vm477, 0.0
      %2602 = vst.msk [vmem:[#allocation2 + $0x260] sm:$0xff] %vm473, 0.0
      %2603 = vst.msk [vmem:[#allocation2 + $0x268] sm:$0xff] %vm473, 0.0
      %2604 = vst.msk [vmem:[#allocation2 + $0x270] sm:$0xff] %vm473, 0.0
      %2605 = vst.msk [vmem:[#allocation2 + $0x278] sm:$0x3] %vm477, 0.0
      %2606 = vst.msk [vmem:[#allocation2 + $0x280] sm:$0xff] %vm473, 0.0
      %2607 = vst.msk [vmem:[#allocation2 + $0x288] sm:$0xff] %vm473, 0.0
      %2608 = vst.msk [vmem:[#allocation2 + $0x290] sm:$0xff] %vm473, 0.0
      %2609 = vst.msk [vmem:[#allocation2 + $0x298] sm:$0x3] %vm477, 0.0
      %2610 = vst.msk [vmem:[#allocation2 + $0x2a0] sm:$0xff] %vm473, 0.0
      %2611 = vst.msk [vmem:[#allocation2 + $0x2a8] sm:$0xff] %vm473, 0.0
      %2612 = vst.msk [vmem:[#allocation2 + $0x2b0] sm:$0xff] %vm473, 0.0
      %2613 = vst.msk [vmem:[#allocation2 + $0x2b8] sm:$0x3] %vm477, 0.0
      %2614 = vst.msk [vmem:[#allocation2 + $0x2c0] sm:$0xff] %vm473, 0.0
      %2615 = vst.msk [vmem:[#allocation2 + $0x2c8] sm:$0xff] %vm473, 0.0
      %2616 = vst.msk [vmem:[#allocation2 + $0x2d0] sm:$0xff] %vm473, 0.0
      %2617 = vst.msk [vmem:[#allocation2 + $0x2d8] sm:$0x3] %vm477, 0.0
      %2618 = vst.msk [vmem:[#allocation2 + $0x2e0] sm:$0xff] %vm473, 0.0
      %2619 = vst.msk [vmem:[#allocation2 + $0x2e8] sm:$0xff] %vm473, 0.0
      %2620 = vst.msk [vmem:[#allocation2 + $0x2f0] sm:$0xff] %vm473, 0.0
      %2621 = vst.msk [vmem:[#allocation2 + $0x2f8] sm:$0x3] %vm477, 0.0
      %2622 = vst.msk [vmem:[#allocation2 + $0x300] sm:$0xff] %vm473, 0.0
      %2623 = vst.msk [vmem:[#allocation2 + $0x308] sm:$0xff] %vm473, 0.0
      %2624 = vst.msk [vmem:[#allocation2 + $0x310] sm:$0xff] %vm473, 0.0
      %2625 = vst.msk [vmem:[#allocation2 + $0x318] sm:$0x3] %vm477, 0.0
      %2626 = vst.msk [vmem:[#allocation2 + $0x320] sm:$0xff] %vm473, 0.0
      %2627 = vst.msk [vmem:[#allocation2 + $0x328] sm:$0xff] %vm473, 0.0
      %2628 = vst.msk [vmem:[#allocation2 + $0x330] sm:$0xff] %vm473, 0.0
      %2629 = vst.msk [vmem:[#allocation2 + $0x338] sm:$0x3] %vm477, 0.0
      %s2630 = scalar_lea.vmem [#allocation2], 96
      %2631 = vst.msk [vmem:[%s2630 + $0x3] sm:$0xff] %vm473, %v441
      %2632 = vst.msk [vmem:[%s2630 + $0xb] sm:$0xff] %vm473, %v442
      %2633 = vst.msk [vmem:[%s2630 + $0x23] sm:$0xff] %vm473, %v443
      %2634 = vst.msk [vmem:[%s2630 + $0x2b] sm:$0xff] %vm473, %v444
      %2635 = vst.msk [vmem:[%s2630 + $0x43] sm:$0xff] %vm473, %v445
      %2636 = vst.msk [vmem:[%s2630 + $0x4b] sm:$0xff] %vm473, %v446
      %2637 = vst.msk [vmem:[%s2630 + $0x63] sm:$0xff] %vm473, %v447
      %2638 = vst.msk [vmem:[%s2630 + $0x6b] sm:$0xff] %vm473, %v448
      %2639 = vst.msk [vmem:[%s2630 + $0x83] sm:$0xff] %vm473, %v449
      %2640 = vst.msk [vmem:[%s2630 + $0x8b] sm:$0xff] %vm473, %v450
      %2641 = vst.msk [vmem:[%s2630 + $0xa3] sm:$0xff] %vm473, %v451
      %2642 = vst.msk [vmem:[%s2630 + $0xab] sm:$0xff] %vm473, %v452
      %2643 = vst.msk [vmem:[%s2630 + $0xc3] sm:$0xff] %vm473, %v453
      %2644 = vst.msk [vmem:[%s2630 + $0xcb] sm:$0xff] %vm473, %v454
      %2645 = vst.msk [vmem:[%s2630 + $0xe3] sm:$0xff] %vm473, %v455
      %2646 = vst.msk [vmem:[%s2630 + $0xeb] sm:$0xff] %vm473, %v456
      %2647 = vst.msk [vmem:[%s2630 + $0x103] sm:$0xff] %vm473, %v457
      %2648 = vst.msk [vmem:[%s2630 + $0x10b] sm:$0xff] %vm473, %v458
      %2649 = vst.msk [vmem:[%s2630 + $0x123] sm:$0xff] %vm473, %v459
      %2650 = vst.msk [vmem:[%s2630 + $0x12b] sm:$0xff] %vm473, %v460
      %2651 = vst.msk [vmem:[%s2630 + $0x143] sm:$0xff] %vm473, %v461
      %2652 = vst.msk [vmem:[%s2630 + $0x14b] sm:$0xff] %vm473, %v462
      %2653 = vst.msk [vmem:[%s2630 + $0x163] sm:$0xff] %vm473, %v463
      %2654 = vst.msk [vmem:[%s2630 + $0x16b] sm:$0xff] %vm473, %v464
      %2655 = vst.msk [vmem:[%s2630 + $0x183] sm:$0xff] %vm473, %v465
      %2656 = vst.msk [vmem:[%s2630 + $0x18b] sm:$0xff] %vm473, %v466
      %2657 = vst.msk [vmem:[%s2630 + $0x1a3] sm:$0xff] %vm473, %v467
      %2658 = vst.msk [vmem:[%s2630 + $0x1ab] sm:$0xff] %vm473, %v468
      %2659 = vst.msk [vmem:[%s2630 + $0x1c3] sm:$0xff] %vm473, %v469
      %2660 = vst.msk [vmem:[%s2630 + $0x1cb] sm:$0xff] %vm473, %v470
      %2661 = vst.msk [vmem:[%s2630 + $0x1e3] sm:$0xff] %vm473, %v471
      %2662 = vst.msk [vmem:[%s2630 + $0x1eb] sm:$0xff] %vm473, %v472
      %v2663 = vld [vmem:[#allocation2] sm:$0xff]
      %v2664 = vld [vmem:[#allocation2 + $0x8] sm:$0xff]
      %v2665 = vld [vmem:[#allocation2 + $0x20] sm:$0xff]
      %v2666 = vld [vmem:[#allocation2 + $0x28] sm:$0xff]
      %v2667 = vld [vmem:[#allocation2 + $0x40] sm:$0xff]
      %v2668 = vld [vmem:[#allocation2 + $0x48] sm:$0xff]
      %v2669 = vld [vmem:[#allocation2 + $0x60] sm:$0xff]
      %v2670 = vld [vmem:[#allocation2 + $0x68] sm:$0xff]
      %v2671 = vld [vmem:[#allocation2 + $0x80] sm:$0xff]
      %v2672 = vld [vmem:[#allocation2 + $0x88] sm:$0xff]
      %v2673 = vld [vmem:[#allocation2 + $0xa0] sm:$0xff]
      %v2674 = vld [vmem:[#allocation2 + $0xa8] sm:$0xff]
      %v2675 = vld [vmem:[#allocation2 + $0xc0] sm:$0xff]
      %v2676 = vld [vmem:[#allocation2 + $0xc8] sm:$0xff]
      %v2677 = vld [vmem:[#allocation2 + $0xe0] sm:$0xff]
      %v2678 = vld [vmem:[#allocation2 + $0xe8] sm:$0xff]
      %v2679 = vld [vmem:[#allocation2 + $0x100] sm:$0xff]
      %v2680 = vld [vmem:[#allocation2 + $0x108] sm:$0xff]
      %v2681 = vld [vmem:[#allocation2 + $0x120] sm:$0xff]
      %v2682 = vld [vmem:[#allocation2 + $0x128] sm:$0xff]
      %v2683 = vld [vmem:[#allocation2 + $0x140] sm:$0xff]
      %v2684 = vld [vmem:[#allocation2 + $0x148] sm:$0xff]
      %v2685 = vld [vmem:[#allocation2 + $0x160] sm:$0xff]
      %v2686 = vld [vmem:[#allocation2 + $0x168] sm:$0xff]
      %v2687 = vld [vmem:[#allocation2 + $0x180] sm:$0xff]
      %v2688 = vld [vmem:[#allocation2 + $0x188] sm:$0xff]
      %v2689 = vld [vmem:[#allocation2 + $0x1a0] sm:$0xff]
      %v2690 = vld [vmem:[#allocation2 + $0x1a8] sm:$0xff]
      %v2691 = vld [vmem:[#allocation2 + $0x1c0] sm:$0xff]
      %v2692 = vld [vmem:[#allocation2 + $0x1c8] sm:$0xff]
      %v2693 = vld [vmem:[#allocation2 + $0x1e0] sm:$0xff]
      %v2694 = vld [vmem:[#allocation2 + $0x1e8] sm:$0xff]
      %v2695 = vld [vmem:[#allocation2 + $0x3] sm:$0xff]
      %v2696 = vld [vmem:[#allocation2 + $0xb] sm:$0xff]
      %v2697 = vld [vmem:[#allocation2 + $0x23] sm:$0xff]
      %v2698 = vld [vmem:[#allocation2 + $0x2b] sm:$0xff]
      %v2699 = vld [vmem:[#allocation2 + $0x43] sm:$0xff]
      %v2700 = vld [vmem:[#allocation2 + $0x4b] sm:$0xff]
      %v2701 = vld [vmem:[#allocation2 + $0x63] sm:$0xff]
      %v2702 = vld [vmem:[#allocation2 + $0x6b] sm:$0xff]
      %v2703 = vld [vmem:[#allocation2 + $0x83] sm:$0xff]
      %v2704 = vld [vmem:[#allocation2 + $0x8b] sm:$0xff]
      %v2705 = vld [vmem:[#allocation2 + $0xa3] sm:$0xff]
      %v2706 = vld [vmem:[#allocation2 + $0xab] sm:$0xff]
      %v2707 = vld [vmem:[#allocation2 + $0xc3] sm:$0xff]
      %v2708 = vld [vmem:[#allocation2 + $0xcb] sm:$0xff]
      %v2709 = vld [vmem:[#allocation2 + $0xe3] sm:$0xff]
      %v2710 = vld [vmem:[#allocation2 + $0xeb] sm:$0xff]
      %v2711 = vld [vmem:[#allocation2 + $0x103] sm:$0xff]
      %v2712 = vld [vmem:[#allocation2 + $0x10b] sm:$0xff]
      %v2713 = vld [vmem:[#allocation2 + $0x123] sm:$0xff]
      %v2714 = vld [vmem:[#allocation2 + $0x12b] sm:$0xff]
      %v2715 = vld [vmem:[#allocation2 + $0x143] sm:$0xff]
      %v2716 = vld [vmem:[#allocation2 + $0x14b] sm:$0xff]
      %v2717 = vld [vmem:[#allocation2 + $0x163] sm:$0xff]
      %v2718 = vld [vmem:[#allocation2 + $0x16b] sm:$0xff]
      %v2719 = vld [vmem:[#allocation2 + $0x183] sm:$0xff]
      %v2720 = vld [vmem:[#allocation2 + $0x18b] sm:$0xff]
      %v2721 = vld [vmem:[#allocation2 + $0x1a3] sm:$0xff]
      %v2722 = vld [vmem:[#allocation2 + $0x1ab] sm:$0xff]
      %v2723 = vld [vmem:[#allocation2 + $0x1c3] sm:$0xff]
      %v2724 = vld [vmem:[#allocation2 + $0x1cb] sm:$0xff]
      %v2725 = vld [vmem:[#allocation2 + $0x1e3] sm:$0xff]
      %v2726 = vld [vmem:[#allocation2 + $0x1eb] sm:$0xff]
      %v2727 = vld [vmem:[#allocation2 + $0x6] sm:$0xff]
      %v2728 = vld [vmem:[#allocation2 + $0xe] sm:$0xff]
      %v2729 = vld [vmem:[#allocation2 + $0x26] sm:$0xff]
      %v2730 = vld [vmem:[#allocation2 + $0x2e] sm:$0xff]
      %v2731 = vld [vmem:[#allocation2 + $0x46] sm:$0xff]
      %v2732 = vld [vmem:[#allocation2 + $0x4e] sm:$0xff]
      %v2733 = vld [vmem:[#allocation2 + $0x66] sm:$0xff]
      %v2734 = vld [vmem:[#allocation2 + $0x6e] sm:$0xff]
      %v2735 = vld [vmem:[#allocation2 + $0x86] sm:$0xff]
      %v2736 = vld [vmem:[#allocation2 + $0x8e] sm:$0xff]
      %v2737 = vld [vmem:[#allocation2 + $0xa6] sm:$0xff]
      %v2738 = vld [vmem:[#allocation2 + $0xae] sm:$0xff]
      %v2739 = vld [vmem:[#allocation2 + $0xc6] sm:$0xff]
      %v2740 = vld [vmem:[#allocation2 + $0xce] sm:$0xff]
      %v2741 = vld [vmem:[#allocation2 + $0xe6] sm:$0xff]
      %v2742 = vld [vmem:[#allocation2 + $0xee] sm:$0xff]
      %v2743 = vld [vmem:[#allocation2 + $0x106] sm:$0xff]
      %v2744 = vld [vmem:[#allocation2 + $0x10e] sm:$0xff]
      %v2745 = vld [vmem:[#allocation2 + $0x126] sm:$0xff]
      %v2746 = vld [vmem:[#allocation2 + $0x12e] sm:$0xff]
      %v2747 = vld [vmem:[#allocation2 + $0x146] sm:$0xff]
      %v2748 = vld [vmem:[#allocation2 + $0x14e] sm:$0xff]
      %v2749 = vld [vmem:[#allocation2 + $0x166] sm:$0xff]
      %v2750 = vld [vmem:[#allocation2 + $0x16e] sm:$0xff]
      %v2751 = vld [vmem:[#allocation2 + $0x186] sm:$0xff]
      %v2752 = vld [vmem:[#allocation2 + $0x18e] sm:$0xff]
      %v2753 = vld [vmem:[#allocation2 + $0x1a6] sm:$0xff]
      %v2754 = vld [vmem:[#allocation2 + $0x1ae] sm:$0xff]
      %v2755 = vld [vmem:[#allocation2 + $0x1c6] sm:$0xff]
      %v2756 = vld [vmem:[#allocation2 + $0x1ce] sm:$0xff]
      %v2757 = vld [vmem:[#allocation2 + $0x1e6] sm:$0xff]
      %v2758 = vld [vmem:[#allocation2 + $0x1ee] sm:$0xff]
      %v2759 = vld [vmem:[%s2630] sm:$0xff]
      %v2760 = vld [vmem:[%s2630 + $0x8] sm:$0xff]
      %v2761 = vld [vmem:[%s2630 + $0x20] sm:$0xff]
      %v2762 = vld [vmem:[%s2630 + $0x28] sm:$0xff]
      %v2763 = vld [vmem:[%s2630 + $0x40] sm:$0xff]
      %v2764 = vld [vmem:[%s2630 + $0x48] sm:$0xff]
      %v2765 = vld [vmem:[%s2630 + $0x60] sm:$0xff]
      %v2766 = vld [vmem:[%s2630 + $0x68] sm:$0xff]
      %v2767 = vld [vmem:[%s2630 + $0x80] sm:$0xff]
      %v2768 = vld [vmem:[%s2630 + $0x88] sm:$0xff]
      %v2769 = vld [vmem:[%s2630 + $0xa0] sm:$0xff]
      %v2770 = vld [vmem:[%s2630 + $0xa8] sm:$0xff]
      %v2771 = vld [vmem:[%s2630 + $0xc0] sm:$0xff]
      %v2772 = vld [vmem:[%s2630 + $0xc8] sm:$0xff]
      %v2773 = vld [vmem:[%s2630 + $0xe0] sm:$0xff]
      %v2774 = vld [vmem:[%s2630 + $0xe8] sm:$0xff]
      %v2775 = vld [vmem:[%s2630 + $0x100] sm:$0xff]
      %v2776 = vld [vmem:[%s2630 + $0x108] sm:$0xff]
      %v2777 = vld [vmem:[%s2630 + $0x120] sm:$0xff]
      %v2778 = vld [vmem:[%s2630 + $0x128] sm:$0xff]
      %v2779 = vld [vmem:[%s2630 + $0x140] sm:$0xff]
      %v2780 = vld [vmem:[%s2630 + $0x148] sm:$0xff]
      %v2781 = vld [vmem:[%s2630 + $0x160] sm:$0xff]
      %v2782 = vld [vmem:[%s2630 + $0x168] sm:$0xff]
      %v2783 = vld [vmem:[%s2630 + $0x180] sm:$0xff]
      %v2784 = vld [vmem:[%s2630 + $0x188] sm:$0xff]
      %v2785 = vld [vmem:[%s2630 + $0x1a0] sm:$0xff]
      %v2786 = vld [vmem:[%s2630 + $0x1a8] sm:$0xff]
      %v2787 = vld [vmem:[%s2630 + $0x1c0] sm:$0xff]
      %v2788 = vld [vmem:[%s2630 + $0x1c8] sm:$0xff]
      %v2789 = vld [vmem:[%s2630 + $0x1e0] sm:$0xff]
      %v2790 = vld [vmem:[%s2630 + $0x1e8] sm:$0xff]
      %v2791 = vld [vmem:[%s2630 + $0x3] sm:$0xff]
      %v2792 = vld [vmem:[%s2630 + $0xb] sm:$0xff]
      %v2793 = vld [vmem:[%s2630 + $0x23] sm:$0xff]
      %v2794 = vld [vmem:[%s2630 + $0x2b] sm:$0xff]
      %v2795 = vld [vmem:[%s2630 + $0x43] sm:$0xff]
      %v2796 = vld [vmem:[%s2630 + $0x4b] sm:$0xff]
      %v2797 = vld [vmem:[%s2630 + $0x63] sm:$0xff]
      %v2798 = vld [vmem:[%s2630 + $0x6b] sm:$0xff]
      %v2799 = vld [vmem:[%s2630 + $0x83] sm:$0xff]
      %v2800 = vld [vmem:[%s2630 + $0x8b] sm:$0xff]
      %v2801 = vld [vmem:[%s2630 + $0xa3] sm:$0xff]
      %v2802 = vld [vmem:[%s2630 + $0xab] sm:$0xff]
      %v2803 = vld [vmem:[%s2630 + $0xc3] sm:$0xff]
      %v2804 = vld [vmem:[%s2630 + $0xcb] sm:$0xff]
      %v2805 = vld [vmem:[%s2630 + $0xe3] sm:$0xff]
      %v2806 = vld [vmem:[%s2630 + $0xeb] sm:$0xff]
      %v2807 = vld [vmem:[%s2630 + $0x103] sm:$0xff]
      %v2808 = vld [vmem:[%s2630 + $0x10b] sm:$0xff]
      %v2809 = vld [vmem:[%s2630 + $0x123] sm:$0xff]
      %v2810 = vld [vmem:[%s2630 + $0x12b] sm:$0xff]
      %v2811 = vld [vmem:[%s2630 + $0x143] sm:$0xff]
      %v2812 = vld [vmem:[%s2630 + $0x14b] sm:$0xff]
      %v2813 = vld [vmem:[%s2630 + $0x163] sm:$0xff]
      %v2814 = vld [vmem:[%s2630 + $0x16b] sm:$0xff]
      %v2815 = vld [vmem:[%s2630 + $0x183] sm:$0xff]
      %v2816 = vld [vmem:[%s2630 + $0x18b] sm:$0xff]
      %v2817 = vld [vmem:[%s2630 + $0x1a3] sm:$0xff]
      %v2818 = vld [vmem:[%s2630 + $0x1ab] sm:$0xff]
      %v2819 = vld [vmem:[%s2630 + $0x1c3] sm:$0xff]
      %v2820 = vld [vmem:[%s2630 + $0x1cb] sm:$0xff]
      %v2821 = vld [vmem:[%s2630 + $0x1e3] sm:$0xff]
      %v2822 = vld [vmem:[%s2630 + $0x1eb] sm:$0xff]
      %v2823 = vld [vmem:[%s2630 + $0x6] sm:$0xff]
      %v2824 = vld [vmem:[%s2630 + $0xe] sm:$0xff]
      %v2825 = vld [vmem:[%s2630 + $0x26] sm:$0xff]
      %v2826 = vld [vmem:[%s2630 + $0x2e] sm:$0xff]
      %v2827 = vld [vmem:[%s2630 + $0x46] sm:$0xff]
      %v2828 = vld [vmem:[%s2630 + $0x4e] sm:$0xff]
      %v2829 = vld [vmem:[%s2630 + $0x66] sm:$0xff]
      %v2830 = vld [vmem:[%s2630 + $0x6e] sm:$0xff]
      %v2831 = vld [vmem:[%s2630 + $0x86] sm:$0xff]
      %v2832 = vld [vmem:[%s2630 + $0x8e] sm:$0xff]
      %v2833 = vld [vmem:[%s2630 + $0xa6] sm:$0xff]
      %v2834 = vld [vmem:[%s2630 + $0xae] sm:$0xff]
      %v2835 = vld [vmem:[%s2630 + $0xc6] sm:$0xff]
      %v2836 = vld [vmem:[%s2630 + $0xce] sm:$0xff]
      %v2837 = vld [vmem:[%s2630 + $0xe6] sm:$0xff]
      %v2838 = vld [vmem:[%s2630 + $0xee] sm:$0xff]
      %v2839 = vld [vmem:[%s2630 + $0x106] sm:$0xff]
      %v2840 = vld [vmem:[%s2630 + $0x10e] sm:$0xff]
      %v2841 = vld [vmem:[%s2630 + $0x126] sm:$0xff]
      %v2842 = vld [vmem:[%s2630 + $0x12e] sm:$0xff]
      %v2843 = vld [vmem:[%s2630 + $0x146] sm:$0xff]
      %v2844 = vld [vmem:[%s2630 + $0x14e] sm:$0xff]
      %v2845 = vld [vmem:[%s2630 + $0x166] sm:$0xff]
      %v2846 = vld [vmem:[%s2630 + $0x16e] sm:$0xff]
      %v2847 = vld [vmem:[%s2630 + $0x186] sm:$0xff]
      %v2848 = vld [vmem:[%s2630 + $0x18e] sm:$0xff]
      %v2849 = vld [vmem:[%s2630 + $0x1a6] sm:$0xff]
      %v2850 = vld [vmem:[%s2630 + $0x1ae] sm:$0xff]
      %v2851 = vld [vmem:[%s2630 + $0x1c6] sm:$0xff]
      %v2852 = vld [vmem:[%s2630 + $0x1ce] sm:$0xff]
      %v2853 = vld [vmem:[%s2630 + $0x1e6] sm:$0xff]
      %v2854 = vld [vmem:[%s2630 + $0x1ee] sm:$0xff]
      %s2855 = scalar_lea.vmem [#allocation2], 192
      %v2856 = vld [vmem:[%s2855] sm:$0xff]
      %v2857 = vld [vmem:[%s2855 + $0x8] sm:$0xff]
      %v2858 = vld [vmem:[%s2855 + $0x20] sm:$0xff]
      %v2859 = vld [vmem:[%s2855 + $0x28] sm:$0xff]
      %v2860 = vld [vmem:[%s2855 + $0x40] sm:$0xff]
      %v2861 = vld [vmem:[%s2855 + $0x48] sm:$0xff]
      %v2862 = vld [vmem:[%s2855 + $0x60] sm:$0xff]
      %v2863 = vld [vmem:[%s2855 + $0x68] sm:$0xff]
      %v2864 = vld [vmem:[%s2855 + $0x80] sm:$0xff]
      %v2865 = vld [vmem:[%s2855 + $0x88] sm:$0xff]
      %v2866 = vld [vmem:[%s2855 + $0xa0] sm:$0xff]
      %v2867 = vld [vmem:[%s2855 + $0xa8] sm:$0xff]
      %v2868 = vld [vmem:[%s2855 + $0xc0] sm:$0xff]
      %v2869 = vld [vmem:[%s2855 + $0xc8] sm:$0xff]
      %v2870 = vld [vmem:[%s2855 + $0xe0] sm:$0xff]
      %v2871 = vld [vmem:[%s2855 + $0xe8] sm:$0xff]
      %v2872 = vld [vmem:[%s2855 + $0x100] sm:$0xff]
      %v2873 = vld [vmem:[%s2855 + $0x108] sm:$0xff]
      %v2874 = vld [vmem:[%s2855 + $0x120] sm:$0xff]
      %v2875 = vld [vmem:[%s2855 + $0x128] sm:$0xff]
      %v2876 = vld [vmem:[%s2855 + $0x140] sm:$0xff]
      %v2877 = vld [vmem:[%s2855 + $0x148] sm:$0xff]
      %v2878 = vld [vmem:[%s2855 + $0x160] sm:$0xff]
      %v2879 = vld [vmem:[%s2855 + $0x168] sm:$0xff]
      %v2880 = vld [vmem:[%s2855 + $0x180] sm:$0xff]
      %v2881 = vld [vmem:[%s2855 + $0x188] sm:$0xff]
      %v2882 = vld [vmem:[%s2855 + $0x1a0] sm:$0xff]
      %v2883 = vld [vmem:[%s2855 + $0x1a8] sm:$0xff]
      %v2884 = vld [vmem:[%s2855 + $0x1c0] sm:$0xff]
      %v2885 = vld [vmem:[%s2855 + $0x1c8] sm:$0xff]
      %v2886 = vld [vmem:[%s2855 + $0x1e0] sm:$0xff]
      %v2887 = vld [vmem:[%s2855 + $0x1e8] sm:$0xff]
      %v2888 = vld [vmem:[%s2855 + $0x3] sm:$0xff]
      %v2889 = vld [vmem:[%s2855 + $0xb] sm:$0xff]
      %v2890 = vld [vmem:[%s2855 + $0x23] sm:$0xff]
      %v2891 = vld [vmem:[%s2855 + $0x2b] sm:$0xff]
      %v2892 = vld [vmem:[%s2855 + $0x43] sm:$0xff]
      %v2893 = vld [vmem:[%s2855 + $0x4b] sm:$0xff]
      %v2894 = vld [vmem:[%s2855 + $0x63] sm:$0xff]
      %v2895 = vld [vmem:[%s2855 + $0x6b] sm:$0xff]
      %v2896 = vld [vmem:[%s2855 + $0x83] sm:$0xff]
      %v2897 = vld [vmem:[%s2855 + $0x8b] sm:$0xff]
      %v2898 = vld [vmem:[%s2855 + $0xa3] sm:$0xff]
      %v2899 = vld [vmem:[%s2855 + $0xab] sm:$0xff]
      %v2900 = vld [vmem:[%s2855 + $0xc3] sm:$0xff]
      %v2901 = vld [vmem:[%s2855 + $0xcb] sm:$0xff]
      %v2902 = vld [vmem:[%s2855 + $0xe3] sm:$0xff]
      %v2903 = vld [vmem:[%s2855 + $0xeb] sm:$0xff]
      %v2904 = vld [vmem:[%s2855 + $0x103] sm:$0xff]
      %v2905 = vld [vmem:[%s2855 + $0x10b] sm:$0xff]
      %v2906 = vld [vmem:[%s2855 + $0x123] sm:$0xff]
      %v2907 = vld [vmem:[%s2855 + $0x12b] sm:$0xff]
      %v2908 = vld [vmem:[%s2855 + $0x143] sm:$0xff]
      %v2909 = vld [vmem:[%s2855 + $0x14b] sm:$0xff]
      %v2910 = vld [vmem:[%s2855 + $0x163] sm:$0xff]
      %v2911 = vld [vmem:[%s2855 + $0x16b] sm:$0xff]
      %v2912 = vld [vmem:[%s2855 + $0x183] sm:$0xff]
      %v2913 = vld [vmem:[%s2855 + $0x18b] sm:$0xff]
      %v2914 = vld [vmem:[%s2855 + $0x1a3] sm:$0xff]
      %v2915 = vld [vmem:[%s2855 + $0x1ab] sm:$0xff]
      %v2916 = vld [vmem:[%s2855 + $0x1c3] sm:$0xff]
      %v2917 = vld [vmem:[%s2855 + $0x1cb] sm:$0xff]
      %v2918 = vld [vmem:[%s2855 + $0x1e3] sm:$0xff]
      %v2919 = vld [vmem:[%s2855 + $0x1eb] sm:$0xff]
      %v2920 = vld [vmem:[%s2855 + $0x6] sm:$0xff]
      %v2921 = vld [vmem:[%s2855 + $0xe] sm:$0xff]
      %v2922 = vld [vmem:[%s2855 + $0x26] sm:$0xff]
      %v2923 = vld [vmem:[%s2855 + $0x2e] sm:$0xff]
      %v2924 = vld [vmem:[%s2855 + $0x46] sm:$0xff]
      %v2925 = vld [vmem:[%s2855 + $0x4e] sm:$0xff]
      %v2926 = vld [vmem:[%s2855 + $0x66] sm:$0xff]
      %v2927 = vld [vmem:[%s2855 + $0x6e] sm:$0xff]
      %v2928 = vld [vmem:[%s2855 + $0x86] sm:$0xff]
      %v2929 = vld [vmem:[%s2855 + $0x8e] sm:$0xff]
      %v2930 = vld [vmem:[%s2855 + $0xa6] sm:$0xff]
      %v2931 = vld [vmem:[%s2855 + $0xae] sm:$0xff]
      %v2932 = vld [vmem:[%s2855 + $0xc6] sm:$0xff]
      %v2933 = vld [vmem:[%s2855 + $0xce] sm:$0xff]
      %v2934 = vld [vmem:[%s2855 + $0xe6] sm:$0xff]
      %v2935 = vld [vmem:[%s2855 + $0xee] sm:$0xff]
      %v2936 = vld [vmem:[%s2855 + $0x106] sm:$0xff]
      %v2937 = vld [vmem:[%s2855 + $0x10e] sm:$0xff]
      %v2938 = vld [vmem:[%s2855 + $0x126] sm:$0xff]
      %v2939 = vld [vmem:[%s2855 + $0x12e] sm:$0xff]
      %v2940 = vld [vmem:[%s2855 + $0x146] sm:$0xff]
      %v2941 = vld [vmem:[%s2855 + $0x14e] sm:$0xff]
      %v2942 = vld [vmem:[%s2855 + $0x166] sm:$0xff]
      %v2943 = vld [vmem:[%s2855 + $0x16e] sm:$0xff]
      %v2944 = vld [vmem:[%s2855 + $0x186] sm:$0xff]
      %v2945 = vld [vmem:[%s2855 + $0x18e] sm:$0xff]
      %v2946 = vld [vmem:[%s2855 + $0x1a6] sm:$0xff]
      %v2947 = vld [vmem:[%s2855 + $0x1ae] sm:$0xff]
      %v2948 = vld [vmem:[%s2855 + $0x1c6] sm:$0xff]
      %v2949 = vld [vmem:[%s2855 + $0x1ce] sm:$0xff]
      %v2950 = vld [vmem:[%s2855 + $0x1e6] sm:$0xff]
      %v2951 = vld [vmem:[%s2855 + $0x1ee] sm:$0xff]
      %2984 = vrot.lane.b32.xlu0 %v2695, 8
      %v2985 = vpop.permute.xlu0 %2984
      %2986 = vrot.lane.b32.xlu0 %v2696, 8
      %v2987 = vpop.permute.xlu0 %2986
      %2988 = vrot.lane.b32.xlu0 %v2697, 8
      %v2989 = vpop.permute.xlu0 %2988
      %2990 = vrot.lane.b32.xlu0 %v2698, 8
      %v2991 = vpop.permute.xlu0 %2990
      %2992 = vrot.lane.b32.xlu0 %v2699, 8
      %v2993 = vpop.permute.xlu0 %2992
      %2994 = vrot.lane.b32.xlu0 %v2700, 8
      %v2995 = vpop.permute.xlu0 %2994
      %2996 = vrot.lane.b32.xlu0 %v2701, 8
      %v2997 = vpop.permute.xlu0 %2996
      %2998 = vrot.lane.b32.xlu0 %v2702, 8
      %v2999 = vpop.permute.xlu0 %2998
      %3000 = vrot.lane.b32.xlu0 %v2703, 8
      %v3001 = vpop.permute.xlu0 %3000
      %3002 = vrot.lane.b32.xlu0 %v2704, 8
      %v3003 = vpop.permute.xlu0 %3002
      %3004 = vrot.lane.b32.xlu0 %v2705, 8
      %v3005 = vpop.permute.xlu0 %3004
      %3006 = vrot.lane.b32.xlu0 %v2706, 8
      %v3007 = vpop.permute.xlu0 %3006
      %3008 = vrot.lane.b32.xlu0 %v2707, 8
      %v3009 = vpop.permute.xlu0 %3008
      %3010 = vrot.lane.b32.xlu0 %v2708, 8
      %v3011 = vpop.permute.xlu0 %3010
      %3012 = vrot.lane.b32.xlu0 %v2709, 8
      %v3013 = vpop.permute.xlu0 %3012
      %3014 = vrot.lane.b32.xlu0 %v2710, 8
      %v3015 = vpop.permute.xlu0 %3014
      %3016 = vrot.lane.b32.xlu0 %v2711, 8
      %v3017 = vpop.permute.xlu0 %3016
      %3018 = vrot.lane.b32.xlu0 %v2712, 8
      %v3019 = vpop.permute.xlu0 %3018
      %3020 = vrot.lane.b32.xlu0 %v2713, 8
      %v3021 = vpop.permute.xlu0 %3020
      %3022 = vrot.lane.b32.xlu0 %v2714, 8
      %v3023 = vpop.permute.xlu0 %3022
      %3024 = vrot.lane.b32.xlu0 %v2715, 8
      %v3025 = vpop.permute.xlu0 %3024
      %3026 = vrot.lane.b32.xlu0 %v2716, 8
      %v3027 = vpop.permute.xlu0 %3026
      %3028 = vrot.lane.b32.xlu0 %v2717, 8
      %v3029 = vpop.permute.xlu0 %3028
      %3030 = vrot.lane.b32.xlu0 %v2718, 8
      %v3031 = vpop.permute.xlu0 %3030
      %3032 = vrot.lane.b32.xlu0 %v2719, 8
      %v3033 = vpop.permute.xlu0 %3032
      %3034 = vrot.lane.b32.xlu0 %v2720, 8
      %v3035 = vpop.permute.xlu0 %3034
      %3036 = vrot.lane.b32.xlu0 %v2721, 8
      %v3037 = vpop.permute.xlu0 %3036
      %3038 = vrot.lane.b32.xlu0 %v2722, 8
      %v3039 = vpop.permute.xlu0 %3038
      %3040 = vrot.lane.b32.xlu0 %v2723, 8
      %v3041 = vpop.permute.xlu0 %3040
      %3042 = vrot.lane.b32.xlu0 %v2724, 8
      %v3043 = vpop.permute.xlu0 %3042
      %3044 = vrot.lane.b32.xlu0 %v2725, 8
      %v3045 = vpop.permute.xlu0 %3044
      %3046 = vrot.lane.b32.xlu0 %v2726, 8
      %v3047 = vpop.permute.xlu0 %3046
      %3112 = vrot.lane.b32.xlu0 %v2727, 16
      %v3113 = vpop.permute.xlu0 %3112
      %3114 = vrot.lane.b32.xlu0 %v2728, 16
      %v3115 = vpop.permute.xlu0 %3114
      %3116 = vrot.lane.b32.xlu0 %v2729, 16
      %v3117 = vpop.permute.xlu0 %3116
      %3118 = vrot.lane.b32.xlu0 %v2730, 16
      %v3119 = vpop.permute.xlu0 %3118
      %3120 = vrot.lane.b32.xlu0 %v2731, 16
      %v3121 = vpop.permute.xlu0 %3120
      %3122 = vrot.lane.b32.xlu0 %v2732, 16
      %v3123 = vpop.permute.xlu0 %3122
      %3124 = vrot.lane.b32.xlu0 %v2733, 16
      %v3125 = vpop.permute.xlu0 %3124
      %3126 = vrot.lane.b32.xlu0 %v2734, 16
      %v3127 = vpop.permute.xlu0 %3126
      %3128 = vrot.lane.b32.xlu0 %v2735, 16
      %v3129 = vpop.permute.xlu0 %3128
      %3130 = vrot.lane.b32.xlu0 %v2736, 16
      %v3131 = vpop.permute.xlu0 %3130
      %3132 = vrot.lane.b32.xlu0 %v2737, 16
      %v3133 = vpop.permute.xlu0 %3132
      %3134 = vrot.lane.b32.xlu0 %v2738, 16
      %v3135 = vpop.permute.xlu0 %3134
      %3136 = vrot.lane.b32.xlu0 %v2739, 16
      %v3137 = vpop.permute.xlu0 %3136
      %3138 = vrot.lane.b32.xlu0 %v2740, 16
      %v3139 = vpop.permute.xlu0 %3138
      %3140 = vrot.lane.b32.xlu0 %v2741, 16
      %v3141 = vpop.permute.xlu0 %3140
      %3142 = vrot.lane.b32.xlu0 %v2742, 16
      %v3143 = vpop.permute.xlu0 %3142
      %3144 = vrot.lane.b32.xlu0 %v2743, 16
      %v3145 = vpop.permute.xlu0 %3144
      %3146 = vrot.lane.b32.xlu0 %v2744, 16
      %v3147 = vpop.permute.xlu0 %3146
      %3148 = vrot.lane.b32.xlu0 %v2745, 16
      %v3149 = vpop.permute.xlu0 %3148
      %3150 = vrot.lane.b32.xlu0 %v2746, 16
      %v3151 = vpop.permute.xlu0 %3150
      %3152 = vrot.lane.b32.xlu0 %v2747, 16
      %v3153 = vpop.permute.xlu0 %3152
      %3154 = vrot.lane.b32.xlu0 %v2748, 16
      %v3155 = vpop.permute.xlu0 %3154
      %3156 = vrot.lane.b32.xlu0 %v2749, 16
      %v3157 = vpop.permute.xlu0 %3156
      %3158 = vrot.lane.b32.xlu0 %v2750, 16
      %v3159 = vpop.permute.xlu0 %3158
      %3160 = vrot.lane.b32.xlu0 %v2751, 16
      %v3161 = vpop.permute.xlu0 %3160
      %3162 = vrot.lane.b32.xlu0 %v2752, 16
      %v3163 = vpop.permute.xlu0 %3162
      %3164 = vrot.lane.b32.xlu0 %v2753, 16
      %v3165 = vpop.permute.xlu0 %3164
      %3166 = vrot.lane.b32.xlu0 %v2754, 16
      %v3167 = vpop.permute.xlu0 %3166
      %3168 = vrot.lane.b32.xlu0 %v2755, 16
      %v3169 = vpop.permute.xlu0 %3168
      %3170 = vrot.lane.b32.xlu0 %v2756, 16
      %v3171 = vpop.permute.xlu0 %3170
      %3172 = vrot.lane.b32.xlu0 %v2757, 16
      %v3173 = vpop.permute.xlu0 %3172
      %3174 = vrot.lane.b32.xlu0 %v2758, 16
      %v3175 = vpop.permute.xlu0 %3174
      %3240 = vrot.lane.b32.xlu0 %v2759, 24
      %v3241 = vpop.permute.xlu0 %3240
      %3242 = vrot.lane.b32.xlu0 %v2760, 24
      %v3243 = vpop.permute.xlu0 %3242
      %3244 = vrot.lane.b32.xlu0 %v2761, 24
      %v3245 = vpop.permute.xlu0 %3244
      %3246 = vrot.lane.b32.xlu0 %v2762, 24
      %v3247 = vpop.permute.xlu0 %3246
      %3248 = vrot.lane.b32.xlu0 %v2763, 24
      %v3249 = vpop.permute.xlu0 %3248
      %3250 = vrot.lane.b32.xlu0 %v2764, 24
      %v3251 = vpop.permute.xlu0 %3250
      %3252 = vrot.lane.b32.xlu0 %v2765, 24
      %v3253 = vpop.permute.xlu0 %3252
      %3254 = vrot.lane.b32.xlu0 %v2766, 24
      %v3255 = vpop.permute.xlu0 %3254
      %3256 = vrot.lane.b32.xlu0 %v2767, 24
      %v3257 = vpop.permute.xlu0 %3256
      %3258 = vrot.lane.b32.xlu0 %v2768, 24
      %v3259 = vpop.permute.xlu0 %3258
      %3260 = vrot.lane.b32.xlu0 %v2769, 24
      %v3261 = vpop.permute.xlu0 %3260
      %3262 = vrot.lane.b32.xlu0 %v2770, 24
      %v3263 = vpop.permute.xlu0 %3262
      %3264 = vrot.lane.b32.xlu0 %v2771, 24
      %v3265 = vpop.permute.xlu0 %3264
      %3266 = vrot.lane.b32.xlu0 %v2772, 24
      %v3267 = vpop.permute.xlu0 %3266
      %3268 = vrot.lane.b32.xlu0 %v2773, 24
      %v3269 = vpop.permute.xlu0 %3268
      %3270 = vrot.lane.b32.xlu0 %v2774, 24
      %v3271 = vpop.permute.xlu0 %3270
      %3272 = vrot.lane.b32.xlu0 %v2775, 24
      %v3273 = vpop.permute.xlu0 %3272
      %3274 = vrot.lane.b32.xlu0 %v2776, 24
      %v3275 = vpop.permute.xlu0 %3274
      %3276 = vrot.lane.b32.xlu0 %v2777, 24
      %v3277 = vpop.permute.xlu0 %3276
      %3278 = vrot.lane.b32.xlu0 %v2778, 24
      %v3279 = vpop.permute.xlu0 %3278
      %3280 = vrot.lane.b32.xlu0 %v2779, 24
      %v3281 = vpop.permute.xlu0 %3280
      %3282 = vrot.lane.b32.xlu0 %v2780, 24
      %v3283 = vpop.permute.xlu0 %3282
      %3284 = vrot.lane.b32.xlu0 %v2781, 24
      %v3285 = vpop.permute.xlu0 %3284
      %3286 = vrot.lane.b32.xlu0 %v2782, 24
      %v3287 = vpop.permute.xlu0 %3286
      %3288 = vrot.lane.b32.xlu0 %v2783, 24
      %v3289 = vpop.permute.xlu0 %3288
      %3290 = vrot.lane.b32.xlu0 %v2784, 24
      %v3291 = vpop.permute.xlu0 %3290
      %3292 = vrot.lane.b32.xlu0 %v2785, 24
      %v3293 = vpop.permute.xlu0 %3292
      %3294 = vrot.lane.b32.xlu0 %v2786, 24
      %v3295 = vpop.permute.xlu0 %3294
      %3296 = vrot.lane.b32.xlu0 %v2787, 24
      %v3297 = vpop.permute.xlu0 %3296
      %3298 = vrot.lane.b32.xlu0 %v2788, 24
      %v3299 = vpop.permute.xlu0 %3298
      %3300 = vrot.lane.b32.xlu0 %v2789, 24
      %v3301 = vpop.permute.xlu0 %3300
      %3302 = vrot.lane.b32.xlu0 %v2790, 24
      %v3303 = vpop.permute.xlu0 %3302
      %3368 = vrot.lane.b32.xlu0 %v2791, 32
      %v3369 = vpop.permute.xlu0 %3368
      %3370 = vrot.lane.b32.xlu0 %v2792, 32
      %v3371 = vpop.permute.xlu0 %3370
      %3372 = vrot.lane.b32.xlu0 %v2793, 32
      %v3373 = vpop.permute.xlu0 %3372
      %3374 = vrot.lane.b32.xlu0 %v2794, 32
      %v3375 = vpop.permute.xlu0 %3374
      %3376 = vrot.lane.b32.xlu0 %v2795, 32
      %v3377 = vpop.permute.xlu0 %3376
      %3378 = vrot.lane.b32.xlu0 %v2796, 32
      %v3379 = vpop.permute.xlu0 %3378
      %3380 = vrot.lane.b32.xlu0 %v2797, 32
      %v3381 = vpop.permute.xlu0 %3380
      %3382 = vrot.lane.b32.xlu0 %v2798, 32
      %v3383 = vpop.permute.xlu0 %3382
      %3384 = vrot.lane.b32.xlu0 %v2799, 32
      %v3385 = vpop.permute.xlu0 %3384
      %3386 = vrot.lane.b32.xlu0 %v2800, 32
      %v3387 = vpop.permute.xlu0 %3386
      %3388 = vrot.lane.b32.xlu0 %v2801, 32
      %v3389 = vpop.permute.xlu0 %3388
      %3390 = vrot.lane.b32.xlu0 %v2802, 32
      %v3391 = vpop.permute.xlu0 %3390
      %3392 = vrot.lane.b32.xlu0 %v2803, 32
      %v3393 = vpop.permute.xlu0 %3392
      %3394 = vrot.lane.b32.xlu0 %v2804, 32
      %v3395 = vpop.permute.xlu0 %3394
      %3396 = vrot.lane.b32.xlu0 %v2805, 32
      %v3397 = vpop.permute.xlu0 %3396
      %3398 = vrot.lane.b32.xlu0 %v2806, 32
      %v3399 = vpop.permute.xlu0 %3398
      %3400 = vrot.lane.b32.xlu0 %v2807, 32
      %v3401 = vpop.permute.xlu0 %3400
      %3402 = vrot.lane.b32.xlu0 %v2808, 32
      %v3403 = vpop.permute.xlu0 %3402
      %3404 = vrot.lane.b32.xlu0 %v2809, 32
      %v3405 = vpop.permute.xlu0 %3404
      %3406 = vrot.lane.b32.xlu0 %v2810, 32
      %v3407 = vpop.permute.xlu0 %3406
      %3408 = vrot.lane.b32.xlu0 %v2811, 32
      %v3409 = vpop.permute.xlu0 %3408
      %3410 = vrot.lane.b32.xlu0 %v2812, 32
      %v3411 = vpop.permute.xlu0 %3410
      %3412 = vrot.lane.b32.xlu0 %v2813, 32
      %v3413 = vpop.permute.xlu0 %3412
      %3414 = vrot.lane.b32.xlu0 %v2814, 32
      %v3415 = vpop.permute.xlu0 %3414
      %3416 = vrot.lane.b32.xlu0 %v2815, 32
      %v3417 = vpop.permute.xlu0 %3416
      %3418 = vrot.lane.b32.xlu0 %v2816, 32
      %v3419 = vpop.permute.xlu0 %3418
      %3420 = vrot.lane.b32.xlu0 %v2817, 32
      %v3421 = vpop.permute.xlu0 %3420
      %3422 = vrot.lane.b32.xlu0 %v2818, 32
      %v3423 = vpop.permute.xlu0 %3422
      %3424 = vrot.lane.b32.xlu0 %v2819, 32
      %v3425 = vpop.permute.xlu0 %3424
      %3426 = vrot.lane.b32.xlu0 %v2820, 32
      %v3427 = vpop.permute.xlu0 %3426
      %3428 = vrot.lane.b32.xlu0 %v2821, 32
      %v3429 = vpop.permute.xlu0 %3428
      %3430 = vrot.lane.b32.xlu0 %v2822, 32
      %v3431 = vpop.permute.xlu0 %3430
      %3496 = vrot.lane.b32.xlu0 %v2823, 40
      %v3497 = vpop.permute.xlu0 %3496
      %3498 = vrot.lane.b32.xlu0 %v2824, 40
      %v3499 = vpop.permute.xlu0 %3498
      %3500 = vrot.lane.b32.xlu0 %v2825, 40
      %v3501 = vpop.permute.xlu0 %3500
      %3502 = vrot.lane.b32.xlu0 %v2826, 40
      %v3503 = vpop.permute.xlu0 %3502
      %3504 = vrot.lane.b32.xlu0 %v2827, 40
      %v3505 = vpop.permute.xlu0 %3504
      %3506 = vrot.lane.b32.xlu0 %v2828, 40
      %v3507 = vpop.permute.xlu0 %3506
      %3508 = vrot.lane.b32.xlu0 %v2829, 40
      %v3509 = vpop.permute.xlu0 %3508
      %3510 = vrot.lane.b32.xlu0 %v2830, 40
      %v3511 = vpop.permute.xlu0 %3510
      %3512 = vrot.lane.b32.xlu0 %v2831, 40
      %v3513 = vpop.permute.xlu0 %3512
      %3514 = vrot.lane.b32.xlu0 %v2832, 40
      %v3515 = vpop.permute.xlu0 %3514
      %3516 = vrot.lane.b32.xlu0 %v2833, 40
      %v3517 = vpop.permute.xlu0 %3516
      %3518 = vrot.lane.b32.xlu0 %v2834, 40
      %v3519 = vpop.permute.xlu0 %3518
      %3520 = vrot.lane.b32.xlu0 %v2835, 40
      %v3521 = vpop.permute.xlu0 %3520
      %3522 = vrot.lane.b32.xlu0 %v2836, 40
      %v3523 = vpop.permute.xlu0 %3522
      %3524 = vrot.lane.b32.xlu0 %v2837, 40
      %v3525 = vpop.permute.xlu0 %3524
      %3526 = vrot.lane.b32.xlu0 %v2838, 40
      %v3527 = vpop.permute.xlu0 %3526
      %3528 = vrot.lane.b32.xlu0 %v2839, 40
      %v3529 = vpop.permute.xlu0 %3528
      %3530 = vrot.lane.b32.xlu0 %v2840, 40
      %v3531 = vpop.permute.xlu0 %3530
      %3532 = vrot.lane.b32.xlu0 %v2841, 40
      %v3533 = vpop.permute.xlu0 %3532
      %3534 = vrot.lane.b32.xlu0 %v2842, 40
      %v3535 = vpop.permute.xlu0 %3534
      %3536 = vrot.lane.b32.xlu0 %v2843, 40
      %v3537 = vpop.permute.xlu0 %3536
      %3538 = vrot.lane.b32.xlu0 %v2844, 40
      %v3539 = vpop.permute.xlu0 %3538
      %3540 = vrot.lane.b32.xlu0 %v2845, 40
      %v3541 = vpop.permute.xlu0 %3540
      %3542 = vrot.lane.b32.xlu0 %v2846, 40
      %v3543 = vpop.permute.xlu0 %3542
      %3544 = vrot.lane.b32.xlu0 %v2847, 40
      %v3545 = vpop.permute.xlu0 %3544
      %3546 = vrot.lane.b32.xlu0 %v2848, 40
      %v3547 = vpop.permute.xlu0 %3546
      %3548 = vrot.lane.b32.xlu0 %v2849, 40
      %v3549 = vpop.permute.xlu0 %3548
      %3550 = vrot.lane.b32.xlu0 %v2850, 40
      %v3551 = vpop.permute.xlu0 %3550
      %3552 = vrot.lane.b32.xlu0 %v2851, 40
      %v3553 = vpop.permute.xlu0 %3552
      %3554 = vrot.lane.b32.xlu0 %v2852, 40
      %v3555 = vpop.permute.xlu0 %3554
      %3556 = vrot.lane.b32.xlu0 %v2853, 40
      %v3557 = vpop.permute.xlu0 %3556
      %3558 = vrot.lane.b32.xlu0 %v2854, 40
      %v3559 = vpop.permute.xlu0 %3558
      %3624 = vrot.lane.b32.xlu0 %v2856, 48
      %v3625 = vpop.permute.xlu0 %3624
      %3626 = vrot.lane.b32.xlu0 %v2857, 48
      %v3627 = vpop.permute.xlu0 %3626
      %3628 = vrot.lane.b32.xlu0 %v2858, 48
      %v3629 = vpop.permute.xlu0 %3628
      %3630 = vrot.lane.b32.xlu0 %v2859, 48
      %v3631 = vpop.permute.xlu0 %3630
      %3632 = vrot.lane.b32.xlu0 %v2860, 48
      %v3633 = vpop.permute.xlu0 %3632
      %3634 = vrot.lane.b32.xlu0 %v2861, 48
      %v3635 = vpop.permute.xlu0 %3634
      %3636 = vrot.lane.b32.xlu0 %v2862, 48
      %v3637 = vpop.permute.xlu0 %3636
      %3638 = vrot.lane.b32.xlu0 %v2863, 48
      %v3639 = vpop.permute.xlu0 %3638
      %3640 = vrot.lane.b32.xlu0 %v2864, 48
      %v3641 = vpop.permute.xlu0 %3640
      %3642 = vrot.lane.b32.xlu0 %v2865, 48
      %v3643 = vpop.permute.xlu0 %3642
      %3644 = vrot.lane.b32.xlu0 %v2866, 48
      %v3645 = vpop.permute.xlu0 %3644
      %3646 = vrot.lane.b32.xlu0 %v2867, 48
      %v3647 = vpop.permute.xlu0 %3646
      %3648 = vrot.lane.b32.xlu0 %v2868, 48
      %v3649 = vpop.permute.xlu0 %3648
      %3650 = vrot.lane.b32.xlu0 %v2869, 48
      %v3651 = vpop.permute.xlu0 %3650
      %3652 = vrot.lane.b32.xlu0 %v2870, 48
      %v3653 = vpop.permute.xlu0 %3652
      %3654 = vrot.lane.b32.xlu0 %v2871, 48
      %v3655 = vpop.permute.xlu0 %3654
      %3656 = vrot.lane.b32.xlu0 %v2872, 48
      %v3657 = vpop.permute.xlu0 %3656
      %3658 = vrot.lane.b32.xlu0 %v2873, 48
      %v3659 = vpop.permute.xlu0 %3658
      %3660 = vrot.lane.b32.xlu0 %v2874, 48
      %v3661 = vpop.permute.xlu0 %3660
      %3662 = vrot.lane.b32.xlu0 %v2875, 48
      %v3663 = vpop.permute.xlu0 %3662
      %3664 = vrot.lane.b32.xlu0 %v2876, 48
      %v3665 = vpop.permute.xlu0 %3664
      %3666 = vrot.lane.b32.xlu0 %v2877, 48
      %v3667 = vpop.permute.xlu0 %3666
      %3668 = vrot.lane.b32.xlu0 %v2878, 48
      %v3669 = vpop.permute.xlu0 %3668
      %3670 = vrot.lane.b32.xlu0 %v2879, 48
      %v3671 = vpop.permute.xlu0 %3670
      %3672 = vrot.lane.b32.xlu0 %v2880, 48
      %v3673 = vpop.permute.xlu0 %3672
      %3674 = vrot.lane.b32.xlu0 %v2881, 48
      %v3675 = vpop.permute.xlu0 %3674
      %3676 = vrot.lane.b32.xlu0 %v2882, 48
      %v3677 = vpop.permute.xlu0 %3676
      %3678 = vrot.lane.b32.xlu0 %v2883, 48
      %v3679 = vpop.permute.xlu0 %3678
      %3680 = vrot.lane.b32.xlu0 %v2884, 48
      %v3681 = vpop.permute.xlu0 %3680
      %3682 = vrot.lane.b32.xlu0 %v2885, 48
      %v3683 = vpop.permute.xlu0 %3682
      %3684 = vrot.lane.b32.xlu0 %v2886, 48
      %v3685 = vpop.permute.xlu0 %3684
      %3686 = vrot.lane.b32.xlu0 %v2887, 48
      %v3687 = vpop.permute.xlu0 %3686
      %3752 = vrot.lane.b32.xlu0 %v2888, 56
      %v3753 = vpop.permute.xlu0 %3752
      %3754 = vrot.lane.b32.xlu0 %v2889, 56
      %v3755 = vpop.permute.xlu0 %3754
      %3756 = vrot.lane.b32.xlu0 %v2890, 56
      %v3757 = vpop.permute.xlu0 %3756
      %3758 = vrot.lane.b32.xlu0 %v2891, 56
      %v3759 = vpop.permute.xlu0 %3758
      %3760 = vrot.lane.b32.xlu0 %v2892, 56
      %v3761 = vpop.permute.xlu0 %3760
      %3762 = vrot.lane.b32.xlu0 %v2893, 56
      %v3763 = vpop.permute.xlu0 %3762
      %3764 = vrot.lane.b32.xlu0 %v2894, 56
      %v3765 = vpop.permute.xlu0 %3764
      %3766 = vrot.lane.b32.xlu0 %v2895, 56
      %v3767 = vpop.permute.xlu0 %3766
      %3768 = vrot.lane.b32.xlu0 %v2896, 56
      %v3769 = vpop.permute.xlu0 %3768
      %3770 = vrot.lane.b32.xlu0 %v2897, 56
      %v3771 = vpop.permute.xlu0 %3770
      %3772 = vrot.lane.b32.xlu0 %v2898, 56
      %v3773 = vpop.permute.xlu0 %3772
      %3774 = vrot.lane.b32.xlu0 %v2899, 56
      %v3775 = vpop.permute.xlu0 %3774
      %3776 = vrot.lane.b32.xlu0 %v2900, 56
      %v3777 = vpop.permute.xlu0 %3776
      %3778 = vrot.lane.b32.xlu0 %v2901, 56
      %v3779 = vpop.permute.xlu0 %3778
      %3780 = vrot.lane.b32.xlu0 %v2902, 56
      %v3781 = vpop.permute.xlu0 %3780
      %3782 = vrot.lane.b32.xlu0 %v2903, 56
      %v3783 = vpop.permute.xlu0 %3782
      %3784 = vrot.lane.b32.xlu0 %v2904, 56
      %v3785 = vpop.permute.xlu0 %3784
      %3786 = vrot.lane.b32.xlu0 %v2905, 56
      %v3787 = vpop.permute.xlu0 %3786
      %3788 = vrot.lane.b32.xlu0 %v2906, 56
      %v3789 = vpop.permute.xlu0 %3788
      %3790 = vrot.lane.b32.xlu0 %v2907, 56
      %v3791 = vpop.permute.xlu0 %3790
      %3792 = vrot.lane.b32.xlu0 %v2908, 56
      %v3793 = vpop.permute.xlu0 %3792
      %3794 = vrot.lane.b32.xlu0 %v2909, 56
      %v3795 = vpop.permute.xlu0 %3794
      %3796 = vrot.lane.b32.xlu0 %v2910, 56
      %v3797 = vpop.permute.xlu0 %3796
      %3798 = vrot.lane.b32.xlu0 %v2911, 56
      %v3799 = vpop.permute.xlu0 %3798
      %3800 = vrot.lane.b32.xlu0 %v2912, 56
      %v3801 = vpop.permute.xlu0 %3800
      %3802 = vrot.lane.b32.xlu0 %v2913, 56
      %v3803 = vpop.permute.xlu0 %3802
      %3804 = vrot.lane.b32.xlu0 %v2914, 56
      %v3805 = vpop.permute.xlu0 %3804
      %3806 = vrot.lane.b32.xlu0 %v2915, 56
      %v3807 = vpop.permute.xlu0 %3806
      %3808 = vrot.lane.b32.xlu0 %v2916, 56
      %v3809 = vpop.permute.xlu0 %3808
      %3810 = vrot.lane.b32.xlu0 %v2917, 56
      %v3811 = vpop.permute.xlu0 %3810
      %3812 = vrot.lane.b32.xlu0 %v2918, 56
      %v3813 = vpop.permute.xlu0 %3812
      %3814 = vrot.lane.b32.xlu0 %v2919, 56
      %v3815 = vpop.permute.xlu0 %3814
      %3880 = vrot.lane.b32.xlu0 %v2920, 64
      %v3881 = vpop.permute.xlu0 %3880
      %3882 = vrot.lane.b32.xlu0 %v2921, 64
      %v3883 = vpop.permute.xlu0 %3882
      %3884 = vrot.lane.b32.xlu0 %v2922, 64
      %v3885 = vpop.permute.xlu0 %3884
      %3886 = vrot.lane.b32.xlu0 %v2923, 64
      %v3887 = vpop.permute.xlu0 %3886
      %3888 = vrot.lane.b32.xlu0 %v2924, 64
      %v3889 = vpop.permute.xlu0 %3888
      %3890 = vrot.lane.b32.xlu0 %v2925, 64
      %v3891 = vpop.permute.xlu0 %3890
      %3892 = vrot.lane.b32.xlu0 %v2926, 64
      %v3893 = vpop.permute.xlu0 %3892
      %3894 = vrot.lane.b32.xlu0 %v2927, 64
      %v3895 = vpop.permute.xlu0 %3894
      %3896 = vrot.lane.b32.xlu0 %v2928, 64
      %v3897 = vpop.permute.xlu0 %3896
      %3898 = vrot.lane.b32.xlu0 %v2929, 64
      %v3899 = vpop.permute.xlu0 %3898
      %3900 = vrot.lane.b32.xlu0 %v2930, 64
      %v3901 = vpop.permute.xlu0 %3900
      %3902 = vrot.lane.b32.xlu0 %v2931, 64
      %v3903 = vpop.permute.xlu0 %3902
      %3904 = vrot.lane.b32.xlu0 %v2932, 64
      %v3905 = vpop.permute.xlu0 %3904
      %3906 = vrot.lane.b32.xlu0 %v2933, 64
      %v3907 = vpop.permute.xlu0 %3906
      %3908 = vrot.lane.b32.xlu0 %v2934, 64
      %v3909 = vpop.permute.xlu0 %3908
      %3910 = vrot.lane.b32.xlu0 %v2935, 64
      %v3911 = vpop.permute.xlu0 %3910
      %3912 = vrot.lane.b32.xlu0 %v2936, 64
      %v3913 = vpop.permute.xlu0 %3912
      %3914 = vrot.lane.b32.xlu0 %v2937, 64
      %v3915 = vpop.permute.xlu0 %3914
      %3916 = vrot.lane.b32.xlu0 %v2938, 64
      %v3917 = vpop.permute.xlu0 %3916
      %3918 = vrot.lane.b32.xlu0 %v2939, 64
      %v3919 = vpop.permute.xlu0 %3918
      %3920 = vrot.lane.b32.xlu0 %v2940, 64
      %v3921 = vpop.permute.xlu0 %3920
      %3922 = vrot.lane.b32.xlu0 %v2941, 64
      %v3923 = vpop.permute.xlu0 %3922
      %3924 = vrot.lane.b32.xlu0 %v2942, 64
      %v3925 = vpop.permute.xlu0 %3924
      %3926 = vrot.lane.b32.xlu0 %v2943, 64
      %v3927 = vpop.permute.xlu0 %3926
      %3928 = vrot.lane.b32.xlu0 %v2944, 64
      %v3929 = vpop.permute.xlu0 %3928
      %3930 = vrot.lane.b32.xlu0 %v2945, 64
      %v3931 = vpop.permute.xlu0 %3930
      %3932 = vrot.lane.b32.xlu0 %v2946, 64
      %v3933 = vpop.permute.xlu0 %3932
      %3934 = vrot.lane.b32.xlu0 %v2947, 64
      %v3935 = vpop.permute.xlu0 %3934
      %3936 = vrot.lane.b32.xlu0 %v2948, 64
      %v3937 = vpop.permute.xlu0 %3936
      %3938 = vrot.lane.b32.xlu0 %v2949, 64
      %v3939 = vpop.permute.xlu0 %3938
      %3940 = vrot.lane.b32.xlu0 %v2950, 64
      %v3941 = vpop.permute.xlu0 %3940
      %3942 = vrot.lane.b32.xlu0 %v2951, 64
      %v3943 = vpop.permute.xlu0 %3942
      %v3976 = vsel %vm473, %v2663, %v2985
      %v3977 = vsel %vm473, %v2664, %v2987
      %v3978 = vsel %vm473, %v2665, %v2989
      %v3979 = vsel %vm473, %v2666, %v2991
      %v3980 = vsel %vm473, %v2667, %v2993
      %v3981 = vsel %vm473, %v2668, %v2995
      %v3982 = vsel %vm473, %v2669, %v2997
      %v3983 = vsel %vm473, %v2670, %v2999
      %v3984 = vsel %vm473, %v2671, %v3001
      %v3985 = vsel %vm473, %v2672, %v3003
      %v3986 = vsel %vm473, %v2673, %v3005
      %v3987 = vsel %vm473, %v2674, %v3007
      %v3988 = vsel %vm473, %v2675, %v3009
      %v3989 = vsel %vm473, %v2676, %v3011
      %v3990 = vsel %vm473, %v2677, %v3013
      %v3991 = vsel %vm473, %v2678, %v3015
      %v3992 = vsel %vm473, %v2679, %v3017
      %v3993 = vsel %vm473, %v2680, %v3019
      %v3994 = vsel %vm473, %v2681, %v3021
      %v3995 = vsel %vm473, %v2682, %v3023
      %v3996 = vsel %vm473, %v2683, %v3025
      %v3997 = vsel %vm473, %v2684, %v3027
      %v3998 = vsel %vm473, %v2685, %v3029
      %v3999 = vsel %vm473, %v2686, %v3031
      %v4000 = vsel %vm473, %v2687, %v3033
      %v4001 = vsel %vm473, %v2688, %v3035
      %v4002 = vsel %vm473, %v2689, %v3037
      %v4003 = vsel %vm473, %v2690, %v3039
      %v4004 = vsel %vm473, %v2691, %v3041
      %v4005 = vsel %vm473, %v2692, %v3043
      %v4006 = vsel %vm473, %v2693, %v3045
      %v4007 = vsel %vm473, %v2694, %v3047
      %v4008 = vsel %vm1957, %v3976, %v3113
      %v4009 = vsel %vm1957, %v3977, %v3115
      %v4010 = vsel %vm1957, %v3978, %v3117
      %v4011 = vsel %vm1957, %v3979, %v3119
      %v4012 = vsel %vm1957, %v3980, %v3121
      %v4013 = vsel %vm1957, %v3981, %v3123
      %v4014 = vsel %vm1957, %v3982, %v3125
      %v4015 = vsel %vm1957, %v3983, %v3127
      %v4016 = vsel %vm1957, %v3984, %v3129
      %v4017 = vsel %vm1957, %v3985, %v3131
      %v4018 = vsel %vm1957, %v3986, %v3133
      %v4019 = vsel %vm1957, %v3987, %v3135
      %v4020 = vsel %vm1957, %v3988, %v3137
      %v4021 = vsel %vm1957, %v3989, %v3139
      %v4022 = vsel %vm1957, %v3990, %v3141
      %v4023 = vsel %vm1957, %v3991, %v3143
      %v4024 = vsel %vm1957, %v3992, %v3145
      %v4025 = vsel %vm1957, %v3993, %v3147
      %v4026 = vsel %vm1957, %v3994, %v3149
      %v4027 = vsel %vm1957, %v3995, %v3151
      %v4028 = vsel %vm1957, %v3996, %v3153
      %v4029 = vsel %vm1957, %v3997, %v3155
      %v4030 = vsel %vm1957, %v3998, %v3157
      %v4031 = vsel %vm1957, %v3999, %v3159
      %v4032 = vsel %vm1957, %v4000, %v3161
      %v4033 = vsel %vm1957, %v4001, %v3163
      %v4034 = vsel %vm1957, %v4002, %v3165
      %v4035 = vsel %vm1957, %v4003, %v3167
      %v4036 = vsel %vm1957, %v4004, %v3169
      %v4037 = vsel %vm1957, %v4005, %v3171
      %v4038 = vsel %vm1957, %v4006, %v3173
      %v4039 = vsel %vm1957, %v4007, %v3175
      %v4040 = vsel %vm1990, %v4008, %v3241
      %v4041 = vsel %vm1990, %v4009, %v3243
      %v4042 = vsel %vm1990, %v4010, %v3245
      %v4043 = vsel %vm1990, %v4011, %v3247
      %v4044 = vsel %vm1990, %v4012, %v3249
      %v4045 = vsel %vm1990, %v4013, %v3251
      %v4046 = vsel %vm1990, %v4014, %v3253
      %v4047 = vsel %vm1990, %v4015, %v3255
      %v4048 = vsel %vm1990, %v4016, %v3257
      %v4049 = vsel %vm1990, %v4017, %v3259
      %v4050 = vsel %vm1990, %v4018, %v3261
      %v4051 = vsel %vm1990, %v4019, %v3263
      %v4052 = vsel %vm1990, %v4020, %v3265
      %v4053 = vsel %vm1990, %v4021, %v3267
      %v4054 = vsel %vm1990, %v4022, %v3269
      %v4055 = vsel %vm1990, %v4023, %v3271
      %v4056 = vsel %vm1990, %v4024, %v3273
      %v4057 = vsel %vm1990, %v4025, %v3275
      %v4058 = vsel %vm1990, %v4026, %v3277
      %v4059 = vsel %vm1990, %v4027, %v3279
      %v4060 = vsel %vm1990, %v4028, %v3281
      %v4061 = vsel %vm1990, %v4029, %v3283
      %v4062 = vsel %vm1990, %v4030, %v3285
      %v4063 = vsel %vm1990, %v4031, %v3287
      %v4064 = vsel %vm1990, %v4032, %v3289
      %v4065 = vsel %vm1990, %v4033, %v3291
      %v4066 = vsel %vm1990, %v4034, %v3293
      %v4067 = vsel %vm1990, %v4035, %v3295
      %v4068 = vsel %vm1990, %v4036, %v3297
      %v4069 = vsel %vm1990, %v4037, %v3299
      %v4070 = vsel %vm1990, %v4038, %v3301
      %v4071 = vsel %vm1990, %v4039, %v3303
      %v4072 = vsel %vm2023, %v4040, %v3369
      %v4073 = vsel %vm2023, %v4041, %v3371
      %v4074 = vsel %vm2023, %v4042, %v3373
      %v4075 = vsel %vm2023, %v4043, %v3375
      %v4076 = vsel %vm2023, %v4044, %v3377
      %v4077 = vsel %vm2023, %v4045, %v3379
      %v4078 = vsel %vm2023, %v4046, %v3381
      %v4079 = vsel %vm2023, %v4047, %v3383
      %v4080 = vsel %vm2023, %v4048, %v3385
      %v4081 = vsel %vm2023, %v4049, %v3387
      %v4082 = vsel %vm2023, %v4050, %v3389
      %v4083 = vsel %vm2023, %v4051, %v3391
      %v4084 = vsel %vm2023, %v4052, %v3393
      %v4085 = vsel %vm2023, %v4053, %v3395
      %v4086 = vsel %vm2023, %v4054, %v3397
      %v4087 = vsel %vm2023, %v4055, %v3399
      %v4088 = vsel %vm2023, %v4056, %v3401
      %v4089 = vsel %vm2023, %v4057, %v3403
      %v4090 = vsel %vm2023, %v4058, %v3405
      %v4091 = vsel %vm2023, %v4059, %v3407
      %v4092 = vsel %vm2023, %v4060, %v3409
      %v4093 = vsel %vm2023, %v4061, %v3411
      %v4094 = vsel %vm2023, %v4062, %v3413
      %v4095 = vsel %vm2023, %v4063, %v3415
      %v4096 = vsel %vm2023, %v4064, %v3417
      %v4097 = vsel %vm2023, %v4065, %v3419
      %v4098 = vsel %vm2023, %v4066, %v3421
      %v4099 = vsel %vm2023, %v4067, %v3423
      %v4100 = vsel %vm2023, %v4068, %v3425
      %v4101 = vsel %vm2023, %v4069, %v3427
      %v4102 = vsel %vm2023, %v4070, %v3429
      %v4103 = vsel %vm2023, %v4071, %v3431
      %v4104 = vsel %vm2056, %v4072, %v3497
      %v4105 = vsel %vm2056, %v4073, %v3499
      %v4106 = vsel %vm2056, %v4074, %v3501
      %v4107 = vsel %vm2056, %v4075, %v3503
      %v4108 = vsel %vm2056, %v4076, %v3505
      %v4109 = vsel %vm2056, %v4077, %v3507
      %v4110 = vsel %vm2056, %v4078, %v3509
      %v4111 = vsel %vm2056, %v4079, %v3511
      %v4112 = vsel %vm2056, %v4080, %v3513
      %v4113 = vsel %vm2056, %v4081, %v3515
      %v4114 = vsel %vm2056, %v4082, %v3517
      %v4115 = vsel %vm2056, %v4083, %v3519
      %v4116 = vsel %vm2056, %v4084, %v3521
      %v4117 = vsel %vm2056, %v4085, %v3523
      %v4118 = vsel %vm2056, %v4086, %v3525
      %v4119 = vsel %vm2056, %v4087, %v3527
      %v4120 = vsel %vm2056, %v4088, %v3529
      %v4121 = vsel %vm2056, %v4089, %v3531
      %v4122 = vsel %vm2056, %v4090, %v3533
      %v4123 = vsel %vm2056, %v4091, %v3535
      %v4124 = vsel %vm2056, %v4092, %v3537
      %v4125 = vsel %vm2056, %v4093, %v3539
      %v4126 = vsel %vm2056, %v4094, %v3541
      %v4127 = vsel %vm2056, %v4095, %v3543
      %v4128 = vsel %vm2056, %v4096, %v3545
      %v4129 = vsel %vm2056, %v4097, %v3547
      %v4130 = vsel %vm2056, %v4098, %v3549
      %v4131 = vsel %vm2056, %v4099, %v3551
      %v4132 = vsel %vm2056, %v4100, %v3553
      %v4133 = vsel %vm2056, %v4101, %v3555
      %v4134 = vsel %vm2056, %v4102, %v3557
      %v4135 = vsel %vm2056, %v4103, %v3559
      %v4136 = vsel %vm2089, %v4104, %v3625
      %v4137 = vsel %vm2089, %v4105, %v3627
      %v4138 = vsel %vm2089, %v4106, %v3629
      %v4139 = vsel %vm2089, %v4107, %v3631
      %v4140 = vsel %vm2089, %v4108, %v3633
      %v4141 = vsel %vm2089, %v4109, %v3635
      %v4142 = vsel %vm2089, %v4110, %v3637
      %v4143 = vsel %vm2089, %v4111, %v3639
      %v4144 = vsel %vm2089, %v4112, %v3641
      %v4145 = vsel %vm2089, %v4113, %v3643
      %v4146 = vsel %vm2089, %v4114, %v3645
      %v4147 = vsel %vm2089, %v4115, %v3647
      %v4148 = vsel %vm2089, %v4116, %v3649
      %v4149 = vsel %vm2089, %v4117, %v3651
      %v4150 = vsel %vm2089, %v4118, %v3653
      %v4151 = vsel %vm2089, %v4119, %v3655
      %v4152 = vsel %vm2089, %v4120, %v3657
      %v4153 = vsel %vm2089, %v4121, %v3659
      %v4154 = vsel %vm2089, %v4122, %v3661
      %v4155 = vsel %vm2089, %v4123, %v3663
      %v4156 = vsel %vm2089, %v4124, %v3665
      %v4157 = vsel %vm2089, %v4125, %v3667
      %v4158 = vsel %vm2089, %v4126, %v3669
      %v4159 = vsel %vm2089, %v4127, %v3671
      %v4160 = vsel %vm2089, %v4128, %v3673
      %v4161 = vsel %vm2089, %v4129, %v3675
      %v4162 = vsel %vm2089, %v4130, %v3677
      %v4163 = vsel %vm2089, %v4131, %v3679
      %v4164 = vsel %vm2089, %v4132, %v3681
      %v4165 = vsel %vm2089, %v4133, %v3683
      %v4166 = vsel %vm2089, %v4134, %v3685
      %v4167 = vsel %vm2089, %v4135, %v3687
      %v4168 = vsel %vm2122, %v4136, %v3753
      %v4169 = vsel %vm2122, %v4137, %v3755
      %v4170 = vsel %vm2122, %v4138, %v3757
      %v4171 = vsel %vm2122, %v4139, %v3759
      %v4172 = vsel %vm2122, %v4140, %v3761
      %v4173 = vsel %vm2122, %v4141, %v3763
      %v4174 = vsel %vm2122, %v4142, %v3765
      %v4175 = vsel %vm2122, %v4143, %v3767
      %v4176 = vsel %vm2122, %v4144, %v3769
      %v4177 = vsel %vm2122, %v4145, %v3771
      %v4178 = vsel %vm2122, %v4146, %v3773
      %v4179 = vsel %vm2122, %v4147, %v3775
      %v4180 = vsel %vm2122, %v4148, %v3777
      %v4181 = vsel %vm2122, %v4149, %v3779
      %v4182 = vsel %vm2122, %v4150, %v3781
      %v4183 = vsel %vm2122, %v4151, %v3783
      %v4184 = vsel %vm2122, %v4152, %v3785
      %v4185 = vsel %vm2122, %v4153, %v3787
      %v4186 = vsel %vm2122, %v4154, %v3789
      %v4187 = vsel %vm2122, %v4155, %v3791
      %v4188 = vsel %vm2122, %v4156, %v3793
      %v4189 = vsel %vm2122, %v4157, %v3795
      %v4190 = vsel %vm2122, %v4158, %v3797
      %v4191 = vsel %vm2122, %v4159, %v3799
      %v4192 = vsel %vm2122, %v4160, %v3801
      %v4193 = vsel %vm2122, %v4161, %v3803
      %v4194 = vsel %vm2122, %v4162, %v3805
      %v4195 = vsel %vm2122, %v4163, %v3807
      %v4196 = vsel %vm2122, %v4164, %v3809
      %v4197 = vsel %vm2122, %v4165, %v3811
      %v4198 = vsel %vm2122, %v4166, %v3813
      %v4199 = vsel %vm2122, %v4167, %v3815
      %v4200 = vsel %vm2155, %v4168, %v3881
      %v4201 = vsel %vm2155, %v4169, %v3883
      %v4202 = vsel %vm2155, %v4170, %v3885
      %v4203 = vsel %vm2155, %v4171, %v3887
      %v4204 = vsel %vm2155, %v4172, %v3889
      %v4205 = vsel %vm2155, %v4173, %v3891
      %v4206 = vsel %vm2155, %v4174, %v3893
      %v4207 = vsel %vm2155, %v4175, %v3895
      %v4208 = vsel %vm2155, %v4176, %v3897
      %v4209 = vsel %vm2155, %v4177, %v3899
      %v4210 = vsel %vm2155, %v4178, %v3901
      %v4211 = vsel %vm2155, %v4179, %v3903
      %v4212 = vsel %vm2155, %v4180, %v3905
      %v4213 = vsel %vm2155, %v4181, %v3907
      %v4214 = vsel %vm2155, %v4182, %v3909
      %v4215 = vsel %vm2155, %v4183, %v3911
      %v4216 = vsel %vm2155, %v4184, %v3913
      %v4217 = vsel %vm2155, %v4185, %v3915
      %v4218 = vsel %vm2155, %v4186, %v3917
      %v4219 = vsel %vm2155, %v4187, %v3919
      %v4220 = vsel %vm2155, %v4188, %v3921
      %v4221 = vsel %vm2155, %v4189, %v3923
      %v4222 = vsel %vm2155, %v4190, %v3925
      %v4223 = vsel %vm2155, %v4191, %v3927
      %v4224 = vsel %vm2155, %v4192, %v3929
      %v4225 = vsel %vm2155, %v4193, %v3931
      %v4226 = vsel %vm2155, %v4194, %v3933
      %v4227 = vsel %vm2155, %v4195, %v3935
      %v4228 = vsel %vm2155, %v4196, %v3937
      %v4229 = vsel %vm2155, %v4197, %v3939
      %v4230 = vsel %vm2155, %v4198, %v3941
      %v4231 = vsel %vm2155, %v4199, %v3943
      %v4232 = vld [vmem:[%s3] sm:$0xff]
      %v4233 = vld [vmem:[%s3 + $0x8] sm:$0xff]
      %v4234 = vld [vmem:[%s3 + $0x10] sm:$0xff]
      %v4235 = vld [vmem:[%s3 + $0x18] sm:$0xff]
      %v4236 = vld [vmem:[%s3 + $0x20] sm:$0xff]
      %v4237 = vld [vmem:[%s3 + $0x28] sm:$0xff]
      %v4238 = vld [vmem:[%s3 + $0x30] sm:$0xff]
      %v4239 = vld [vmem:[%s3 + $0x38] sm:$0xff]
      %v4240 = vld [vmem:[%s3 + $0x40] sm:$0xff]
      %v4241 = vld [vmem:[%s4] sm:$0x1]
      %v4243 = vlaneseq
      %v4244 = vshrl.u32 %v4243, 7
      %v4245 = vsub.s32 0, %v4244
      %v4246 = vrot.slane %v4241, %v4245
      %v4249 = vsel %vm2204, %v4200, 0
      %v4252 = vsel %vm2204, %v4201, 0
      %v4255 = vsel %vm2204, %v4202, 0
      %v4258 = vsel %vm2204, %v4203, 0
      %v4261 = vsel %vm2204, %v4204, 0
      %v4264 = vsel %vm2204, %v4205, 0
      %v4267 = vsel %vm2204, %v4206, 0
      %v4270 = vsel %vm2204, %v4207, 0
      %v4273 = vsel %vm2204, %v4208, 0
      %v4276 = vsel %vm2204, %v4209, 0
      %v4279 = vsel %vm2204, %v4210, 0
      %v4282 = vsel %vm2204, %v4211, 0
      %v4285 = vsel %vm2204, %v4212, 0
      %v4288 = vsel %vm2204, %v4213, 0
      %v4291 = vsel %vm2204, %v4214, 0
      %v4294 = vsel %vm2204, %v4215, 0
      %v4297 = vsel %vm2204, %v4216, 0
      %v4300 = vsel %vm2204, %v4217, 0
      %v4303 = vsel %vm2204, %v4218, 0
      %v4306 = vsel %vm2204, %v4219, 0
      %v4309 = vsel %vm2204, %v4220, 0
      %v4312 = vsel %vm2204, %v4221, 0
      %v4315 = vsel %vm2204, %v4222, 0
      %v4318 = vsel %vm2204, %v4223, 0
      %v4321 = vsel %vm2204, %v4224, 0
      %v4324 = vsel %vm2204, %v4225, 0
      %v4327 = vsel %vm2204, %v4226, 0
      %v4330 = vsel %vm2204, %v4227, 0
      %v4333 = vsel %vm2204, %v4228, 0
      %v4336 = vsel %vm2204, %v4229, 0
      %v4339 = vsel %vm2204, %v4230, 0
      %v4342 = vsel %vm2204, %v4231, 0
      %4344 = vmatprep.subr.mxu0 0.0
      %4345 = vmatpush1.msra.mxu0 %v4232
      %4346 = vmatprep.subr.mxu0 0.0
      %4347 = vmatpush1.msra.mxu0 %v4233
      %4348 = vmatprep.subr.mxu0 0.0
      %4349 = vmatpush1.msra.mxu0 %v4234
      %4350 = vmatprep.subr.mxu0 0.0
      %4351 = vmatpush1.msra.mxu0 %v4235
      %4352 = vmatprep.subr.mxu0 0.0
      %4353 = vmatpush1.msra.mxu0 %v4236
      %4354 = vmatprep.subr.mxu0 0.0
      %4355 = vmatpush1.msra.mxu0 %v4237
      %4356 = vmatprep.subr.mxu0 0.0
      %4357 = vmatpush1.msra.mxu0 %v4238
      %4358 = vmatprep.subr.mxu0 0.0
      %4359 = vmatpush1.msra.mxu0 %v4239
      %4360 = vmatprep.subr.mxu0 0.0
      %4361 = vmatpush1.msra.mxu0 %v4240
      %4362 = vmatprep.subr.mxu0 0.0
      %4363 = vmatpush1.msra.mxu0 0.0
      %4364 = vmatprep.subr.mxu0 0.0
      %4365 = vmatpush1.msra.mxu0 0.0
      %4366 = vmatprep.subr.mxu0 0.0
      %4367 = vmatpush1.msra.mxu0 0.0
      %4368 = vmatprep.subr.mxu0 0.0
      %4369 = vmatpush1.msra.mxu0 0.0
      %4370 = vmatprep.subr.mxu0 0.0
      %4371 = vmatpush1.msra.mxu0 0.0
      %4372 = vmatprep.subr.mxu0 0.0
      %4373 = vmatpush1.msra.mxu0 0.0
      %4374 = vmatprep.subr.mxu0 0.0
      %4375 = vmatpush1.msra.mxu0 0.0
      %4376 = vmatprep.subr.mxu0 0.0
      %4377 = vmatpush1.msra.mxu0 0.0
      %4378 = vmatprep.subr.mxu0 0.0
      %4379 = vmatpush1.msra.mxu0 0.0
      %4380 = vmatprep.subr.mxu0 0.0
      %4381 = vmatpush1.msra.mxu0 0.0
      %4382 = vmatprep.subr.mxu0 0.0
      %4383 = vmatpush1.msra.mxu0 0.0
      %4384 = vmatprep.subr.mxu0 0.0
      %4385 = vmatpush1.msra.mxu0 0.0
      %4386 = vmatprep.subr.mxu0 0.0
      %4387 = vmatpush1.msra.mxu0 0.0
      %4388 = vmatprep.subr.mxu0 0.0
      %4389 = vmatpush1.msra.mxu0 0.0
      %4390 = vmatprep.subr.mxu0 0.0
      %4391 = vmatpush1.msra.mxu0 0.0
      %4392 = vmatprep.subr.mxu0 0.0
      %4393 = vmatpush1.msra.mxu0 0.0
      %4394 = vmatprep.subr.mxu0 0.0
      %4395 = vmatpush1.msra.mxu0 0.0
      %4396 = vmatprep.subr.mxu0 0.0
      %4397 = vmatpush1.msra.mxu0 0.0
      %4398 = vmatprep.subr.mxu0 0.0
      %4399 = vmatpush1.msra.mxu0 0.0
      %4400 = vmatprep.subr.mxu0 0.0
      %4401 = vmatpush1.msra.mxu0 0.0
      %4402 = vmatprep.subr.mxu0 0.0
      %4403 = vmatpush1.msra.mxu0 0.0
      %4404 = vmatprep.subr.mxu0 0.0
      %4405 = vmatpush1.msra.mxu0 0.0
      %4406 = vmatprep.subr.mxu0 0.0
      %4407 = vmatpush1.msra.mxu0 0.0
      %4408 = vmatprep.mubr.f32.mxu0 0.0
      %4409 = vmatmul.mubr.f32.gmra.mrb[0].mxu0 %v4249
      %v4410 = vpop.f32.mrb[0].mxu0
      %v4411 = vadd.f32 %v4246, %v4410
      %v4412 = vpop.f32.mrb[0].mxu0
      %4413 = vmatprep.mubr.f32.mxu0 0.0
      %4414 = vmatmul.mubr.f32.gmra.mrb[0].mxu0 %v4252
      %v4415 = vpop.f32.mrb[0].mxu0
      %v4416 = vadd.f32 %v4246, %v4415
      %v4417 = vpop.f32.mrb[0].mxu0
      %4418 = vmatprep.mubr.f32.mxu0 0.0
      %4419 = vmatmul.mubr.f32.gmra.mrb[0].mxu0 %v4255
      %v4420 = vpop.f32.mrb[0].mxu0
      %v4421 = vadd.f32 %v4246, %v4420
      %v4422 = vpop.f32.mrb[0].mxu0
      %4423 = vmatprep.mubr.f32.mxu0 0.0
      %4424 = vmatmul.mubr.f32.gmra.mrb[0].mxu0 %v4258
      %v4425 = vpop.f32.mrb[0].mxu0
      %v4426 = vadd.f32 %v4246, %v4425
      %v4427 = vpop.f32.mrb[0].mxu0
      %4428 = vmatprep.mubr.f32.mxu0 0.0
      %4429 = vmatmul.mubr.f32.gmra.mrb[0].mxu0 %v4261
      %v4430 = vpop.f32.mrb[0].mxu0
      %v4431 = vadd.f32 %v4246, %v4430
      %v4432 = vpop.f32.mrb[0].mxu0
      %4433 = vmatprep.mubr.f32.mxu0 0.0
      %4434 = vmatmul.mubr.f32.gmra.mrb[0].mxu0 %v4264
      %v4435 = vpop.f32.mrb[0].mxu0
      %v4436 = vadd.f32 %v4246, %v4435
      %v4437 = vpop.f32.mrb[0].mxu0
      %4438 = vmatprep.mubr.f32.mxu0 0.0
      %4439 = vmatmul.mubr.f32.gmra.mrb[0].mxu0 %v4267
      %v4440 = vpop.f32.mrb[0].mxu0
      %v4441 = vadd.f32 %v4246, %v4440
      %v4442 = vpop.f32.mrb[0].mxu0
      %4443 = vmatprep.mubr.f32.mxu0 0.0
      %4444 = vmatmul.mubr.f32.gmra.mrb[0].mxu0 %v4270
      %v4445 = vpop.f32.mrb[0].mxu0
      %v4446 = vadd.f32 %v4246, %v4445
      %v4447 = vpop.f32.mrb[0].mxu0
      %4448 = vmatprep.mubr.f32.mxu0 0.0
      %4449 = vmatmul.mubr.f32.gmra.mrb[0].mxu0 %v4273
      %v4450 = vpop.f32.mrb[0].mxu0
      %v4451 = vadd.f32 %v4246, %v4450
      %v4452 = vpop.f32.mrb[0].mxu0
      %4453 = vmatprep.mubr.f32.mxu0 0.0
      %4454 = vmatmul.mubr.f32.gmra.mrb[0].mxu0 %v4276
      %v4455 = vpop.f32.mrb[0].mxu0
      %v4456 = vadd.f32 %v4246, %v4455
      %v4457 = vpop.f32.mrb[0].mxu0
      %4458 = vmatprep.mubr.f32.mxu0 0.0
      %4459 = vmatmul.mubr.f32.gmra.mrb[0].mxu0 %v4279
      %v4460 = vpop.f32.mrb[0].mxu0
      %v4461 = vadd.f32 %v4246, %v4460
      %v4462 = vpop.f32.mrb[0].mxu0
      %4463 = vmatprep.mubr.f32.mxu0 0.0
      %4464 = vmatmul.mubr.f32.gmra.mrb[0].mxu0 %v4282
      %v4465 = vpop.f32.mrb[0].mxu0
      %v4466 = vadd.f32 %v4246, %v4465
      %v4467 = vpop.f32.mrb[0].mxu0
      %4468 = vmatprep.mubr.f32.mxu0 0.0
      %4469 = vmatmul.mubr.f32.gmra.mrb[0].mxu0 %v4285
      %v4470 = vpop.f32.mrb[0].mxu0
      %v4471 = vadd.f32 %v4246, %v4470
      %v4472 = vpop.f32.mrb[0].mxu0
      %4473 = vmatprep.mubr.f32.mxu0 0.0
      %4474 = vmatmul.mubr.f32.gmra.mrb[0].mxu0 %v4288
      %v4475 = vpop.f32.mrb[0].mxu0
      %v4476 = vadd.f32 %v4246, %v4475
      %v4477 = vpop.f32.mrb[0].mxu0
      %4478 = vmatprep.mubr.f32.mxu0 0.0
      %4479 = vmatmul.mubr.f32.gmra.mrb[0].mxu0 %v4291
      %v4480 = vpop.f32.mrb[0].mxu0
      %v4481 = vadd.f32 %v4246, %v4480
      %v4482 = vpop.f32.mrb[0].mxu0
      %4483 = vmatprep.mubr.f32.mxu0 0.0
      %4484 = vmatmul.mubr.f32.gmra.mrb[0].mxu0 %v4294
      %v4485 = vpop.f32.mrb[0].mxu0
      %v4486 = vadd.f32 %v4246, %v4485
      %v4487 = vpop.f32.mrb[0].mxu0
      %4488 = vmatprep.mubr.f32.mxu0 0.0
      %4489 = vmatmul.mubr.f32.gmra.mrb[0].mxu0 %v4297
      %v4490 = vpop.f32.mrb[0].mxu0
      %v4491 = vadd.f32 %v4246, %v4490
      %v4492 = vpop.f32.mrb[0].mxu0
      %4493 = vmatprep.mubr.f32.mxu0 0.0
      %4494 = vmatmul.mubr.f32.gmra.mrb[0].mxu0 %v4300
      %v4495 = vpop.f32.mrb[0].mxu0
      %v4496 = vadd.f32 %v4246, %v4495
      %v4497 = vpop.f32.mrb[0].mxu0
      %4498 = vmatprep.mubr.f32.mxu0 0.0
      %4499 = vmatmul.mubr.f32.gmra.mrb[0].mxu0 %v4303
      %v4500 = vpop.f32.mrb[0].mxu0
      %v4501 = vadd.f32 %v4246, %v4500
      %v4502 = vpop.f32.mrb[0].mxu0
      %4503 = vmatprep.mubr.f32.mxu0 0.0
      %4504 = vmatmul.mubr.f32.gmra.mrb[0].mxu0 %v4306
      %v4505 = vpop.f32.mrb[0].mxu0
      %v4506 = vadd.f32 %v4246, %v4505
      %v4507 = vpop.f32.mrb[0].mxu0
      %4508 = vmatprep.mubr.f32.mxu0 0.0
      %4509 = vmatmul.mubr.f32.gmra.mrb[0].mxu0 %v4309
      %v4510 = vpop.f32.mrb[0].mxu0
      %v4511 = vadd.f32 %v4246, %v4510
      %v4512 = vpop.f32.mrb[0].mxu0
      %4513 = vmatprep.mubr.f32.mxu0 0.0
      %4514 = vmatmul.mubr.f32.gmra.mrb[0].mxu0 %v4312
      %v4515 = vpop.f32.mrb[0].mxu0
      %v4516 = vadd.f32 %v4246, %v4515
      %v4517 = vpop.f32.mrb[0].mxu0
      %4518 = vmatprep.mubr.f32.mxu0 0.0
      %4519 = vmatmul.mubr.f32.gmra.mrb[0].mxu0 %v4315
      %v4520 = vpop.f32.mrb[0].mxu0
      %v4521 = vadd.f32 %v4246, %v4520
      %v4522 = vpop.f32.mrb[0].mxu0
      %4523 = vmatprep.mubr.f32.mxu0 0.0
      %4524 = vmatmul.mubr.f32.gmra.mrb[0].mxu0 %v4318
      %v4525 = vpop.f32.mrb[0].mxu0
      %v4526 = vadd.f32 %v4246, %v4525
      %v4527 = vpop.f32.mrb[0].mxu0
      %4528 = vmatprep.mubr.f32.mxu0 0.0
      %4529 = vmatmul.mubr.f32.gmra.mrb[0].mxu0 %v4321
      %v4530 = vpop.f32.mrb[0].mxu0
      %v4531 = vadd.f32 %v4246, %v4530
      %v4532 = vpop.f32.mrb[0].mxu0
      %4533 = vmatprep.mubr.f32.mxu0 0.0
      %4534 = vmatmul.mubr.f32.gmra.mrb[0].mxu0 %v4324
      %v4535 = vpop.f32.mrb[0].mxu0
      %v4536 = vadd.f32 %v4246, %v4535
      %v4537 = vpop.f32.mrb[0].mxu0
      %4538 = vmatprep.mubr.f32.mxu0 0.0
      %4539 = vmatmul.mubr.f32.gmra.mrb[0].mxu0 %v4327
      %v4540 = vpop.f32.mrb[0].mxu0
      %v4541 = vadd.f32 %v4246, %v4540
      %v4542 = vpop.f32.mrb[0].mxu0
      %4543 = vmatprep.mubr.f32.mxu0 0.0
      %4544 = vmatmul.mubr.f32.gmra.mrb[0].mxu0 %v4330
      %v4545 = vpop.f32.mrb[0].mxu0
      %v4546 = vadd.f32 %v4246, %v4545
      %v4547 = vpop.f32.mrb[0].mxu0
      %4548 = vmatprep.mubr.f32.mxu0 0.0
      %4549 = vmatmul.mubr.f32.gmra.mrb[0].mxu0 %v4333
      %v4550 = vpop.f32.mrb[0].mxu0
      %v4551 = vadd.f32 %v4246, %v4550
      %v4552 = vpop.f32.mrb[0].mxu0
      %4553 = vmatprep.mubr.f32.mxu0 0.0
      %4554 = vmatmul.mubr.f32.gmra.mrb[0].mxu0 %v4336
      %v4555 = vpop.f32.mrb[0].mxu0
      %v4556 = vadd.f32 %v4246, %v4555
      %v4557 = vpop.f32.mrb[0].mxu0
      %4558 = vmatprep.mubr.f32.mxu0 0.0
      %4559 = vmatmul.mubr.f32.gmra.mrb[0].mxu0 %v4339
      %v4560 = vpop.f32.mrb[0].mxu0
      %v4561 = vadd.f32 %v4246, %v4560
      %v4562 = vpop.f32.mrb[0].mxu0
      %4563 = vmatprep.mubr.f32.mxu0 0.0
      %4564 = vmatmul.mubr.f32.gmra.mrb[0].mxu0 %v4342
      %v4565 = vpop.f32.mrb[0].mxu0
      %v4566 = vadd.f32 %v4246, %v4565
      %v4567 = vpop.f32.mrb[0].mxu0
      %4568 = vdwg.mxu0
      %4569 = vst.msk [vmem:[#allocation2] sm:$0xff] %vm473, 0.0
      %4570 = vst.msk [vmem:[#allocation2 + $0x8] sm:$0xff] %vm473, 0.0
      %4571 = vst.msk [vmem:[#allocation2 + $0x10] sm:$0xff] %vm473, 0.0
      %4572 = vst.msk [vmem:[#allocation2 + $0x18] sm:$0x3] %vm477, 0.0
      %4573 = vst.msk [vmem:[#allocation2 + $0x20] sm:$0xff] %vm473, 0.0
      %4574 = vst.msk [vmem:[#allocation2 + $0x28] sm:$0xff] %vm473, 0.0
      %4575 = vst.msk [vmem:[#allocation2 + $0x30] sm:$0xff] %vm473, 0.0
      %4576 = vst.msk [vmem:[#allocation2 + $0x38] sm:$0x3] %vm477, 0.0
      %4577 = vst.msk [vmem:[#allocation2 + $0x40] sm:$0xff] %vm473, 0.0
      %4578 = vst.msk [vmem:[#allocation2 + $0x48] sm:$0xff] %vm473, 0.0
      %4579 = vst.msk [vmem:[#allocation2 + $0x50] sm:$0xff] %vm473, 0.0
      %4580 = vst.msk [vmem:[#allocation2 + $0x58] sm:$0x3] %vm477, 0.0
      %4581 = vst.msk [vmem:[#allocation2 + $0x60] sm:$0xff] %vm473, 0.0
      %4582 = vst.msk [vmem:[#allocation2 + $0x68] sm:$0xff] %vm473, 0.0
      %4583 = vst.msk [vmem:[#allocation2 + $0x70] sm:$0xff] %vm473, 0.0
      %4584 = vst.msk [vmem:[#allocation2 + $0x78] sm:$0x3] %vm477, 0.0
      %4585 = vst.msk [vmem:[#allocation2 + $0x80] sm:$0xff] %vm473, 0.0
      %4586 = vst.msk [vmem:[#allocation2 + $0x88] sm:$0xff] %vm473, 0.0
      %4587 = vst.msk [vmem:[#allocation2 + $0x90] sm:$0xff] %vm473, 0.0
      %4588 = vst.msk [vmem:[#allocation2 + $0x98] sm:$0x3] %vm477, 0.0
      %4589 = vst.msk [vmem:[#allocation2 + $0xa0] sm:$0xff] %vm473, 0.0
      %4590 = vst.msk [vmem:[#allocation2 + $0xa8] sm:$0xff] %vm473, 0.0
      %4591 = vst.msk [vmem:[#allocation2 + $0xb0] sm:$0xff] %vm473, 0.0
      %4592 = vst.msk [vmem:[#allocation2 + $0xb8] sm:$0x3] %vm477, 0.0
      %4593 = vst.msk [vmem:[#allocation2 + $0xc0] sm:$0xff] %vm473, 0.0
      %4594 = vst.msk [vmem:[#allocation2 + $0xc8] sm:$0xff] %vm473, 0.0
      %4595 = vst.msk [vmem:[#allocation2 + $0xd0] sm:$0xff] %vm473, 0.0
      %4596 = vst.msk [vmem:[#allocation2 + $0xd8] sm:$0x3] %vm477, 0.0
      %4597 = vst.msk [vmem:[#allocation2 + $0xe0] sm:$0xff] %vm473, 0.0
      %4598 = vst.msk [vmem:[#allocation2 + $0xe8] sm:$0xff] %vm473, 0.0
      %4599 = vst.msk [vmem:[#allocation2 + $0xf0] sm:$0xff] %vm473, 0.0
      %4600 = vst.msk [vmem:[#allocation2 + $0xf8] sm:$0x3] %vm477, 0.0
      %4601 = vst.msk [vmem:[#allocation2 + $0x100] sm:$0xff] %vm473, 0.0
      %4602 = vst.msk [vmem:[#allocation2 + $0x108] sm:$0xff] %vm473, 0.0
      %4603 = vst.msk [vmem:[#allocation2 + $0x110] sm:$0xff] %vm473, 0.0
      %4604 = vst.msk [vmem:[#allocation2 + $0x118] sm:$0x3] %vm477, 0.0
      %4605 = vst.msk [vmem:[#allocation2 + $0x120] sm:$0xff] %vm473, 0.0
      %4606 = vst.msk [vmem:[#allocation2 + $0x128] sm:$0xff] %vm473, 0.0
      %4607 = vst.msk [vmem:[#allocation2 + $0x130] sm:$0xff] %vm473, 0.0
      %4608 = vst.msk [vmem:[#allocation2 + $0x138] sm:$0x3] %vm477, 0.0
      %4609 = vst.msk [vmem:[#allocation2 + $0x140] sm:$0xff] %vm473, 0.0
      %4610 = vst.msk [vmem:[#allocation2 + $0x148] sm:$0xff] %vm473, 0.0
      %4611 = vst.msk [vmem:[#allocation2 + $0x150] sm:$0xff] %vm473, 0.0
      %4612 = vst.msk [vmem:[#allocation2 + $0x158] sm:$0x3] %vm477, 0.0
      %4613 = vst.msk [vmem:[#allocation2 + $0x160] sm:$0xff] %vm473, 0.0
      %4614 = vst.msk [vmem:[#allocation2 + $0x168] sm:$0xff] %vm473, 0.0
      %4615 = vst.msk [vmem:[#allocation2 + $0x170] sm:$0xff] %vm473, 0.0
      %4616 = vst.msk [vmem:[#allocation2 + $0x178] sm:$0x3] %vm477, 0.0
      %4617 = vst.msk [vmem:[#allocation2 + $0x180] sm:$0xff] %vm473, 0.0
      %4618 = vst.msk [vmem:[#allocation2 + $0x188] sm:$0xff] %vm473, 0.0
      %4619 = vst.msk [vmem:[#allocation2 + $0x190] sm:$0xff] %vm473, 0.0
      %4620 = vst.msk [vmem:[#allocation2 + $0x198] sm:$0x3] %vm477, 0.0
      %4621 = vst.msk [vmem:[#allocation2 + $0x1a0] sm:$0xff] %vm473, 0.0
      %4622 = vst.msk [vmem:[#allocation2 + $0x1a8] sm:$0xff] %vm473, 0.0
      %4623 = vst.msk [vmem:[#allocation2 + $0x1b0] sm:$0xff] %vm473, 0.0
      %4624 = vst.msk [vmem:[#allocation2 + $0x1b8] sm:$0x3] %vm477, 0.0
      %4625 = vst.msk [vmem:[#allocation2 + $0x1c0] sm:$0xff] %vm473, 0.0
      %4626 = vst.msk [vmem:[#allocation2 + $0x1c8] sm:$0xff] %vm473, 0.0
      %4627 = vst.msk [vmem:[#allocation2 + $0x1d0] sm:$0xff] %vm473, 0.0
      %4628 = vst.msk [vmem:[#allocation2 + $0x1d8] sm:$0x3] %vm477, 0.0
      %4629 = vst.msk [vmem:[#allocation2 + $0x1e0] sm:$0xff] %vm473, 0.0
      %4630 = vst.msk [vmem:[#allocation2 + $0x1e8] sm:$0xff] %vm473, 0.0
      %4631 = vst.msk [vmem:[#allocation2 + $0x1f0] sm:$0xff] %vm473, 0.0
      %4632 = vst.msk [vmem:[#allocation2 + $0x1f8] sm:$0x3] %vm477, 0.0
      %4633 = vst.msk [vmem:[#allocation2 + $0x200] sm:$0xff] %vm473, 0.0
      %4634 = vst.msk [vmem:[#allocation2 + $0x208] sm:$0xff] %vm473, 0.0
      %4635 = vst.msk [vmem:[#allocation2 + $0x210] sm:$0xff] %vm473, 0.0
      %4636 = vst.msk [vmem:[#allocation2 + $0x218] sm:$0x3] %vm477, 0.0
      %4637 = vst.msk [vmem:[#allocation2 + $0x220] sm:$0xff] %vm473, 0.0
      %4638 = vst.msk [vmem:[#allocation2 + $0x228] sm:$0xff] %vm473, 0.0
      %4639 = vst.msk [vmem:[#allocation2 + $0x230] sm:$0xff] %vm473, 0.0
      %4640 = vst.msk [vmem:[#allocation2 + $0x238] sm:$0x3] %vm477, 0.0
      %4641 = vst.msk [vmem:[#allocation2 + $0x240] sm:$0xff] %vm473, 0.0
      %4642 = vst.msk [vmem:[#allocation2 + $0x248] sm:$0xff] %vm473, 0.0
      %4643 = vst.msk [vmem:[#allocation2 + $0x250] sm:$0xff] %vm473, 0.0
      %4644 = vst.msk [vmem:[#allocation2 + $0x258] sm:$0x3] %vm477, 0.0
      %4645 = vst.msk [vmem:[#allocation2 + $0x260] sm:$0xff] %vm473, 0.0
      %4646 = vst.msk [vmem:[#allocation2 + $0x268] sm:$0xff] %vm473, 0.0
      %4647 = vst.msk [vmem:[#allocation2 + $0x270] sm:$0xff] %vm473, 0.0
      %4648 = vst.msk [vmem:[#allocation2 + $0x278] sm:$0x3] %vm477, 0.0
      %4649 = vst.msk [vmem:[#allocation2 + $0x280] sm:$0xff] %vm473, 0.0
      %4650 = vst.msk [vmem:[#allocation2 + $0x288] sm:$0xff] %vm473, 0.0
      %4651 = vst.msk [vmem:[#allocation2 + $0x290] sm:$0xff] %vm473, 0.0
      %4652 = vst.msk [vmem:[#allocation2 + $0x298] sm:$0x3] %vm477, 0.0
      %4653 = vst.msk [vmem:[#allocation2 + $0x2a0] sm:$0xff] %vm473, 0.0
      %4654 = vst.msk [vmem:[#allocation2 + $0x2a8] sm:$0xff] %vm473, 0.0
      %4655 = vst.msk [vmem:[#allocation2 + $0x2b0] sm:$0xff] %vm473, 0.0
      %4656 = vst.msk [vmem:[#allocation2 + $0x2b8] sm:$0x3] %vm477, 0.0
      %4657 = vst.msk [vmem:[#allocation2 + $0x2c0] sm:$0xff] %vm473, 0.0
      %4658 = vst.msk [vmem:[#allocation2 + $0x2c8] sm:$0xff] %vm473, 0.0
      %4659 = vst.msk [vmem:[#allocation2 + $0x2d0] sm:$0xff] %vm473, 0.0
      %4660 = vst.msk [vmem:[#allocation2 + $0x2d8] sm:$0x3] %vm477, 0.0
      %4661 = vst.msk [vmem:[#allocation2 + $0x2e0] sm:$0xff] %vm473, 0.0
      %4662 = vst.msk [vmem:[#allocation2 + $0x2e8] sm:$0xff] %vm473, 0.0
      %4663 = vst.msk [vmem:[#allocation2 + $0x2f0] sm:$0xff] %vm473, 0.0
      %4664 = vst.msk [vmem:[#allocation2 + $0x2f8] sm:$0x3] %vm477, 0.0
      %4665 = vst.msk [vmem:[#allocation2 + $0x300] sm:$0xff] %vm473, 0.0
      %4666 = vst.msk [vmem:[#allocation2 + $0x308] sm:$0xff] %vm473, 0.0
      %4667 = vst.msk [vmem:[#allocation2 + $0x310] sm:$0xff] %vm473, 0.0
      %4668 = vst.msk [vmem:[#allocation2 + $0x318] sm:$0x3] %vm477, 0.0
      %4669 = vst.msk [vmem:[#allocation2 + $0x320] sm:$0xff] %vm473, 0.0
      %4670 = vst.msk [vmem:[#allocation2 + $0x328] sm:$0xff] %vm473, 0.0
      %4671 = vst.msk [vmem:[#allocation2 + $0x330] sm:$0xff] %vm473, 0.0
      %4672 = vst.msk [vmem:[#allocation2 + $0x338] sm:$0x3] %vm477, 0.0
      %4705 = vrot.lane.b32.xlu0 %v2368, 120
      %v4706 = vpop.permute.xlu0 %4705
      %4707 = vrot.lane.b32.xlu0 %v2373, 120
      %v4708 = vpop.permute.xlu0 %4707
      %4709 = vrot.lane.b32.xlu0 %v2378, 120
      %v4710 = vpop.permute.xlu0 %4709
      %4711 = vrot.lane.b32.xlu0 %v2383, 120
      %v4712 = vpop.permute.xlu0 %4711
      %4713 = vrot.lane.b32.xlu0 %v2388, 120
      %v4714 = vpop.permute.xlu0 %4713
      %4715 = vrot.lane.b32.xlu0 %v2393, 120
      %v4716 = vpop.permute.xlu0 %4715
      %4717 = vrot.lane.b32.xlu0 %v2398, 120
      %v4718 = vpop.permute.xlu0 %4717
      %4719 = vrot.lane.b32.xlu0 %v2403, 120
      %v4720 = vpop.permute.xlu0 %4719
      %4721 = vrot.lane.b32.xlu0 %v2408, 120
      %v4722 = vpop.permute.xlu0 %4721
      %4723 = vrot.lane.b32.xlu0 %v2413, 120
      %v4724 = vpop.permute.xlu0 %4723
      %4725 = vrot.lane.b32.xlu0 %v2418, 120
      %v4726 = vpop.permute.xlu0 %4725
      %4727 = vrot.lane.b32.xlu0 %v2423, 120
      %v4728 = vpop.permute.xlu0 %4727
      %4729 = vrot.lane.b32.xlu0 %v2428, 120
      %v4730 = vpop.permute.xlu0 %4729
      %4731 = vrot.lane.b32.xlu0 %v2433, 120
      %v4732 = vpop.permute.xlu0 %4731
      %4733 = vrot.lane.b32.xlu0 %v2438, 120
      %v4734 = vpop.permute.xlu0 %4733
      %4735 = vrot.lane.b32.xlu0 %v2443, 120
      %v4736 = vpop.permute.xlu0 %4735
      %4737 = vrot.lane.b32.xlu0 %v2448, 120
      %v4738 = vpop.permute.xlu0 %4737
      %4739 = vrot.lane.b32.xlu0 %v2453, 120
      %v4740 = vpop.permute.xlu0 %4739
      %4741 = vrot.lane.b32.xlu0 %v2458, 120
      %v4742 = vpop.permute.xlu0 %4741
      %4743 = vrot.lane.b32.xlu0 %v2463, 120
      %v4744 = vpop.permute.xlu0 %4743
      %4745 = vrot.lane.b32.xlu0 %v2468, 120
      %v4746 = vpop.permute.xlu0 %4745
      %4747 = vrot.lane.b32.xlu0 %v2473, 120
      %v4748 = vpop.permute.xlu0 %4747
      %4749 = vrot.lane.b32.xlu0 %v2478, 120
      %v4750 = vpop.permute.xlu0 %4749
      %4751 = vrot.lane.b32.xlu0 %v2483, 120
      %v4752 = vpop.permute.xlu0 %4751
      %4753 = vrot.lane.b32.xlu0 %v2488, 120
      %v4754 = vpop.permute.xlu0 %4753
      %4755 = vrot.lane.b32.xlu0 %v2493, 120
      %v4756 = vpop.permute.xlu0 %4755
      %4757 = vrot.lane.b32.xlu0 %v2498, 120
      %v4758 = vpop.permute.xlu0 %4757
      %4759 = vrot.lane.b32.xlu0 %v2503, 120
      %v4760 = vpop.permute.xlu0 %4759
      %4761 = vrot.lane.b32.xlu0 %v2508, 120
      %v4762 = vpop.permute.xlu0 %4761
      %4763 = vrot.lane.b32.xlu0 %v2513, 120
      %v4764 = vpop.permute.xlu0 %4763
      %4765 = vrot.lane.b32.xlu0 %v2518, 120
      %v4766 = vpop.permute.xlu0 %4765
      %4767 = vrot.lane.b32.xlu0 %v2523, 120
      %v4768 = vpop.permute.xlu0 %4767
      %4801 = vst.msk [vmem:[%s2630 + $0x3] sm:$0xff] %vm473, %v4706
      %4802 = vst.msk [vmem:[%s2630 + $0xb] sm:$0xff] %vm473, %v4708
      %4803 = vst.msk [vmem:[%s2630 + $0x23] sm:$0xff] %vm473, %v4710
      %4804 = vst.msk [vmem:[%s2630 + $0x2b] sm:$0xff] %vm473, %v4712
      %4805 = vst.msk [vmem:[%s2630 + $0x43] sm:$0xff] %vm473, %v4714
      %4806 = vst.msk [vmem:[%s2630 + $0x4b] sm:$0xff] %vm473, %v4716
      %4807 = vst.msk [vmem:[%s2630 + $0x63] sm:$0xff] %vm473, %v4718
      %4808 = vst.msk [vmem:[%s2630 + $0x6b] sm:$0xff] %vm473, %v4720
      %4809 = vst.msk [vmem:[%s2630 + $0x83] sm:$0xff] %vm473, %v4722
      %4810 = vst.msk [vmem:[%s2630 + $0x8b] sm:$0xff] %vm473, %v4724
      %4811 = vst.msk [vmem:[%s2630 + $0xa3] sm:$0xff] %vm473, %v4726
      %4812 = vst.msk [vmem:[%s2630 + $0xab] sm:$0xff] %vm473, %v4728
      %4813 = vst.msk [vmem:[%s2630 + $0xc3] sm:$0xff] %vm473, %v4730
      %4814 = vst.msk [vmem:[%s2630 + $0xcb] sm:$0xff] %vm473, %v4732
      %4815 = vst.msk [vmem:[%s2630 + $0xe3] sm:$0xff] %vm473, %v4734
      %4816 = vst.msk [vmem:[%s2630 + $0xeb] sm:$0xff] %vm473, %v4736
      %4817 = vst.msk [vmem:[%s2630 + $0x103] sm:$0xff] %vm473, %v4738
      %4818 = vst.msk [vmem:[%s2630 + $0x10b] sm:$0xff] %vm473, %v4740
      %4819 = vst.msk [vmem:[%s2630 + $0x123] sm:$0xff] %vm473, %v4742
      %4820 = vst.msk [vmem:[%s2630 + $0x12b] sm:$0xff] %vm473, %v4744
      %4821 = vst.msk [vmem:[%s2630 + $0x143] sm:$0xff] %vm473, %v4746
      %4822 = vst.msk [vmem:[%s2630 + $0x14b] sm:$0xff] %vm473, %v4748
      %4823 = vst.msk [vmem:[%s2630 + $0x163] sm:$0xff] %vm473, %v4750
      %4824 = vst.msk [vmem:[%s2630 + $0x16b] sm:$0xff] %vm473, %v4752
      %4825 = vst.msk [vmem:[%s2630 + $0x183] sm:$0xff] %vm473, %v4754
      %4826 = vst.msk [vmem:[%s2630 + $0x18b] sm:$0xff] %vm473, %v4756
      %4827 = vst.msk [vmem:[%s2630 + $0x1a3] sm:$0xff] %vm473, %v4758
      %4828 = vst.msk [vmem:[%s2630 + $0x1ab] sm:$0xff] %vm473, %v4760
      %4829 = vst.msk [vmem:[%s2630 + $0x1c3] sm:$0xff] %vm473, %v4762
      %4830 = vst.msk [vmem:[%s2630 + $0x1cb] sm:$0xff] %vm473, %v4764
      %4831 = vst.msk [vmem:[%s2630 + $0x1e3] sm:$0xff] %vm473, %v4766
      %4832 = vst.msk [vmem:[%s2630 + $0x1eb] sm:$0xff] %vm473, %v4768
      %v4833 = vld [vmem:[#allocation2] sm:$0xff]
      %v4834 = vld [vmem:[#allocation2 + $0x8] sm:$0xff]
      %v4835 = vld [vmem:[#allocation2 + $0x20] sm:$0xff]
      %v4836 = vld [vmem:[#allocation2 + $0x28] sm:$0xff]
      %v4837 = vld [vmem:[#allocation2 + $0x40] sm:$0xff]
      %v4838 = vld [vmem:[#allocation2 + $0x48] sm:$0xff]
      %v4839 = vld [vmem:[#allocation2 + $0x60] sm:$0xff]
      %v4840 = vld [vmem:[#allocation2 + $0x68] sm:$0xff]
      %v4841 = vld [vmem:[#allocation2 + $0x80] sm:$0xff]
      %v4842 = vld [vmem:[#allocation2 + $0x88] sm:$0xff]
      %v4843 = vld [vmem:[#allocation2 + $0xa0] sm:$0xff]
      %v4844 = vld [vmem:[#allocation2 + $0xa8] sm:$0xff]
      %v4845 = vld [vmem:[#allocation2 + $0xc0] sm:$0xff]
      %v4846 = vld [vmem:[#allocation2 + $0xc8] sm:$0xff]
      %v4847 = vld [vmem:[#allocation2 + $0xe0] sm:$0xff]
      %v4848 = vld [vmem:[#allocation2 + $0xe8] sm:$0xff]
      %v4849 = vld [vmem:[#allocation2 + $0x100] sm:$0xff]
      %v4850 = vld [vmem:[#allocation2 + $0x108] sm:$0xff]
      %v4851 = vld [vmem:[#allocation2 + $0x120] sm:$0xff]
      %v4852 = vld [vmem:[#allocation2 + $0x128] sm:$0xff]
      %v4853 = vld [vmem:[#allocation2 + $0x140] sm:$0xff]
      %v4854 = vld [vmem:[#allocation2 + $0x148] sm:$0xff]
      %v4855 = vld [vmem:[#allocation2 + $0x160] sm:$0xff]
      %v4856 = vld [vmem:[#allocation2 + $0x168] sm:$0xff]
      %v4857 = vld [vmem:[#allocation2 + $0x180] sm:$0xff]
      %v4858 = vld [vmem:[#allocation2 + $0x188] sm:$0xff]
      %v4859 = vld [vmem:[#allocation2 + $0x1a0] sm:$0xff]
      %v4860 = vld [vmem:[#allocation2 + $0x1a8] sm:$0xff]
      %v4861 = vld [vmem:[#allocation2 + $0x1c0] sm:$0xff]
      %v4862 = vld [vmem:[#allocation2 + $0x1c8] sm:$0xff]
      %v4863 = vld [vmem:[#allocation2 + $0x1e0] sm:$0xff]
      %v4864 = vld [vmem:[#allocation2 + $0x1e8] sm:$0xff]
      %v4865 = vld [vmem:[#allocation2 + $0x3] sm:$0xff]
      %v4866 = vld [vmem:[#allocation2 + $0xb] sm:$0xff]
      %v4867 = vld [vmem:[#allocation2 + $0x23] sm:$0xff]
      %v4868 = vld [vmem:[#allocation2 + $0x2b] sm:$0xff]
      %v4869 = vld [vmem:[#allocation2 + $0x43] sm:$0xff]
      %v4870 = vld [vmem:[#allocation2 + $0x4b] sm:$0xff]
      %v4871 = vld [vmem:[#allocation2 + $0x63] sm:$0xff]
      %v4872 = vld [vmem:[#allocation2 + $0x6b] sm:$0xff]
      %v4873 = vld [vmem:[#allocation2 + $0x83] sm:$0xff]
      %v4874 = vld [vmem:[#allocation2 + $0x8b] sm:$0xff]
      %v4875 = vld [vmem:[#allocation2 + $0xa3] sm:$0xff]
      %v4876 = vld [vmem:[#allocation2 + $0xab] sm:$0xff]
      %v4877 = vld [vmem:[#allocation2 + $0xc3] sm:$0xff]
      %v4878 = vld [vmem:[#allocation2 + $0xcb] sm:$0xff]
      %v4879 = vld [vmem:[#allocation2 + $0xe3] sm:$0xff]
      %v4880 = vld [vmem:[#allocation2 + $0xeb] sm:$0xff]
      %v4881 = vld [vmem:[#allocation2 + $0x103] sm:$0xff]
      %v4882 = vld [vmem:[#allocation2 + $0x10b] sm:$0xff]
      %v4883 = vld [vmem:[#allocation2 + $0x123] sm:$0xff]
      %v4884 = vld [vmem:[#allocation2 + $0x12b] sm:$0xff]
      %v4885 = vld [vmem:[#allocation2 + $0x143] sm:$0xff]
      %v4886 = vld [vmem:[#allocation2 + $0x14b] sm:$0xff]
      %v4887 = vld [vmem:[#allocation2 + $0x163] sm:$0xff]
      %v4888 = vld [vmem:[#allocation2 + $0x16b] sm:$0xff]
      %v4889 = vld [vmem:[#allocation2 + $0x183] sm:$0xff]
      %v4890 = vld [vmem:[#allocation2 + $0x18b] sm:$0xff]
      %v4891 = vld [vmem:[#allocation2 + $0x1a3] sm:$0xff]
      %v4892 = vld [vmem:[#allocation2 + $0x1ab] sm:$0xff]
      %v4893 = vld [vmem:[#allocation2 + $0x1c3] sm:$0xff]
      %v4894 = vld [vmem:[#allocation2 + $0x1cb] sm:$0xff]
      %v4895 = vld [vmem:[#allocation2 + $0x1e3] sm:$0xff]
      %v4896 = vld [vmem:[#allocation2 + $0x1eb] sm:$0xff]
      %v4897 = vld [vmem:[#allocation2 + $0x6] sm:$0xff]
      %v4898 = vld [vmem:[#allocation2 + $0xe] sm:$0xff]
      %v4899 = vld [vmem:[#allocation2 + $0x26] sm:$0xff]
      %v4900 = vld [vmem:[#allocation2 + $0x2e] sm:$0xff]
      %v4901 = vld [vmem:[#allocation2 + $0x46] sm:$0xff]
      %v4902 = vld [vmem:[#allocation2 + $0x4e] sm:$0xff]
      %v4903 = vld [vmem:[#allocation2 + $0x66] sm:$0xff]
      %v4904 = vld [vmem:[#allocation2 + $0x6e] sm:$0xff]
      %v4905 = vld [vmem:[#allocation2 + $0x86] sm:$0xff]
      %v4906 = vld [vmem:[#allocation2 + $0x8e] sm:$0xff]
      %v4907 = vld [vmem:[#allocation2 + $0xa6] sm:$0xff]
      %v4908 = vld [vmem:[#allocation2 + $0xae] sm:$0xff]
      %v4909 = vld [vmem:[#allocation2 + $0xc6] sm:$0xff]
      %v4910 = vld [vmem:[#allocation2 + $0xce] sm:$0xff]
      %v4911 = vld [vmem:[#allocation2 + $0xe6] sm:$0xff]
      %v4912 = vld [vmem:[#allocation2 + $0xee] sm:$0xff]
      %v4913 = vld [vmem:[#allocation2 + $0x106] sm:$0xff]
      %v4914 = vld [vmem:[#allocation2 + $0x10e] sm:$0xff]
      %v4915 = vld [vmem:[#allocation2 + $0x126] sm:$0xff]
      %v4916 = vld [vmem:[#allocation2 + $0x12e] sm:$0xff]
      %v4917 = vld [vmem:[#allocation2 + $0x146] sm:$0xff]
      %v4918 = vld [vmem:[#allocation2 + $0x14e] sm:$0xff]
      %v4919 = vld [vmem:[#allocation2 + $0x166] sm:$0xff]
      %v4920 = vld [vmem:[#allocation2 + $0x16e] sm:$0xff]
      %v4921 = vld [vmem:[#allocation2 + $0x186] sm:$0xff]
      %v4922 = vld [vmem:[#allocation2 + $0x18e] sm:$0xff]
      %v4923 = vld [vmem:[#allocation2 + $0x1a6] sm:$0xff]
      %v4924 = vld [vmem:[#allocation2 + $0x1ae] sm:$0xff]
      %v4925 = vld [vmem:[#allocation2 + $0x1c6] sm:$0xff]
      %v4926 = vld [vmem:[#allocation2 + $0x1ce] sm:$0xff]
      %v4927 = vld [vmem:[#allocation2 + $0x1e6] sm:$0xff]
      %v4928 = vld [vmem:[#allocation2 + $0x1ee] sm:$0xff]
      %v4929 = vld [vmem:[%s2630] sm:$0xff]
      %v4930 = vld [vmem:[%s2630 + $0x8] sm:$0xff]
      %v4931 = vld [vmem:[%s2630 + $0x20] sm:$0xff]
      %v4932 = vld [vmem:[%s2630 + $0x28] sm:$0xff]
      %v4933 = vld [vmem:[%s2630 + $0x40] sm:$0xff]
      %v4934 = vld [vmem:[%s2630 + $0x48] sm:$0xff]
      %v4935 = vld [vmem:[%s2630 + $0x60] sm:$0xff]
      %v4936 = vld [vmem:[%s2630 + $0x68] sm:$0xff]
      %v4937 = vld [vmem:[%s2630 + $0x80] sm:$0xff]
      %v4938 = vld [vmem:[%s2630 + $0x88] sm:$0xff]
      %v4939 = vld [vmem:[%s2630 + $0xa0] sm:$0xff]
      %v4940 = vld [vmem:[%s2630 + $0xa8] sm:$0xff]
      %v4941 = vld [vmem:[%s2630 + $0xc0] sm:$0xff]
      %v4942 = vld [vmem:[%s2630 + $0xc8] sm:$0xff]
      %v4943 = vld [vmem:[%s2630 + $0xe0] sm:$0xff]
      %v4944 = vld [vmem:[%s2630 + $0xe8] sm:$0xff]
      %v4945 = vld [vmem:[%s2630 + $0x100] sm:$0xff]
      %v4946 = vld [vmem:[%s2630 + $0x108] sm:$0xff]
      %v4947 = vld [vmem:[%s2630 + $0x120] sm:$0xff]
      %v4948 = vld [vmem:[%s2630 + $0x128] sm:$0xff]
      %v4949 = vld [vmem:[%s2630 + $0x140] sm:$0xff]
      %v4950 = vld [vmem:[%s2630 + $0x148] sm:$0xff]
      %v4951 = vld [vmem:[%s2630 + $0x160] sm:$0xff]
      %v4952 = vld [vmem:[%s2630 + $0x168] sm:$0xff]
      %v4953 = vld [vmem:[%s2630 + $0x180] sm:$0xff]
      %v4954 = vld [vmem:[%s2630 + $0x188] sm:$0xff]
      %v4955 = vld [vmem:[%s2630 + $0x1a0] sm:$0xff]
      %v4956 = vld [vmem:[%s2630 + $0x1a8] sm:$0xff]
      %v4957 = vld [vmem:[%s2630 + $0x1c0] sm:$0xff]
      %v4958 = vld [vmem:[%s2630 + $0x1c8] sm:$0xff]
      %v4959 = vld [vmem:[%s2630 + $0x1e0] sm:$0xff]
      %v4960 = vld [vmem:[%s2630 + $0x1e8] sm:$0xff]
      %v4961 = vld [vmem:[%s2630 + $0x3] sm:$0xff]
      %v4962 = vld [vmem:[%s2630 + $0xb] sm:$0xff]
      %v4963 = vld [vmem:[%s2630 + $0x23] sm:$0xff]
      %v4964 = vld [vmem:[%s2630 + $0x2b] sm:$0xff]
      %v4965 = vld [vmem:[%s2630 + $0x43] sm:$0xff]
      %v4966 = vld [vmem:[%s2630 + $0x4b] sm:$0xff]
      %v4967 = vld [vmem:[%s2630 + $0x63] sm:$0xff]
      %v4968 = vld [vmem:[%s2630 + $0x6b] sm:$0xff]
      %v4969 = vld [vmem:[%s2630 + $0x83] sm:$0xff]
      %v4970 = vld [vmem:[%s2630 + $0x8b] sm:$0xff]
      %v4971 = vld [vmem:[%s2630 + $0xa3] sm:$0xff]
      %v4972 = vld [vmem:[%s2630 + $0xab] sm:$0xff]
      %v4973 = vld [vmem:[%s2630 + $0xc3] sm:$0xff]
      %v4974 = vld [vmem:[%s2630 + $0xcb] sm:$0xff]
      %v4975 = vld [vmem:[%s2630 + $0xe3] sm:$0xff]
      %v4976 = vld [vmem:[%s2630 + $0xeb] sm:$0xff]
      %v4977 = vld [vmem:[%s2630 + $0x103] sm:$0xff]
      %v4978 = vld [vmem:[%s2630 + $0x10b] sm:$0xff]
      %v4979 = vld [vmem:[%s2630 + $0x123] sm:$0xff]
      %v4980 = vld [vmem:[%s2630 + $0x12b] sm:$0xff]
      %v4981 = vld [vmem:[%s2630 + $0x143] sm:$0xff]
      %v4982 = vld [vmem:[%s2630 + $0x14b] sm:$0xff]
      %v4983 = vld [vmem:[%s2630 + $0x163] sm:$0xff]
      %v4984 = vld [vmem:[%s2630 + $0x16b] sm:$0xff]
      %v4985 = vld [vmem:[%s2630 + $0x183] sm:$0xff]
      %v4986 = vld [vmem:[%s2630 + $0x18b] sm:$0xff]
      %v4987 = vld [vmem:[%s2630 + $0x1a3] sm:$0xff]
      %v4988 = vld [vmem:[%s2630 + $0x1ab] sm:$0xff]
      %v4989 = vld [vmem:[%s2630 + $0x1c3] sm:$0xff]
      %v4990 = vld [vmem:[%s2630 + $0x1cb] sm:$0xff]
      %v4991 = vld [vmem:[%s2630 + $0x1e3] sm:$0xff]
      %v4992 = vld [vmem:[%s2630 + $0x1eb] sm:$0xff]
      %v4993 = vld [vmem:[%s2630 + $0x6] sm:$0xff]
      %v4994 = vld [vmem:[%s2630 + $0xe] sm:$0xff]
      %v4995 = vld [vmem:[%s2630 + $0x26] sm:$0xff]
      %v4996 = vld [vmem:[%s2630 + $0x2e] sm:$0xff]
      %v4997 = vld [vmem:[%s2630 + $0x46] sm:$0xff]
      %v4998 = vld [vmem:[%s2630 + $0x4e] sm:$0xff]
      %v4999 = vld [vmem:[%s2630 + $0x66] sm:$0xff]
      %v5000 = vld [vmem:[%s2630 + $0x6e] sm:$0xff]
      %v5001 = vld [vmem:[%s2630 + $0x86] sm:$0xff]
      %v5002 = vld [vmem:[%s2630 + $0x8e] sm:$0xff]
      %v5003 = vld [vmem:[%s2630 + $0xa6] sm:$0xff]
      %v5004 = vld [vmem:[%s2630 + $0xae] sm:$0xff]
      %v5005 = vld [vmem:[%s2630 + $0xc6] sm:$0xff]
      %v5006 = vld [vmem:[%s2630 + $0xce] sm:$0xff]
      %v5007 = vld [vmem:[%s2630 + $0xe6] sm:$0xff]
      %v5008 = vld [vmem:[%s2630 + $0xee] sm:$0xff]
      %v5009 = vld [vmem:[%s2630 + $0x106] sm:$0xff]
      %v5010 = vld [vmem:[%s2630 + $0x10e] sm:$0xff]
      %v5011 = vld [vmem:[%s2630 + $0x126] sm:$0xff]
      %v5012 = vld [vmem:[%s2630 + $0x12e] sm:$0xff]
      %v5013 = vld [vmem:[%s2630 + $0x146] sm:$0xff]
      %v5014 = vld [vmem:[%s2630 + $0x14e] sm:$0xff]
      %v5015 = vld [vmem:[%s2630 + $0x166] sm:$0xff]
      %v5016 = vld [vmem:[%s2630 + $0x16e] sm:$0xff]
      %v5017 = vld [vmem:[%s2630 + $0x186] sm:$0xff]
      %v5018 = vld [vmem:[%s2630 + $0x18e] sm:$0xff]
      %v5019 = vld [vmem:[%s2630 + $0x1a6] sm:$0xff]
      %v5020 = vld [vmem:[%s2630 + $0x1ae] sm:$0xff]
      %v5021 = vld [vmem:[%s2630 + $0x1c6] sm:$0xff]
      %v5022 = vld [vmem:[%s2630 + $0x1ce] sm:$0xff]
      %v5023 = vld [vmem:[%s2630 + $0x1e6] sm:$0xff]
      %v5024 = vld [vmem:[%s2630 + $0x1ee] sm:$0xff]
      %v5025 = vld [vmem:[%s2855] sm:$0xff]
      %v5026 = vld [vmem:[%s2855 + $0x8] sm:$0xff]
      %v5027 = vld [vmem:[%s2855 + $0x20] sm:$0xff]
      %v5028 = vld [vmem:[%s2855 + $0x28] sm:$0xff]
      %v5029 = vld [vmem:[%s2855 + $0x40] sm:$0xff]
      %v5030 = vld [vmem:[%s2855 + $0x48] sm:$0xff]
      %v5031 = vld [vmem:[%s2855 + $0x60] sm:$0xff]
      %v5032 = vld [vmem:[%s2855 + $0x68] sm:$0xff]
      %v5033 = vld [vmem:[%s2855 + $0x80] sm:$0xff]
      %v5034 = vld [vmem:[%s2855 + $0x88] sm:$0xff]
      %v5035 = vld [vmem:[%s2855 + $0xa0] sm:$0xff]
      %v5036 = vld [vmem:[%s2855 + $0xa8] sm:$0xff]
      %v5037 = vld [vmem:[%s2855 + $0xc0] sm:$0xff]
      %v5038 = vld [vmem:[%s2855 + $0xc8] sm:$0xff]
      %v5039 = vld [vmem:[%s2855 + $0xe0] sm:$0xff]
      %v5040 = vld [vmem:[%s2855 + $0xe8] sm:$0xff]
      %v5041 = vld [vmem:[%s2855 + $0x100] sm:$0xff]
      %v5042 = vld [vmem:[%s2855 + $0x108] sm:$0xff]
      %v5043 = vld [vmem:[%s2855 + $0x120] sm:$0xff]
      %v5044 = vld [vmem:[%s2855 + $0x128] sm:$0xff]
      %v5045 = vld [vmem:[%s2855 + $0x140] sm:$0xff]
      %v5046 = vld [vmem:[%s2855 + $0x148] sm:$0xff]
      %v5047 = vld [vmem:[%s2855 + $0x160] sm:$0xff]
      %v5048 = vld [vmem:[%s2855 + $0x168] sm:$0xff]
      %v5049 = vld [vmem:[%s2855 + $0x180] sm:$0xff]
      %v5050 = vld [vmem:[%s2855 + $0x188] sm:$0xff]
      %v5051 = vld [vmem:[%s2855 + $0x1a0] sm:$0xff]
      %v5052 = vld [vmem:[%s2855 + $0x1a8] sm:$0xff]
      %v5053 = vld [vmem:[%s2855 + $0x1c0] sm:$0xff]
      %v5054 = vld [vmem:[%s2855 + $0x1c8] sm:$0xff]
      %v5055 = vld [vmem:[%s2855 + $0x1e0] sm:$0xff]
      %v5056 = vld [vmem:[%s2855 + $0x1e8] sm:$0xff]
      %v5057 = vld [vmem:[%s2855 + $0x3] sm:$0xff]
      %v5058 = vld [vmem:[%s2855 + $0xb] sm:$0xff]
      %v5059 = vld [vmem:[%s2855 + $0x23] sm:$0xff]
      %v5060 = vld [vmem:[%s2855 + $0x2b] sm:$0xff]
      %v5061 = vld [vmem:[%s2855 + $0x43] sm:$0xff]
      %v5062 = vld [vmem:[%s2855 + $0x4b] sm:$0xff]
      %v5063 = vld [vmem:[%s2855 + $0x63] sm:$0xff]
      %v5064 = vld [vmem:[%s2855 + $0x6b] sm:$0xff]
      %v5065 = vld [vmem:[%s2855 + $0x83] sm:$0xff]
      %v5066 = vld [vmem:[%s2855 + $0x8b] sm:$0xff]
      %v5067 = vld [vmem:[%s2855 + $0xa3] sm:$0xff]
      %v5068 = vld [vmem:[%s2855 + $0xab] sm:$0xff]
      %v5069 = vld [vmem:[%s2855 + $0xc3] sm:$0xff]
      %v5070 = vld [vmem:[%s2855 + $0xcb] sm:$0xff]
      %v5071 = vld [vmem:[%s2855 + $0xe3] sm:$0xff]
      %v5072 = vld [vmem:[%s2855 + $0xeb] sm:$0xff]
      %v5073 = vld [vmem:[%s2855 + $0x103] sm:$0xff]
      %v5074 = vld [vmem:[%s2855 + $0x10b] sm:$0xff]
      %v5075 = vld [vmem:[%s2855 + $0x123] sm:$0xff]
      %v5076 = vld [vmem:[%s2855 + $0x12b] sm:$0xff]
      %v5077 = vld [vmem:[%s2855 + $0x143] sm:$0xff]
      %v5078 = vld [vmem:[%s2855 + $0x14b] sm:$0xff]
      %v5079 = vld [vmem:[%s2855 + $0x163] sm:$0xff]
      %v5080 = vld [vmem:[%s2855 + $0x16b] sm:$0xff]
      %v5081 = vld [vmem:[%s2855 + $0x183] sm:$0xff]
      %v5082 = vld [vmem:[%s2855 + $0x18b] sm:$0xff]
      %v5083 = vld [vmem:[%s2855 + $0x1a3] sm:$0xff]
      %v5084 = vld [vmem:[%s2855 + $0x1ab] sm:$0xff]
      %v5085 = vld [vmem:[%s2855 + $0x1c3] sm:$0xff]
      %v5086 = vld [vmem:[%s2855 + $0x1cb] sm:$0xff]
      %v5087 = vld [vmem:[%s2855 + $0x1e3] sm:$0xff]
      %v5088 = vld [vmem:[%s2855 + $0x1eb] sm:$0xff]
      %v5089 = vld [vmem:[%s2855 + $0x6] sm:$0xff]
      %v5090 = vld [vmem:[%s2855 + $0xe] sm:$0xff]
      %v5091 = vld [vmem:[%s2855 + $0x26] sm:$0xff]
      %v5092 = vld [vmem:[%s2855 + $0x2e] sm:$0xff]
      %v5093 = vld [vmem:[%s2855 + $0x46] sm:$0xff]
      %v5094 = vld [vmem:[%s2855 + $0x4e] sm:$0xff]
      %v5095 = vld [vmem:[%s2855 + $0x66] sm:$0xff]
      %v5096 = vld [vmem:[%s2855 + $0x6e] sm:$0xff]
      %v5097 = vld [vmem:[%s2855 + $0x86] sm:$0xff]
      %v5098 = vld [vmem:[%s2855 + $0x8e] sm:$0xff]
      %v5099 = vld [vmem:[%s2855 + $0xa6] sm:$0xff]
      %v5100 = vld [vmem:[%s2855 + $0xae] sm:$0xff]
      %v5101 = vld [vmem:[%s2855 + $0xc6] sm:$0xff]
      %v5102 = vld [vmem:[%s2855 + $0xce] sm:$0xff]
      %v5103 = vld [vmem:[%s2855 + $0xe6] sm:$0xff]
      %v5104 = vld [vmem:[%s2855 + $0xee] sm:$0xff]
      %v5105 = vld [vmem:[%s2855 + $0x106] sm:$0xff]
      %v5106 = vld [vmem:[%s2855 + $0x10e] sm:$0xff]
      %v5107 = vld [vmem:[%s2855 + $0x126] sm:$0xff]
      %v5108 = vld [vmem:[%s2855 + $0x12e] sm:$0xff]
      %v5109 = vld [vmem:[%s2855 + $0x146] sm:$0xff]
      %v5110 = vld [vmem:[%s2855 + $0x14e] sm:$0xff]
      %v5111 = vld [vmem:[%s2855 + $0x166] sm:$0xff]
      %v5112 = vld [vmem:[%s2855 + $0x16e] sm:$0xff]
      %v5113 = vld [vmem:[%s2855 + $0x186] sm:$0xff]
      %v5114 = vld [vmem:[%s2855 + $0x18e] sm:$0xff]
      %v5115 = vld [vmem:[%s2855 + $0x1a6] sm:$0xff]
      %v5116 = vld [vmem:[%s2855 + $0x1ae] sm:$0xff]
      %v5117 = vld [vmem:[%s2855 + $0x1c6] sm:$0xff]
      %v5118 = vld [vmem:[%s2855 + $0x1ce] sm:$0xff]
      %v5119 = vld [vmem:[%s2855 + $0x1e6] sm:$0xff]
      %v5120 = vld [vmem:[%s2855 + $0x1ee] sm:$0xff]
      %5153 = vrot.lane.b32.xlu0 %v4865, 8
      %v5154 = vpop.permute.xlu0 %5153
      %5155 = vrot.lane.b32.xlu0 %v4866, 8
      %v5156 = vpop.permute.xlu0 %5155
      %5157 = vrot.lane.b32.xlu0 %v4867, 8
      %v5158 = vpop.permute.xlu0 %5157
      %5159 = vrot.lane.b32.xlu0 %v4868, 8
      %v5160 = vpop.permute.xlu0 %5159
      %5161 = vrot.lane.b32.xlu0 %v4869, 8
      %v5162 = vpop.permute.xlu0 %5161
      %5163 = vrot.lane.b32.xlu0 %v4870, 8
      %v5164 = vpop.permute.xlu0 %5163
      %5165 = vrot.lane.b32.xlu0 %v4871, 8
      %v5166 = vpop.permute.xlu0 %5165
      %5167 = vrot.lane.b32.xlu0 %v4872, 8
      %v5168 = vpop.permute.xlu0 %5167
      %5169 = vrot.lane.b32.xlu0 %v4873, 8
      %v5170 = vpop.permute.xlu0 %5169
      %5171 = vrot.lane.b32.xlu0 %v4874, 8
      %v5172 = vpop.permute.xlu0 %5171
      %5173 = vrot.lane.b32.xlu0 %v4875, 8
      %v5174 = vpop.permute.xlu0 %5173
      %5175 = vrot.lane.b32.xlu0 %v4876, 8
      %v5176 = vpop.permute.xlu0 %5175
      %5177 = vrot.lane.b32.xlu0 %v4877, 8
      %v5178 = vpop.permute.xlu0 %5177
      %5179 = vrot.lane.b32.xlu0 %v4878, 8
      %v5180 = vpop.permute.xlu0 %5179
      %5181 = vrot.lane.b32.xlu0 %v4879, 8
      %v5182 = vpop.permute.xlu0 %5181
      %5183 = vrot.lane.b32.xlu0 %v4880, 8
      %v5184 = vpop.permute.xlu0 %5183
      %5185 = vrot.lane.b32.xlu0 %v4881, 8
      %v5186 = vpop.permute.xlu0 %5185
      %5187 = vrot.lane.b32.xlu0 %v4882, 8
      %v5188 = vpop.permute.xlu0 %5187
      %5189 = vrot.lane.b32.xlu0 %v4883, 8
      %v5190 = vpop.permute.xlu0 %5189
      %5191 = vrot.lane.b32.xlu0 %v4884, 8
      %v5192 = vpop.permute.xlu0 %5191
      %5193 = vrot.lane.b32.xlu0 %v4885, 8
      %v5194 = vpop.permute.xlu0 %5193
      %5195 = vrot.lane.b32.xlu0 %v4886, 8
      %v5196 = vpop.permute.xlu0 %5195
      %5197 = vrot.lane.b32.xlu0 %v4887, 8
      %v5198 = vpop.permute.xlu0 %5197
      %5199 = vrot.lane.b32.xlu0 %v4888, 8
      %v5200 = vpop.permute.xlu0 %5199
      %5201 = vrot.lane.b32.xlu0 %v4889, 8
      %v5202 = vpop.permute.xlu0 %5201
      %5203 = vrot.lane.b32.xlu0 %v4890, 8
      %v5204 = vpop.permute.xlu0 %5203
      %5205 = vrot.lane.b32.xlu0 %v4891, 8
      %v5206 = vpop.permute.xlu0 %5205
      %5207 = vrot.lane.b32.xlu0 %v4892, 8
      %v5208 = vpop.permute.xlu0 %5207
      %5209 = vrot.lane.b32.xlu0 %v4893, 8
      %v5210 = vpop.permute.xlu0 %5209
      %5211 = vrot.lane.b32.xlu0 %v4894, 8
      %v5212 = vpop.permute.xlu0 %5211
      %5213 = vrot.lane.b32.xlu0 %v4895, 8
      %v5214 = vpop.permute.xlu0 %5213
      %5215 = vrot.lane.b32.xlu0 %v4896, 8
      %v5216 = vpop.permute.xlu0 %5215
      %5281 = vrot.lane.b32.xlu0 %v4897, 16
      %v5282 = vpop.permute.xlu0 %5281
      %5283 = vrot.lane.b32.xlu0 %v4898, 16
      %v5284 = vpop.permute.xlu0 %5283
      %5285 = vrot.lane.b32.xlu0 %v4899, 16
      %v5286 = vpop.permute.xlu0 %5285
      %5287 = vrot.lane.b32.xlu0 %v4900, 16
      %v5288 = vpop.permute.xlu0 %5287
      %5289 = vrot.lane.b32.xlu0 %v4901, 16
      %v5290 = vpop.permute.xlu0 %5289
      %5291 = vrot.lane.b32.xlu0 %v4902, 16
      %v5292 = vpop.permute.xlu0 %5291
      %5293 = vrot.lane.b32.xlu0 %v4903, 16
      %v5294 = vpop.permute.xlu0 %5293
      %5295 = vrot.lane.b32.xlu0 %v4904, 16
      %v5296 = vpop.permute.xlu0 %5295
      %5297 = vrot.lane.b32.xlu0 %v4905, 16
      %v5298 = vpop.permute.xlu0 %5297
      %5299 = vrot.lane.b32.xlu0 %v4906, 16
      %v5300 = vpop.permute.xlu0 %5299
      %5301 = vrot.lane.b32.xlu0 %v4907, 16
      %v5302 = vpop.permute.xlu0 %5301
      %5303 = vrot.lane.b32.xlu0 %v4908, 16
      %v5304 = vpop.permute.xlu0 %5303
      %5305 = vrot.lane.b32.xlu0 %v4909, 16
      %v5306 = vpop.permute.xlu0 %5305
      %5307 = vrot.lane.b32.xlu0 %v4910, 16
      %v5308 = vpop.permute.xlu0 %5307
      %5309 = vrot.lane.b32.xlu0 %v4911, 16
      %v5310 = vpop.permute.xlu0 %5309
      %5311 = vrot.lane.b32.xlu0 %v4912, 16
      %v5312 = vpop.permute.xlu0 %5311
      %5313 = vrot.lane.b32.xlu0 %v4913, 16
      %v5314 = vpop.permute.xlu0 %5313
      %5315 = vrot.lane.b32.xlu0 %v4914, 16
      %v5316 = vpop.permute.xlu0 %5315
      %5317 = vrot.lane.b32.xlu0 %v4915, 16
      %v5318 = vpop.permute.xlu0 %5317
      %5319 = vrot.lane.b32.xlu0 %v4916, 16
      %v5320 = vpop.permute.xlu0 %5319
      %5321 = vrot.lane.b32.xlu0 %v4917, 16
      %v5322 = vpop.permute.xlu0 %5321
      %5323 = vrot.lane.b32.xlu0 %v4918, 16
      %v5324 = vpop.permute.xlu0 %5323
      %5325 = vrot.lane.b32.xlu0 %v4919, 16
      %v5326 = vpop.permute.xlu0 %5325
      %5327 = vrot.lane.b32.xlu0 %v4920, 16
      %v5328 = vpop.permute.xlu0 %5327
      %5329 = vrot.lane.b32.xlu0 %v4921, 16
      %v5330 = vpop.permute.xlu0 %5329
      %5331 = vrot.lane.b32.xlu0 %v4922, 16
      %v5332 = vpop.permute.xlu0 %5331
      %5333 = vrot.lane.b32.xlu0 %v4923, 16
      %v5334 = vpop.permute.xlu0 %5333
      %5335 = vrot.lane.b32.xlu0 %v4924, 16
      %v5336 = vpop.permute.xlu0 %5335
      %5337 = vrot.lane.b32.xlu0 %v4925, 16
      %v5338 = vpop.permute.xlu0 %5337
      %5339 = vrot.lane.b32.xlu0 %v4926, 16
      %v5340 = vpop.permute.xlu0 %5339
      %5341 = vrot.lane.b32.xlu0 %v4927, 16
      %v5342 = vpop.permute.xlu0 %5341
      %5343 = vrot.lane.b32.xlu0 %v4928, 16
      %v5344 = vpop.permute.xlu0 %5343
      %5409 = vrot.lane.b32.xlu0 %v4929, 24
      %v5410 = vpop.permute.xlu0 %5409
      %5411 = vrot.lane.b32.xlu0 %v4930, 24
      %v5412 = vpop.permute.xlu0 %5411
      %5413 = vrot.lane.b32.xlu0 %v4931, 24
      %v5414 = vpop.permute.xlu0 %5413
      %5415 = vrot.lane.b32.xlu0 %v4932, 24
      %v5416 = vpop.permute.xlu0 %5415
      %5417 = vrot.lane.b32.xlu0 %v4933, 24
      %v5418 = vpop.permute.xlu0 %5417
      %5419 = vrot.lane.b32.xlu0 %v4934, 24
      %v5420 = vpop.permute.xlu0 %5419
      %5421 = vrot.lane.b32.xlu0 %v4935, 24
      %v5422 = vpop.permute.xlu0 %5421
      %5423 = vrot.lane.b32.xlu0 %v4936, 24
      %v5424 = vpop.permute.xlu0 %5423
      %5425 = vrot.lane.b32.xlu0 %v4937, 24
      %v5426 = vpop.permute.xlu0 %5425
      %5427 = vrot.lane.b32.xlu0 %v4938, 24
      %v5428 = vpop.permute.xlu0 %5427
      %5429 = vrot.lane.b32.xlu0 %v4939, 24
      %v5430 = vpop.permute.xlu0 %5429
      %5431 = vrot.lane.b32.xlu0 %v4940, 24
      %v5432 = vpop.permute.xlu0 %5431
      %5433 = vrot.lane.b32.xlu0 %v4941, 24
      %v5434 = vpop.permute.xlu0 %5433
      %5435 = vrot.lane.b32.xlu0 %v4942, 24
      %v5436 = vpop.permute.xlu0 %5435
      %5437 = vrot.lane.b32.xlu0 %v4943, 24
      %v5438 = vpop.permute.xlu0 %5437
      %5439 = vrot.lane.b32.xlu0 %v4944, 24
      %v5440 = vpop.permute.xlu0 %5439
      %5441 = vrot.lane.b32.xlu0 %v4945, 24
      %v5442 = vpop.permute.xlu0 %5441
      %5443 = vrot.lane.b32.xlu0 %v4946, 24
      %v5444 = vpop.permute.xlu0 %5443
      %5445 = vrot.lane.b32.xlu0 %v4947, 24
      %v5446 = vpop.permute.xlu0 %5445
      %5447 = vrot.lane.b32.xlu0 %v4948, 24
      %v5448 = vpop.permute.xlu0 %5447
      %5449 = vrot.lane.b32.xlu0 %v4949, 24
      %v5450 = vpop.permute.xlu0 %5449
      %5451 = vrot.lane.b32.xlu0 %v4950, 24
      %v5452 = vpop.permute.xlu0 %5451
      %5453 = vrot.lane.b32.xlu0 %v4951, 24
      %v5454 = vpop.permute.xlu0 %5453
      %5455 = vrot.lane.b32.xlu0 %v4952, 24
      %v5456 = vpop.permute.xlu0 %5455
      %5457 = vrot.lane.b32.xlu0 %v4953, 24
      %v5458 = vpop.permute.xlu0 %5457
      %5459 = vrot.lane.b32.xlu0 %v4954, 24
      %v5460 = vpop.permute.xlu0 %5459
      %5461 = vrot.lane.b32.xlu0 %v4955, 24
      %v5462 = vpop.permute.xlu0 %5461
      %5463 = vrot.lane.b32.xlu0 %v4956, 24
      %v5464 = vpop.permute.xlu0 %5463
      %5465 = vrot.lane.b32.xlu0 %v4957, 24
      %v5466 = vpop.permute.xlu0 %5465
      %5467 = vrot.lane.b32.xlu0 %v4958, 24
      %v5468 = vpop.permute.xlu0 %5467
      %5469 = vrot.lane.b32.xlu0 %v4959, 24
      %v5470 = vpop.permute.xlu0 %5469
      %5471 = vrot.lane.b32.xlu0 %v4960, 24
      %v5472 = vpop.permute.xlu0 %5471
      %5537 = vrot.lane.b32.xlu0 %v4961, 32
      %v5538 = vpop.permute.xlu0 %5537
      %5539 = vrot.lane.b32.xlu0 %v4962, 32
      %v5540 = vpop.permute.xlu0 %5539
      %5541 = vrot.lane.b32.xlu0 %v4963, 32
      %v5542 = vpop.permute.xlu0 %5541
      %5543 = vrot.lane.b32.xlu0 %v4964, 32
      %v5544 = vpop.permute.xlu0 %5543
      %5545 = vrot.lane.b32.xlu0 %v4965, 32
      %v5546 = vpop.permute.xlu0 %5545
      %5547 = vrot.lane.b32.xlu0 %v4966, 32
      %v5548 = vpop.permute.xlu0 %5547
      %5549 = vrot.lane.b32.xlu0 %v4967, 32
      %v5550 = vpop.permute.xlu0 %5549
      %5551 = vrot.lane.b32.xlu0 %v4968, 32
      %v5552 = vpop.permute.xlu0 %5551
      %5553 = vrot.lane.b32.xlu0 %v4969, 32
      %v5554 = vpop.permute.xlu0 %5553
      %5555 = vrot.lane.b32.xlu0 %v4970, 32
      %v5556 = vpop.permute.xlu0 %5555
      %5557 = vrot.lane.b32.xlu0 %v4971, 32
      %v5558 = vpop.permute.xlu0 %5557
      %5559 = vrot.lane.b32.xlu0 %v4972, 32
      %v5560 = vpop.permute.xlu0 %5559
      %5561 = vrot.lane.b32.xlu0 %v4973, 32
      %v5562 = vpop.permute.xlu0 %5561
      %5563 = vrot.lane.b32.xlu0 %v4974, 32
      %v5564 = vpop.permute.xlu0 %5563
      %5565 = vrot.lane.b32.xlu0 %v4975, 32
      %v5566 = vpop.permute.xlu0 %5565
      %5567 = vrot.lane.b32.xlu0 %v4976, 32
      %v5568 = vpop.permute.xlu0 %5567
      %5569 = vrot.lane.b32.xlu0 %v4977, 32
      %v5570 = vpop.permute.xlu0 %5569
      %5571 = vrot.lane.b32.xlu0 %v4978, 32
      %v5572 = vpop.permute.xlu0 %5571
      %5573 = vrot.lane.b32.xlu0 %v4979, 32
      %v5574 = vpop.permute.xlu0 %5573
      %5575 = vrot.lane.b32.xlu0 %v4980, 32
      %v5576 = vpop.permute.xlu0 %5575
      %5577 = vrot.lane.b32.xlu0 %v4981, 32
      %v5578 = vpop.permute.xlu0 %5577
      %5579 = vrot.lane.b32.xlu0 %v4982, 32
      %v5580 = vpop.permute.xlu0 %5579
      %5581 = vrot.lane.b32.xlu0 %v4983, 32
      %v5582 = vpop.permute.xlu0 %5581
      %5583 = vrot.lane.b32.xlu0 %v4984, 32
      %v5584 = vpop.permute.xlu0 %5583
      %5585 = vrot.lane.b32.xlu0 %v4985, 32
      %v5586 = vpop.permute.xlu0 %5585
      %5587 = vrot.lane.b32.xlu0 %v4986, 32
      %v5588 = vpop.permute.xlu0 %5587
      %5589 = vrot.lane.b32.xlu0 %v4987, 32
      %v5590 = vpop.permute.xlu0 %5589
      %5591 = vrot.lane.b32.xlu0 %v4988, 32
      %v5592 = vpop.permute.xlu0 %5591
      %5593 = vrot.lane.b32.xlu0 %v4989, 32
      %v5594 = vpop.permute.xlu0 %5593
      %5595 = vrot.lane.b32.xlu0 %v4990, 32
      %v5596 = vpop.permute.xlu0 %5595
      %5597 = vrot.lane.b32.xlu0 %v4991, 32
      %v5598 = vpop.permute.xlu0 %5597
      %5599 = vrot.lane.b32.xlu0 %v4992, 32
      %v5600 = vpop.permute.xlu0 %5599
      %5665 = vrot.lane.b32.xlu0 %v4993, 40
      %v5666 = vpop.permute.xlu0 %5665
      %5667 = vrot.lane.b32.xlu0 %v4994, 40
      %v5668 = vpop.permute.xlu0 %5667
      %5669 = vrot.lane.b32.xlu0 %v4995, 40
      %v5670 = vpop.permute.xlu0 %5669
      %5671 = vrot.lane.b32.xlu0 %v4996, 40
      %v5672 = vpop.permute.xlu0 %5671
      %5673 = vrot.lane.b32.xlu0 %v4997, 40
      %v5674 = vpop.permute.xlu0 %5673
      %5675 = vrot.lane.b32.xlu0 %v4998, 40
      %v5676 = vpop.permute.xlu0 %5675
      %5677 = vrot.lane.b32.xlu0 %v4999, 40
      %v5678 = vpop.permute.xlu0 %5677
      %5679 = vrot.lane.b32.xlu0 %v5000, 40
      %v5680 = vpop.permute.xlu0 %5679
      %5681 = vrot.lane.b32.xlu0 %v5001, 40
      %v5682 = vpop.permute.xlu0 %5681
      %5683 = vrot.lane.b32.xlu0 %v5002, 40
      %v5684 = vpop.permute.xlu0 %5683
      %5685 = vrot.lane.b32.xlu0 %v5003, 40
      %v5686 = vpop.permute.xlu0 %5685
      %5687 = vrot.lane.b32.xlu0 %v5004, 40
      %v5688 = vpop.permute.xlu0 %5687
      %5689 = vrot.lane.b32.xlu0 %v5005, 40
      %v5690 = vpop.permute.xlu0 %5689
      %5691 = vrot.lane.b32.xlu0 %v5006, 40
      %v5692 = vpop.permute.xlu0 %5691
      %5693 = vrot.lane.b32.xlu0 %v5007, 40
      %v5694 = vpop.permute.xlu0 %5693
      %5695 = vrot.lane.b32.xlu0 %v5008, 40
      %v5696 = vpop.permute.xlu0 %5695
      %5697 = vrot.lane.b32.xlu0 %v5009, 40
      %v5698 = vpop.permute.xlu0 %5697
      %5699 = vrot.lane.b32.xlu0 %v5010, 40
      %v5700 = vpop.permute.xlu0 %5699
      %5701 = vrot.lane.b32.xlu0 %v5011, 40
      %v5702 = vpop.permute.xlu0 %5701
      %5703 = vrot.lane.b32.xlu0 %v5012, 40
      %v5704 = vpop.permute.xlu0 %5703
      %5705 = vrot.lane.b32.xlu0 %v5013, 40
      %v5706 = vpop.permute.xlu0 %5705
      %5707 = vrot.lane.b32.xlu0 %v5014, 40
      %v5708 = vpop.permute.xlu0 %5707
      %5709 = vrot.lane.b32.xlu0 %v5015, 40
      %v5710 = vpop.permute.xlu0 %5709
      %5711 = vrot.lane.b32.xlu0 %v5016, 40
      %v5712 = vpop.permute.xlu0 %5711
      %5713 = vrot.lane.b32.xlu0 %v5017, 40
      %v5714 = vpop.permute.xlu0 %5713
      %5715 = vrot.lane.b32.xlu0 %v5018, 40
      %v5716 = vpop.permute.xlu0 %5715
      %5717 = vrot.lane.b32.xlu0 %v5019, 40
      %v5718 = vpop.permute.xlu0 %5717
      %5719 = vrot.lane.b32.xlu0 %v5020, 40
      %v5720 = vpop.permute.xlu0 %5719
      %5721 = vrot.lane.b32.xlu0 %v5021, 40
      %v5722 = vpop.permute.xlu0 %5721
      %5723 = vrot.lane.b32.xlu0 %v5022, 40
      %v5724 = vpop.permute.xlu0 %5723
      %5725 = vrot.lane.b32.xlu0 %v5023, 40
      %v5726 = vpop.permute.xlu0 %5725
      %5727 = vrot.lane.b32.xlu0 %v5024, 40
      %v5728 = vpop.permute.xlu0 %5727
      %5793 = vrot.lane.b32.xlu0 %v5025, 48
      %v5794 = vpop.permute.xlu0 %5793
      %5795 = vrot.lane.b32.xlu0 %v5026, 48
      %v5796 = vpop.permute.xlu0 %5795
      %5797 = vrot.lane.b32.xlu0 %v5027, 48
      %v5798 = vpop.permute.xlu0 %5797
      %5799 = vrot.lane.b32.xlu0 %v5028, 48
      %v5800 = vpop.permute.xlu0 %5799
      %5801 = vrot.lane.b32.xlu0 %v5029, 48
      %v5802 = vpop.permute.xlu0 %5801
      %5803 = vrot.lane.b32.xlu0 %v5030, 48
      %v5804 = vpop.permute.xlu0 %5803
      %5805 = vrot.lane.b32.xlu0 %v5031, 48
      %v5806 = vpop.permute.xlu0 %5805
      %5807 = vrot.lane.b32.xlu0 %v5032, 48
      %v5808 = vpop.permute.xlu0 %5807
      %5809 = vrot.lane.b32.xlu0 %v5033, 48
      %v5810 = vpop.permute.xlu0 %5809
      %5811 = vrot.lane.b32.xlu0 %v5034, 48
      %v5812 = vpop.permute.xlu0 %5811
      %5813 = vrot.lane.b32.xlu0 %v5035, 48
      %v5814 = vpop.permute.xlu0 %5813
      %5815 = vrot.lane.b32.xlu0 %v5036, 48
      %v5816 = vpop.permute.xlu0 %5815
      %5817 = vrot.lane.b32.xlu0 %v5037, 48
      %v5818 = vpop.permute.xlu0 %5817
      %5819 = vrot.lane.b32.xlu0 %v5038, 48
      %v5820 = vpop.permute.xlu0 %5819
      %5821 = vrot.lane.b32.xlu0 %v5039, 48
      %v5822 = vpop.permute.xlu0 %5821
      %5823 = vrot.lane.b32.xlu0 %v5040, 48
      %v5824 = vpop.permute.xlu0 %5823
      %5825 = vrot.lane.b32.xlu0 %v5041, 48
      %v5826 = vpop.permute.xlu0 %5825
      %5827 = vrot.lane.b32.xlu0 %v5042, 48
      %v5828 = vpop.permute.xlu0 %5827
      %5829 = vrot.lane.b32.xlu0 %v5043, 48
      %v5830 = vpop.permute.xlu0 %5829
      %5831 = vrot.lane.b32.xlu0 %v5044, 48
      %v5832 = vpop.permute.xlu0 %5831
      %5833 = vrot.lane.b32.xlu0 %v5045, 48
      %v5834 = vpop.permute.xlu0 %5833
      %5835 = vrot.lane.b32.xlu0 %v5046, 48
      %v5836 = vpop.permute.xlu0 %5835
      %5837 = vrot.lane.b32.xlu0 %v5047, 48
      %v5838 = vpop.permute.xlu0 %5837
      %5839 = vrot.lane.b32.xlu0 %v5048, 48
      %v5840 = vpop.permute.xlu0 %5839
      %5841 = vrot.lane.b32.xlu0 %v5049, 48
      %v5842 = vpop.permute.xlu0 %5841
      %5843 = vrot.lane.b32.xlu0 %v5050, 48
      %v5844 = vpop.permute.xlu0 %5843
      %5845 = vrot.lane.b32.xlu0 %v5051, 48
      %v5846 = vpop.permute.xlu0 %5845
      %5847 = vrot.lane.b32.xlu0 %v5052, 48
      %v5848 = vpop.permute.xlu0 %5847
      %5849 = vrot.lane.b32.xlu0 %v5053, 48
      %v5850 = vpop.permute.xlu0 %5849
      %5851 = vrot.lane.b32.xlu0 %v5054, 48
      %v5852 = vpop.permute.xlu0 %5851
      %5853 = vrot.lane.b32.xlu0 %v5055, 48
      %v5854 = vpop.permute.xlu0 %5853
      %5855 = vrot.lane.b32.xlu0 %v5056, 48
      %v5856 = vpop.permute.xlu0 %5855
      %5921 = vrot.lane.b32.xlu0 %v5057, 56
      %v5922 = vpop.permute.xlu0 %5921
      %5923 = vrot.lane.b32.xlu0 %v5058, 56
      %v5924 = vpop.permute.xlu0 %5923
      %5925 = vrot.lane.b32.xlu0 %v5059, 56
      %v5926 = vpop.permute.xlu0 %5925
      %5927 = vrot.lane.b32.xlu0 %v5060, 56
      %v5928 = vpop.permute.xlu0 %5927
      %5929 = vrot.lane.b32.xlu0 %v5061, 56
      %v5930 = vpop.permute.xlu0 %5929
      %5931 = vrot.lane.b32.xlu0 %v5062, 56
      %v5932 = vpop.permute.xlu0 %5931
      %5933 = vrot.lane.b32.xlu0 %v5063, 56
      %v5934 = vpop.permute.xlu0 %5933
      %5935 = vrot.lane.b32.xlu0 %v5064, 56
      %v5936 = vpop.permute.xlu0 %5935
      %5937 = vrot.lane.b32.xlu0 %v5065, 56
      %v5938 = vpop.permute.xlu0 %5937
      %5939 = vrot.lane.b32.xlu0 %v5066, 56
      %v5940 = vpop.permute.xlu0 %5939
      %5941 = vrot.lane.b32.xlu0 %v5067, 56
      %v5942 = vpop.permute.xlu0 %5941
      %5943 = vrot.lane.b32.xlu0 %v5068, 56
      %v5944 = vpop.permute.xlu0 %5943
      %5945 = vrot.lane.b32.xlu0 %v5069, 56
      %v5946 = vpop.permute.xlu0 %5945
      %5947 = vrot.lane.b32.xlu0 %v5070, 56
      %v5948 = vpop.permute.xlu0 %5947
      %5949 = vrot.lane.b32.xlu0 %v5071, 56
      %v5950 = vpop.permute.xlu0 %5949
      %5951 = vrot.lane.b32.xlu0 %v5072, 56
      %v5952 = vpop.permute.xlu0 %5951
      %5953 = vrot.lane.b32.xlu0 %v5073, 56
      %v5954 = vpop.permute.xlu0 %5953
      %5955 = vrot.lane.b32.xlu0 %v5074, 56
      %v5956 = vpop.permute.xlu0 %5955
      %5957 = vrot.lane.b32.xlu0 %v5075, 56
      %v5958 = vpop.permute.xlu0 %5957
      %5959 = vrot.lane.b32.xlu0 %v5076, 56
      %v5960 = vpop.permute.xlu0 %5959
      %5961 = vrot.lane.b32.xlu0 %v5077, 56
      %v5962 = vpop.permute.xlu0 %5961
      %5963 = vrot.lane.b32.xlu0 %v5078, 56
      %v5964 = vpop.permute.xlu0 %5963
      %5965 = vrot.lane.b32.xlu0 %v5079, 56
      %v5966 = vpop.permute.xlu0 %5965
      %5967 = vrot.lane.b32.xlu0 %v5080, 56
      %v5968 = vpop.permute.xlu0 %5967
      %5969 = vrot.lane.b32.xlu0 %v5081, 56
      %v5970 = vpop.permute.xlu0 %5969
      %5971 = vrot.lane.b32.xlu0 %v5082, 56
      %v5972 = vpop.permute.xlu0 %5971
      %5973 = vrot.lane.b32.xlu0 %v5083, 56
      %v5974 = vpop.permute.xlu0 %5973
      %5975 = vrot.lane.b32.xlu0 %v5084, 56
      %v5976 = vpop.permute.xlu0 %5975
      %5977 = vrot.lane.b32.xlu0 %v5085, 56
      %v5978 = vpop.permute.xlu0 %5977
      %5979 = vrot.lane.b32.xlu0 %v5086, 56
      %v5980 = vpop.permute.xlu0 %5979
      %5981 = vrot.lane.b32.xlu0 %v5087, 56
      %v5982 = vpop.permute.xlu0 %5981
      %5983 = vrot.lane.b32.xlu0 %v5088, 56
      %v5984 = vpop.permute.xlu0 %5983
      %6049 = vrot.lane.b32.xlu0 %v5089, 64
      %v6050 = vpop.permute.xlu0 %6049
      %6051 = vrot.lane.b32.xlu0 %v5090, 64
      %v6052 = vpop.permute.xlu0 %6051
      %6053 = vrot.lane.b32.xlu0 %v5091, 64
      %v6054 = vpop.permute.xlu0 %6053
      %6055 = vrot.lane.b32.xlu0 %v5092, 64
      %v6056 = vpop.permute.xlu0 %6055
      %6057 = vrot.lane.b32.xlu0 %v5093, 64
      %v6058 = vpop.permute.xlu0 %6057
      %6059 = vrot.lane.b32.xlu0 %v5094, 64
      %v6060 = vpop.permute.xlu0 %6059
      %6061 = vrot.lane.b32.xlu0 %v5095, 64
      %v6062 = vpop.permute.xlu0 %6061
      %6063 = vrot.lane.b32.xlu0 %v5096, 64
      %v6064 = vpop.permute.xlu0 %6063
      %6065 = vrot.lane.b32.xlu0 %v5097, 64
      %v6066 = vpop.permute.xlu0 %6065
      %6067 = vrot.lane.b32.xlu0 %v5098, 64
      %v6068 = vpop.permute.xlu0 %6067
      %6069 = vrot.lane.b32.xlu0 %v5099, 64
      %v6070 = vpop.permute.xlu0 %6069
      %6071 = vrot.lane.b32.xlu0 %v5100, 64
      %v6072 = vpop.permute.xlu0 %6071
      %6073 = vrot.lane.b32.xlu0 %v5101, 64
      %v6074 = vpop.permute.xlu0 %6073
      %6075 = vrot.lane.b32.xlu0 %v5102, 64
      %v6076 = vpop.permute.xlu0 %6075
      %6077 = vrot.lane.b32.xlu0 %v5103, 64
      %v6078 = vpop.permute.xlu0 %6077
      %6079 = vrot.lane.b32.xlu0 %v5104, 64
      %v6080 = vpop.permute.xlu0 %6079
      %6081 = vrot.lane.b32.xlu0 %v5105, 64
      %v6082 = vpop.permute.xlu0 %6081
      %6083 = vrot.lane.b32.xlu0 %v5106, 64
      %v6084 = vpop.permute.xlu0 %6083
      %6085 = vrot.lane.b32.xlu0 %v5107, 64
      %v6086 = vpop.permute.xlu0 %6085
      %6087 = vrot.lane.b32.xlu0 %v5108, 64
      %v6088 = vpop.permute.xlu0 %6087
      %6089 = vrot.lane.b32.xlu0 %v5109, 64
      %v6090 = vpop.permute.xlu0 %6089
      %6091 = vrot.lane.b32.xlu0 %v5110, 64
      %v6092 = vpop.permute.xlu0 %6091
      %6093 = vrot.lane.b32.xlu0 %v5111, 64
      %v6094 = vpop.permute.xlu0 %6093
      %6095 = vrot.lane.b32.xlu0 %v5112, 64
      %v6096 = vpop.permute.xlu0 %6095
      %6097 = vrot.lane.b32.xlu0 %v5113, 64
      %v6098 = vpop.permute.xlu0 %6097
      %6099 = vrot.lane.b32.xlu0 %v5114, 64
      %v6100 = vpop.permute.xlu0 %6099
      %6101 = vrot.lane.b32.xlu0 %v5115, 64
      %v6102 = vpop.permute.xlu0 %6101
      %6103 = vrot.lane.b32.xlu0 %v5116, 64
      %v6104 = vpop.permute.xlu0 %6103
      %6105 = vrot.lane.b32.xlu0 %v5117, 64
      %v6106 = vpop.permute.xlu0 %6105
      %6107 = vrot.lane.b32.xlu0 %v5118, 64
      %v6108 = vpop.permute.xlu0 %6107
      %6109 = vrot.lane.b32.xlu0 %v5119, 64
      %v6110 = vpop.permute.xlu0 %6109
      %6111 = vrot.lane.b32.xlu0 %v5120, 64
      %v6112 = vpop.permute.xlu0 %6111
      %v6145 = vsel %vm473, %v4833, %v5154
      %v6146 = vsel %vm473, %v4834, %v5156
      %v6147 = vsel %vm473, %v4835, %v5158
      %v6148 = vsel %vm473, %v4836, %v5160
      %v6149 = vsel %vm473, %v4837, %v5162
      %v6150 = vsel %vm473, %v4838, %v5164
      %v6151 = vsel %vm473, %v4839, %v5166
      %v6152 = vsel %vm473, %v4840, %v5168
      %v6153 = vsel %vm473, %v4841, %v5170
      %v6154 = vsel %vm473, %v4842, %v5172
      %v6155 = vsel %vm473, %v4843, %v5174
      %v6156 = vsel %vm473, %v4844, %v5176
      %v6157 = vsel %vm473, %v4845, %v5178
      %v6158 = vsel %vm473, %v4846, %v5180
      %v6159 = vsel %vm473, %v4847, %v5182
      %v6160 = vsel %vm473, %v4848, %v5184
      %v6161 = vsel %vm473, %v4849, %v5186
      %v6162 = vsel %vm473, %v4850, %v5188
      %v6163 = vsel %vm473, %v4851, %v5190
      %v6164 = vsel %vm473, %v4852, %v5192
      %v6165 = vsel %vm473, %v4853, %v5194
      %v6166 = vsel %vm473, %v4854, %v5196
      %v6167 = vsel %vm473, %v4855, %v5198
      %v6168 = vsel %vm473, %v4856, %v5200
      %v6169 = vsel %vm473, %v4857, %v5202
      %v6170 = vsel %vm473, %v4858, %v5204
      %v6171 = vsel %vm473, %v4859, %v5206
      %v6172 = vsel %vm473, %v4860, %v5208
      %v6173 = vsel %vm473, %v4861, %v5210
      %v6174 = vsel %vm473, %v4862, %v5212
      %v6175 = vsel %vm473, %v4863, %v5214
      %v6176 = vsel %vm473, %v4864, %v5216
      %v6177 = vsel %vm1957, %v6145, %v5282
      %v6178 = vsel %vm1957, %v6146, %v5284
      %v6179 = vsel %vm1957, %v6147, %v5286
      %v6180 = vsel %vm1957, %v6148, %v5288
      %v6181 = vsel %vm1957, %v6149, %v5290
      %v6182 = vsel %vm1957, %v6150, %v5292
      %v6183 = vsel %vm1957, %v6151, %v5294
      %v6184 = vsel %vm1957, %v6152, %v5296
      %v6185 = vsel %vm1957, %v6153, %v5298
      %v6186 = vsel %vm1957, %v6154, %v5300
      %v6187 = vsel %vm1957, %v6155, %v5302
      %v6188 = vsel %vm1957, %v6156, %v5304
      %v6189 = vsel %vm1957, %v6157, %v5306
      %v6190 = vsel %vm1957, %v6158, %v5308
      %v6191 = vsel %vm1957, %v6159, %v5310
      %v6192 = vsel %vm1957, %v6160, %v5312
      %v6193 = vsel %vm1957, %v6161, %v5314
      %v6194 = vsel %vm1957, %v6162, %v5316
      %v6195 = vsel %vm1957, %v6163, %v5318
      %v6196 = vsel %vm1957, %v6164, %v5320
      %v6197 = vsel %vm1957, %v6165, %v5322
      %v6198 = vsel %vm1957, %v6166, %v5324
      %v6199 = vsel %vm1957, %v6167, %v5326
      %v6200 = vsel %vm1957, %v6168, %v5328
      %v6201 = vsel %vm1957, %v6169, %v5330
      %v6202 = vsel %vm1957, %v6170, %v5332
      %v6203 = vsel %vm1957, %v6171, %v5334
      %v6204 = vsel %vm1957, %v6172, %v5336
      %v6205 = vsel %vm1957, %v6173, %v5338
      %v6206 = vsel %vm1957, %v6174, %v5340
      %v6207 = vsel %vm1957, %v6175, %v5342
      %v6208 = vsel %vm1957, %v6176, %v5344
      %v6209 = vsel %vm1990, %v6177, %v5410
      %v6210 = vsel %vm1990, %v6178, %v5412
      %v6211 = vsel %vm1990, %v6179, %v5414
      %v6212 = vsel %vm1990, %v6180, %v5416
      %v6213 = vsel %vm1990, %v6181, %v5418
      %v6214 = vsel %vm1990, %v6182, %v5420
      %v6215 = vsel %vm1990, %v6183, %v5422
      %v6216 = vsel %vm1990, %v6184, %v5424
      %v6217 = vsel %vm1990, %v6185, %v5426
      %v6218 = vsel %vm1990, %v6186, %v5428
      %v6219 = vsel %vm1990, %v6187, %v5430
      %v6220 = vsel %vm1990, %v6188, %v5432
      %v6221 = vsel %vm1990, %v6189, %v5434
      %v6222 = vsel %vm1990, %v6190, %v5436
      %v6223 = vsel %vm1990, %v6191, %v5438
      %v6224 = vsel %vm1990, %v6192, %v5440
      %v6225 = vsel %vm1990, %v6193, %v5442
      %v6226 = vsel %vm1990, %v6194, %v5444
      %v6227 = vsel %vm1990, %v6195, %v5446
      %v6228 = vsel %vm1990, %v6196, %v5448
      %v6229 = vsel %vm1990, %v6197, %v5450
      %v6230 = vsel %vm1990, %v6198, %v5452
      %v6231 = vsel %vm1990, %v6199, %v5454
      %v6232 = vsel %vm1990, %v6200, %v5456
      %v6233 = vsel %vm1990, %v6201, %v5458
      %v6234 = vsel %vm1990, %v6202, %v5460
      %v6235 = vsel %vm1990, %v6203, %v5462
      %v6236 = vsel %vm1990, %v6204, %v5464
      %v6237 = vsel %vm1990, %v6205, %v5466
      %v6238 = vsel %vm1990, %v6206, %v5468
      %v6239 = vsel %vm1990, %v6207, %v5470
      %v6240 = vsel %vm1990, %v6208, %v5472
      %v6241 = vsel %vm2023, %v6209, %v5538
      %v6242 = vsel %vm2023, %v6210, %v5540
      %v6243 = vsel %vm2023, %v6211, %v5542
      %v6244 = vsel %vm2023, %v6212, %v5544
      %v6245 = vsel %vm2023, %v6213, %v5546
      %v6246 = vsel %vm2023, %v6214, %v5548
      %v6247 = vsel %vm2023, %v6215, %v5550
      %v6248 = vsel %vm2023, %v6216, %v5552
      %v6249 = vsel %vm2023, %v6217, %v5554
      %v6250 = vsel %vm2023, %v6218, %v5556
      %v6251 = vsel %vm2023, %v6219, %v5558
      %v6252 = vsel %vm2023, %v6220, %v5560
      %v6253 = vsel %vm2023, %v6221, %v5562
      %v6254 = vsel %vm2023, %v6222, %v5564
      %v6255 = vsel %vm2023, %v6223, %v5566
      %v6256 = vsel %vm2023, %v6224, %v5568
      %v6257 = vsel %vm2023, %v6225, %v5570
      %v6258 = vsel %vm2023, %v6226, %v5572
      %v6259 = vsel %vm2023, %v6227, %v5574
      %v6260 = vsel %vm2023, %v6228, %v5576
      %v6261 = vsel %vm2023, %v6229, %v5578
      %v6262 = vsel %vm2023, %v6230, %v5580
      %v6263 = vsel %vm2023, %v6231, %v5582
      %v6264 = vsel %vm2023, %v6232, %v5584
      %v6265 = vsel %vm2023, %v6233, %v5586
      %v6266 = vsel %vm2023, %v6234, %v5588
      %v6267 = vsel %vm2023, %v6235, %v5590
      %v6268 = vsel %vm2023, %v6236, %v5592
      %v6269 = vsel %vm2023, %v6237, %v5594
      %v6270 = vsel %vm2023, %v6238, %v5596
      %v6271 = vsel %vm2023, %v6239, %v5598
      %v6272 = vsel %vm2023, %v6240, %v5600
      %v6273 = vsel %vm2056, %v6241, %v5666
      %v6274 = vsel %vm2056, %v6242, %v5668
      %v6275 = vsel %vm2056, %v6243, %v5670
      %v6276 = vsel %vm2056, %v6244, %v5672
      %v6277 = vsel %vm2056, %v6245, %v5674
      %v6278 = vsel %vm2056, %v6246, %v5676
      %v6279 = vsel %vm2056, %v6247, %v5678
      %v6280 = vsel %vm2056, %v6248, %v5680
      %v6281 = vsel %vm2056, %v6249, %v5682
      %v6282 = vsel %vm2056, %v6250, %v5684
      %v6283 = vsel %vm2056, %v6251, %v5686
      %v6284 = vsel %vm2056, %v6252, %v5688
      %v6285 = vsel %vm2056, %v6253, %v5690
      %v6286 = vsel %vm2056, %v6254, %v5692
      %v6287 = vsel %vm2056, %v6255, %v5694
      %v6288 = vsel %vm2056, %v6256, %v5696
      %v6289 = vsel %vm2056, %v6257, %v5698
      %v6290 = vsel %vm2056, %v6258, %v5700
      %v6291 = vsel %vm2056, %v6259, %v5702
      %v6292 = vsel %vm2056, %v6260, %v5704
      %v6293 = vsel %vm2056, %v6261, %v5706
      %v6294 = vsel %vm2056, %v6262, %v5708
      %v6295 = vsel %vm2056, %v6263, %v5710
      %v6296 = vsel %vm2056, %v6264, %v5712
      %v6297 = vsel %vm2056, %v6265, %v5714
      %v6298 = vsel %vm2056, %v6266, %v5716
      %v6299 = vsel %vm2056, %v6267, %v5718
      %v6300 = vsel %vm2056, %v6268, %v5720
      %v6301 = vsel %vm2056, %v6269, %v5722
      %v6302 = vsel %vm2056, %v6270, %v5724
      %v6303 = vsel %vm2056, %v6271, %v5726
      %v6304 = vsel %vm2056, %v6272, %v5728
      %v6305 = vsel %vm2089, %v6273, %v5794
      %v6306 = vsel %vm2089, %v6274, %v5796
      %v6307 = vsel %vm2089, %v6275, %v5798
      %v6308 = vsel %vm2089, %v6276, %v5800
      %v6309 = vsel %vm2089, %v6277, %v5802
      %v6310 = vsel %vm2089, %v6278, %v5804
      %v6311 = vsel %vm2089, %v6279, %v5806
      %v6312 = vsel %vm2089, %v6280, %v5808
      %v6313 = vsel %vm2089, %v6281, %v5810
      %v6314 = vsel %vm2089, %v6282, %v5812
      %v6315 = vsel %vm2089, %v6283, %v5814
      %v6316 = vsel %vm2089, %v6284, %v5816
      %v6317 = vsel %vm2089, %v6285, %v5818
      %v6318 = vsel %vm2089, %v6286, %v5820
      %v6319 = vsel %vm2089, %v6287, %v5822
      %v6320 = vsel %vm2089, %v6288, %v5824
      %v6321 = vsel %vm2089, %v6289, %v5826
      %v6322 = vsel %vm2089, %v6290, %v5828
      %v6323 = vsel %vm2089, %v6291, %v5830
      %v6324 = vsel %vm2089, %v6292, %v5832
      %v6325 = vsel %vm2089, %v6293, %v5834
      %v6326 = vsel %vm2089, %v6294, %v5836
      %v6327 = vsel %vm2089, %v6295, %v5838
      %v6328 = vsel %vm2089, %v6296, %v5840
      %v6329 = vsel %vm2089, %v6297, %v5842
      %v6330 = vsel %vm2089, %v6298, %v5844
      %v6331 = vsel %vm2089, %v6299, %v5846
      %v6332 = vsel %vm2089, %v6300, %v5848
      %v6333 = vsel %vm2089, %v6301, %v5850
      %v6334 = vsel %vm2089, %v6302, %v5852
      %v6335 = vsel %vm2089, %v6303, %v5854
      %v6336 = vsel %vm2089, %v6304, %v5856
      %v6337 = vsel %vm2122, %v6305, %v5922
      %v6338 = vsel %vm2122, %v6306, %v5924
      %v6339 = vsel %vm2122, %v6307, %v5926
      %v6340 = vsel %vm2122, %v6308, %v5928
      %v6341 = vsel %vm2122, %v6309, %v5930
      %v6342 = vsel %vm2122, %v6310, %v5932
      %v6343 = vsel %vm2122, %v6311, %v5934
      %v6344 = vsel %vm2122, %v6312, %v5936
      %v6345 = vsel %vm2122, %v6313, %v5938
      %v6346 = vsel %vm2122, %v6314, %v5940
      %v6347 = vsel %vm2122, %v6315, %v5942
      %v6348 = vsel %vm2122, %v6316, %v5944
      %v6349 = vsel %vm2122, %v6317, %v5946
      %v6350 = vsel %vm2122, %v6318, %v5948
      %v6351 = vsel %vm2122, %v6319, %v5950
      %v6352 = vsel %vm2122, %v6320, %v5952
      %v6353 = vsel %vm2122, %v6321, %v5954
      %v6354 = vsel %vm2122, %v6322, %v5956
      %v6355 = vsel %vm2122, %v6323, %v5958
      %v6356 = vsel %vm2122, %v6324, %v5960
      %v6357 = vsel %vm2122, %v6325, %v5962
      %v6358 = vsel %vm2122, %v6326, %v5964
      %v6359 = vsel %vm2122, %v6327, %v5966
      %v6360 = vsel %vm2122, %v6328, %v5968
      %v6361 = vsel %vm2122, %v6329, %v5970
      %v6362 = vsel %vm2122, %v6330, %v5972
      %v6363 = vsel %vm2122, %v6331, %v5974
      %v6364 = vsel %vm2122, %v6332, %v5976
      %v6365 = vsel %vm2122, %v6333, %v5978
      %v6366 = vsel %vm2122, %v6334, %v5980
      %v6367 = vsel %vm2122, %v6335, %v5982
      %v6368 = vsel %vm2122, %v6336, %v5984
      %v6369 = vsel %vm2155, %v6337, %v6050
      %v6370 = vsel %vm2155, %v6338, %v6052
      %v6371 = vsel %vm2155, %v6339, %v6054
      %v6372 = vsel %vm2155, %v6340, %v6056
      %v6373 = vsel %vm2155, %v6341, %v6058
      %v6374 = vsel %vm2155, %v6342, %v6060
      %v6375 = vsel %vm2155, %v6343, %v6062
      %v6376 = vsel %vm2155, %v6344, %v6064
      %v6377 = vsel %vm2155, %v6345, %v6066
      %v6378 = vsel %vm2155, %v6346, %v6068
      %v6379 = vsel %vm2155, %v6347, %v6070
      %v6380 = vsel %vm2155, %v6348, %v6072
      %v6381 = vsel %vm2155, %v6349, %v6074
      %v6382 = vsel %vm2155, %v6350, %v6076
      %v6383 = vsel %vm2155, %v6351, %v6078
      %v6384 = vsel %vm2155, %v6352, %v6080
      %v6385 = vsel %vm2155, %v6353, %v6082
      %v6386 = vsel %vm2155, %v6354, %v6084
      %v6387 = vsel %vm2155, %v6355, %v6086
      %v6388 = vsel %vm2155, %v6356, %v6088
      %v6389 = vsel %vm2155, %v6357, %v6090
      %v6390 = vsel %vm2155, %v6358, %v6092
      %v6391 = vsel %vm2155, %v6359, %v6094
      %v6392 = vsel %vm2155, %v6360, %v6096
      %v6393 = vsel %vm2155, %v6361, %v6098
      %v6394 = vsel %vm2155, %v6362, %v6100
      %v6395 = vsel %vm2155, %v6363, %v6102
      %v6396 = vsel %vm2155, %v6364, %v6104
      %v6397 = vsel %vm2155, %v6365, %v6106
      %v6398 = vsel %vm2155, %v6366, %v6108
      %v6399 = vsel %vm2155, %v6367, %v6110
      %v6400 = vsel %vm2155, %v6368, %v6112
      %v6401 = vld [vmem:[%s5] sm:$0xff]
      %v6402 = vld [vmem:[%s5 + $0x8] sm:$0xff]
      %v6403 = vld [vmem:[%s5 + $0x10] sm:$0xff]
      %v6404 = vld [vmem:[%s5 + $0x18] sm:$0xff]
      %v6405 = vld [vmem:[%s5 + $0x20] sm:$0xff]
      %v6406 = vld [vmem:[%s5 + $0x28] sm:$0xff]
      %v6407 = vld [vmem:[%s5 + $0x30] sm:$0xff]
      %v6408 = vld [vmem:[%s5 + $0x38] sm:$0xff]
      %v6409 = vld [vmem:[%s5 + $0x40] sm:$0xff]
      %v6410 = vld [vmem:[%s6] sm:$0x1]
      %v6412 = vlaneseq
      %v6413 = vshrl.u32 %v6412, 7
      %v6414 = vsub.s32 0, %v6413
      %v6415 = vrot.slane %v6410, %v6414
      %v6418 = vsel %vm2204, %v6369, 0
      %v6421 = vsel %vm2204, %v6370, 0
      %v6424 = vsel %vm2204, %v6371, 0
      %v6427 = vsel %vm2204, %v6372, 0
      %v6430 = vsel %vm2204, %v6373, 0
      %v6433 = vsel %vm2204, %v6374, 0
      %v6436 = vsel %vm2204, %v6375, 0
      %v6439 = vsel %vm2204, %v6376, 0
      %v6442 = vsel %vm2204, %v6377, 0
      %v6445 = vsel %vm2204, %v6378, 0
      %v6448 = vsel %vm2204, %v6379, 0
      %v6451 = vsel %vm2204, %v6380, 0
      %v6454 = vsel %vm2204, %v6381, 0
      %v6457 = vsel %vm2204, %v6382, 0
      %v6460 = vsel %vm2204, %v6383, 0
      %v6463 = vsel %vm2204, %v6384, 0
      %v6466 = vsel %vm2204, %v6385, 0
      %v6469 = vsel %vm2204, %v6386, 0
      %v6472 = vsel %vm2204, %v6387, 0
      %v6475 = vsel %vm2204, %v6388, 0
      %v6478 = vsel %vm2204, %v6389, 0
      %v6481 = vsel %vm2204, %v6390, 0
      %v6484 = vsel %vm2204, %v6391, 0
      %v6487 = vsel %vm2204, %v6392, 0
      %v6490 = vsel %vm2204, %v6393, 0
      %v6493 = vsel %vm2204, %v6394, 0
      %v6496 = vsel %vm2204, %v6395, 0
      %v6499 = vsel %vm2204, %v6396, 0
      %v6502 = vsel %vm2204, %v6397, 0
      %v6505 = vsel %vm2204, %v6398, 0
      %v6508 = vsel %vm2204, %v6399, 0
      %v6511 = vsel %vm2204, %v6400, 0
      %6513 = vmatprep.subr.mxu0 0.0
      %6514 = vmatpush1.msra.mxu0 %v6401
      %6515 = vmatprep.subr.mxu0 0.0
      %6516 = vmatpush1.msra.mxu0 %v6402
      %6517 = vmatprep.subr.mxu0 0.0
      %6518 = vmatpush1.msra.mxu0 %v6403
      %6519 = vmatprep.subr.mxu0 0.0
      %6520 = vmatpush1.msra.mxu0 %v6404
      %6521 = vmatprep.subr.mxu0 0.0
      %6522 = vmatpush1.msra.mxu0 %v6405
      %6523 = vmatprep.subr.mxu0 0.0
      %6524 = vmatpush1.msra.mxu0 %v6406
      %6525 = vmatprep.subr.mxu0 0.0
      %6526 = vmatpush1.msra.mxu0 %v6407
      %6527 = vmatprep.subr.mxu0 0.0
      %6528 = vmatpush1.msra.mxu0 %v6408
      %6529 = vmatprep.subr.mxu0 0.0
      %6530 = vmatpush1.msra.mxu0 %v6409
      %6531 = vmatprep.subr.mxu0 0.0
      %6532 = vmatpush1.msra.mxu0 0.0
      %6533 = vmatprep.subr.mxu0 0.0
      %6534 = vmatpush1.msra.mxu0 0.0
      %6535 = vmatprep.subr.mxu0 0.0
      %6536 = vmatpush1.msra.mxu0 0.0
      %6537 = vmatprep.subr.mxu0 0.0
      %6538 = vmatpush1.msra.mxu0 0.0
      %6539 = vmatprep.subr.mxu0 0.0
      %6540 = vmatpush1.msra.mxu0 0.0
      %6541 = vmatprep.subr.mxu0 0.0
      %6542 = vmatpush1.msra.mxu0 0.0
      %6543 = vmatprep.subr.mxu0 0.0
      %6544 = vmatpush1.msra.mxu0 0.0
      %6545 = vmatprep.subr.mxu0 0.0
      %6546 = vmatpush1.msra.mxu0 0.0
      %6547 = vmatprep.subr.mxu0 0.0
      %6548 = vmatpush1.msra.mxu0 0.0
      %6549 = vmatprep.subr.mxu0 0.0
      %6550 = vmatpush1.msra.mxu0 0.0
      %6551 = vmatprep.subr.mxu0 0.0
      %6552 = vmatpush1.msra.mxu0 0.0
      %6553 = vmatprep.subr.mxu0 0.0
      %6554 = vmatpush1.msra.mxu0 0.0
      %6555 = vmatprep.subr.mxu0 0.0
      %6556 = vmatpush1.msra.mxu0 0.0
      %6557 = vmatprep.subr.mxu0 0.0
      %6558 = vmatpush1.msra.mxu0 0.0
      %6559 = vmatprep.subr.mxu0 0.0
      %6560 = vmatpush1.msra.mxu0 0.0
      %6561 = vmatprep.subr.mxu0 0.0
      %6562 = vmatpush1.msra.mxu0 0.0
      %6563 = vmatprep.subr.mxu0 0.0
      %6564 = vmatpush1.msra.mxu0 0.0
      %6565 = vmatprep.subr.mxu0 0.0
      %6566 = vmatpush1.msra.mxu0 0.0
      %6567 = vmatprep.subr.mxu0 0.0
      %6568 = vmatpush1.msra.mxu0 0.0
      %6569 = vmatprep.subr.mxu0 0.0
      %6570 = vmatpush1.msra.mxu0 0.0
      %6571 = vmatprep.subr.mxu0 0.0
      %6572 = vmatpush1.msra.mxu0 0.0
      %6573 = vmatprep.subr.mxu0 0.0
      %6574 = vmatpush1.msra.mxu0 0.0
      %6575 = vmatprep.subr.mxu0 0.0
      %6576 = vmatpush1.msra.mxu0 0.0
      %6577 = vmatprep.mubr.f32.mxu0 0.0
      %6578 = vmatmul.mubr.f32.gmra.mrb[0].mxu0 %v6418
      %v6579 = vpop.f32.mrb[0].mxu0
      %v6580 = vadd.f32 %v6415, %v6579
      %v6581 = vpop.f32.mrb[0].mxu0
      %6582 = vmatprep.mubr.f32.mxu0 0.0
      %6583 = vmatmul.mubr.f32.gmra.mrb[0].mxu0 %v6421
      %v6584 = vpop.f32.mrb[0].mxu0
      %v6585 = vadd.f32 %v6415, %v6584
      %v6586 = vpop.f32.mrb[0].mxu0
      %6587 = vmatprep.mubr.f32.mxu0 0.0
      %6588 = vmatmul.mubr.f32.gmra.mrb[0].mxu0 %v6424
      %v6589 = vpop.f32.mrb[0].mxu0
      %v6590 = vadd.f32 %v6415, %v6589
      %v6591 = vpop.f32.mrb[0].mxu0
      %6592 = vmatprep.mubr.f32.mxu0 0.0
      %6593 = vmatmul.mubr.f32.gmra.mrb[0].mxu0 %v6427
      %v6594 = vpop.f32.mrb[0].mxu0
      %v6595 = vadd.f32 %v6415, %v6594
      %v6596 = vpop.f32.mrb[0].mxu0
      %6597 = vmatprep.mubr.f32.mxu0 0.0
      %6598 = vmatmul.mubr.f32.gmra.mrb[0].mxu0 %v6430
      %v6599 = vpop.f32.mrb[0].mxu0
      %v6600 = vadd.f32 %v6415, %v6599
      %v6601 = vpop.f32.mrb[0].mxu0
      %6602 = vmatprep.mubr.f32.mxu0 0.0
      %6603 = vmatmul.mubr.f32.gmra.mrb[0].mxu0 %v6433
      %v6604 = vpop.f32.mrb[0].mxu0
      %v6605 = vadd.f32 %v6415, %v6604
      %v6606 = vpop.f32.mrb[0].mxu0
      %6607 = vmatprep.mubr.f32.mxu0 0.0
      %6608 = vmatmul.mubr.f32.gmra.mrb[0].mxu0 %v6436
      %v6609 = vpop.f32.mrb[0].mxu0
      %v6610 = vadd.f32 %v6415, %v6609
      %v6611 = vpop.f32.mrb[0].mxu0
      %6612 = vmatprep.mubr.f32.mxu0 0.0
      %6613 = vmatmul.mubr.f32.gmra.mrb[0].mxu0 %v6439
      %v6614 = vpop.f32.mrb[0].mxu0
      %v6615 = vadd.f32 %v6415, %v6614
      %v6616 = vpop.f32.mrb[0].mxu0
      %6617 = vmatprep.mubr.f32.mxu0 0.0
      %6618 = vmatmul.mubr.f32.gmra.mrb[0].mxu0 %v6442
      %v6619 = vpop.f32.mrb[0].mxu0
      %v6620 = vadd.f32 %v6415, %v6619
      %v6621 = vpop.f32.mrb[0].mxu0
      %6622 = vmatprep.mubr.f32.mxu0 0.0
      %6623 = vmatmul.mubr.f32.gmra.mrb[0].mxu0 %v6445
      %v6624 = vpop.f32.mrb[0].mxu0
      %v6625 = vadd.f32 %v6415, %v6624
      %v6626 = vpop.f32.mrb[0].mxu0
      %6627 = vmatprep.mubr.f32.mxu0 0.0
      %6628 = vmatmul.mubr.f32.gmra.mrb[0].mxu0 %v6448
      %v6629 = vpop.f32.mrb[0].mxu0
      %v6630 = vadd.f32 %v6415, %v6629
      %v6631 = vpop.f32.mrb[0].mxu0
      %6632 = vmatprep.mubr.f32.mxu0 0.0
      %6633 = vmatmul.mubr.f32.gmra.mrb[0].mxu0 %v6451
      %v6634 = vpop.f32.mrb[0].mxu0
      %v6635 = vadd.f32 %v6415, %v6634
      %v6636 = vpop.f32.mrb[0].mxu0
      %6637 = vmatprep.mubr.f32.mxu0 0.0
      %6638 = vmatmul.mubr.f32.gmra.mrb[0].mxu0 %v6454
      %v6639 = vpop.f32.mrb[0].mxu0
      %v6640 = vadd.f32 %v6415, %v6639
      %v6641 = vpop.f32.mrb[0].mxu0
      %6642 = vmatprep.mubr.f32.mxu0 0.0
      %6643 = vmatmul.mubr.f32.gmra.mrb[0].mxu0 %v6457
      %v6644 = vpop.f32.mrb[0].mxu0
      %v6645 = vadd.f32 %v6415, %v6644
      %v6646 = vpop.f32.mrb[0].mxu0
      %6647 = vmatprep.mubr.f32.mxu0 0.0
      %6648 = vmatmul.mubr.f32.gmra.mrb[0].mxu0 %v6460
      %v6649 = vpop.f32.mrb[0].mxu0
      %v6650 = vadd.f32 %v6415, %v6649
      %v6651 = vpop.f32.mrb[0].mxu0
      %6652 = vmatprep.mubr.f32.mxu0 0.0
      %6653 = vmatmul.mubr.f32.gmra.mrb[0].mxu0 %v6463
      %v6654 = vpop.f32.mrb[0].mxu0
      %v6655 = vadd.f32 %v6415, %v6654
      %v6656 = vpop.f32.mrb[0].mxu0
      %6657 = vmatprep.mubr.f32.mxu0 0.0
      %6658 = vmatmul.mubr.f32.gmra.mrb[0].mxu0 %v6466
      %v6659 = vpop.f32.mrb[0].mxu0
      %v6660 = vadd.f32 %v6415, %v6659
      %v6661 = vpop.f32.mrb[0].mxu0
      %6662 = vmatprep.mubr.f32.mxu0 0.0
      %6663 = vmatmul.mubr.f32.gmra.mrb[0].mxu0 %v6469
      %v6664 = vpop.f32.mrb[0].mxu0
      %v6665 = vadd.f32 %v6415, %v6664
      %v6666 = vpop.f32.mrb[0].mxu0
      %6667 = vmatprep.mubr.f32.mxu0 0.0
      %6668 = vmatmul.mubr.f32.gmra.mrb[0].mxu0 %v6472
      %v6669 = vpop.f32.mrb[0].mxu0
      %v6670 = vadd.f32 %v6415, %v6669
      %v6671 = vpop.f32.mrb[0].mxu0
      %6672 = vmatprep.mubr.f32.mxu0 0.0
      %6673 = vmatmul.mubr.f32.gmra.mrb[0].mxu0 %v6475
      %v6674 = vpop.f32.mrb[0].mxu0
      %v6675 = vadd.f32 %v6415, %v6674
      %v6676 = vpop.f32.mrb[0].mxu0
      %6677 = vmatprep.mubr.f32.mxu0 0.0
      %6678 = vmatmul.mubr.f32.gmra.mrb[0].mxu0 %v6478
      %v6679 = vpop.f32.mrb[0].mxu0
      %v6680 = vadd.f32 %v6415, %v6679
      %v6681 = vpop.f32.mrb[0].mxu0
      %6682 = vmatprep.mubr.f32.mxu0 0.0
      %6683 = vmatmul.mubr.f32.gmra.mrb[0].mxu0 %v6481
      %v6684 = vpop.f32.mrb[0].mxu0
      %v6685 = vadd.f32 %v6415, %v6684
      %v6686 = vpop.f32.mrb[0].mxu0
      %6687 = vmatprep.mubr.f32.mxu0 0.0
      %6688 = vmatmul.mubr.f32.gmra.mrb[0].mxu0 %v6484
      %v6689 = vpop.f32.mrb[0].mxu0
      %v6690 = vadd.f32 %v6415, %v6689
      %v6691 = vpop.f32.mrb[0].mxu0
      %6692 = vmatprep.mubr.f32.mxu0 0.0
      %6693 = vmatmul.mubr.f32.gmra.mrb[0].mxu0 %v6487
      %v6694 = vpop.f32.mrb[0].mxu0
      %v6695 = vadd.f32 %v6415, %v6694
      %v6696 = vpop.f32.mrb[0].mxu0
      %6697 = vmatprep.mubr.f32.mxu0 0.0
      %6698 = vmatmul.mubr.f32.gmra.mrb[0].mxu0 %v6490
      %v6699 = vpop.f32.mrb[0].mxu0
      %v6700 = vadd.f32 %v6415, %v6699
      %v6701 = vpop.f32.mrb[0].mxu0
      %6702 = vmatprep.mubr.f32.mxu0 0.0
      %6703 = vmatmul.mubr.f32.gmra.mrb[0].mxu0 %v6493
      %v6704 = vpop.f32.mrb[0].mxu0
      %v6705 = vadd.f32 %v6415, %v6704
      %v6706 = vpop.f32.mrb[0].mxu0
      %6707 = vmatprep.mubr.f32.mxu0 0.0
      %6708 = vmatmul.mubr.f32.gmra.mrb[0].mxu0 %v6496
      %v6709 = vpop.f32.mrb[0].mxu0
      %v6710 = vadd.f32 %v6415, %v6709
      %v6711 = vpop.f32.mrb[0].mxu0
      %6712 = vmatprep.mubr.f32.mxu0 0.0
      %6713 = vmatmul.mubr.f32.gmra.mrb[0].mxu0 %v6499
      %v6714 = vpop.f32.mrb[0].mxu0
      %v6715 = vadd.f32 %v6415, %v6714
      %v6716 = vpop.f32.mrb[0].mxu0
      %6717 = vmatprep.mubr.f32.mxu0 0.0
      %6718 = vmatmul.mubr.f32.gmra.mrb[0].mxu0 %v6502
      %v6719 = vpop.f32.mrb[0].mxu0
      %v6720 = vadd.f32 %v6415, %v6719
      %v6721 = vpop.f32.mrb[0].mxu0
      %6722 = vmatprep.mubr.f32.mxu0 0.0
      %6723 = vmatmul.mubr.f32.gmra.mrb[0].mxu0 %v6505
      %v6724 = vpop.f32.mrb[0].mxu0
      %v6725 = vadd.f32 %v6415, %v6724
      %v6726 = vpop.f32.mrb[0].mxu0
      %6727 = vmatprep.mubr.f32.mxu0 0.0
      %6728 = vmatmul.mubr.f32.gmra.mrb[0].mxu0 %v6508
      %v6729 = vpop.f32.mrb[0].mxu0
      %v6730 = vadd.f32 %v6415, %v6729
      %v6731 = vpop.f32.mrb[0].mxu0
      %6732 = vmatprep.mubr.f32.mxu0 0.0
      %6733 = vmatmul.mubr.f32.gmra.mrb[0].mxu0 %v6511
      %v6734 = vpop.f32.mrb[0].mxu0
      %v6735 = vadd.f32 %v6415, %v6734
      %v6736 = vpop.f32.mrb[0].mxu0
      %6737 = vdwg.mxu0
      %6738 = vst.msk [vmem:[#allocation2] sm:$0xff] %vm473, 0.0
      %6739 = vst.msk [vmem:[#allocation2 + $0x8] sm:$0xff] %vm473, 0.0
      %6740 = vst.msk [vmem:[#allocation2 + $0x10] sm:$0xff] %vm473, 0.0
      %6741 = vst.msk [vmem:[#allocation2 + $0x18] sm:$0x3] %vm477, 0.0
      %6742 = vst.msk [vmem:[#allocation2 + $0x20] sm:$0xff] %vm473, 0.0
      %6743 = vst.msk [vmem:[#allocation2 + $0x28] sm:$0xff] %vm473, 0.0
      %6744 = vst.msk [vmem:[#allocation2 + $0x30] sm:$0xff] %vm473, 0.0
      %6745 = vst.msk [vmem:[#allocation2 + $0x38] sm:$0x3] %vm477, 0.0
      %6746 = vst.msk [vmem:[#allocation2 + $0x40] sm:$0xff] %vm473, 0.0
      %6747 = vst.msk [vmem:[#allocation2 + $0x48] sm:$0xff] %vm473, 0.0
      %6748 = vst.msk [vmem:[#allocation2 + $0x50] sm:$0xff] %vm473, 0.0
      %6749 = vst.msk [vmem:[#allocation2 + $0x58] sm:$0x3] %vm477, 0.0
      %6750 = vst.msk [vmem:[#allocation2 + $0x60] sm:$0xff] %vm473, 0.0
      %6751 = vst.msk [vmem:[#allocation2 + $0x68] sm:$0xff] %vm473, 0.0
      %6752 = vst.msk [vmem:[#allocation2 + $0x70] sm:$0xff] %vm473, 0.0
      %6753 = vst.msk [vmem:[#allocation2 + $0x78] sm:$0x3] %vm477, 0.0
      %6754 = vst.msk [vmem:[#allocation2 + $0x80] sm:$0xff] %vm473, 0.0
      %6755 = vst.msk [vmem:[#allocation2 + $0x88] sm:$0xff] %vm473, 0.0
      %6756 = vst.msk [vmem:[#allocation2 + $0x90] sm:$0xff] %vm473, 0.0
      %6757 = vst.msk [vmem:[#allocation2 + $0x98] sm:$0x3] %vm477, 0.0
      %6758 = vst.msk [vmem:[#allocation2 + $0xa0] sm:$0xff] %vm473, 0.0
      %6759 = vst.msk [vmem:[#allocation2 + $0xa8] sm:$0xff] %vm473, 0.0
      %6760 = vst.msk [vmem:[#allocation2 + $0xb0] sm:$0xff] %vm473, 0.0
      %6761 = vst.msk [vmem:[#allocation2 + $0xb8] sm:$0x3] %vm477, 0.0
      %6762 = vst.msk [vmem:[#allocation2 + $0xc0] sm:$0xff] %vm473, 0.0
      %6763 = vst.msk [vmem:[#allocation2 + $0xc8] sm:$0xff] %vm473, 0.0
      %6764 = vst.msk [vmem:[#allocation2 + $0xd0] sm:$0xff] %vm473, 0.0
      %6765 = vst.msk [vmem:[#allocation2 + $0xd8] sm:$0x3] %vm477, 0.0
      %6766 = vst.msk [vmem:[#allocation2 + $0xe0] sm:$0xff] %vm473, 0.0
      %6767 = vst.msk [vmem:[#allocation2 + $0xe8] sm:$0xff] %vm473, 0.0
      %6768 = vst.msk [vmem:[#allocation2 + $0xf0] sm:$0xff] %vm473, 0.0
      %6769 = vst.msk [vmem:[#allocation2 + $0xf8] sm:$0x3] %vm477, 0.0
      %6770 = vst.msk [vmem:[#allocation2 + $0x100] sm:$0xff] %vm473, 0.0
      %6771 = vst.msk [vmem:[#allocation2 + $0x108] sm:$0xff] %vm473, 0.0
      %6772 = vst.msk [vmem:[#allocation2 + $0x110] sm:$0xff] %vm473, 0.0
      %6773 = vst.msk [vmem:[#allocation2 + $0x118] sm:$0x3] %vm477, 0.0
      %6774 = vst.msk [vmem:[#allocation2 + $0x120] sm:$0xff] %vm473, 0.0
      %6775 = vst.msk [vmem:[#allocation2 + $0x128] sm:$0xff] %vm473, 0.0
      %6776 = vst.msk [vmem:[#allocation2 + $0x130] sm:$0xff] %vm473, 0.0
      %6777 = vst.msk [vmem:[#allocation2 + $0x138] sm:$0x3] %vm477, 0.0
      %6778 = vst.msk [vmem:[#allocation2 + $0x140] sm:$0xff] %vm473, 0.0
      %6779 = vst.msk [vmem:[#allocation2 + $0x148] sm:$0xff] %vm473, 0.0
      %6780 = vst.msk [vmem:[#allocation2 + $0x150] sm:$0xff] %vm473, 0.0
      %6781 = vst.msk [vmem:[#allocation2 + $0x158] sm:$0x3] %vm477, 0.0
      %6782 = vst.msk [vmem:[#allocation2 + $0x160] sm:$0xff] %vm473, 0.0
      %6783 = vst.msk [vmem:[#allocation2 + $0x168] sm:$0xff] %vm473, 0.0
      %6784 = vst.msk [vmem:[#allocation2 + $0x170] sm:$0xff] %vm473, 0.0
      %6785 = vst.msk [vmem:[#allocation2 + $0x178] sm:$0x3] %vm477, 0.0
      %6786 = vst.msk [vmem:[#allocation2 + $0x180] sm:$0xff] %vm473, 0.0
      %6787 = vst.msk [vmem:[#allocation2 + $0x188] sm:$0xff] %vm473, 0.0
      %6788 = vst.msk [vmem:[#allocation2 + $0x190] sm:$0xff] %vm473, 0.0
      %6789 = vst.msk [vmem:[#allocation2 + $0x198] sm:$0x3] %vm477, 0.0
      %6790 = vst.msk [vmem:[#allocation2 + $0x1a0] sm:$0xff] %vm473, 0.0
      %6791 = vst.msk [vmem:[#allocation2 + $0x1a8] sm:$0xff] %vm473, 0.0
      %6792 = vst.msk [vmem:[#allocation2 + $0x1b0] sm:$0xff] %vm473, 0.0
      %6793 = vst.msk [vmem:[#allocation2 + $0x1b8] sm:$0x3] %vm477, 0.0
      %6794 = vst.msk [vmem:[#allocation2 + $0x1c0] sm:$0xff] %vm473, 0.0
      %6795 = vst.msk [vmem:[#allocation2 + $0x1c8] sm:$0xff] %vm473, 0.0
      %6796 = vst.msk [vmem:[#allocation2 + $0x1d0] sm:$0xff] %vm473, 0.0
      %6797 = vst.msk [vmem:[#allocation2 + $0x1d8] sm:$0x3] %vm477, 0.0
      %6798 = vst.msk [vmem:[#allocation2 + $0x1e0] sm:$0xff] %vm473, 0.0
      %6799 = vst.msk [vmem:[#allocation2 + $0x1e8] sm:$0xff] %vm473, 0.0
      %6800 = vst.msk [vmem:[#allocation2 + $0x1f0] sm:$0xff] %vm473, 0.0
      %6801 = vst.msk [vmem:[#allocation2 + $0x1f8] sm:$0x3] %vm477, 0.0
      %6802 = vst.msk [vmem:[#allocation2 + $0x200] sm:$0xff] %vm473, 0.0
      %6803 = vst.msk [vmem:[#allocation2 + $0x208] sm:$0xff] %vm473, 0.0
      %6804 = vst.msk [vmem:[#allocation2 + $0x210] sm:$0xff] %vm473, 0.0
      %6805 = vst.msk [vmem:[#allocation2 + $0x218] sm:$0x3] %vm477, 0.0
      %6806 = vst.msk [vmem:[#allocation2 + $0x220] sm:$0xff] %vm473, 0.0
      %6807 = vst.msk [vmem:[#allocation2 + $0x228] sm:$0xff] %vm473, 0.0
      %6808 = vst.msk [vmem:[#allocation2 + $0x230] sm:$0xff] %vm473, 0.0
      %6809 = vst.msk [vmem:[#allocation2 + $0x238] sm:$0x3] %vm477, 0.0
      %6810 = vst.msk [vmem:[#allocation2 + $0x240] sm:$0xff] %vm473, 0.0
      %6811 = vst.msk [vmem:[#allocation2 + $0x248] sm:$0xff] %vm473, 0.0
      %6812 = vst.msk [vmem:[#allocation2 + $0x250] sm:$0xff] %vm473, 0.0
      %6813 = vst.msk [vmem:[#allocation2 + $0x258] sm:$0x3] %vm477, 0.0
      %6814 = vst.msk [vmem:[#allocation2 + $0x260] sm:$0xff] %vm473, 0.0
      %6815 = vst.msk [vmem:[#allocation2 + $0x268] sm:$0xff] %vm473, 0.0
      %6816 = vst.msk [vmem:[#allocation2 + $0x270] sm:$0xff] %vm473, 0.0
      %6817 = vst.msk [vmem:[#allocation2 + $0x278] sm:$0x3] %vm477, 0.0
      %6818 = vst.msk [vmem:[#allocation2 + $0x280] sm:$0xff] %vm473, 0.0
      %6819 = vst.msk [vmem:[#allocation2 + $0x288] sm:$0xff] %vm473, 0.0
      %6820 = vst.msk [vmem:[#allocation2 + $0x290] sm:$0xff] %vm473, 0.0
      %6821 = vst.msk [vmem:[#allocation2 + $0x298] sm:$0x3] %vm477, 0.0
      %6822 = vst.msk [vmem:[#allocation2 + $0x2a0] sm:$0xff] %vm473, 0.0
      %6823 = vst.msk [vmem:[#allocation2 + $0x2a8] sm:$0xff] %vm473, 0.0
      %6824 = vst.msk [vmem:[#allocation2 + $0x2b0] sm:$0xff] %vm473, 0.0
      %6825 = vst.msk [vmem:[#allocation2 + $0x2b8] sm:$0x3] %vm477, 0.0
      %6826 = vst.msk [vmem:[#allocation2 + $0x2c0] sm:$0xff] %vm473, 0.0
      %6827 = vst.msk [vmem:[#allocation2 + $0x2c8] sm:$0xff] %vm473, 0.0
      %6828 = vst.msk [vmem:[#allocation2 + $0x2d0] sm:$0xff] %vm473, 0.0
      %6829 = vst.msk [vmem:[#allocation2 + $0x2d8] sm:$0x3] %vm477, 0.0
      %6830 = vst.msk [vmem:[#allocation2 + $0x2e0] sm:$0xff] %vm473, 0.0
      %6831 = vst.msk [vmem:[#allocation2 + $0x2e8] sm:$0xff] %vm473, 0.0
      %6832 = vst.msk [vmem:[#allocation2 + $0x2f0] sm:$0xff] %vm473, 0.0
      %6833 = vst.msk [vmem:[#allocation2 + $0x2f8] sm:$0x3] %vm477, 0.0
      %6834 = vst.msk [vmem:[#allocation2 + $0x300] sm:$0xff] %vm473, 0.0
      %6835 = vst.msk [vmem:[#allocation2 + $0x308] sm:$0xff] %vm473, 0.0
      %6836 = vst.msk [vmem:[#allocation2 + $0x310] sm:$0xff] %vm473, 0.0
      %6837 = vst.msk [vmem:[#allocation2 + $0x318] sm:$0x3] %vm477, 0.0
      %6838 = vst.msk [vmem:[#allocation2 + $0x320] sm:$0xff] %vm473, 0.0
      %6839 = vst.msk [vmem:[#allocation2 + $0x328] sm:$0xff] %vm473, 0.0
      %6840 = vst.msk [vmem:[#allocation2 + $0x330] sm:$0xff] %vm473, 0.0
      %6841 = vst.msk [vmem:[#allocation2 + $0x338] sm:$0x3] %vm477, 0.0
      %6842 = vrot.lane.b32.xlu0 %v2368, 112
      %v6843 = vpop.permute.xlu0 %6842
      %6844 = vrot.lane.b32.xlu0 %v2373, 112
      %v6845 = vpop.permute.xlu0 %6844
      %6846 = vrot.lane.b32.xlu0 %v2378, 112
      %v6847 = vpop.permute.xlu0 %6846
      %6848 = vrot.lane.b32.xlu0 %v2383, 112
      %v6849 = vpop.permute.xlu0 %6848
      %6850 = vrot.lane.b32.xlu0 %v2388, 112
      %v6851 = vpop.permute.xlu0 %6850
      %6852 = vrot.lane.b32.xlu0 %v2393, 112
      %v6853 = vpop.permute.xlu0 %6852
      %6854 = vrot.lane.b32.xlu0 %v2398, 112
      %v6855 = vpop.permute.xlu0 %6854
      %6856 = vrot.lane.b32.xlu0 %v2403, 112
      %v6857 = vpop.permute.xlu0 %6856
      %6858 = vrot.lane.b32.xlu0 %v2408, 112
      %v6859 = vpop.permute.xlu0 %6858
      %6860 = vrot.lane.b32.xlu0 %v2413, 112
      %v6861 = vpop.permute.xlu0 %6860
      %6862 = vrot.lane.b32.xlu0 %v2418, 112
      %v6863 = vpop.permute.xlu0 %6862
      %6864 = vrot.lane.b32.xlu0 %v2423, 112
      %v6865 = vpop.permute.xlu0 %6864
      %6866 = vrot.lane.b32.xlu0 %v2428, 112
      %v6867 = vpop.permute.xlu0 %6866
      %6868 = vrot.lane.b32.xlu0 %v2433, 112
      %v6869 = vpop.permute.xlu0 %6868
      %6870 = vrot.lane.b32.xlu0 %v2438, 112
      %v6871 = vpop.permute.xlu0 %6870
      %6872 = vrot.lane.b32.xlu0 %v2443, 112
      %v6873 = vpop.permute.xlu0 %6872
      %6874 = vrot.lane.b32.xlu0 %v2448, 112
      %v6875 = vpop.permute.xlu0 %6874
      %6876 = vrot.lane.b32.xlu0 %v2453, 112
      %v6877 = vpop.permute.xlu0 %6876
      %6878 = vrot.lane.b32.xlu0 %v2458, 112
      %v6879 = vpop.permute.xlu0 %6878
      %6880 = vrot.lane.b32.xlu0 %v2463, 112
      %v6881 = vpop.permute.xlu0 %6880
      %6882 = vrot.lane.b32.xlu0 %v2468, 112
      %v6883 = vpop.permute.xlu0 %6882
      %6884 = vrot.lane.b32.xlu0 %v2473, 112
      %v6885 = vpop.permute.xlu0 %6884
      %6886 = vrot.lane.b32.xlu0 %v2478, 112
      %v6887 = vpop.permute.xlu0 %6886
      %6888 = vrot.lane.b32.xlu0 %v2483, 112
      %v6889 = vpop.permute.xlu0 %6888
      %6890 = vrot.lane.b32.xlu0 %v2488, 112
      %v6891 = vpop.permute.xlu0 %6890
      %6892 = vrot.lane.b32.xlu0 %v2493, 112
      %v6893 = vpop.permute.xlu0 %6892
      %6894 = vrot.lane.b32.xlu0 %v2498, 112
      %v6895 = vpop.permute.xlu0 %6894
      %6896 = vrot.lane.b32.xlu0 %v2503, 112
      %v6897 = vpop.permute.xlu0 %6896
      %6898 = vrot.lane.b32.xlu0 %v2508, 112
      %v6899 = vpop.permute.xlu0 %6898
      %6900 = vrot.lane.b32.xlu0 %v2513, 112
      %v6901 = vpop.permute.xlu0 %6900
      %6902 = vrot.lane.b32.xlu0 %v2518, 112
      %v6903 = vpop.permute.xlu0 %6902
      %6904 = vrot.lane.b32.xlu0 %v2523, 112
      %v6905 = vpop.permute.xlu0 %6904
      %6938 = vst.msk [vmem:[%s2630 + $0x3] sm:$0xff] %vm473, %v6843
      %6939 = vst.msk [vmem:[%s2630 + $0xb] sm:$0xff] %vm473, %v6845
      %6940 = vst.msk [vmem:[%s2630 + $0x23] sm:$0xff] %vm473, %v6847
      %6941 = vst.msk [vmem:[%s2630 + $0x2b] sm:$0xff] %vm473, %v6849
      %6942 = vst.msk [vmem:[%s2630 + $0x43] sm:$0xff] %vm473, %v6851
      %6943 = vst.msk [vmem:[%s2630 + $0x4b] sm:$0xff] %vm473, %v6853
      %6944 = vst.msk [vmem:[%s2630 + $0x63] sm:$0xff] %vm473, %v6855
      %6945 = vst.msk [vmem:[%s2630 + $0x6b] sm:$0xff] %vm473, %v6857
      %6946 = vst.msk [vmem:[%s2630 + $0x83] sm:$0xff] %vm473, %v6859
      %6947 = vst.msk [vmem:[%s2630 + $0x8b] sm:$0xff] %vm473, %v6861
      %6948 = vst.msk [vmem:[%s2630 + $0xa3] sm:$0xff] %vm473, %v6863
      %6949 = vst.msk [vmem:[%s2630 + $0xab] sm:$0xff] %vm473, %v6865
      %6950 = vst.msk [vmem:[%s2630 + $0xc3] sm:$0xff] %vm473, %v6867
      %6951 = vst.msk [vmem:[%s2630 + $0xcb] sm:$0xff] %vm473, %v6869
      %6952 = vst.msk [vmem:[%s2630 + $0xe3] sm:$0xff] %vm473, %v6871
      %6953 = vst.msk [vmem:[%s2630 + $0xeb] sm:$0xff] %vm473, %v6873
      %6954 = vst.msk [vmem:[%s2630 + $0x103] sm:$0xff] %vm473, %v6875
      %6955 = vst.msk [vmem:[%s2630 + $0x10b] sm:$0xff] %vm473, %v6877
      %6956 = vst.msk [vmem:[%s2630 + $0x123] sm:$0xff] %vm473, %v6879
      %6957 = vst.msk [vmem:[%s2630 + $0x12b] sm:$0xff] %vm473, %v6881
      %6958 = vst.msk [vmem:[%s2630 + $0x143] sm:$0xff] %vm473, %v6883
      %6959 = vst.msk [vmem:[%s2630 + $0x14b] sm:$0xff] %vm473, %v6885
      %6960 = vst.msk [vmem:[%s2630 + $0x163] sm:$0xff] %vm473, %v6887
      %6961 = vst.msk [vmem:[%s2630 + $0x16b] sm:$0xff] %vm473, %v6889
      %6962 = vst.msk [vmem:[%s2630 + $0x183] sm:$0xff] %vm473, %v6891
      %6963 = vst.msk [vmem:[%s2630 + $0x18b] sm:$0xff] %vm473, %v6893
      %6964 = vst.msk [vmem:[%s2630 + $0x1a3] sm:$0xff] %vm473, %v6895
      %6965 = vst.msk [vmem:[%s2630 + $0x1ab] sm:$0xff] %vm473, %v6897
      %6966 = vst.msk [vmem:[%s2630 + $0x1c3] sm:$0xff] %vm473, %v6899
      %6967 = vst.msk [vmem:[%s2630 + $0x1cb] sm:$0xff] %vm473, %v6901
      %6968 = vst.msk [vmem:[%s2630 + $0x1e3] sm:$0xff] %vm473, %v6903
      %6969 = vst.msk [vmem:[%s2630 + $0x1eb] sm:$0xff] %vm473, %v6905
      %v6970 = vld [vmem:[#allocation2] sm:$0xff]
      %v6971 = vld [vmem:[#allocation2 + $0x8] sm:$0xff]
      %v6972 = vld [vmem:[#allocation2 + $0x20] sm:$0xff]
      %v6973 = vld [vmem:[#allocation2 + $0x28] sm:$0xff]
      %v6974 = vld [vmem:[#allocation2 + $0x40] sm:$0xff]
      %v6975 = vld [vmem:[#allocation2 + $0x48] sm:$0xff]
      %v6976 = vld [vmem:[#allocation2 + $0x60] sm:$0xff]
      %v6977 = vld [vmem:[#allocation2 + $0x68] sm:$0xff]
      %v6978 = vld [vmem:[#allocation2 + $0x80] sm:$0xff]
      %v6979 = vld [vmem:[#allocation2 + $0x88] sm:$0xff]
      %v6980 = vld [vmem:[#allocation2 + $0xa0] sm:$0xff]
      %v6981 = vld [vmem:[#allocation2 + $0xa8] sm:$0xff]
      %v6982 = vld [vmem:[#allocation2 + $0xc0] sm:$0xff]
      %v6983 = vld [vmem:[#allocation2 + $0xc8] sm:$0xff]
      %v6984 = vld [vmem:[#allocation2 + $0xe0] sm:$0xff]
      %v6985 = vld [vmem:[#allocation2 + $0xe8] sm:$0xff]
      %v6986 = vld [vmem:[#allocation2 + $0x100] sm:$0xff]
      %v6987 = vld [vmem:[#allocation2 + $0x108] sm:$0xff]
      %v6988 = vld [vmem:[#allocation2 + $0x120] sm:$0xff]
      %v6989 = vld [vmem:[#allocation2 + $0x128] sm:$0xff]
      %v6990 = vld [vmem:[#allocation2 + $0x140] sm:$0xff]
      %v6991 = vld [vmem:[#allocation2 + $0x148] sm:$0xff]
      %v6992 = vld [vmem:[#allocation2 + $0x160] sm:$0xff]
      %v6993 = vld [vmem:[#allocation2 + $0x168] sm:$0xff]
      %v6994 = vld [vmem:[#allocation2 + $0x180] sm:$0xff]
      %v6995 = vld [vmem:[#allocation2 + $0x188] sm:$0xff]
      %v6996 = vld [vmem:[#allocation2 + $0x1a0] sm:$0xff]
      %v6997 = vld [vmem:[#allocation2 + $0x1a8] sm:$0xff]
      %v6998 = vld [vmem:[#allocation2 + $0x1c0] sm:$0xff]
      %v6999 = vld [vmem:[#allocation2 + $0x1c8] sm:$0xff]
      %v7000 = vld [vmem:[#allocation2 + $0x1e0] sm:$0xff]
      %v7001 = vld [vmem:[#allocation2 + $0x1e8] sm:$0xff]
      %v7002 = vld [vmem:[#allocation2 + $0x3] sm:$0xff]
      %v7003 = vld [vmem:[#allocation2 + $0xb] sm:$0xff]
      %v7004 = vld [vmem:[#allocation2 + $0x23] sm:$0xff]
      %v7005 = vld [vmem:[#allocation2 + $0x2b] sm:$0xff]
      %v7006 = vld [vmem:[#allocation2 + $0x43] sm:$0xff]
      %v7007 = vld [vmem:[#allocation2 + $0x4b] sm:$0xff]
      %v7008 = vld [vmem:[#allocation2 + $0x63] sm:$0xff]
      %v7009 = vld [vmem:[#allocation2 + $0x6b] sm:$0xff]
      %v7010 = vld [vmem:[#allocation2 + $0x83] sm:$0xff]
      %v7011 = vld [vmem:[#allocation2 + $0x8b] sm:$0xff]
      %v7012 = vld [vmem:[#allocation2 + $0xa3] sm:$0xff]
      %v7013 = vld [vmem:[#allocation2 + $0xab] sm:$0xff]
      %v7014 = vld [vmem:[#allocation2 + $0xc3] sm:$0xff]
      %v7015 = vld [vmem:[#allocation2 + $0xcb] sm:$0xff]
      %v7016 = vld [vmem:[#allocation2 + $0xe3] sm:$0xff]
      %v7017 = vld [vmem:[#allocation2 + $0xeb] sm:$0xff]
      %v7018 = vld [vmem:[#allocation2 + $0x103] sm:$0xff]
      %v7019 = vld [vmem:[#allocation2 + $0x10b] sm:$0xff]
      %v7020 = vld [vmem:[#allocation2 + $0x123] sm:$0xff]
      %v7021 = vld [vmem:[#allocation2 + $0x12b] sm:$0xff]
      %v7022 = vld [vmem:[#allocation2 + $0x143] sm:$0xff]
      %v7023 = vld [vmem:[#allocation2 + $0x14b] sm:$0xff]
      %v7024 = vld [vmem:[#allocation2 + $0x163] sm:$0xff]
      %v7025 = vld [vmem:[#allocation2 + $0x16b] sm:$0xff]
      %v7026 = vld [vmem:[#allocation2 + $0x183] sm:$0xff]
      %v7027 = vld [vmem:[#allocation2 + $0x18b] sm:$0xff]
      %v7028 = vld [vmem:[#allocation2 + $0x1a3] sm:$0xff]
      %v7029 = vld [vmem:[#allocation2 + $0x1ab] sm:$0xff]
      %v7030 = vld [vmem:[#allocation2 + $0x1c3] sm:$0xff]
      %v7031 = vld [vmem:[#allocation2 + $0x1cb] sm:$0xff]
      %v7032 = vld [vmem:[#allocation2 + $0x1e3] sm:$0xff]
      %v7033 = vld [vmem:[#allocation2 + $0x1eb] sm:$0xff]
      %v7034 = vld [vmem:[#allocation2 + $0x6] sm:$0xff]
      %v7035 = vld [vmem:[#allocation2 + $0xe] sm:$0xff]
      %v7036 = vld [vmem:[#allocation2 + $0x26] sm:$0xff]
      %v7037 = vld [vmem:[#allocation2 + $0x2e] sm:$0xff]
      %v7038 = vld [vmem:[#allocation2 + $0x46] sm:$0xff]
      %v7039 = vld [vmem:[#allocation2 + $0x4e] sm:$0xff]
      %v7040 = vld [vmem:[#allocation2 + $0x66] sm:$0xff]
      %v7041 = vld [vmem:[#allocation2 + $0x6e] sm:$0xff]
      %v7042 = vld [vmem:[#allocation2 + $0x86] sm:$0xff]
      %v7043 = vld [vmem:[#allocation2 + $0x8e] sm:$0xff]
      %v7044 = vld [vmem:[#allocation2 + $0xa6] sm:$0xff]
      %v7045 = vld [vmem:[#allocation2 + $0xae] sm:$0xff]
      %v7046 = vld [vmem:[#allocation2 + $0xc6] sm:$0xff]
      %v7047 = vld [vmem:[#allocation2 + $0xce] sm:$0xff]
      %v7048 = vld [vmem:[#allocation2 + $0xe6] sm:$0xff]
      %v7049 = vld [vmem:[#allocation2 + $0xee] sm:$0xff]
      %v7050 = vld [vmem:[#allocation2 + $0x106] sm:$0xff]
      %v7051 = vld [vmem:[#allocation2 + $0x10e] sm:$0xff]
      %v7052 = vld [vmem:[#allocation2 + $0x126] sm:$0xff]
      %v7053 = vld [vmem:[#allocation2 + $0x12e] sm:$0xff]
      %v7054 = vld [vmem:[#allocation2 + $0x146] sm:$0xff]
      %v7055 = vld [vmem:[#allocation2 + $0x14e] sm:$0xff]
      %v7056 = vld [vmem:[#allocation2 + $0x166] sm:$0xff]
      %v7057 = vld [vmem:[#allocation2 + $0x16e] sm:$0xff]
      %v7058 = vld [vmem:[#allocation2 + $0x186] sm:$0xff]
      %v7059 = vld [vmem:[#allocation2 + $0x18e] sm:$0xff]
      %v7060 = vld [vmem:[#allocation2 + $0x1a6] sm:$0xff]
      %v7061 = vld [vmem:[#allocation2 + $0x1ae] sm:$0xff]
      %v7062 = vld [vmem:[#allocation2 + $0x1c6] sm:$0xff]
      %v7063 = vld [vmem:[#allocation2 + $0x1ce] sm:$0xff]
      %v7064 = vld [vmem:[#allocation2 + $0x1e6] sm:$0xff]
      %v7065 = vld [vmem:[#allocation2 + $0x1ee] sm:$0xff]
      %v7066 = vld [vmem:[%s2630] sm:$0xff]
      %v7067 = vld [vmem:[%s2630 + $0x8] sm:$0xff]
      %v7068 = vld [vmem:[%s2630 + $0x20] sm:$0xff]
      %v7069 = vld [vmem:[%s2630 + $0x28] sm:$0xff]
      %v7070 = vld [vmem:[%s2630 + $0x40] sm:$0xff]
      %v7071 = vld [vmem:[%s2630 + $0x48] sm:$0xff]
      %v7072 = vld [vmem:[%s2630 + $0x60] sm:$0xff]
      %v7073 = vld [vmem:[%s2630 + $0x68] sm:$0xff]
      %v7074 = vld [vmem:[%s2630 + $0x80] sm:$0xff]
      %v7075 = vld [vmem:[%s2630 + $0x88] sm:$0xff]
      %v7076 = vld [vmem:[%s2630 + $0xa0] sm:$0xff]
      %v7077 = vld [vmem:[%s2630 + $0xa8] sm:$0xff]
      %v7078 = vld [vmem:[%s2630 + $0xc0] sm:$0xff]
      %v7079 = vld [vmem:[%s2630 + $0xc8] sm:$0xff]
      %v7080 = vld [vmem:[%s2630 + $0xe0] sm:$0xff]
      %v7081 = vld [vmem:[%s2630 + $0xe8] sm:$0xff]
      %v7082 = vld [vmem:[%s2630 + $0x100] sm:$0xff]
      %v7083 = vld [vmem:[%s2630 + $0x108] sm:$0xff]
      %v7084 = vld [vmem:[%s2630 + $0x120] sm:$0xff]
      %v7085 = vld [vmem:[%s2630 + $0x128] sm:$0xff]
      %v7086 = vld [vmem:[%s2630 + $0x140] sm:$0xff]
      %v7087 = vld [vmem:[%s2630 + $0x148] sm:$0xff]
      %v7088 = vld [vmem:[%s2630 + $0x160] sm:$0xff]
      %v7089 = vld [vmem:[%s2630 + $0x168] sm:$0xff]
      %v7090 = vld [vmem:[%s2630 + $0x180] sm:$0xff]
      %v7091 = vld [vmem:[%s2630 + $0x188] sm:$0xff]
      %v7092 = vld [vmem:[%s2630 + $0x1a0] sm:$0xff]
      %v7093 = vld [vmem:[%s2630 + $0x1a8] sm:$0xff]
      %v7094 = vld [vmem:[%s2630 + $0x1c0] sm:$0xff]
      %v7095 = vld [vmem:[%s2630 + $0x1c8] sm:$0xff]
      %v7096 = vld [vmem:[%s2630 + $0x1e0] sm:$0xff]
      %v7097 = vld [vmem:[%s2630 + $0x1e8] sm:$0xff]
      %v7098 = vld [vmem:[%s2630 + $0x3] sm:$0xff]
      %v7099 = vld [vmem:[%s2630 + $0xb] sm:$0xff]
      %v7100 = vld [vmem:[%s2630 + $0x23] sm:$0xff]
      %v7101 = vld [vmem:[%s2630 + $0x2b] sm:$0xff]
      %v7102 = vld [vmem:[%s2630 + $0x43] sm:$0xff]
      %v7103 = vld [vmem:[%s2630 + $0x4b] sm:$0xff]
      %v7104 = vld [vmem:[%s2630 + $0x63] sm:$0xff]
      %v7105 = vld [vmem:[%s2630 + $0x6b] sm:$0xff]
      %v7106 = vld [vmem:[%s2630 + $0x83] sm:$0xff]
      %v7107 = vld [vmem:[%s2630 + $0x8b] sm:$0xff]
      %v7108 = vld [vmem:[%s2630 + $0xa3] sm:$0xff]
      %v7109 = vld [vmem:[%s2630 + $0xab] sm:$0xff]
      %v7110 = vld [vmem:[%s2630 + $0xc3] sm:$0xff]
      %v7111 = vld [vmem:[%s2630 + $0xcb] sm:$0xff]
      %v7112 = vld [vmem:[%s2630 + $0xe3] sm:$0xff]
      %v7113 = vld [vmem:[%s2630 + $0xeb] sm:$0xff]
      %v7114 = vld [vmem:[%s2630 + $0x103] sm:$0xff]
      %v7115 = vld [vmem:[%s2630 + $0x10b] sm:$0xff]
      %v7116 = vld [vmem:[%s2630 + $0x123] sm:$0xff]
      %v7117 = vld [vmem:[%s2630 + $0x12b] sm:$0xff]
      %v7118 = vld [vmem:[%s2630 + $0x143] sm:$0xff]
      %v7119 = vld [vmem:[%s2630 + $0x14b] sm:$0xff]
      %v7120 = vld [vmem:[%s2630 + $0x163] sm:$0xff]
      %v7121 = vld [vmem:[%s2630 + $0x16b] sm:$0xff]
      %v7122 = vld [vmem:[%s2630 + $0x183] sm:$0xff]
      %v7123 = vld [vmem:[%s2630 + $0x18b] sm:$0xff]
      %v7124 = vld [vmem:[%s2630 + $0x1a3] sm:$0xff]
      %v7125 = vld [vmem:[%s2630 + $0x1ab] sm:$0xff]
      %v7126 = vld [vmem:[%s2630 + $0x1c3] sm:$0xff]
      %v7127 = vld [vmem:[%s2630 + $0x1cb] sm:$0xff]
      %v7128 = vld [vmem:[%s2630 + $0x1e3] sm:$0xff]
      %v7129 = vld [vmem:[%s2630 + $0x1eb] sm:$0xff]
      %v7130 = vld [vmem:[%s2630 + $0x6] sm:$0xff]
      %v7131 = vld [vmem:[%s2630 + $0xe] sm:$0xff]
      %v7132 = vld [vmem:[%s2630 + $0x26] sm:$0xff]
      %v7133 = vld [vmem:[%s2630 + $0x2e] sm:$0xff]
      %v7134 = vld [vmem:[%s2630 + $0x46] sm:$0xff]
      %v7135 = vld [vmem:[%s2630 + $0x4e] sm:$0xff]
      %v7136 = vld [vmem:[%s2630 + $0x66] sm:$0xff]
      %v7137 = vld [vmem:[%s2630 + $0x6e] sm:$0xff]
      %v7138 = vld [vmem:[%s2630 + $0x86] sm:$0xff]
      %v7139 = vld [vmem:[%s2630 + $0x8e] sm:$0xff]
      %v7140 = vld [vmem:[%s2630 + $0xa6] sm:$0xff]
      %v7141 = vld [vmem:[%s2630 + $0xae] sm:$0xff]
      %v7142 = vld [vmem:[%s2630 + $0xc6] sm:$0xff]
      %v7143 = vld [vmem:[%s2630 + $0xce] sm:$0xff]
      %v7144 = vld [vmem:[%s2630 + $0xe6] sm:$0xff]
      %v7145 = vld [vmem:[%s2630 + $0xee] sm:$0xff]
      %v7146 = vld [vmem:[%s2630 + $0x106] sm:$0xff]
      %v7147 = vld [vmem:[%s2630 + $0x10e] sm:$0xff]
      %v7148 = vld [vmem:[%s2630 + $0x126] sm:$0xff]
      %v7149 = vld [vmem:[%s2630 + $0x12e] sm:$0xff]
      %v7150 = vld [vmem:[%s2630 + $0x146] sm:$0xff]
      %v7151 = vld [vmem:[%s2630 + $0x14e] sm:$0xff]
      %v7152 = vld [vmem:[%s2630 + $0x166] sm:$0xff]
      %v7153 = vld [vmem:[%s2630 + $0x16e] sm:$0xff]
      %v7154 = vld [vmem:[%s2630 + $0x186] sm:$0xff]
      %v7155 = vld [vmem:[%s2630 + $0x18e] sm:$0xff]
      %v7156 = vld [vmem:[%s2630 + $0x1a6] sm:$0xff]
      %v7157 = vld [vmem:[%s2630 + $0x1ae] sm:$0xff]
      %v7158 = vld [vmem:[%s2630 + $0x1c6] sm:$0xff]
      %v7159 = vld [vmem:[%s2630 + $0x1ce] sm:$0xff]
      %v7160 = vld [vmem:[%s2630 + $0x1e6] sm:$0xff]
      %v7161 = vld [vmem:[%s2630 + $0x1ee] sm:$0xff]
      %v7162 = vld [vmem:[%s2855] sm:$0xff]
      %v7163 = vld [vmem:[%s2855 + $0x8] sm:$0xff]
      %v7164 = vld [vmem:[%s2855 + $0x20] sm:$0xff]
      %v7165 = vld [vmem:[%s2855 + $0x28] sm:$0xff]
      %v7166 = vld [vmem:[%s2855 + $0x40] sm:$0xff]
      %v7167 = vld [vmem:[%s2855 + $0x48] sm:$0xff]
      %v7168 = vld [vmem:[%s2855 + $0x60] sm:$0xff]
      %v7169 = vld [vmem:[%s2855 + $0x68] sm:$0xff]
      %v7170 = vld [vmem:[%s2855 + $0x80] sm:$0xff]
      %v7171 = vld [vmem:[%s2855 + $0x88] sm:$0xff]
      %v7172 = vld [vmem:[%s2855 + $0xa0] sm:$0xff]
      %v7173 = vld [vmem:[%s2855 + $0xa8] sm:$0xff]
      %v7174 = vld [vmem:[%s2855 + $0xc0] sm:$0xff]
      %v7175 = vld [vmem:[%s2855 + $0xc8] sm:$0xff]
      %v7176 = vld [vmem:[%s2855 + $0xe0] sm:$0xff]
      %v7177 = vld [vmem:[%s2855 + $0xe8] sm:$0xff]
      %v7178 = vld [vmem:[%s2855 + $0x100] sm:$0xff]
      %v7179 = vld [vmem:[%s2855 + $0x108] sm:$0xff]
      %v7180 = vld [vmem:[%s2855 + $0x120] sm:$0xff]
      %v7181 = vld [vmem:[%s2855 + $0x128] sm:$0xff]
      %v7182 = vld [vmem:[%s2855 + $0x140] sm:$0xff]
      %v7183 = vld [vmem:[%s2855 + $0x148] sm:$0xff]
      %v7184 = vld [vmem:[%s2855 + $0x160] sm:$0xff]
      %v7185 = vld [vmem:[%s2855 + $0x168] sm:$0xff]
      %v7186 = vld [vmem:[%s2855 + $0x180] sm:$0xff]
      %v7187 = vld [vmem:[%s2855 + $0x188] sm:$0xff]
      %v7188 = vld [vmem:[%s2855 + $0x1a0] sm:$0xff]
      %v7189 = vld [vmem:[%s2855 + $0x1a8] sm:$0xff]
      %v7190 = vld [vmem:[%s2855 + $0x1c0] sm:$0xff]
      %v7191 = vld [vmem:[%s2855 + $0x1c8] sm:$0xff]
      %v7192 = vld [vmem:[%s2855 + $0x1e0] sm:$0xff]
      %v7193 = vld [vmem:[%s2855 + $0x1e8] sm:$0xff]
      %v7194 = vld [vmem:[%s2855 + $0x3] sm:$0xff]
      %v7195 = vld [vmem:[%s2855 + $0xb] sm:$0xff]
      %v7196 = vld [vmem:[%s2855 + $0x23] sm:$0xff]
      %v7197 = vld [vmem:[%s2855 + $0x2b] sm:$0xff]
      %v7198 = vld [vmem:[%s2855 + $0x43] sm:$0xff]
      %v7199 = vld [vmem:[%s2855 + $0x4b] sm:$0xff]
      %v7200 = vld [vmem:[%s2855 + $0x63] sm:$0xff]
      %v7201 = vld [vmem:[%s2855 + $0x6b] sm:$0xff]
      %v7202 = vld [vmem:[%s2855 + $0x83] sm:$0xff]
      %v7203 = vld [vmem:[%s2855 + $0x8b] sm:$0xff]
      %v7204 = vld [vmem:[%s2855 + $0xa3] sm:$0xff]
      %v7205 = vld [vmem:[%s2855 + $0xab] sm:$0xff]
      %v7206 = vld [vmem:[%s2855 + $0xc3] sm:$0xff]
      %v7207 = vld [vmem:[%s2855 + $0xcb] sm:$0xff]
      %v7208 = vld [vmem:[%s2855 + $0xe3] sm:$0xff]
      %v7209 = vld [vmem:[%s2855 + $0xeb] sm:$0xff]
      %v7210 = vld [vmem:[%s2855 + $0x103] sm:$0xff]
      %v7211 = vld [vmem:[%s2855 + $0x10b] sm:$0xff]
      %v7212 = vld [vmem:[%s2855 + $0x123] sm:$0xff]
      %v7213 = vld [vmem:[%s2855 + $0x12b] sm:$0xff]
      %v7214 = vld [vmem:[%s2855 + $0x143] sm:$0xff]
      %v7215 = vld [vmem:[%s2855 + $0x14b] sm:$0xff]
      %v7216 = vld [vmem:[%s2855 + $0x163] sm:$0xff]
      %v7217 = vld [vmem:[%s2855 + $0x16b] sm:$0xff]
      %v7218 = vld [vmem:[%s2855 + $0x183] sm:$0xff]
      %v7219 = vld [vmem:[%s2855 + $0x18b] sm:$0xff]
      %v7220 = vld [vmem:[%s2855 + $0x1a3] sm:$0xff]
      %v7221 = vld [vmem:[%s2855 + $0x1ab] sm:$0xff]
      %v7222 = vld [vmem:[%s2855 + $0x1c3] sm:$0xff]
      %v7223 = vld [vmem:[%s2855 + $0x1cb] sm:$0xff]
      %v7224 = vld [vmem:[%s2855 + $0x1e3] sm:$0xff]
      %v7225 = vld [vmem:[%s2855 + $0x1eb] sm:$0xff]
      %v7226 = vld [vmem:[%s2855 + $0x6] sm:$0xff]
      %v7227 = vld [vmem:[%s2855 + $0xe] sm:$0xff]
      %v7228 = vld [vmem:[%s2855 + $0x26] sm:$0xff]
      %v7229 = vld [vmem:[%s2855 + $0x2e] sm:$0xff]
      %v7230 = vld [vmem:[%s2855 + $0x46] sm:$0xff]
      %v7231 = vld [vmem:[%s2855 + $0x4e] sm:$0xff]
      %v7232 = vld [vmem:[%s2855 + $0x66] sm:$0xff]
      %v7233 = vld [vmem:[%s2855 + $0x6e] sm:$0xff]
      %v7234 = vld [vmem:[%s2855 + $0x86] sm:$0xff]
      %v7235 = vld [vmem:[%s2855 + $0x8e] sm:$0xff]
      %v7236 = vld [vmem:[%s2855 + $0xa6] sm:$0xff]
      %v7237 = vld [vmem:[%s2855 + $0xae] sm:$0xff]
      %v7238 = vld [vmem:[%s2855 + $0xc6] sm:$0xff]
      %v7239 = vld [vmem:[%s2855 + $0xce] sm:$0xff]
      %v7240 = vld [vmem:[%s2855 + $0xe6] sm:$0xff]
      %v7241 = vld [vmem:[%s2855 + $0xee] sm:$0xff]
      %v7242 = vld [vmem:[%s2855 + $0x106] sm:$0xff]
      %v7243 = vld [vmem:[%s2855 + $0x10e] sm:$0xff]
      %v7244 = vld [vmem:[%s2855 + $0x126] sm:$0xff]
      %v7245 = vld [vmem:[%s2855 + $0x12e] sm:$0xff]
      %v7246 = vld [vmem:[%s2855 + $0x146] sm:$0xff]
      %v7247 = vld [vmem:[%s2855 + $0x14e] sm:$0xff]
      %v7248 = vld [vmem:[%s2855 + $0x166] sm:$0xff]
      %v7249 = vld [vmem:[%s2855 + $0x16e] sm:$0xff]
      %v7250 = vld [vmem:[%s2855 + $0x186] sm:$0xff]
      %v7251 = vld [vmem:[%s2855 + $0x18e] sm:$0xff]
      %v7252 = vld [vmem:[%s2855 + $0x1a6] sm:$0xff]
      %v7253 = vld [vmem:[%s2855 + $0x1ae] sm:$0xff]
      %v7254 = vld [vmem:[%s2855 + $0x1c6] sm:$0xff]
      %v7255 = vld [vmem:[%s2855 + $0x1ce] sm:$0xff]
      %v7256 = vld [vmem:[%s2855 + $0x1e6] sm:$0xff]
      %v7257 = vld [vmem:[%s2855 + $0x1ee] sm:$0xff]
      %7290 = vrot.lane.b32.xlu0 %v7002, 8
      %v7291 = vpop.permute.xlu0 %7290
      %7292 = vrot.lane.b32.xlu0 %v7003, 8
      %v7293 = vpop.permute.xlu0 %7292
      %7294 = vrot.lane.b32.xlu0 %v7004, 8
      %v7295 = vpop.permute.xlu0 %7294
      %7296 = vrot.lane.b32.xlu0 %v7005, 8
      %v7297 = vpop.permute.xlu0 %7296
      %7298 = vrot.lane.b32.xlu0 %v7006, 8
      %v7299 = vpop.permute.xlu0 %7298
      %7300 = vrot.lane.b32.xlu0 %v7007, 8
      %v7301 = vpop.permute.xlu0 %7300
      %7302 = vrot.lane.b32.xlu0 %v7008, 8
      %v7303 = vpop.permute.xlu0 %7302
      %7304 = vrot.lane.b32.xlu0 %v7009, 8
      %v7305 = vpop.permute.xlu0 %7304
      %7306 = vrot.lane.b32.xlu0 %v7010, 8
      %v7307 = vpop.permute.xlu0 %7306
      %7308 = vrot.lane.b32.xlu0 %v7011, 8
      %v7309 = vpop.permute.xlu0 %7308
      %7310 = vrot.lane.b32.xlu0 %v7012, 8
      %v7311 = vpop.permute.xlu0 %7310
      %7312 = vrot.lane.b32.xlu0 %v7013, 8
      %v7313 = vpop.permute.xlu0 %7312
      %7314 = vrot.lane.b32.xlu0 %v7014, 8
      %v7315 = vpop.permute.xlu0 %7314
      %7316 = vrot.lane.b32.xlu0 %v7015, 8
      %v7317 = vpop.permute.xlu0 %7316
      %7318 = vrot.lane.b32.xlu0 %v7016, 8
      %v7319 = vpop.permute.xlu0 %7318
      %7320 = vrot.lane.b32.xlu0 %v7017, 8
      %v7321 = vpop.permute.xlu0 %7320
      %7322 = vrot.lane.b32.xlu0 %v7018, 8
      %v7323 = vpop.permute.xlu0 %7322
      %7324 = vrot.lane.b32.xlu0 %v7019, 8
      %v7325 = vpop.permute.xlu0 %7324
      %7326 = vrot.lane.b32.xlu0 %v7020, 8
      %v7327 = vpop.permute.xlu0 %7326
      %7328 = vrot.lane.b32.xlu0 %v7021, 8
      %v7329 = vpop.permute.xlu0 %7328
      %7330 = vrot.lane.b32.xlu0 %v7022, 8
      %v7331 = vpop.permute.xlu0 %7330
      %7332 = vrot.lane.b32.xlu0 %v7023, 8
      %v7333 = vpop.permute.xlu0 %7332
      %7334 = vrot.lane.b32.xlu0 %v7024, 8
      %v7335 = vpop.permute.xlu0 %7334
      %7336 = vrot.lane.b32.xlu0 %v7025, 8
      %v7337 = vpop.permute.xlu0 %7336
      %7338 = vrot.lane.b32.xlu0 %v7026, 8
      %v7339 = vpop.permute.xlu0 %7338
      %7340 = vrot.lane.b32.xlu0 %v7027, 8
      %v7341 = vpop.permute.xlu0 %7340
      %7342 = vrot.lane.b32.xlu0 %v7028, 8
      %v7343 = vpop.permute.xlu0 %7342
      %7344 = vrot.lane.b32.xlu0 %v7029, 8
      %v7345 = vpop.permute.xlu0 %7344
      %7346 = vrot.lane.b32.xlu0 %v7030, 8
      %v7347 = vpop.permute.xlu0 %7346
      %7348 = vrot.lane.b32.xlu0 %v7031, 8
      %v7349 = vpop.permute.xlu0 %7348
      %7350 = vrot.lane.b32.xlu0 %v7032, 8
      %v7351 = vpop.permute.xlu0 %7350
      %7352 = vrot.lane.b32.xlu0 %v7033, 8
      %v7353 = vpop.permute.xlu0 %7352
      %7418 = vrot.lane.b32.xlu0 %v7034, 16
      %v7419 = vpop.permute.xlu0 %7418
      %7420 = vrot.lane.b32.xlu0 %v7035, 16
      %v7421 = vpop.permute.xlu0 %7420
      %7422 = vrot.lane.b32.xlu0 %v7036, 16
      %v7423 = vpop.permute.xlu0 %7422
      %7424 = vrot.lane.b32.xlu0 %v7037, 16
      %v7425 = vpop.permute.xlu0 %7424
      %7426 = vrot.lane.b32.xlu0 %v7038, 16
      %v7427 = vpop.permute.xlu0 %7426
      %7428 = vrot.lane.b32.xlu0 %v7039, 16
      %v7429 = vpop.permute.xlu0 %7428
      %7430 = vrot.lane.b32.xlu0 %v7040, 16
      %v7431 = vpop.permute.xlu0 %7430
      %7432 = vrot.lane.b32.xlu0 %v7041, 16
      %v7433 = vpop.permute.xlu0 %7432
      %7434 = vrot.lane.b32.xlu0 %v7042, 16
      %v7435 = vpop.permute.xlu0 %7434
      %7436 = vrot.lane.b32.xlu0 %v7043, 16
      %v7437 = vpop.permute.xlu0 %7436
      %7438 = vrot.lane.b32.xlu0 %v7044, 16
      %v7439 = vpop.permute.xlu0 %7438
      %7440 = vrot.lane.b32.xlu0 %v7045, 16
      %v7441 = vpop.permute.xlu0 %7440
      %7442 = vrot.lane.b32.xlu0 %v7046, 16
      %v7443 = vpop.permute.xlu0 %7442
      %7444 = vrot.lane.b32.xlu0 %v7047, 16
      %v7445 = vpop.permute.xlu0 %7444
      %7446 = vrot.lane.b32.xlu0 %v7048, 16
      %v7447 = vpop.permute.xlu0 %7446
      %7448 = vrot.lane.b32.xlu0 %v7049, 16
      %v7449 = vpop.permute.xlu0 %7448
      %7450 = vrot.lane.b32.xlu0 %v7050, 16
      %v7451 = vpop.permute.xlu0 %7450
      %7452 = vrot.lane.b32.xlu0 %v7051, 16
      %v7453 = vpop.permute.xlu0 %7452
      %7454 = vrot.lane.b32.xlu0 %v7052, 16
      %v7455 = vpop.permute.xlu0 %7454
      %7456 = vrot.lane.b32.xlu0 %v7053, 16
      %v7457 = vpop.permute.xlu0 %7456
      %7458 = vrot.lane.b32.xlu0 %v7054, 16
      %v7459 = vpop.permute.xlu0 %7458
      %7460 = vrot.lane.b32.xlu0 %v7055, 16
      %v7461 = vpop.permute.xlu0 %7460
      %7462 = vrot.lane.b32.xlu0 %v7056, 16
      %v7463 = vpop.permute.xlu0 %7462
      %7464 = vrot.lane.b32.xlu0 %v7057, 16
      %v7465 = vpop.permute.xlu0 %7464
      %7466 = vrot.lane.b32.xlu0 %v7058, 16
      %v7467 = vpop.permute.xlu0 %7466
      %7468 = vrot.lane.b32.xlu0 %v7059, 16
      %v7469 = vpop.permute.xlu0 %7468
      %7470 = vrot.lane.b32.xlu0 %v7060, 16
      %v7471 = vpop.permute.xlu0 %7470
      %7472 = vrot.lane.b32.xlu0 %v7061, 16
      %v7473 = vpop.permute.xlu0 %7472
      %7474 = vrot.lane.b32.xlu0 %v7062, 16
      %v7475 = vpop.permute.xlu0 %7474
      %7476 = vrot.lane.b32.xlu0 %v7063, 16
      %v7477 = vpop.permute.xlu0 %7476
      %7478 = vrot.lane.b32.xlu0 %v7064, 16
      %v7479 = vpop.permute.xlu0 %7478
      %7480 = vrot.lane.b32.xlu0 %v7065, 16
      %v7481 = vpop.permute.xlu0 %7480
      %7546 = vrot.lane.b32.xlu0 %v7066, 24
      %v7547 = vpop.permute.xlu0 %7546
      %7548 = vrot.lane.b32.xlu0 %v7067, 24
      %v7549 = vpop.permute.xlu0 %7548
      %7550 = vrot.lane.b32.xlu0 %v7068, 24
      %v7551 = vpop.permute.xlu0 %7550
      %7552 = vrot.lane.b32.xlu0 %v7069, 24
      %v7553 = vpop.permute.xlu0 %7552
      %7554 = vrot.lane.b32.xlu0 %v7070, 24
      %v7555 = vpop.permute.xlu0 %7554
      %7556 = vrot.lane.b32.xlu0 %v7071, 24
      %v7557 = vpop.permute.xlu0 %7556
      %7558 = vrot.lane.b32.xlu0 %v7072, 24
      %v7559 = vpop.permute.xlu0 %7558
      %7560 = vrot.lane.b32.xlu0 %v7073, 24
      %v7561 = vpop.permute.xlu0 %7560
      %7562 = vrot.lane.b32.xlu0 %v7074, 24
      %v7563 = vpop.permute.xlu0 %7562
      %7564 = vrot.lane.b32.xlu0 %v7075, 24
      %v7565 = vpop.permute.xlu0 %7564
      %7566 = vrot.lane.b32.xlu0 %v7076, 24
      %v7567 = vpop.permute.xlu0 %7566
      %7568 = vrot.lane.b32.xlu0 %v7077, 24
      %v7569 = vpop.permute.xlu0 %7568
      %7570 = vrot.lane.b32.xlu0 %v7078, 24
      %v7571 = vpop.permute.xlu0 %7570
      %7572 = vrot.lane.b32.xlu0 %v7079, 24
      %v7573 = vpop.permute.xlu0 %7572
      %7574 = vrot.lane.b32.xlu0 %v7080, 24
      %v7575 = vpop.permute.xlu0 %7574
      %7576 = vrot.lane.b32.xlu0 %v7081, 24
      %v7577 = vpop.permute.xlu0 %7576
      %7578 = vrot.lane.b32.xlu0 %v7082, 24
      %v7579 = vpop.permute.xlu0 %7578
      %7580 = vrot.lane.b32.xlu0 %v7083, 24
      %v7581 = vpop.permute.xlu0 %7580
      %7582 = vrot.lane.b32.xlu0 %v7084, 24
      %v7583 = vpop.permute.xlu0 %7582
      %7584 = vrot.lane.b32.xlu0 %v7085, 24
      %v7585 = vpop.permute.xlu0 %7584
      %7586 = vrot.lane.b32.xlu0 %v7086, 24
      %v7587 = vpop.permute.xlu0 %7586
      %7588 = vrot.lane.b32.xlu0 %v7087, 24
      %v7589 = vpop.permute.xlu0 %7588
      %7590 = vrot.lane.b32.xlu0 %v7088, 24
      %v7591 = vpop.permute.xlu0 %7590
      %7592 = vrot.lane.b32.xlu0 %v7089, 24
      %v7593 = vpop.permute.xlu0 %7592
      %7594 = vrot.lane.b32.xlu0 %v7090, 24
      %v7595 = vpop.permute.xlu0 %7594
      %7596 = vrot.lane.b32.xlu0 %v7091, 24
      %v7597 = vpop.permute.xlu0 %7596
      %7598 = vrot.lane.b32.xlu0 %v7092, 24
      %v7599 = vpop.permute.xlu0 %7598
      %7600 = vrot.lane.b32.xlu0 %v7093, 24
      %v7601 = vpop.permute.xlu0 %7600
      %7602 = vrot.lane.b32.xlu0 %v7094, 24
      %v7603 = vpop.permute.xlu0 %7602
      %7604 = vrot.lane.b32.xlu0 %v7095, 24
      %v7605 = vpop.permute.xlu0 %7604
      %7606 = vrot.lane.b32.xlu0 %v7096, 24
      %v7607 = vpop.permute.xlu0 %7606
      %7608 = vrot.lane.b32.xlu0 %v7097, 24
      %v7609 = vpop.permute.xlu0 %7608
      %7674 = vrot.lane.b32.xlu0 %v7098, 32
      %v7675 = vpop.permute.xlu0 %7674
      %7676 = vrot.lane.b32.xlu0 %v7099, 32
      %v7677 = vpop.permute.xlu0 %7676
      %7678 = vrot.lane.b32.xlu0 %v7100, 32
      %v7679 = vpop.permute.xlu0 %7678
      %7680 = vrot.lane.b32.xlu0 %v7101, 32
      %v7681 = vpop.permute.xlu0 %7680
      %7682 = vrot.lane.b32.xlu0 %v7102, 32
      %v7683 = vpop.permute.xlu0 %7682
      %7684 = vrot.lane.b32.xlu0 %v7103, 32
      %v7685 = vpop.permute.xlu0 %7684
      %7686 = vrot.lane.b32.xlu0 %v7104, 32
      %v7687 = vpop.permute.xlu0 %7686
      %7688 = vrot.lane.b32.xlu0 %v7105, 32
      %v7689 = vpop.permute.xlu0 %7688
      %7690 = vrot.lane.b32.xlu0 %v7106, 32
      %v7691 = vpop.permute.xlu0 %7690
      %7692 = vrot.lane.b32.xlu0 %v7107, 32
      %v7693 = vpop.permute.xlu0 %7692
      %7694 = vrot.lane.b32.xlu0 %v7108, 32
      %v7695 = vpop.permute.xlu0 %7694
      %7696 = vrot.lane.b32.xlu0 %v7109, 32
      %v7697 = vpop.permute.xlu0 %7696
      %7698 = vrot.lane.b32.xlu0 %v7110, 32
      %v7699 = vpop.permute.xlu0 %7698
      %7700 = vrot.lane.b32.xlu0 %v7111, 32
      %v7701 = vpop.permute.xlu0 %7700
      %7702 = vrot.lane.b32.xlu0 %v7112, 32
      %v7703 = vpop.permute.xlu0 %7702
      %7704 = vrot.lane.b32.xlu0 %v7113, 32
      %v7705 = vpop.permute.xlu0 %7704
      %7706 = vrot.lane.b32.xlu0 %v7114, 32
      %v7707 = vpop.permute.xlu0 %7706
      %7708 = vrot.lane.b32.xlu0 %v7115, 32
      %v7709 = vpop.permute.xlu0 %7708
      %7710 = vrot.lane.b32.xlu0 %v7116, 32
      %v7711 = vpop.permute.xlu0 %7710
      %7712 = vrot.lane.b32.xlu0 %v7117, 32
      %v7713 = vpop.permute.xlu0 %7712
      %7714 = vrot.lane.b32.xlu0 %v7118, 32
      %v7715 = vpop.permute.xlu0 %7714
      %7716 = vrot.lane.b32.xlu0 %v7119, 32
      %v7717 = vpop.permute.xlu0 %7716
      %7718 = vrot.lane.b32.xlu0 %v7120, 32
      %v7719 = vpop.permute.xlu0 %7718
      %7720 = vrot.lane.b32.xlu0 %v7121, 32
      %v7721 = vpop.permute.xlu0 %7720
      %7722 = vrot.lane.b32.xlu0 %v7122, 32
      %v7723 = vpop.permute.xlu0 %7722
      %7724 = vrot.lane.b32.xlu0 %v7123, 32
      %v7725 = vpop.permute.xlu0 %7724
      %7726 = vrot.lane.b32.xlu0 %v7124, 32
      %v7727 = vpop.permute.xlu0 %7726
      %7728 = vrot.lane.b32.xlu0 %v7125, 32
      %v7729 = vpop.permute.xlu0 %7728
      %7730 = vrot.lane.b32.xlu0 %v7126, 32
      %v7731 = vpop.permute.xlu0 %7730
      %7732 = vrot.lane.b32.xlu0 %v7127, 32
      %v7733 = vpop.permute.xlu0 %7732
      %7734 = vrot.lane.b32.xlu0 %v7128, 32
      %v7735 = vpop.permute.xlu0 %7734
      %7736 = vrot.lane.b32.xlu0 %v7129, 32
      %v7737 = vpop.permute.xlu0 %7736
      %7802 = vrot.lane.b32.xlu0 %v7130, 40
      %v7803 = vpop.permute.xlu0 %7802
      %7804 = vrot.lane.b32.xlu0 %v7131, 40
      %v7805 = vpop.permute.xlu0 %7804
      %7806 = vrot.lane.b32.xlu0 %v7132, 40
      %v7807 = vpop.permute.xlu0 %7806
      %7808 = vrot.lane.b32.xlu0 %v7133, 40
      %v7809 = vpop.permute.xlu0 %7808
      %7810 = vrot.lane.b32.xlu0 %v7134, 40
      %v7811 = vpop.permute.xlu0 %7810
      %7812 = vrot.lane.b32.xlu0 %v7135, 40
      %v7813 = vpop.permute.xlu0 %7812
      %7814 = vrot.lane.b32.xlu0 %v7136, 40
      %v7815 = vpop.permute.xlu0 %7814
      %7816 = vrot.lane.b32.xlu0 %v7137, 40
      %v7817 = vpop.permute.xlu0 %7816
      %7818 = vrot.lane.b32.xlu0 %v7138, 40
      %v7819 = vpop.permute.xlu0 %7818
      %7820 = vrot.lane.b32.xlu0 %v7139, 40
      %v7821 = vpop.permute.xlu0 %7820
      %7822 = vrot.lane.b32.xlu0 %v7140, 40
      %v7823 = vpop.permute.xlu0 %7822
      %7824 = vrot.lane.b32.xlu0 %v7141, 40
      %v7825 = vpop.permute.xlu0 %7824
      %7826 = vrot.lane.b32.xlu0 %v7142, 40
      %v7827 = vpop.permute.xlu0 %7826
      %7828 = vrot.lane.b32.xlu0 %v7143, 40
      %v7829 = vpop.permute.xlu0 %7828
      %7830 = vrot.lane.b32.xlu0 %v7144, 40
      %v7831 = vpop.permute.xlu0 %7830
      %7832 = vrot.lane.b32.xlu0 %v7145, 40
      %v7833 = vpop.permute.xlu0 %7832
      %7834 = vrot.lane.b32.xlu0 %v7146, 40
      %v7835 = vpop.permute.xlu0 %7834
      %7836 = vrot.lane.b32.xlu0 %v7147, 40
      %v7837 = vpop.permute.xlu0 %7836
      %7838 = vrot.lane.b32.xlu0 %v7148, 40
      %v7839 = vpop.permute.xlu0 %7838
      %7840 = vrot.lane.b32.xlu0 %v7149, 40
      %v7841 = vpop.permute.xlu0 %7840
      %7842 = vrot.lane.b32.xlu0 %v7150, 40
      %v7843 = vpop.permute.xlu0 %7842
      %7844 = vrot.lane.b32.xlu0 %v7151, 40
      %v7845 = vpop.permute.xlu0 %7844
      %7846 = vrot.lane.b32.xlu0 %v7152, 40
      %v7847 = vpop.permute.xlu0 %7846
      %7848 = vrot.lane.b32.xlu0 %v7153, 40
      %v7849 = vpop.permute.xlu0 %7848
      %7850 = vrot.lane.b32.xlu0 %v7154, 40
      %v7851 = vpop.permute.xlu0 %7850
      %7852 = vrot.lane.b32.xlu0 %v7155, 40
      %v7853 = vpop.permute.xlu0 %7852
      %7854 = vrot.lane.b32.xlu0 %v7156, 40
      %v7855 = vpop.permute.xlu0 %7854
      %7856 = vrot.lane.b32.xlu0 %v7157, 40
      %v7857 = vpop.permute.xlu0 %7856
      %7858 = vrot.lane.b32.xlu0 %v7158, 40
      %v7859 = vpop.permute.xlu0 %7858
      %7860 = vrot.lane.b32.xlu0 %v7159, 40
      %v7861 = vpop.permute.xlu0 %7860
      %7862 = vrot.lane.b32.xlu0 %v7160, 40
      %v7863 = vpop.permute.xlu0 %7862
      %7864 = vrot.lane.b32.xlu0 %v7161, 40
      %v7865 = vpop.permute.xlu0 %7864
      %7930 = vrot.lane.b32.xlu0 %v7162, 48
      %v7931 = vpop.permute.xlu0 %7930
      %7932 = vrot.lane.b32.xlu0 %v7163, 48
      %v7933 = vpop.permute.xlu0 %7932
      %7934 = vrot.lane.b32.xlu0 %v7164, 48
      %v7935 = vpop.permute.xlu0 %7934
      %7936 = vrot.lane.b32.xlu0 %v7165, 48
      %v7937 = vpop.permute.xlu0 %7936
      %7938 = vrot.lane.b32.xlu0 %v7166, 48
      %v7939 = vpop.permute.xlu0 %7938
      %7940 = vrot.lane.b32.xlu0 %v7167, 48
      %v7941 = vpop.permute.xlu0 %7940
      %7942 = vrot.lane.b32.xlu0 %v7168, 48
      %v7943 = vpop.permute.xlu0 %7942
      %7944 = vrot.lane.b32.xlu0 %v7169, 48
      %v7945 = vpop.permute.xlu0 %7944
      %7946 = vrot.lane.b32.xlu0 %v7170, 48
      %v7947 = vpop.permute.xlu0 %7946
      %7948 = vrot.lane.b32.xlu0 %v7171, 48
      %v7949 = vpop.permute.xlu0 %7948
      %7950 = vrot.lane.b32.xlu0 %v7172, 48
      %v7951 = vpop.permute.xlu0 %7950
      %7952 = vrot.lane.b32.xlu0 %v7173, 48
      %v7953 = vpop.permute.xlu0 %7952
      %7954 = vrot.lane.b32.xlu0 %v7174, 48
      %v7955 = vpop.permute.xlu0 %7954
      %7956 = vrot.lane.b32.xlu0 %v7175, 48
      %v7957 = vpop.permute.xlu0 %7956
      %7958 = vrot.lane.b32.xlu0 %v7176, 48
      %v7959 = vpop.permute.xlu0 %7958
      %7960 = vrot.lane.b32.xlu0 %v7177, 48
      %v7961 = vpop.permute.xlu0 %7960
      %7962 = vrot.lane.b32.xlu0 %v7178, 48
      %v7963 = vpop.permute.xlu0 %7962
      %7964 = vrot.lane.b32.xlu0 %v7179, 48
      %v7965 = vpop.permute.xlu0 %7964
      %7966 = vrot.lane.b32.xlu0 %v7180, 48
      %v7967 = vpop.permute.xlu0 %7966
      %7968 = vrot.lane.b32.xlu0 %v7181, 48
      %v7969 = vpop.permute.xlu0 %7968
      %7970 = vrot.lane.b32.xlu0 %v7182, 48
      %v7971 = vpop.permute.xlu0 %7970
      %7972 = vrot.lane.b32.xlu0 %v7183, 48
      %v7973 = vpop.permute.xlu0 %7972
      %7974 = vrot.lane.b32.xlu0 %v7184, 48
      %v7975 = vpop.permute.xlu0 %7974
      %7976 = vrot.lane.b32.xlu0 %v7185, 48
      %v7977 = vpop.permute.xlu0 %7976
      %7978 = vrot.lane.b32.xlu0 %v7186, 48
      %v7979 = vpop.permute.xlu0 %7978
      %7980 = vrot.lane.b32.xlu0 %v7187, 48
      %v7981 = vpop.permute.xlu0 %7980
      %7982 = vrot.lane.b32.xlu0 %v7188, 48
      %v7983 = vpop.permute.xlu0 %7982
      %7984 = vrot.lane.b32.xlu0 %v7189, 48
      %v7985 = vpop.permute.xlu0 %7984
      %7986 = vrot.lane.b32.xlu0 %v7190, 48
      %v7987 = vpop.permute.xlu0 %7986
      %7988 = vrot.lane.b32.xlu0 %v7191, 48
      %v7989 = vpop.permute.xlu0 %7988
      %7990 = vrot.lane.b32.xlu0 %v7192, 48
      %v7991 = vpop.permute.xlu0 %7990
      %7992 = vrot.lane.b32.xlu0 %v7193, 48
      %v7993 = vpop.permute.xlu0 %7992
      %8058 = vrot.lane.b32.xlu0 %v7194, 56
      %v8059 = vpop.permute.xlu0 %8058
      %8060 = vrot.lane.b32.xlu0 %v7195, 56
      %v8061 = vpop.permute.xlu0 %8060
      %8062 = vrot.lane.b32.xlu0 %v7196, 56
      %v8063 = vpop.permute.xlu0 %8062
      %8064 = vrot.lane.b32.xlu0 %v7197, 56
      %v8065 = vpop.permute.xlu0 %8064
      %8066 = vrot.lane.b32.xlu0 %v7198, 56
      %v8067 = vpop.permute.xlu0 %8066
      %8068 = vrot.lane.b32.xlu0 %v7199, 56
      %v8069 = vpop.permute.xlu0 %8068
      %8070 = vrot.lane.b32.xlu0 %v7200, 56
      %v8071 = vpop.permute.xlu0 %8070
      %8072 = vrot.lane.b32.xlu0 %v7201, 56
      %v8073 = vpop.permute.xlu0 %8072
      %8074 = vrot.lane.b32.xlu0 %v7202, 56
      %v8075 = vpop.permute.xlu0 %8074
      %8076 = vrot.lane.b32.xlu0 %v7203, 56
      %v8077 = vpop.permute.xlu0 %8076
      %8078 = vrot.lane.b32.xlu0 %v7204, 56
      %v8079 = vpop.permute.xlu0 %8078
      %8080 = vrot.lane.b32.xlu0 %v7205, 56
      %v8081 = vpop.permute.xlu0 %8080
      %8082 = vrot.lane.b32.xlu0 %v7206, 56
      %v8083 = vpop.permute.xlu0 %8082
      %8084 = vrot.lane.b32.xlu0 %v7207, 56
      %v8085 = vpop.permute.xlu0 %8084
      %8086 = vrot.lane.b32.xlu0 %v7208, 56
      %v8087 = vpop.permute.xlu0 %8086
      %8088 = vrot.lane.b32.xlu0 %v7209, 56
      %v8089 = vpop.permute.xlu0 %8088
      %8090 = vrot.lane.b32.xlu0 %v7210, 56
      %v8091 = vpop.permute.xlu0 %8090
      %8092 = vrot.lane.b32.xlu0 %v7211, 56
      %v8093 = vpop.permute.xlu0 %8092
      %8094 = vrot.lane.b32.xlu0 %v7212, 56
      %v8095 = vpop.permute.xlu0 %8094
      %8096 = vrot.lane.b32.xlu0 %v7213, 56
      %v8097 = vpop.permute.xlu0 %8096
      %8098 = vrot.lane.b32.xlu0 %v7214, 56
      %v8099 = vpop.permute.xlu0 %8098
      %8100 = vrot.lane.b32.xlu0 %v7215, 56
      %v8101 = vpop.permute.xlu0 %8100
      %8102 = vrot.lane.b32.xlu0 %v7216, 56
      %v8103 = vpop.permute.xlu0 %8102
      %8104 = vrot.lane.b32.xlu0 %v7217, 56
      %v8105 = vpop.permute.xlu0 %8104
      %8106 = vrot.lane.b32.xlu0 %v7218, 56
      %v8107 = vpop.permute.xlu0 %8106
      %8108 = vrot.lane.b32.xlu0 %v7219, 56
      %v8109 = vpop.permute.xlu0 %8108
      %8110 = vrot.lane.b32.xlu0 %v7220, 56
      %v8111 = vpop.permute.xlu0 %8110
      %8112 = vrot.lane.b32.xlu0 %v7221, 56
      %v8113 = vpop.permute.xlu0 %8112
      %8114 = vrot.lane.b32.xlu0 %v7222, 56
      %v8115 = vpop.permute.xlu0 %8114
      %8116 = vrot.lane.b32.xlu0 %v7223, 56
      %v8117 = vpop.permute.xlu0 %8116
      %8118 = vrot.lane.b32.xlu0 %v7224, 56
      %v8119 = vpop.permute.xlu0 %8118
      %8120 = vrot.lane.b32.xlu0 %v7225, 56
      %v8121 = vpop.permute.xlu0 %8120
      %8186 = vrot.lane.b32.xlu0 %v7226, 64
      %v8187 = vpop.permute.xlu0 %8186
      %8188 = vrot.lane.b32.xlu0 %v7227, 64
      %v8189 = vpop.permute.xlu0 %8188
      %8190 = vrot.lane.b32.xlu0 %v7228, 64
      %v8191 = vpop.permute.xlu0 %8190
      %8192 = vrot.lane.b32.xlu0 %v7229, 64
      %v8193 = vpop.permute.xlu0 %8192
      %8194 = vrot.lane.b32.xlu0 %v7230, 64
      %v8195 = vpop.permute.xlu0 %8194
      %8196 = vrot.lane.b32.xlu0 %v7231, 64
      %v8197 = vpop.permute.xlu0 %8196
      %8198 = vrot.lane.b32.xlu0 %v7232, 64
      %v8199 = vpop.permute.xlu0 %8198
      %8200 = vrot.lane.b32.xlu0 %v7233, 64
      %v8201 = vpop.permute.xlu0 %8200
      %8202 = vrot.lane.b32.xlu0 %v7234, 64
      %v8203 = vpop.permute.xlu0 %8202
      %8204 = vrot.lane.b32.xlu0 %v7235, 64
      %v8205 = vpop.permute.xlu0 %8204
      %8206 = vrot.lane.b32.xlu0 %v7236, 64
      %v8207 = vpop.permute.xlu0 %8206
      %8208 = vrot.lane.b32.xlu0 %v7237, 64
      %v8209 = vpop.permute.xlu0 %8208
      %8210 = vrot.lane.b32.xlu0 %v7238, 64
      %v8211 = vpop.permute.xlu0 %8210
      %8212 = vrot.lane.b32.xlu0 %v7239, 64
      %v8213 = vpop.permute.xlu0 %8212
      %8214 = vrot.lane.b32.xlu0 %v7240, 64
      %v8215 = vpop.permute.xlu0 %8214
      %8216 = vrot.lane.b32.xlu0 %v7241, 64
      %v8217 = vpop.permute.xlu0 %8216
      %8218 = vrot.lane.b32.xlu0 %v7242, 64
      %v8219 = vpop.permute.xlu0 %8218
      %8220 = vrot.lane.b32.xlu0 %v7243, 64
      %v8221 = vpop.permute.xlu0 %8220
      %8222 = vrot.lane.b32.xlu0 %v7244, 64
      %v8223 = vpop.permute.xlu0 %8222
      %8224 = vrot.lane.b32.xlu0 %v7245, 64
      %v8225 = vpop.permute.xlu0 %8224
      %8226 = vrot.lane.b32.xlu0 %v7246, 64
      %v8227 = vpop.permute.xlu0 %8226
      %8228 = vrot.lane.b32.xlu0 %v7247, 64
      %v8229 = vpop.permute.xlu0 %8228
      %8230 = vrot.lane.b32.xlu0 %v7248, 64
      %v8231 = vpop.permute.xlu0 %8230
      %8232 = vrot.lane.b32.xlu0 %v7249, 64
      %v8233 = vpop.permute.xlu0 %8232
      %8234 = vrot.lane.b32.xlu0 %v7250, 64
      %v8235 = vpop.permute.xlu0 %8234
      %8236 = vrot.lane.b32.xlu0 %v7251, 64
      %v8237 = vpop.permute.xlu0 %8236
      %8238 = vrot.lane.b32.xlu0 %v7252, 64
      %v8239 = vpop.permute.xlu0 %8238
      %8240 = vrot.lane.b32.xlu0 %v7253, 64
      %v8241 = vpop.permute.xlu0 %8240
      %8242 = vrot.lane.b32.xlu0 %v7254, 64
      %v8243 = vpop.permute.xlu0 %8242
      %8244 = vrot.lane.b32.xlu0 %v7255, 64
      %v8245 = vpop.permute.xlu0 %8244
      %8246 = vrot.lane.b32.xlu0 %v7256, 64
      %v8247 = vpop.permute.xlu0 %8246
      %8248 = vrot.lane.b32.xlu0 %v7257, 64
      %v8249 = vpop.permute.xlu0 %8248
      %v8282 = vsel %vm473, %v6970, %v7291
      %v8283 = vsel %vm473, %v6971, %v7293
      %v8284 = vsel %vm473, %v6972, %v7295
      %v8285 = vsel %vm473, %v6973, %v7297
      %v8286 = vsel %vm473, %v6974, %v7299
      %v8287 = vsel %vm473, %v6975, %v7301
      %v8288 = vsel %vm473, %v6976, %v7303
      %v8289 = vsel %vm473, %v6977, %v7305
      %v8290 = vsel %vm473, %v6978, %v7307
      %v8291 = vsel %vm473, %v6979, %v7309
      %v8292 = vsel %vm473, %v6980, %v7311
      %v8293 = vsel %vm473, %v6981, %v7313
      %v8294 = vsel %vm473, %v6982, %v7315
      %v8295 = vsel %vm473, %v6983, %v7317
      %v8296 = vsel %vm473, %v6984, %v7319
      %v8297 = vsel %vm473, %v6985, %v7321
      %v8298 = vsel %vm473, %v6986, %v7323
      %v8299 = vsel %vm473, %v6987, %v7325
      %v8300 = vsel %vm473, %v6988, %v7327
      %v8301 = vsel %vm473, %v6989, %v7329
      %v8302 = vsel %vm473, %v6990, %v7331
      %v8303 = vsel %vm473, %v6991, %v7333
      %v8304 = vsel %vm473, %v6992, %v7335
      %v8305 = vsel %vm473, %v6993, %v7337
      %v8306 = vsel %vm473, %v6994, %v7339
      %v8307 = vsel %vm473, %v6995, %v7341
      %v8308 = vsel %vm473, %v6996, %v7343
      %v8309 = vsel %vm473, %v6997, %v7345
      %v8310 = vsel %vm473, %v6998, %v7347
      %v8311 = vsel %vm473, %v6999, %v7349
      %v8312 = vsel %vm473, %v7000, %v7351
      %v8313 = vsel %vm473, %v7001, %v7353
      %v8314 = vsel %vm1957, %v8282, %v7419
      %v8315 = vsel %vm1957, %v8283, %v7421
      %v8316 = vsel %vm1957, %v8284, %v7423
      %v8317 = vsel %vm1957, %v8285, %v7425
      %v8318 = vsel %vm1957, %v8286, %v7427
      %v8319 = vsel %vm1957, %v8287, %v7429
      %v8320 = vsel %vm1957, %v8288, %v7431
      %v8321 = vsel %vm1957, %v8289, %v7433
      %v8322 = vsel %vm1957, %v8290, %v7435
      %v8323 = vsel %vm1957, %v8291, %v7437
      %v8324 = vsel %vm1957, %v8292, %v7439
      %v8325 = vsel %vm1957, %v8293, %v7441
      %v8326 = vsel %vm1957, %v8294, %v7443
      %v8327 = vsel %vm1957, %v8295, %v7445
      %v8328 = vsel %vm1957, %v8296, %v7447
      %v8329 = vsel %vm1957, %v8297, %v7449
      %v8330 = vsel %vm1957, %v8298, %v7451
      %v8331 = vsel %vm1957, %v8299, %v7453
      %v8332 = vsel %vm1957, %v8300, %v7455
      %v8333 = vsel %vm1957, %v8301, %v7457
      %v8334 = vsel %vm1957, %v8302, %v7459
      %v8335 = vsel %vm1957, %v8303, %v7461
      %v8336 = vsel %vm1957, %v8304, %v7463
      %v8337 = vsel %vm1957, %v8305, %v7465
      %v8338 = vsel %vm1957, %v8306, %v7467
      %v8339 = vsel %vm1957, %v8307, %v7469
      %v8340 = vsel %vm1957, %v8308, %v7471
      %v8341 = vsel %vm1957, %v8309, %v7473
      %v8342 = vsel %vm1957, %v8310, %v7475
      %v8343 = vsel %vm1957, %v8311, %v7477
      %v8344 = vsel %vm1957, %v8312, %v7479
      %v8345 = vsel %vm1957, %v8313, %v7481
      %v8346 = vsel %vm1990, %v8314, %v7547
      %v8347 = vsel %vm1990, %v8315, %v7549
      %v8348 = vsel %vm1990, %v8316, %v7551
      %v8349 = vsel %vm1990, %v8317, %v7553
      %v8350 = vsel %vm1990, %v8318, %v7555
      %v8351 = vsel %vm1990, %v8319, %v7557
      %v8352 = vsel %vm1990, %v8320, %v7559
      %v8353 = vsel %vm1990, %v8321, %v7561
      %v8354 = vsel %vm1990, %v8322, %v7563
      %v8355 = vsel %vm1990, %v8323, %v7565
      %v8356 = vsel %vm1990, %v8324, %v7567
      %v8357 = vsel %vm1990, %v8325, %v7569
      %v8358 = vsel %vm1990, %v8326, %v7571
      %v8359 = vsel %vm1990, %v8327, %v7573
      %v8360 = vsel %vm1990, %v8328, %v7575
      %v8361 = vsel %vm1990, %v8329, %v7577
      %v8362 = vsel %vm1990, %v8330, %v7579
      %v8363 = vsel %vm1990, %v8331, %v7581
      %v8364 = vsel %vm1990, %v8332, %v7583
      %v8365 = vsel %vm1990, %v8333, %v7585
      %v8366 = vsel %vm1990, %v8334, %v7587
      %v8367 = vsel %vm1990, %v8335, %v7589
      %v8368 = vsel %vm1990, %v8336, %v7591
      %v8369 = vsel %vm1990, %v8337, %v7593
      %v8370 = vsel %vm1990, %v8338, %v7595
      %v8371 = vsel %vm1990, %v8339, %v7597
      %v8372 = vsel %vm1990, %v8340, %v7599
      %v8373 = vsel %vm1990, %v8341, %v7601
      %v8374 = vsel %vm1990, %v8342, %v7603
      %v8375 = vsel %vm1990, %v8343, %v7605
      %v8376 = vsel %vm1990, %v8344, %v7607
      %v8377 = vsel %vm1990, %v8345, %v7609
      %v8378 = vsel %vm2023, %v8346, %v7675
      %v8379 = vsel %vm2023, %v8347, %v7677
      %v8380 = vsel %vm2023, %v8348, %v7679
      %v8381 = vsel %vm2023, %v8349, %v7681
      %v8382 = vsel %vm2023, %v8350, %v7683
      %v8383 = vsel %vm2023, %v8351, %v7685
      %v8384 = vsel %vm2023, %v8352, %v7687
      %v8385 = vsel %vm2023, %v8353, %v7689
      %v8386 = vsel %vm2023, %v8354, %v7691
      %v8387 = vsel %vm2023, %v8355, %v7693
      %v8388 = vsel %vm2023, %v8356, %v7695
      %v8389 = vsel %vm2023, %v8357, %v7697
      %v8390 = vsel %vm2023, %v8358, %v7699
      %v8391 = vsel %vm2023, %v8359, %v7701
      %v8392 = vsel %vm2023, %v8360, %v7703
      %v8393 = vsel %vm2023, %v8361, %v7705
      %v8394 = vsel %vm2023, %v8362, %v7707
      %v8395 = vsel %vm2023, %v8363, %v7709
      %v8396 = vsel %vm2023, %v8364, %v7711
      %v8397 = vsel %vm2023, %v8365, %v7713
      %v8398 = vsel %vm2023, %v8366, %v7715
      %v8399 = vsel %vm2023, %v8367, %v7717
      %v8400 = vsel %vm2023, %v8368, %v7719
      %v8401 = vsel %vm2023, %v8369, %v7721
      %v8402 = vsel %vm2023, %v8370, %v7723
      %v8403 = vsel %vm2023, %v8371, %v7725
      %v8404 = vsel %vm2023, %v8372, %v7727
      %v8405 = vsel %vm2023, %v8373, %v7729
      %v8406 = vsel %vm2023, %v8374, %v7731
      %v8407 = vsel %vm2023, %v8375, %v7733
      %v8408 = vsel %vm2023, %v8376, %v7735
      %v8409 = vsel %vm2023, %v8377, %v7737
      %v8410 = vsel %vm2056, %v8378, %v7803
      %v8411 = vsel %vm2056, %v8379, %v7805
      %v8412 = vsel %vm2056, %v8380, %v7807
      %v8413 = vsel %vm2056, %v8381, %v7809
      %v8414 = vsel %vm2056, %v8382, %v7811
      %v8415 = vsel %vm2056, %v8383, %v7813
      %v8416 = vsel %vm2056, %v8384, %v7815
      %v8417 = vsel %vm2056, %v8385, %v7817
      %v8418 = vsel %vm2056, %v8386, %v7819
      %v8419 = vsel %vm2056, %v8387, %v7821
      %v8420 = vsel %vm2056, %v8388, %v7823
      %v8421 = vsel %vm2056, %v8389, %v7825
      %v8422 = vsel %vm2056, %v8390, %v7827
      %v8423 = vsel %vm2056, %v8391, %v7829
      %v8424 = vsel %vm2056, %v8392, %v7831
      %v8425 = vsel %vm2056, %v8393, %v7833
      %v8426 = vsel %vm2056, %v8394, %v7835
      %v8427 = vsel %vm2056, %v8395, %v7837
      %v8428 = vsel %vm2056, %v8396, %v7839
      %v8429 = vsel %vm2056, %v8397, %v7841
      %v8430 = vsel %vm2056, %v8398, %v7843
      %v8431 = vsel %vm2056, %v8399, %v7845
      %v8432 = vsel %vm2056, %v8400, %v7847
      %v8433 = vsel %vm2056, %v8401, %v7849
      %v8434 = vsel %vm2056, %v8402, %v7851
      %v8435 = vsel %vm2056, %v8403, %v7853
      %v8436 = vsel %vm2056, %v8404, %v7855
      %v8437 = vsel %vm2056, %v8405, %v7857
      %v8438 = vsel %vm2056, %v8406, %v7859
      %v8439 = vsel %vm2056, %v8407, %v7861
      %v8440 = vsel %vm2056, %v8408, %v7863
      %v8441 = vsel %vm2056, %v8409, %v7865
      %v8442 = vsel %vm2089, %v8410, %v7931
      %v8443 = vsel %vm2089, %v8411, %v7933
      %v8444 = vsel %vm2089, %v8412, %v7935
      %v8445 = vsel %vm2089, %v8413, %v7937
      %v8446 = vsel %vm2089, %v8414, %v7939
      %v8447 = vsel %vm2089, %v8415, %v7941
      %v8448 = vsel %vm2089, %v8416, %v7943
      %v8449 = vsel %vm2089, %v8417, %v7945
      %v8450 = vsel %vm2089, %v8418, %v7947
      %v8451 = vsel %vm2089, %v8419, %v7949
      %v8452 = vsel %vm2089, %v8420, %v7951
      %v8453 = vsel %vm2089, %v8421, %v7953
      %v8454 = vsel %vm2089, %v8422, %v7955
      %v8455 = vsel %vm2089, %v8423, %v7957
      %v8456 = vsel %vm2089, %v8424, %v7959
      %v8457 = vsel %vm2089, %v8425, %v7961
      %v8458 = vsel %vm2089, %v8426, %v7963
      %v8459 = vsel %vm2089, %v8427, %v7965
      %v8460 = vsel %vm2089, %v8428, %v7967
      %v8461 = vsel %vm2089, %v8429, %v7969
      %v8462 = vsel %vm2089, %v8430, %v7971
      %v8463 = vsel %vm2089, %v8431, %v7973
      %v8464 = vsel %vm2089, %v8432, %v7975
      %v8465 = vsel %vm2089, %v8433, %v7977
      %v8466 = vsel %vm2089, %v8434, %v7979
      %v8467 = vsel %vm2089, %v8435, %v7981
      %v8468 = vsel %vm2089, %v8436, %v7983
      %v8469 = vsel %vm2089, %v8437, %v7985
      %v8470 = vsel %vm2089, %v8438, %v7987
      %v8471 = vsel %vm2089, %v8439, %v7989
      %v8472 = vsel %vm2089, %v8440, %v7991
      %v8473 = vsel %vm2089, %v8441, %v7993
      %v8474 = vsel %vm2122, %v8442, %v8059
      %v8475 = vsel %vm2122, %v8443, %v8061
      %v8476 = vsel %vm2122, %v8444, %v8063
      %v8477 = vsel %vm2122, %v8445, %v8065
      %v8478 = vsel %vm2122, %v8446, %v8067
      %v8479 = vsel %vm2122, %v8447, %v8069
      %v8480 = vsel %vm2122, %v8448, %v8071
      %v8481 = vsel %vm2122, %v8449, %v8073
      %v8482 = vsel %vm2122, %v8450, %v8075
      %v8483 = vsel %vm2122, %v8451, %v8077
      %v8484 = vsel %vm2122, %v8452, %v8079
      %v8485 = vsel %vm2122, %v8453, %v8081
      %v8486 = vsel %vm2122, %v8454, %v8083
      %v8487 = vsel %vm2122, %v8455, %v8085
      %v8488 = vsel %vm2122, %v8456, %v8087
      %v8489 = vsel %vm2122, %v8457, %v8089
      %v8490 = vsel %vm2122, %v8458, %v8091
      %v8491 = vsel %vm2122, %v8459, %v8093
      %v8492 = vsel %vm2122, %v8460, %v8095
      %v8493 = vsel %vm2122, %v8461, %v8097
      %v8494 = vsel %vm2122, %v8462, %v8099
      %v8495 = vsel %vm2122, %v8463, %v8101
      %v8496 = vsel %vm2122, %v8464, %v8103
      %v8497 = vsel %vm2122, %v8465, %v8105
      %v8498 = vsel %vm2122, %v8466, %v8107
      %v8499 = vsel %vm2122, %v8467, %v8109
      %v8500 = vsel %vm2122, %v8468, %v8111
      %v8501 = vsel %vm2122, %v8469, %v8113
      %v8502 = vsel %vm2122, %v8470, %v8115
      %v8503 = vsel %vm2122, %v8471, %v8117
      %v8504 = vsel %vm2122, %v8472, %v8119
      %v8505 = vsel %vm2122, %v8473, %v8121
      %v8506 = vsel %vm2155, %v8474, %v8187
      %v8507 = vsel %vm2155, %v8475, %v8189
      %v8508 = vsel %vm2155, %v8476, %v8191
      %v8509 = vsel %vm2155, %v8477, %v8193
      %v8510 = vsel %vm2155, %v8478, %v8195
      %v8511 = vsel %vm2155, %v8479, %v8197
      %v8512 = vsel %vm2155, %v8480, %v8199
      %v8513 = vsel %vm2155, %v8481, %v8201
      %v8514 = vsel %vm2155, %v8482, %v8203
      %v8515 = vsel %vm2155, %v8483, %v8205
      %v8516 = vsel %vm2155, %v8484, %v8207
      %v8517 = vsel %vm2155, %v8485, %v8209
      %v8518 = vsel %vm2155, %v8486, %v8211
      %v8519 = vsel %vm2155, %v8487, %v8213
      %v8520 = vsel %vm2155, %v8488, %v8215
      %v8521 = vsel %vm2155, %v8489, %v8217
      %v8522 = vsel %vm2155, %v8490, %v8219
      %v8523 = vsel %vm2155, %v8491, %v8221
      %v8524 = vsel %vm2155, %v8492, %v8223
      %v8525 = vsel %vm2155, %v8493, %v8225
      %v8526 = vsel %vm2155, %v8494, %v8227
      %v8527 = vsel %vm2155, %v8495, %v8229
      %v8528 = vsel %vm2155, %v8496, %v8231
      %v8529 = vsel %vm2155, %v8497, %v8233
      %v8530 = vsel %vm2155, %v8498, %v8235
      %v8531 = vsel %vm2155, %v8499, %v8237
      %v8532 = vsel %vm2155, %v8500, %v8239
      %v8533 = vsel %vm2155, %v8501, %v8241
      %v8534 = vsel %vm2155, %v8502, %v8243
      %v8535 = vsel %vm2155, %v8503, %v8245
      %v8536 = vsel %vm2155, %v8504, %v8247
      %v8537 = vsel %vm2155, %v8505, %v8249
      %v8538 = vld [vmem:[%s7] sm:$0xff]
      %v8539 = vld [vmem:[%s7 + $0x8] sm:$0xff]
      %v8540 = vld [vmem:[%s7 + $0x10] sm:$0xff]
      %v8541 = vld [vmem:[%s7 + $0x18] sm:$0xff]
      %v8542 = vld [vmem:[%s7 + $0x20] sm:$0xff]
      %v8543 = vld [vmem:[%s7 + $0x28] sm:$0xff]
      %v8544 = vld [vmem:[%s7 + $0x30] sm:$0xff]
      %v8545 = vld [vmem:[%s7 + $0x38] sm:$0xff]
      %v8546 = vld [vmem:[%s7 + $0x40] sm:$0xff]
      %v8547 = vld [vmem:[%s8] sm:$0x1]
      %v8549 = vlaneseq
      %v8550 = vshrl.u32 %v8549, 7
      %v8551 = vsub.s32 0, %v8550
      %v8552 = vrot.slane %v8547, %v8551
      %v8555 = vsel %vm2204, %v8506, 0
      %v8558 = vsel %vm2204, %v8507, 0
      %v8561 = vsel %vm2204, %v8508, 0
      %v8564 = vsel %vm2204, %v8509, 0
      %v8567 = vsel %vm2204, %v8510, 0
      %v8570 = vsel %vm2204, %v8511, 0
      %v8573 = vsel %vm2204, %v8512, 0
      %v8576 = vsel %vm2204, %v8513, 0
      %v8579 = vsel %vm2204, %v8514, 0
      %v8582 = vsel %vm2204, %v8515, 0
      %v8585 = vsel %vm2204, %v8516, 0
      %v8588 = vsel %vm2204, %v8517, 0
      %v8591 = vsel %vm2204, %v8518, 0
      %v8594 = vsel %vm2204, %v8519, 0
      %v8597 = vsel %vm2204, %v8520, 0
      %v8600 = vsel %vm2204, %v8521, 0
      %v8603 = vsel %vm2204, %v8522, 0
      %v8606 = vsel %vm2204, %v8523, 0
      %v8609 = vsel %vm2204, %v8524, 0
      %v8612 = vsel %vm2204, %v8525, 0
      %v8615 = vsel %vm2204, %v8526, 0
      %v8618 = vsel %vm2204, %v8527, 0
      %v8621 = vsel %vm2204, %v8528, 0
      %v8624 = vsel %vm2204, %v8529, 0
      %v8627 = vsel %vm2204, %v8530, 0
      %v8630 = vsel %vm2204, %v8531, 0
      %v8633 = vsel %vm2204, %v8532, 0
      %v8636 = vsel %vm2204, %v8533, 0
      %v8639 = vsel %vm2204, %v8534, 0
      %v8642 = vsel %vm2204, %v8535, 0
      %v8645 = vsel %vm2204, %v8536, 0
      %v8648 = vsel %vm2204, %v8537, 0
      %8650 = vmatprep.subr.mxu0 0.0
      %8651 = vmatpush1.msra.mxu0 %v8538
      %8652 = vmatprep.subr.mxu0 0.0
      %8653 = vmatpush1.msra.mxu0 %v8539
      %8654 = vmatprep.subr.mxu0 0.0
      %8655 = vmatpush1.msra.mxu0 %v8540
      %8656 = vmatprep.subr.mxu0 0.0
      %8657 = vmatpush1.msra.mxu0 %v8541
      %8658 = vmatprep.subr.mxu0 0.0
      %8659 = vmatpush1.msra.mxu0 %v8542
      %8660 = vmatprep.subr.mxu0 0.0
      %8661 = vmatpush1.msra.mxu0 %v8543
      %8662 = vmatprep.subr.mxu0 0.0
      %8663 = vmatpush1.msra.mxu0 %v8544
      %8664 = vmatprep.subr.mxu0 0.0
      %8665 = vmatpush1.msra.mxu0 %v8545
      %8666 = vmatprep.subr.mxu0 0.0
      %8667 = vmatpush1.msra.mxu0 %v8546
      %8668 = vmatprep.subr.mxu0 0.0
      %8669 = vmatpush1.msra.mxu0 0.0
      %8670 = vmatprep.subr.mxu0 0.0
      %8671 = vmatpush1.msra.mxu0 0.0
      %8672 = vmatprep.subr.mxu0 0.0
      %8673 = vmatpush1.msra.mxu0 0.0
      %8674 = vmatprep.subr.mxu0 0.0
      %8675 = vmatpush1.msra.mxu0 0.0
      %8676 = vmatprep.subr.mxu0 0.0
      %8677 = vmatpush1.msra.mxu0 0.0
      %8678 = vmatprep.subr.mxu0 0.0
      %8679 = vmatpush1.msra.mxu0 0.0
      %8680 = vmatprep.subr.mxu0 0.0
      %8681 = vmatpush1.msra.mxu0 0.0
      %8682 = vmatprep.subr.mxu0 0.0
      %8683 = vmatpush1.msra.mxu0 0.0
      %8684 = vmatprep.subr.mxu0 0.0
      %8685 = vmatpush1.msra.mxu0 0.0
      %8686 = vmatprep.subr.mxu0 0.0
      %8687 = vmatpush1.msra.mxu0 0.0
      %8688 = vmatprep.subr.mxu0 0.0
      %8689 = vmatpush1.msra.mxu0 0.0
      %8690 = vmatprep.subr.mxu0 0.0
      %8691 = vmatpush1.msra.mxu0 0.0
      %8692 = vmatprep.subr.mxu0 0.0
      %8693 = vmatpush1.msra.mxu0 0.0
      %8694 = vmatprep.subr.mxu0 0.0
      %8695 = vmatpush1.msra.mxu0 0.0
      %8696 = vmatprep.subr.mxu0 0.0
      %8697 = vmatpush1.msra.mxu0 0.0
      %8698 = vmatprep.subr.mxu0 0.0
      %8699 = vmatpush1.msra.mxu0 0.0
      %8700 = vmatprep.subr.mxu0 0.0
      %8701 = vmatpush1.msra.mxu0 0.0
      %8702 = vmatprep.subr.mxu0 0.0
      %8703 = vmatpush1.msra.mxu0 0.0
      %8704 = vmatprep.subr.mxu0 0.0
      %8705 = vmatpush1.msra.mxu0 0.0
      %8706 = vmatprep.subr.mxu0 0.0
      %8707 = vmatpush1.msra.mxu0 0.0
      %8708 = vmatprep.subr.mxu0 0.0
      %8709 = vmatpush1.msra.mxu0 0.0
      %8710 = vmatprep.subr.mxu0 0.0
      %8711 = vmatpush1.msra.mxu0 0.0
      %8712 = vmatprep.subr.mxu0 0.0
      %8713 = vmatpush1.msra.mxu0 0.0
      %8714 = vmatprep.mubr.f32.mxu0 0.0
      %8715 = vmatmul.mubr.f32.gmra.mrb[0].mxu0 %v8555
      %v8716 = vpop.f32.mrb[0].mxu0
      %v8717 = vadd.f32 %v8552, %v8716
      %v8718 = vpop.f32.mrb[0].mxu0
      %8719 = vmatprep.mubr.f32.mxu0 0.0
      %8720 = vmatmul.mubr.f32.gmra.mrb[0].mxu0 %v8558
      %v8721 = vpop.f32.mrb[0].mxu0
      %v8722 = vadd.f32 %v8552, %v8721
      %v8723 = vpop.f32.mrb[0].mxu0
      %8724 = vmatprep.mubr.f32.mxu0 0.0
      %8725 = vmatmul.mubr.f32.gmra.mrb[0].mxu0 %v8561
      %v8726 = vpop.f32.mrb[0].mxu0
      %v8727 = vadd.f32 %v8552, %v8726
      %v8728 = vpop.f32.mrb[0].mxu0
      %8729 = vmatprep.mubr.f32.mxu0 0.0
      %8730 = vmatmul.mubr.f32.gmra.mrb[0].mxu0 %v8564
      %v8731 = vpop.f32.mrb[0].mxu0
      %v8732 = vadd.f32 %v8552, %v8731
      %v8733 = vpop.f32.mrb[0].mxu0
      %8734 = vmatprep.mubr.f32.mxu0 0.0
      %8735 = vmatmul.mubr.f32.gmra.mrb[0].mxu0 %v8567
      %v8736 = vpop.f32.mrb[0].mxu0
      %v8737 = vadd.f32 %v8552, %v8736
      %v8738 = vpop.f32.mrb[0].mxu0
      %8739 = vmatprep.mubr.f32.mxu0 0.0
      %8740 = vmatmul.mubr.f32.gmra.mrb[0].mxu0 %v8570
      %v8741 = vpop.f32.mrb[0].mxu0
      %v8742 = vadd.f32 %v8552, %v8741
      %v8743 = vpop.f32.mrb[0].mxu0
      %8744 = vmatprep.mubr.f32.mxu0 0.0
      %8745 = vmatmul.mubr.f32.gmra.mrb[0].mxu0 %v8573
      %v8746 = vpop.f32.mrb[0].mxu0
      %v8747 = vadd.f32 %v8552, %v8746
      %v8748 = vpop.f32.mrb[0].mxu0
      %8749 = vmatprep.mubr.f32.mxu0 0.0
      %8750 = vmatmul.mubr.f32.gmra.mrb[0].mxu0 %v8576
      %v8751 = vpop.f32.mrb[0].mxu0
      %v8752 = vadd.f32 %v8552, %v8751
      %v8753 = vpop.f32.mrb[0].mxu0
      %8754 = vmatprep.mubr.f32.mxu0 0.0
      %8755 = vmatmul.mubr.f32.gmra.mrb[0].mxu0 %v8579
      %v8756 = vpop.f32.mrb[0].mxu0
      %v8757 = vadd.f32 %v8552, %v8756
      %v8758 = vpop.f32.mrb[0].mxu0
      %8759 = vmatprep.mubr.f32.mxu0 0.0
      %8760 = vmatmul.mubr.f32.gmra.mrb[0].mxu0 %v8582
      %v8761 = vpop.f32.mrb[0].mxu0
      %v8762 = vadd.f32 %v8552, %v8761
      %v8763 = vpop.f32.mrb[0].mxu0
      %8764 = vmatprep.mubr.f32.mxu0 0.0
      %8765 = vmatmul.mubr.f32.gmra.mrb[0].mxu0 %v8585
      %v8766 = vpop.f32.mrb[0].mxu0
      %v8767 = vadd.f32 %v8552, %v8766
      %v8768 = vpop.f32.mrb[0].mxu0
      %8769 = vmatprep.mubr.f32.mxu0 0.0
      %8770 = vmatmul.mubr.f32.gmra.mrb[0].mxu0 %v8588
      %v8771 = vpop.f32.mrb[0].mxu0
      %v8772 = vadd.f32 %v8552, %v8771
      %v8773 = vpop.f32.mrb[0].mxu0
      %8774 = vmatprep.mubr.f32.mxu0 0.0
      %8775 = vmatmul.mubr.f32.gmra.mrb[0].mxu0 %v8591
      %v8776 = vpop.f32.mrb[0].mxu0
      %v8777 = vadd.f32 %v8552, %v8776
      %v8778 = vpop.f32.mrb[0].mxu0
      %8779 = vmatprep.mubr.f32.mxu0 0.0
      %8780 = vmatmul.mubr.f32.gmra.mrb[0].mxu0 %v8594
      %v8781 = vpop.f32.mrb[0].mxu0
      %v8782 = vadd.f32 %v8552, %v8781
      %v8783 = vpop.f32.mrb[0].mxu0
      %8784 = vmatprep.mubr.f32.mxu0 0.0
      %8785 = vmatmul.mubr.f32.gmra.mrb[0].mxu0 %v8597
      %v8786 = vpop.f32.mrb[0].mxu0
      %v8787 = vadd.f32 %v8552, %v8786
      %v8788 = vpop.f32.mrb[0].mxu0
      %8789 = vmatprep.mubr.f32.mxu0 0.0
      %8790 = vmatmul.mubr.f32.gmra.mrb[0].mxu0 %v8600
      %v8791 = vpop.f32.mrb[0].mxu0
      %v8792 = vadd.f32 %v8552, %v8791
      %v8793 = vpop.f32.mrb[0].mxu0
      %8794 = vmatprep.mubr.f32.mxu0 0.0
      %8795 = vmatmul.mubr.f32.gmra.mrb[0].mxu0 %v8603
      %v8796 = vpop.f32.mrb[0].mxu0
      %v8797 = vadd.f32 %v8552, %v8796
      %v8798 = vpop.f32.mrb[0].mxu0
      %8799 = vmatprep.mubr.f32.mxu0 0.0
      %8800 = vmatmul.mubr.f32.gmra.mrb[0].mxu0 %v8606
      %v8801 = vpop.f32.mrb[0].mxu0
      %v8802 = vadd.f32 %v8552, %v8801
      %v8803 = vpop.f32.mrb[0].mxu0
      %8804 = vmatprep.mubr.f32.mxu0 0.0
      %8805 = vmatmul.mubr.f32.gmra.mrb[0].mxu0 %v8609
      %v8806 = vpop.f32.mrb[0].mxu0
      %v8807 = vadd.f32 %v8552, %v8806
      %v8808 = vpop.f32.mrb[0].mxu0
      %8809 = vmatprep.mubr.f32.mxu0 0.0
      %8810 = vmatmul.mubr.f32.gmra.mrb[0].mxu0 %v8612
      %v8811 = vpop.f32.mrb[0].mxu0
      %v8812 = vadd.f32 %v8552, %v8811
      %v8813 = vpop.f32.mrb[0].mxu0
      %8814 = vmatprep.mubr.f32.mxu0 0.0
      %8815 = vmatmul.mubr.f32.gmra.mrb[0].mxu0 %v8615
      %v8816 = vpop.f32.mrb[0].mxu0
      %v8817 = vadd.f32 %v8552, %v8816
      %v8818 = vpop.f32.mrb[0].mxu0
      %8819 = vmatprep.mubr.f32.mxu0 0.0
      %8820 = vmatmul.mubr.f32.gmra.mrb[0].mxu0 %v8618
      %v8821 = vpop.f32.mrb[0].mxu0
      %v8822 = vadd.f32 %v8552, %v8821
      %v8823 = vpop.f32.mrb[0].mxu0
      %8824 = vmatprep.mubr.f32.mxu0 0.0
      %8825 = vmatmul.mubr.f32.gmra.mrb[0].mxu0 %v8621
      %v8826 = vpop.f32.mrb[0].mxu0
      %v8827 = vadd.f32 %v8552, %v8826
      %v8828 = vpop.f32.mrb[0].mxu0
      %8829 = vmatprep.mubr.f32.mxu0 0.0
      %8830 = vmatmul.mubr.f32.gmra.mrb[0].mxu0 %v8624
      %v8831 = vpop.f32.mrb[0].mxu0
      %v8832 = vadd.f32 %v8552, %v8831
      %v8833 = vpop.f32.mrb[0].mxu0
      %8834 = vmatprep.mubr.f32.mxu0 0.0
      %8835 = vmatmul.mubr.f32.gmra.mrb[0].mxu0 %v8627
      %v8836 = vpop.f32.mrb[0].mxu0
      %v8837 = vadd.f32 %v8552, %v8836
      %v8838 = vpop.f32.mrb[0].mxu0
      %8839 = vmatprep.mubr.f32.mxu0 0.0
      %8840 = vmatmul.mubr.f32.gmra.mrb[0].mxu0 %v8630
      %v8841 = vpop.f32.mrb[0].mxu0
      %v8842 = vadd.f32 %v8552, %v8841
      %v8843 = vpop.f32.mrb[0].mxu0
      %8844 = vmatprep.mubr.f32.mxu0 0.0
      %8845 = vmatmul.mubr.f32.gmra.mrb[0].mxu0 %v8633
      %v8846 = vpop.f32.mrb[0].mxu0
      %v8847 = vadd.f32 %v8552, %v8846
      %v8848 = vpop.f32.mrb[0].mxu0
      %8849 = vmatprep.mubr.f32.mxu0 0.0
      %8850 = vmatmul.mubr.f32.gmra.mrb[0].mxu0 %v8636
      %v8851 = vpop.f32.mrb[0].mxu0
      %v8852 = vadd.f32 %v8552, %v8851
      %v8853 = vpop.f32.mrb[0].mxu0
      %8854 = vmatprep.mubr.f32.mxu0 0.0
      %8855 = vmatmul.mubr.f32.gmra.mrb[0].mxu0 %v8639
      %v8856 = vpop.f32.mrb[0].mxu0
      %v8857 = vadd.f32 %v8552, %v8856
      %v8858 = vpop.f32.mrb[0].mxu0
      %8859 = vmatprep.mubr.f32.mxu0 0.0
      %8860 = vmatmul.mubr.f32.gmra.mrb[0].mxu0 %v8642
      %v8861 = vpop.f32.mrb[0].mxu0
      %v8862 = vadd.f32 %v8552, %v8861
      %v8863 = vpop.f32.mrb[0].mxu0
      %8864 = vmatprep.mubr.f32.mxu0 0.0
      %8865 = vmatmul.mubr.f32.gmra.mrb[0].mxu0 %v8645
      %v8866 = vpop.f32.mrb[0].mxu0
      %v8867 = vadd.f32 %v8552, %v8866
      %v8868 = vpop.f32.mrb[0].mxu0
      %8869 = vmatprep.mubr.f32.mxu0 0.0
      %8870 = vmatmul.mubr.f32.gmra.mrb[0].mxu0 %v8648
      %v8871 = vpop.f32.mrb[0].mxu0
      %v8872 = vadd.f32 %v8552, %v8871
      %v8873 = vpop.f32.mrb[0].mxu0
      %8874 = vdwg.mxu0
      %8875 = vst.msk [vmem:[#allocation2] sm:$0xff] %vm473, 0.0
      %8876 = vst.msk [vmem:[#allocation2 + $0x8] sm:$0xff] %vm473, 0.0
      %8877 = vst.msk [vmem:[#allocation2 + $0x10] sm:$0xff] %vm473, 0.0
      %8878 = vst.msk [vmem:[#allocation2 + $0x18] sm:$0x3] %vm477, 0.0
      %8879 = vst.msk [vmem:[#allocation2 + $0x20] sm:$0xff] %vm473, 0.0
      %8880 = vst.msk [vmem:[#allocation2 + $0x28] sm:$0xff] %vm473, 0.0
      %8881 = vst.msk [vmem:[#allocation2 + $0x30] sm:$0xff] %vm473, 0.0
      %8882 = vst.msk [vmem:[#allocation2 + $0x38] sm:$0x3] %vm477, 0.0
      %8883 = vst.msk [vmem:[#allocation2 + $0x40] sm:$0xff] %vm473, 0.0
      %8884 = vst.msk [vmem:[#allocation2 + $0x48] sm:$0xff] %vm473, 0.0
      %8885 = vst.msk [vmem:[#allocation2 + $0x50] sm:$0xff] %vm473, 0.0
      %8886 = vst.msk [vmem:[#allocation2 + $0x58] sm:$0x3] %vm477, 0.0
      %8887 = vst.msk [vmem:[#allocation2 + $0x60] sm:$0xff] %vm473, 0.0
      %8888 = vst.msk [vmem:[#allocation2 + $0x68] sm:$0xff] %vm473, 0.0
      %8889 = vst.msk [vmem:[#allocation2 + $0x70] sm:$0xff] %vm473, 0.0
      %8890 = vst.msk [vmem:[#allocation2 + $0x78] sm:$0x3] %vm477, 0.0
      %8891 = vst.msk [vmem:[#allocation2 + $0x80] sm:$0xff] %vm473, 0.0
      %8892 = vst.msk [vmem:[#allocation2 + $0x88] sm:$0xff] %vm473, 0.0
      %8893 = vst.msk [vmem:[#allocation2 + $0x90] sm:$0xff] %vm473, 0.0
      %8894 = vst.msk [vmem:[#allocation2 + $0x98] sm:$0x3] %vm477, 0.0
      %8895 = vst.msk [vmem:[#allocation2 + $0xa0] sm:$0xff] %vm473, 0.0
      %8896 = vst.msk [vmem:[#allocation2 + $0xa8] sm:$0xff] %vm473, 0.0
      %8897 = vst.msk [vmem:[#allocation2 + $0xb0] sm:$0xff] %vm473, 0.0
      %8898 = vst.msk [vmem:[#allocation2 + $0xb8] sm:$0x3] %vm477, 0.0
      %8899 = vst.msk [vmem:[#allocation2 + $0xc0] sm:$0xff] %vm473, 0.0
      %8900 = vst.msk [vmem:[#allocation2 + $0xc8] sm:$0xff] %vm473, 0.0
      %8901 = vst.msk [vmem:[#allocation2 + $0xd0] sm:$0xff] %vm473, 0.0
      %8902 = vst.msk [vmem:[#allocation2 + $0xd8] sm:$0x3] %vm477, 0.0
      %8903 = vst.msk [vmem:[#allocation2 + $0xe0] sm:$0xff] %vm473, 0.0
      %8904 = vst.msk [vmem:[#allocation2 + $0xe8] sm:$0xff] %vm473, 0.0
      %8905 = vst.msk [vmem:[#allocation2 + $0xf0] sm:$0xff] %vm473, 0.0
      %8906 = vst.msk [vmem:[#allocation2 + $0xf8] sm:$0x3] %vm477, 0.0
      %8907 = vst.msk [vmem:[#allocation2 + $0x100] sm:$0xff] %vm473, 0.0
      %8908 = vst.msk [vmem:[#allocation2 + $0x108] sm:$0xff] %vm473, 0.0
      %8909 = vst.msk [vmem:[#allocation2 + $0x110] sm:$0xff] %vm473, 0.0
      %8910 = vst.msk [vmem:[#allocation2 + $0x118] sm:$0x3] %vm477, 0.0
      %8911 = vst.msk [vmem:[#allocation2 + $0x120] sm:$0xff] %vm473, 0.0
      %8912 = vst.msk [vmem:[#allocation2 + $0x128] sm:$0xff] %vm473, 0.0
      %8913 = vst.msk [vmem:[#allocation2 + $0x130] sm:$0xff] %vm473, 0.0
      %8914 = vst.msk [vmem:[#allocation2 + $0x138] sm:$0x3] %vm477, 0.0
      %8915 = vst.msk [vmem:[#allocation2 + $0x140] sm:$0xff] %vm473, 0.0
      %8916 = vst.msk [vmem:[#allocation2 + $0x148] sm:$0xff] %vm473, 0.0
      %8917 = vst.msk [vmem:[#allocation2 + $0x150] sm:$0xff] %vm473, 0.0
      %8918 = vst.msk [vmem:[#allocation2 + $0x158] sm:$0x3] %vm477, 0.0
      %8919 = vst.msk [vmem:[#allocation2 + $0x160] sm:$0xff] %vm473, 0.0
      %8920 = vst.msk [vmem:[#allocation2 + $0x168] sm:$0xff] %vm473, 0.0
      %8921 = vst.msk [vmem:[#allocation2 + $0x170] sm:$0xff] %vm473, 0.0
      %8922 = vst.msk [vmem:[#allocation2 + $0x178] sm:$0x3] %vm477, 0.0
      %8923 = vst.msk [vmem:[#allocation2 + $0x180] sm:$0xff] %vm473, 0.0
      %8924 = vst.msk [vmem:[#allocation2 + $0x188] sm:$0xff] %vm473, 0.0
      %8925 = vst.msk [vmem:[#allocation2 + $0x190] sm:$0xff] %vm473, 0.0
      %8926 = vst.msk [vmem:[#allocation2 + $0x198] sm:$0x3] %vm477, 0.0
      %8927 = vst.msk [vmem:[#allocation2 + $0x1a0] sm:$0xff] %vm473, 0.0
      %8928 = vst.msk [vmem:[#allocation2 + $0x1a8] sm:$0xff] %vm473, 0.0
      %8929 = vst.msk [vmem:[#allocation2 + $0x1b0] sm:$0xff] %vm473, 0.0
      %8930 = vst.msk [vmem:[#allocation2 + $0x1b8] sm:$0x3] %vm477, 0.0
      %8931 = vst.msk [vmem:[#allocation2 + $0x1c0] sm:$0xff] %vm473, 0.0
      %8932 = vst.msk [vmem:[#allocation2 + $0x1c8] sm:$0xff] %vm473, 0.0
      %8933 = vst.msk [vmem:[#allocation2 + $0x1d0] sm:$0xff] %vm473, 0.0
      %8934 = vst.msk [vmem:[#allocation2 + $0x1d8] sm:$0x3] %vm477, 0.0
      %8935 = vst.msk [vmem:[#allocation2 + $0x1e0] sm:$0xff] %vm473, 0.0
      %8936 = vst.msk [vmem:[#allocation2 + $0x1e8] sm:$0xff] %vm473, 0.0
      %8937 = vst.msk [vmem:[#allocation2 + $0x1f0] sm:$0xff] %vm473, 0.0
      %8938 = vst.msk [vmem:[#allocation2 + $0x1f8] sm:$0x3] %vm477, 0.0
      %8939 = vst.msk [vmem:[#allocation2 + $0x200] sm:$0xff] %vm473, 0.0
      %8940 = vst.msk [vmem:[#allocation2 + $0x208] sm:$0xff] %vm473, 0.0
      %8941 = vst.msk [vmem:[#allocation2 + $0x210] sm:$0xff] %vm473, 0.0
      %8942 = vst.msk [vmem:[#allocation2 + $0x218] sm:$0x3] %vm477, 0.0
      %8943 = vst.msk [vmem:[#allocation2 + $0x220] sm:$0xff] %vm473, 0.0
      %8944 = vst.msk [vmem:[#allocation2 + $0x228] sm:$0xff] %vm473, 0.0
      %8945 = vst.msk [vmem:[#allocation2 + $0x230] sm:$0xff] %vm473, 0.0
      %8946 = vst.msk [vmem:[#allocation2 + $0x238] sm:$0x3] %vm477, 0.0
      %8947 = vst.msk [vmem:[#allocation2 + $0x240] sm:$0xff] %vm473, 0.0
      %8948 = vst.msk [vmem:[#allocation2 + $0x248] sm:$0xff] %vm473, 0.0
      %8949 = vst.msk [vmem:[#allocation2 + $0x250] sm:$0xff] %vm473, 0.0
      %8950 = vst.msk [vmem:[#allocation2 + $0x258] sm:$0x3] %vm477, 0.0
      %8951 = vst.msk [vmem:[#allocation2 + $0x260] sm:$0xff] %vm473, 0.0
      %8952 = vst.msk [vmem:[#allocation2 + $0x268] sm:$0xff] %vm473, 0.0
      %8953 = vst.msk [vmem:[#allocation2 + $0x270] sm:$0xff] %vm473, 0.0
      %8954 = vst.msk [vmem:[#allocation2 + $0x278] sm:$0x3] %vm477, 0.0
      %8955 = vst.msk [vmem:[#allocation2 + $0x280] sm:$0xff] %vm473, 0.0
      %8956 = vst.msk [vmem:[#allocation2 + $0x288] sm:$0xff] %vm473, 0.0
      %8957 = vst.msk [vmem:[#allocation2 + $0x290] sm:$0xff] %vm473, 0.0
      %8958 = vst.msk [vmem:[#allocation2 + $0x298] sm:$0x3] %vm477, 0.0
      %8959 = vst.msk [vmem:[#allocation2 + $0x2a0] sm:$0xff] %vm473, 0.0
      %8960 = vst.msk [vmem:[#allocation2 + $0x2a8] sm:$0xff] %vm473, 0.0
      %8961 = vst.msk [vmem:[#allocation2 + $0x2b0] sm:$0xff] %vm473, 0.0
      %8962 = vst.msk [vmem:[#allocation2 + $0x2b8] sm:$0x3] %vm477, 0.0
      %8963 = vst.msk [vmem:[#allocation2 + $0x2c0] sm:$0xff] %vm473, 0.0
      %8964 = vst.msk [vmem:[#allocation2 + $0x2c8] sm:$0xff] %vm473, 0.0
      %8965 = vst.msk [vmem:[#allocation2 + $0x2d0] sm:$0xff] %vm473, 0.0
      %8966 = vst.msk [vmem:[#allocation2 + $0x2d8] sm:$0x3] %vm477, 0.0
      %8967 = vst.msk [vmem:[#allocation2 + $0x2e0] sm:$0xff] %vm473, 0.0
      %8968 = vst.msk [vmem:[#allocation2 + $0x2e8] sm:$0xff] %vm473, 0.0
      %8969 = vst.msk [vmem:[#allocation2 + $0x2f0] sm:$0xff] %vm473, 0.0
      %8970 = vst.msk [vmem:[#allocation2 + $0x2f8] sm:$0x3] %vm477, 0.0
      %8971 = vst.msk [vmem:[#allocation2 + $0x300] sm:$0xff] %vm473, 0.0
      %8972 = vst.msk [vmem:[#allocation2 + $0x308] sm:$0xff] %vm473, 0.0
      %8973 = vst.msk [vmem:[#allocation2 + $0x310] sm:$0xff] %vm473, 0.0
      %8974 = vst.msk [vmem:[#allocation2 + $0x318] sm:$0x3] %vm477, 0.0
      %8975 = vst.msk [vmem:[#allocation2 + $0x320] sm:$0xff] %vm473, 0.0
      %8976 = vst.msk [vmem:[#allocation2 + $0x328] sm:$0xff] %vm473, 0.0
      %8977 = vst.msk [vmem:[#allocation2 + $0x330] sm:$0xff] %vm473, 0.0
      %8978 = vst.msk [vmem:[#allocation2 + $0x338] sm:$0x3] %vm477, 0.0
      %s8979 = scalar_lea.vmem [#allocation2], 160
      %8980 = vst.msk [vmem:[%s8979 + $0x5] sm:$0xff] %vm473, %v8717
      %8981 = vst.msk [vmem:[%s8979 + $0xd] sm:$0xff] %vm473, %v8722
      %8982 = vst.msk [vmem:[%s8979 + $0x25] sm:$0xff] %vm473, %v8727
      %8983 = vst.msk [vmem:[%s8979 + $0x2d] sm:$0xff] %vm473, %v8732
      %8984 = vst.msk [vmem:[%s8979 + $0x45] sm:$0xff] %vm473, %v8737
      %8985 = vst.msk [vmem:[%s8979 + $0x4d] sm:$0xff] %vm473, %v8742
      %8986 = vst.msk [vmem:[%s8979 + $0x65] sm:$0xff] %vm473, %v8747
      %8987 = vst.msk [vmem:[%s8979 + $0x6d] sm:$0xff] %vm473, %v8752
      %8988 = vst.msk [vmem:[%s8979 + $0x85] sm:$0xff] %vm473, %v8757
      %8989 = vst.msk [vmem:[%s8979 + $0x8d] sm:$0xff] %vm473, %v8762
      %8990 = vst.msk [vmem:[%s8979 + $0xa5] sm:$0xff] %vm473, %v8767
      %8991 = vst.msk [vmem:[%s8979 + $0xad] sm:$0xff] %vm473, %v8772
      %8992 = vst.msk [vmem:[%s8979 + $0xc5] sm:$0xff] %vm473, %v8777
      %8993 = vst.msk [vmem:[%s8979 + $0xcd] sm:$0xff] %vm473, %v8782
      %8994 = vst.msk [vmem:[%s8979 + $0xe5] sm:$0xff] %vm473, %v8787
      %8995 = vst.msk [vmem:[%s8979 + $0xed] sm:$0xff] %vm473, %v8792
      %8996 = vst.msk [vmem:[%s8979 + $0x105] sm:$0xff] %vm473, %v8797
      %8997 = vst.msk [vmem:[%s8979 + $0x10d] sm:$0xff] %vm473, %v8802
      %8998 = vst.msk [vmem:[%s8979 + $0x125] sm:$0xff] %vm473, %v8807
      %8999 = vst.msk [vmem:[%s8979 + $0x12d] sm:$0xff] %vm473, %v8812
      %9000 = vst.msk [vmem:[%s8979 + $0x145] sm:$0xff] %vm473, %v8817
      %9001 = vst.msk [vmem:[%s8979 + $0x14d] sm:$0xff] %vm473, %v8822
      %9002 = vst.msk [vmem:[%s8979 + $0x165] sm:$0xff] %vm473, %v8827
      %9003 = vst.msk [vmem:[%s8979 + $0x16d] sm:$0xff] %vm473, %v8832
      %9004 = vst.msk [vmem:[%s8979 + $0x185] sm:$0xff] %vm473, %v8837
      %9005 = vst.msk [vmem:[%s8979 + $0x18d] sm:$0xff] %vm473, %v8842
      %9006 = vst.msk [vmem:[%s8979 + $0x1a5] sm:$0xff] %vm473, %v8847
      %9007 = vst.msk [vmem:[%s8979 + $0x1ad] sm:$0xff] %vm473, %v8852
      %9008 = vst.msk [vmem:[%s8979 + $0x1c5] sm:$0xff] %vm473, %v8857
      %9009 = vst.msk [vmem:[%s8979 + $0x1cd] sm:$0xff] %vm473, %v8862
      %9010 = vst.msk [vmem:[%s8979 + $0x1e5] sm:$0xff] %vm473, %v8867
      %9011 = vst.msk [vmem:[%s8979 + $0x1ed] sm:$0xff] %vm473, %v8872
      %v9012 = vld [vmem:[#allocation2] sm:$0xff]
      %v9013 = vld [vmem:[#allocation2 + $0x8] sm:$0xff]
      %v9014 = vld [vmem:[#allocation2 + $0x20] sm:$0xff]
      %v9015 = vld [vmem:[#allocation2 + $0x28] sm:$0xff]
      %v9016 = vld [vmem:[#allocation2 + $0x40] sm:$0xff]
      %v9017 = vld [vmem:[#allocation2 + $0x48] sm:$0xff]
      %v9018 = vld [vmem:[#allocation2 + $0x60] sm:$0xff]
      %v9019 = vld [vmem:[#allocation2 + $0x68] sm:$0xff]
      %v9020 = vld [vmem:[#allocation2 + $0x80] sm:$0xff]
      %v9021 = vld [vmem:[#allocation2 + $0x88] sm:$0xff]
      %v9022 = vld [vmem:[#allocation2 + $0xa0] sm:$0xff]
      %v9023 = vld [vmem:[#allocation2 + $0xa8] sm:$0xff]
      %v9024 = vld [vmem:[#allocation2 + $0xc0] sm:$0xff]
      %v9025 = vld [vmem:[#allocation2 + $0xc8] sm:$0xff]
      %v9026 = vld [vmem:[#allocation2 + $0xe0] sm:$0xff]
      %v9027 = vld [vmem:[#allocation2 + $0xe8] sm:$0xff]
      %v9028 = vld [vmem:[#allocation2 + $0x100] sm:$0xff]
      %v9029 = vld [vmem:[#allocation2 + $0x108] sm:$0xff]
      %v9030 = vld [vmem:[#allocation2 + $0x120] sm:$0xff]
      %v9031 = vld [vmem:[#allocation2 + $0x128] sm:$0xff]
      %v9032 = vld [vmem:[#allocation2 + $0x140] sm:$0xff]
      %v9033 = vld [vmem:[#allocation2 + $0x148] sm:$0xff]
      %v9034 = vld [vmem:[#allocation2 + $0x160] sm:$0xff]
      %v9035 = vld [vmem:[#allocation2 + $0x168] sm:$0xff]
      %v9036 = vld [vmem:[#allocation2 + $0x180] sm:$0xff]
      %v9037 = vld [vmem:[#allocation2 + $0x188] sm:$0xff]
      %v9038 = vld [vmem:[#allocation2 + $0x1a0] sm:$0xff]
      %v9039 = vld [vmem:[#allocation2 + $0x1a8] sm:$0xff]
      %v9040 = vld [vmem:[#allocation2 + $0x1c0] sm:$0xff]
      %v9041 = vld [vmem:[#allocation2 + $0x1c8] sm:$0xff]
      %v9042 = vld [vmem:[#allocation2 + $0x1e0] sm:$0xff]
      %v9043 = vld [vmem:[#allocation2 + $0x1e8] sm:$0xff]
      %v9044 = vld [vmem:[#allocation2 + $0x5] sm:$0xff]
      %v9045 = vld [vmem:[#allocation2 + $0xd] sm:$0xff]
      %v9046 = vld [vmem:[#allocation2 + $0x25] sm:$0xff]
      %v9047 = vld [vmem:[#allocation2 + $0x2d] sm:$0xff]
      %v9048 = vld [vmem:[#allocation2 + $0x45] sm:$0xff]
      %v9049 = vld [vmem:[#allocation2 + $0x4d] sm:$0xff]
      %v9050 = vld [vmem:[#allocation2 + $0x65] sm:$0xff]
      %v9051 = vld [vmem:[#allocation2 + $0x6d] sm:$0xff]
      %v9052 = vld [vmem:[#allocation2 + $0x85] sm:$0xff]
      %v9053 = vld [vmem:[#allocation2 + $0x8d] sm:$0xff]
      %v9054 = vld [vmem:[#allocation2 + $0xa5] sm:$0xff]
      %v9055 = vld [vmem:[#allocation2 + $0xad] sm:$0xff]
      %v9056 = vld [vmem:[#allocation2 + $0xc5] sm:$0xff]
      %v9057 = vld [vmem:[#allocation2 + $0xcd] sm:$0xff]
      %v9058 = vld [vmem:[#allocation2 + $0xe5] sm:$0xff]
      %v9059 = vld [vmem:[#allocation2 + $0xed] sm:$0xff]
      %v9060 = vld [vmem:[#allocation2 + $0x105] sm:$0xff]
      %v9061 = vld [vmem:[#allocation2 + $0x10d] sm:$0xff]
      %v9062 = vld [vmem:[#allocation2 + $0x125] sm:$0xff]
      %v9063 = vld [vmem:[#allocation2 + $0x12d] sm:$0xff]
      %v9064 = vld [vmem:[#allocation2 + $0x145] sm:$0xff]
      %v9065 = vld [vmem:[#allocation2 + $0x14d] sm:$0xff]
      %v9066 = vld [vmem:[#allocation2 + $0x165] sm:$0xff]
      %v9067 = vld [vmem:[#allocation2 + $0x16d] sm:$0xff]
      %v9068 = vld [vmem:[#allocation2 + $0x185] sm:$0xff]
      %v9069 = vld [vmem:[#allocation2 + $0x18d] sm:$0xff]
      %v9070 = vld [vmem:[#allocation2 + $0x1a5] sm:$0xff]
      %v9071 = vld [vmem:[#allocation2 + $0x1ad] sm:$0xff]
      %v9072 = vld [vmem:[#allocation2 + $0x1c5] sm:$0xff]
      %v9073 = vld [vmem:[#allocation2 + $0x1cd] sm:$0xff]
      %v9074 = vld [vmem:[#allocation2 + $0x1e5] sm:$0xff]
      %v9075 = vld [vmem:[#allocation2 + $0x1ed] sm:$0xff]
      %v9076 = vld [vmem:[#allocation2 + $0xa] sm:$0xff]
      %v9077 = vld [vmem:[#allocation2 + $0x12] sm:$0xff]
      %v9078 = vld [vmem:[#allocation2 + $0x2a] sm:$0xff]
      %v9079 = vld [vmem:[#allocation2 + $0x32] sm:$0xff]
      %v9080 = vld [vmem:[#allocation2 + $0x4a] sm:$0xff]
      %v9081 = vld [vmem:[#allocation2 + $0x52] sm:$0xff]
      %v9082 = vld [vmem:[#allocation2 + $0x6a] sm:$0xff]
      %v9083 = vld [vmem:[#allocation2 + $0x72] sm:$0xff]
      %v9084 = vld [vmem:[#allocation2 + $0x8a] sm:$0xff]
      %v9085 = vld [vmem:[#allocation2 + $0x92] sm:$0xff]
      %v9086 = vld [vmem:[#allocation2 + $0xaa] sm:$0xff]
      %v9087 = vld [vmem:[#allocation2 + $0xb2] sm:$0xff]
      %v9088 = vld [vmem:[#allocation2 + $0xca] sm:$0xff]
      %v9089 = vld [vmem:[#allocation2 + $0xd2] sm:$0xff]
      %v9090 = vld [vmem:[#allocation2 + $0xea] sm:$0xff]
      %v9091 = vld [vmem:[#allocation2 + $0xf2] sm:$0xff]
      %v9092 = vld [vmem:[#allocation2 + $0x10a] sm:$0xff]
      %v9093 = vld [vmem:[#allocation2 + $0x112] sm:$0xff]
      %v9094 = vld [vmem:[#allocation2 + $0x12a] sm:$0xff]
      %v9095 = vld [vmem:[#allocation2 + $0x132] sm:$0xff]
      %v9096 = vld [vmem:[#allocation2 + $0x14a] sm:$0xff]
      %v9097 = vld [vmem:[#allocation2 + $0x152] sm:$0xff]
      %v9098 = vld [vmem:[#allocation2 + $0x16a] sm:$0xff]
      %v9099 = vld [vmem:[#allocation2 + $0x172] sm:$0xff]
      %v9100 = vld [vmem:[#allocation2 + $0x18a] sm:$0xff]
      %v9101 = vld [vmem:[#allocation2 + $0x192] sm:$0xff]
      %v9102 = vld [vmem:[#allocation2 + $0x1aa] sm:$0xff]
      %v9103 = vld [vmem:[#allocation2 + $0x1b2] sm:$0xff]
      %v9104 = vld [vmem:[#allocation2 + $0x1ca] sm:$0xff]
      %v9105 = vld [vmem:[#allocation2 + $0x1d2] sm:$0xff]
      %v9106 = vld [vmem:[#allocation2 + $0x1ea] sm:$0xff]
      %v9107 = vld [vmem:[#allocation2 + $0x1f2] sm:$0xff]
      %v9108 = vld [vmem:[%s8979] sm:$0xff]
      %v9109 = vld [vmem:[%s8979 + $0x8] sm:$0xff]
      %v9110 = vld [vmem:[%s8979 + $0x20] sm:$0xff]
      %v9111 = vld [vmem:[%s8979 + $0x28] sm:$0xff]
      %v9112 = vld [vmem:[%s8979 + $0x40] sm:$0xff]
      %v9113 = vld [vmem:[%s8979 + $0x48] sm:$0xff]
      %v9114 = vld [vmem:[%s8979 + $0x60] sm:$0xff]
      %v9115 = vld [vmem:[%s8979 + $0x68] sm:$0xff]
      %v9116 = vld [vmem:[%s8979 + $0x80] sm:$0xff]
      %v9117 = vld [vmem:[%s8979 + $0x88] sm:$0xff]
      %v9118 = vld [vmem:[%s8979 + $0xa0] sm:$0xff]
      %v9119 = vld [vmem:[%s8979 + $0xa8] sm:$0xff]
      %v9120 = vld [vmem:[%s8979 + $0xc0] sm:$0xff]
      %v9121 = vld [vmem:[%s8979 + $0xc8] sm:$0xff]
      %v9122 = vld [vmem:[%s8979 + $0xe0] sm:$0xff]
      %v9123 = vld [vmem:[%s8979 + $0xe8] sm:$0xff]
      %v9124 = vld [vmem:[%s8979 + $0x100] sm:$0xff]
      %v9125 = vld [vmem:[%s8979 + $0x108] sm:$0xff]
      %v9126 = vld [vmem:[%s8979 + $0x120] sm:$0xff]
      %v9127 = vld [vmem:[%s8979 + $0x128] sm:$0xff]
      %v9128 = vld [vmem:[%s8979 + $0x140] sm:$0xff]
      %v9129 = vld [vmem:[%s8979 + $0x148] sm:$0xff]
      %v9130 = vld [vmem:[%s8979 + $0x160] sm:$0xff]
      %v9131 = vld [vmem:[%s8979 + $0x168] sm:$0xff]
      %v9132 = vld [vmem:[%s8979 + $0x180] sm:$0xff]
      %v9133 = vld [vmem:[%s8979 + $0x188] sm:$0xff]
      %v9134 = vld [vmem:[%s8979 + $0x1a0] sm:$0xff]
      %v9135 = vld [vmem:[%s8979 + $0x1a8] sm:$0xff]
      %v9136 = vld [vmem:[%s8979 + $0x1c0] sm:$0xff]
      %v9137 = vld [vmem:[%s8979 + $0x1c8] sm:$0xff]
      %v9138 = vld [vmem:[%s8979 + $0x1e0] sm:$0xff]
      %v9139 = vld [vmem:[%s8979 + $0x1e8] sm:$0xff]
      %v9140 = vld [vmem:[%s8979 + $0x5] sm:$0xff]
      %v9141 = vld [vmem:[%s8979 + $0xd] sm:$0xff]
      %v9142 = vld [vmem:[%s8979 + $0x25] sm:$0xff]
      %v9143 = vld [vmem:[%s8979 + $0x2d] sm:$0xff]
      %v9144 = vld [vmem:[%s8979 + $0x45] sm:$0xff]
      %v9145 = vld [vmem:[%s8979 + $0x4d] sm:$0xff]
      %v9146 = vld [vmem:[%s8979 + $0x65] sm:$0xff]
      %v9147 = vld [vmem:[%s8979 + $0x6d] sm:$0xff]
      %v9148 = vld [vmem:[%s8979 + $0x85] sm:$0xff]
      %v9149 = vld [vmem:[%s8979 + $0x8d] sm:$0xff]
      %v9150 = vld [vmem:[%s8979 + $0xa5] sm:$0xff]
      %v9151 = vld [vmem:[%s8979 + $0xad] sm:$0xff]
      %v9152 = vld [vmem:[%s8979 + $0xc5] sm:$0xff]
      %v9153 = vld [vmem:[%s8979 + $0xcd] sm:$0xff]
      %v9154 = vld [vmem:[%s8979 + $0xe5] sm:$0xff]
      %v9155 = vld [vmem:[%s8979 + $0xed] sm:$0xff]
      %v9156 = vld [vmem:[%s8979 + $0x105] sm:$0xff]
      %v9157 = vld [vmem:[%s8979 + $0x10d] sm:$0xff]
      %v9158 = vld [vmem:[%s8979 + $0x125] sm:$0xff]
      %v9159 = vld [vmem:[%s8979 + $0x12d] sm:$0xff]
      %v9160 = vld [vmem:[%s8979 + $0x145] sm:$0xff]
      %v9161 = vld [vmem:[%s8979 + $0x14d] sm:$0xff]
      %v9162 = vld [vmem:[%s8979 + $0x165] sm:$0xff]
      %v9163 = vld [vmem:[%s8979 + $0x16d] sm:$0xff]
      %v9164 = vld [vmem:[%s8979 + $0x185] sm:$0xff]
      %v9165 = vld [vmem:[%s8979 + $0x18d] sm:$0xff]
      %v9166 = vld [vmem:[%s8979 + $0x1a5] sm:$0xff]
      %v9167 = vld [vmem:[%s8979 + $0x1ad] sm:$0xff]
      %v9168 = vld [vmem:[%s8979 + $0x1c5] sm:$0xff]
      %v9169 = vld [vmem:[%s8979 + $0x1cd] sm:$0xff]
      %v9170 = vld [vmem:[%s8979 + $0x1e5] sm:$0xff]
      %v9171 = vld [vmem:[%s8979 + $0x1ed] sm:$0xff]
      %v9172 = vld [vmem:[%s8979 + $0xa] sm:$0xff]
      %v9173 = vld [vmem:[%s8979 + $0x12] sm:$0xff]
      %v9174 = vld [vmem:[%s8979 + $0x2a] sm:$0xff]
      %v9175 = vld [vmem:[%s8979 + $0x32] sm:$0xff]
      %v9176 = vld [vmem:[%s8979 + $0x4a] sm:$0xff]
      %v9177 = vld [vmem:[%s8979 + $0x52] sm:$0xff]
      %v9178 = vld [vmem:[%s8979 + $0x6a] sm:$0xff]
      %v9179 = vld [vmem:[%s8979 + $0x72] sm:$0xff]
      %v9180 = vld [vmem:[%s8979 + $0x8a] sm:$0xff]
      %v9181 = vld [vmem:[%s8979 + $0x92] sm:$0xff]
      %v9182 = vld [vmem:[%s8979 + $0xaa] sm:$0xff]
      %v9183 = vld [vmem:[%s8979 + $0xb2] sm:$0xff]
      %v9184 = vld [vmem:[%s8979 + $0xca] sm:$0xff]
      %v9185 = vld [vmem:[%s8979 + $0xd2] sm:$0xff]
      %v9186 = vld [vmem:[%s8979 + $0xea] sm:$0xff]
      %v9187 = vld [vmem:[%s8979 + $0xf2] sm:$0xff]
      %v9188 = vld [vmem:[%s8979 + $0x10a] sm:$0xff]
      %v9189 = vld [vmem:[%s8979 + $0x112] sm:$0xff]
      %v9190 = vld [vmem:[%s8979 + $0x12a] sm:$0xff]
      %v9191 = vld [vmem:[%s8979 + $0x132] sm:$0xff]
      %v9192 = vld [vmem:[%s8979 + $0x14a] sm:$0xff]
      %v9193 = vld [vmem:[%s8979 + $0x152] sm:$0xff]
      %v9194 = vld [vmem:[%s8979 + $0x16a] sm:$0xff]
      %v9195 = vld [vmem:[%s8979 + $0x172] sm:$0xff]
      %v9196 = vld [vmem:[%s8979 + $0x18a] sm:$0xff]
      %v9197 = vld [vmem:[%s8979 + $0x192] sm:$0xff]
      %v9198 = vld [vmem:[%s8979 + $0x1aa] sm:$0xff]
      %v9199 = vld [vmem:[%s8979 + $0x1b2] sm:$0xff]
      %v9200 = vld [vmem:[%s8979 + $0x1ca] sm:$0xff]
      %v9201 = vld [vmem:[%s8979 + $0x1d2] sm:$0xff]
      %v9202 = vld [vmem:[%s8979 + $0x1ea] sm:$0xff]
      %v9203 = vld [vmem:[%s8979 + $0x1f2] sm:$0xff]
      %s9204 = scalar_lea.vmem [#allocation2], 320
      %v9205 = vld [vmem:[%s9204] sm:$0xff]
      %v9206 = vld [vmem:[%s9204 + $0x8] sm:$0xff]
      %v9207 = vld [vmem:[%s9204 + $0x20] sm:$0xff]
      %v9208 = vld [vmem:[%s9204 + $0x28] sm:$0xff]
      %v9209 = vld [vmem:[%s9204 + $0x40] sm:$0xff]
      %v9210 = vld [vmem:[%s9204 + $0x48] sm:$0xff]
      %v9211 = vld [vmem:[%s9204 + $0x60] sm:$0xff]
      %v9212 = vld [vmem:[%s9204 + $0x68] sm:$0xff]
      %v9213 = vld [vmem:[%s9204 + $0x80] sm:$0xff]
      %v9214 = vld [vmem:[%s9204 + $0x88] sm:$0xff]
      %v9215 = vld [vmem:[%s9204 + $0xa0] sm:$0xff]
      %v9216 = vld [vmem:[%s9204 + $0xa8] sm:$0xff]
      %v9217 = vld [vmem:[%s9204 + $0xc0] sm:$0xff]
      %v9218 = vld [vmem:[%s9204 + $0xc8] sm:$0xff]
      %v9219 = vld [vmem:[%s9204 + $0xe0] sm:$0xff]
      %v9220 = vld [vmem:[%s9204 + $0xe8] sm:$0xff]
      %v9221 = vld [vmem:[%s9204 + $0x100] sm:$0xff]
      %v9222 = vld [vmem:[%s9204 + $0x108] sm:$0xff]
      %v9223 = vld [vmem:[%s9204 + $0x120] sm:$0xff]
      %v9224 = vld [vmem:[%s9204 + $0x128] sm:$0xff]
      %v9225 = vld [vmem:[%s9204 + $0x140] sm:$0xff]
      %v9226 = vld [vmem:[%s9204 + $0x148] sm:$0xff]
      %v9227 = vld [vmem:[%s9204 + $0x160] sm:$0xff]
      %v9228 = vld [vmem:[%s9204 + $0x168] sm:$0xff]
      %v9229 = vld [vmem:[%s9204 + $0x180] sm:$0xff]
      %v9230 = vld [vmem:[%s9204 + $0x188] sm:$0xff]
      %v9231 = vld [vmem:[%s9204 + $0x1a0] sm:$0xff]
      %v9232 = vld [vmem:[%s9204 + $0x1a8] sm:$0xff]
      %v9233 = vld [vmem:[%s9204 + $0x1c0] sm:$0xff]
      %v9234 = vld [vmem:[%s9204 + $0x1c8] sm:$0xff]
      %v9235 = vld [vmem:[%s9204 + $0x1e0] sm:$0xff]
      %v9236 = vld [vmem:[%s9204 + $0x1e8] sm:$0xff]
      %v9237 = vld [vmem:[%s9204 + $0x5] sm:$0xff]
      %v9238 = vld [vmem:[%s9204 + $0xd] sm:$0xff]
      %v9239 = vld [vmem:[%s9204 + $0x25] sm:$0xff]
      %v9240 = vld [vmem:[%s9204 + $0x2d] sm:$0xff]
      %v9241 = vld [vmem:[%s9204 + $0x45] sm:$0xff]
      %v9242 = vld [vmem:[%s9204 + $0x4d] sm:$0xff]
      %v9243 = vld [vmem:[%s9204 + $0x65] sm:$0xff]
      %v9244 = vld [vmem:[%s9204 + $0x6d] sm:$0xff]
      %v9245 = vld [vmem:[%s9204 + $0x85] sm:$0xff]
      %v9246 = vld [vmem:[%s9204 + $0x8d] sm:$0xff]
      %v9247 = vld [vmem:[%s9204 + $0xa5] sm:$0xff]
      %v9248 = vld [vmem:[%s9204 + $0xad] sm:$0xff]
      %v9249 = vld [vmem:[%s9204 + $0xc5] sm:$0xff]
      %v9250 = vld [vmem:[%s9204 + $0xcd] sm:$0xff]
      %v9251 = vld [vmem:[%s9204 + $0xe5] sm:$0xff]
      %v9252 = vld [vmem:[%s9204 + $0xed] sm:$0xff]
      %v9253 = vld [vmem:[%s9204 + $0x105] sm:$0xff]
      %v9254 = vld [vmem:[%s9204 + $0x10d] sm:$0xff]
      %v9255 = vld [vmem:[%s9204 + $0x125] sm:$0xff]
      %v9256 = vld [vmem:[%s9204 + $0x12d] sm:$0xff]
      %v9257 = vld [vmem:[%s9204 + $0x145] sm:$0xff]
      %v9258 = vld [vmem:[%s9204 + $0x14d] sm:$0xff]
      %v9259 = vld [vmem:[%s9204 + $0x165] sm:$0xff]
      %v9260 = vld [vmem:[%s9204 + $0x16d] sm:$0xff]
      %v9261 = vld [vmem:[%s9204 + $0x185] sm:$0xff]
      %v9262 = vld [vmem:[%s9204 + $0x18d] sm:$0xff]
      %v9263 = vld [vmem:[%s9204 + $0x1a5] sm:$0xff]
      %v9264 = vld [vmem:[%s9204 + $0x1ad] sm:$0xff]
      %v9265 = vld [vmem:[%s9204 + $0x1c5] sm:$0xff]
      %v9266 = vld [vmem:[%s9204 + $0x1cd] sm:$0xff]
      %v9267 = vld [vmem:[%s9204 + $0x1e5] sm:$0xff]
      %v9268 = vld [vmem:[%s9204 + $0x1ed] sm:$0xff]
      %v9269 = vld [vmem:[%s9204 + $0xa] sm:$0xff]
      %v9270 = vld [vmem:[%s9204 + $0x12] sm:$0xff]
      %v9271 = vld [vmem:[%s9204 + $0x2a] sm:$0xff]
      %v9272 = vld [vmem:[%s9204 + $0x32] sm:$0xff]
      %v9273 = vld [vmem:[%s9204 + $0x4a] sm:$0xff]
      %v9274 = vld [vmem:[%s9204 + $0x52] sm:$0xff]
      %v9275 = vld [vmem:[%s9204 + $0x6a] sm:$0xff]
      %v9276 = vld [vmem:[%s9204 + $0x72] sm:$0xff]
      %v9277 = vld [vmem:[%s9204 + $0x8a] sm:$0xff]
      %v9278 = vld [vmem:[%s9204 + $0x92] sm:$0xff]
      %v9279 = vld [vmem:[%s9204 + $0xaa] sm:$0xff]
      %v9280 = vld [vmem:[%s9204 + $0xb2] sm:$0xff]
      %v9281 = vld [vmem:[%s9204 + $0xca] sm:$0xff]
      %v9282 = vld [vmem:[%s9204 + $0xd2] sm:$0xff]
      %v9283 = vld [vmem:[%s9204 + $0xea] sm:$0xff]
      %v9284 = vld [vmem:[%s9204 + $0xf2] sm:$0xff]
      %v9285 = vld [vmem:[%s9204 + $0x10a] sm:$0xff]
      %v9286 = vld [vmem:[%s9204 + $0x112] sm:$0xff]
      %v9287 = vld [vmem:[%s9204 + $0x12a] sm:$0xff]
      %v9288 = vld [vmem:[%s9204 + $0x132] sm:$0xff]
      %v9289 = vld [vmem:[%s9204 + $0x14a] sm:$0xff]
      %v9290 = vld [vmem:[%s9204 + $0x152] sm:$0xff]
      %v9291 = vld [vmem:[%s9204 + $0x16a] sm:$0xff]
      %v9292 = vld [vmem:[%s9204 + $0x172] sm:$0xff]
      %v9293 = vld [vmem:[%s9204 + $0x18a] sm:$0xff]
      %v9294 = vld [vmem:[%s9204 + $0x192] sm:$0xff]
      %v9295 = vld [vmem:[%s9204 + $0x1aa] sm:$0xff]
      %v9296 = vld [vmem:[%s9204 + $0x1b2] sm:$0xff]
      %v9297 = vld [vmem:[%s9204 + $0x1ca] sm:$0xff]
      %v9298 = vld [vmem:[%s9204 + $0x1d2] sm:$0xff]
      %v9299 = vld [vmem:[%s9204 + $0x1ea] sm:$0xff]
      %v9300 = vld [vmem:[%s9204 + $0x1f2] sm:$0xff]
      %9333 = vrot.lane.b32.xlu0 %v9044, 8
      %v9334 = vpop.permute.xlu0 %9333
      %9335 = vrot.lane.b32.xlu0 %v9045, 8
      %v9336 = vpop.permute.xlu0 %9335
      %9337 = vrot.lane.b32.xlu0 %v9046, 8
      %v9338 = vpop.permute.xlu0 %9337
      %9339 = vrot.lane.b32.xlu0 %v9047, 8
      %v9340 = vpop.permute.xlu0 %9339
      %9341 = vrot.lane.b32.xlu0 %v9048, 8
      %v9342 = vpop.permute.xlu0 %9341
      %9343 = vrot.lane.b32.xlu0 %v9049, 8
      %v9344 = vpop.permute.xlu0 %9343
      %9345 = vrot.lane.b32.xlu0 %v9050, 8
      %v9346 = vpop.permute.xlu0 %9345
      %9347 = vrot.lane.b32.xlu0 %v9051, 8
      %v9348 = vpop.permute.xlu0 %9347
      %9349 = vrot.lane.b32.xlu0 %v9052, 8
      %v9350 = vpop.permute.xlu0 %9349
      %9351 = vrot.lane.b32.xlu0 %v9053, 8
      %v9352 = vpop.permute.xlu0 %9351
      %9353 = vrot.lane.b32.xlu0 %v9054, 8
      %v9354 = vpop.permute.xlu0 %9353
      %9355 = vrot.lane.b32.xlu0 %v9055, 8
      %v9356 = vpop.permute.xlu0 %9355
      %9357 = vrot.lane.b32.xlu0 %v9056, 8
      %v9358 = vpop.permute.xlu0 %9357
      %9359 = vrot.lane.b32.xlu0 %v9057, 8
      %v9360 = vpop.permute.xlu0 %9359
      %9361 = vrot.lane.b32.xlu0 %v9058, 8
      %v9362 = vpop.permute.xlu0 %9361
      %9363 = vrot.lane.b32.xlu0 %v9059, 8
      %v9364 = vpop.permute.xlu0 %9363
      %9365 = vrot.lane.b32.xlu0 %v9060, 8
      %v9366 = vpop.permute.xlu0 %9365
      %9367 = vrot.lane.b32.xlu0 %v9061, 8
      %v9368 = vpop.permute.xlu0 %9367
      %9369 = vrot.lane.b32.xlu0 %v9062, 8
      %v9370 = vpop.permute.xlu0 %9369
      %9371 = vrot.lane.b32.xlu0 %v9063, 8
      %v9372 = vpop.permute.xlu0 %9371
      %9373 = vrot.lane.b32.xlu0 %v9064, 8
      %v9374 = vpop.permute.xlu0 %9373
      %9375 = vrot.lane.b32.xlu0 %v9065, 8
      %v9376 = vpop.permute.xlu0 %9375
      %9377 = vrot.lane.b32.xlu0 %v9066, 8
      %v9378 = vpop.permute.xlu0 %9377
      %9379 = vrot.lane.b32.xlu0 %v9067, 8
      %v9380 = vpop.permute.xlu0 %9379
      %9381 = vrot.lane.b32.xlu0 %v9068, 8
      %v9382 = vpop.permute.xlu0 %9381
      %9383 = vrot.lane.b32.xlu0 %v9069, 8
      %v9384 = vpop.permute.xlu0 %9383
      %9385 = vrot.lane.b32.xlu0 %v9070, 8
      %v9386 = vpop.permute.xlu0 %9385
      %9387 = vrot.lane.b32.xlu0 %v9071, 8
      %v9388 = vpop.permute.xlu0 %9387
      %9389 = vrot.lane.b32.xlu0 %v9072, 8
      %v9390 = vpop.permute.xlu0 %9389
      %9391 = vrot.lane.b32.xlu0 %v9073, 8
      %v9392 = vpop.permute.xlu0 %9391
      %9393 = vrot.lane.b32.xlu0 %v9074, 8
      %v9394 = vpop.permute.xlu0 %9393
      %9395 = vrot.lane.b32.xlu0 %v9075, 8
      %v9396 = vpop.permute.xlu0 %9395
      %9461 = vrot.lane.b32.xlu0 %v9076, 16
      %v9462 = vpop.permute.xlu0 %9461
      %9463 = vrot.lane.b32.xlu0 %v9077, 16
      %v9464 = vpop.permute.xlu0 %9463
      %9465 = vrot.lane.b32.xlu0 %v9078, 16
      %v9466 = vpop.permute.xlu0 %9465
      %9467 = vrot.lane.b32.xlu0 %v9079, 16
      %v9468 = vpop.permute.xlu0 %9467
      %9469 = vrot.lane.b32.xlu0 %v9080, 16
      %v9470 = vpop.permute.xlu0 %9469
      %9471 = vrot.lane.b32.xlu0 %v9081, 16
      %v9472 = vpop.permute.xlu0 %9471
      %9473 = vrot.lane.b32.xlu0 %v9082, 16
      %v9474 = vpop.permute.xlu0 %9473
      %9475 = vrot.lane.b32.xlu0 %v9083, 16
      %v9476 = vpop.permute.xlu0 %9475
      %9477 = vrot.lane.b32.xlu0 %v9084, 16
      %v9478 = vpop.permute.xlu0 %9477
      %9479 = vrot.lane.b32.xlu0 %v9085, 16
      %v9480 = vpop.permute.xlu0 %9479
      %9481 = vrot.lane.b32.xlu0 %v9086, 16
      %v9482 = vpop.permute.xlu0 %9481
      %9483 = vrot.lane.b32.xlu0 %v9087, 16
      %v9484 = vpop.permute.xlu0 %9483
      %9485 = vrot.lane.b32.xlu0 %v9088, 16
      %v9486 = vpop.permute.xlu0 %9485
      %9487 = vrot.lane.b32.xlu0 %v9089, 16
      %v9488 = vpop.permute.xlu0 %9487
      %9489 = vrot.lane.b32.xlu0 %v9090, 16
      %v9490 = vpop.permute.xlu0 %9489
      %9491 = vrot.lane.b32.xlu0 %v9091, 16
      %v9492 = vpop.permute.xlu0 %9491
      %9493 = vrot.lane.b32.xlu0 %v9092, 16
      %v9494 = vpop.permute.xlu0 %9493
      %9495 = vrot.lane.b32.xlu0 %v9093, 16
      %v9496 = vpop.permute.xlu0 %9495
      %9497 = vrot.lane.b32.xlu0 %v9094, 16
      %v9498 = vpop.permute.xlu0 %9497
      %9499 = vrot.lane.b32.xlu0 %v9095, 16
      %v9500 = vpop.permute.xlu0 %9499
      %9501 = vrot.lane.b32.xlu0 %v9096, 16
      %v9502 = vpop.permute.xlu0 %9501
      %9503 = vrot.lane.b32.xlu0 %v9097, 16
      %v9504 = vpop.permute.xlu0 %9503
      %9505 = vrot.lane.b32.xlu0 %v9098, 16
      %v9506 = vpop.permute.xlu0 %9505
      %9507 = vrot.lane.b32.xlu0 %v9099, 16
      %v9508 = vpop.permute.xlu0 %9507
      %9509 = vrot.lane.b32.xlu0 %v9100, 16
      %v9510 = vpop.permute.xlu0 %9509
      %9511 = vrot.lane.b32.xlu0 %v9101, 16
      %v9512 = vpop.permute.xlu0 %9511
      %9513 = vrot.lane.b32.xlu0 %v9102, 16
      %v9514 = vpop.permute.xlu0 %9513
      %9515 = vrot.lane.b32.xlu0 %v9103, 16
      %v9516 = vpop.permute.xlu0 %9515
      %9517 = vrot.lane.b32.xlu0 %v9104, 16
      %v9518 = vpop.permute.xlu0 %9517
      %9519 = vrot.lane.b32.xlu0 %v9105, 16
      %v9520 = vpop.permute.xlu0 %9519
      %9521 = vrot.lane.b32.xlu0 %v9106, 16
      %v9522 = vpop.permute.xlu0 %9521
      %9523 = vrot.lane.b32.xlu0 %v9107, 16
      %v9524 = vpop.permute.xlu0 %9523
      %9589 = vrot.lane.b32.xlu0 %v9108, 24
      %v9590 = vpop.permute.xlu0 %9589
      %9591 = vrot.lane.b32.xlu0 %v9109, 24
      %v9592 = vpop.permute.xlu0 %9591
      %9593 = vrot.lane.b32.xlu0 %v9110, 24
      %v9594 = vpop.permute.xlu0 %9593
      %9595 = vrot.lane.b32.xlu0 %v9111, 24
      %v9596 = vpop.permute.xlu0 %9595
      %9597 = vrot.lane.b32.xlu0 %v9112, 24
      %v9598 = vpop.permute.xlu0 %9597
      %9599 = vrot.lane.b32.xlu0 %v9113, 24
      %v9600 = vpop.permute.xlu0 %9599
      %9601 = vrot.lane.b32.xlu0 %v9114, 24
      %v9602 = vpop.permute.xlu0 %9601
      %9603 = vrot.lane.b32.xlu0 %v9115, 24
      %v9604 = vpop.permute.xlu0 %9603
      %9605 = vrot.lane.b32.xlu0 %v9116, 24
      %v9606 = vpop.permute.xlu0 %9605
      %9607 = vrot.lane.b32.xlu0 %v9117, 24
      %v9608 = vpop.permute.xlu0 %9607
      %9609 = vrot.lane.b32.xlu0 %v9118, 24
      %v9610 = vpop.permute.xlu0 %9609
      %9611 = vrot.lane.b32.xlu0 %v9119, 24
      %v9612 = vpop.permute.xlu0 %9611
      %9613 = vrot.lane.b32.xlu0 %v9120, 24
      %v9614 = vpop.permute.xlu0 %9613
      %9615 = vrot.lane.b32.xlu0 %v9121, 24
      %v9616 = vpop.permute.xlu0 %9615
      %9617 = vrot.lane.b32.xlu0 %v9122, 24
      %v9618 = vpop.permute.xlu0 %9617
      %9619 = vrot.lane.b32.xlu0 %v9123, 24
      %v9620 = vpop.permute.xlu0 %9619
      %9621 = vrot.lane.b32.xlu0 %v9124, 24
      %v9622 = vpop.permute.xlu0 %9621
      %9623 = vrot.lane.b32.xlu0 %v9125, 24
      %v9624 = vpop.permute.xlu0 %9623
      %9625 = vrot.lane.b32.xlu0 %v9126, 24
      %v9626 = vpop.permute.xlu0 %9625
      %9627 = vrot.lane.b32.xlu0 %v9127, 24
      %v9628 = vpop.permute.xlu0 %9627
      %9629 = vrot.lane.b32.xlu0 %v9128, 24
      %v9630 = vpop.permute.xlu0 %9629
      %9631 = vrot.lane.b32.xlu0 %v9129, 24
      %v9632 = vpop.permute.xlu0 %9631
      %9633 = vrot.lane.b32.xlu0 %v9130, 24
      %v9634 = vpop.permute.xlu0 %9633
      %9635 = vrot.lane.b32.xlu0 %v9131, 24
      %v9636 = vpop.permute.xlu0 %9635
      %9637 = vrot.lane.b32.xlu0 %v9132, 24
      %v9638 = vpop.permute.xlu0 %9637
      %9639 = vrot.lane.b32.xlu0 %v9133, 24
      %v9640 = vpop.permute.xlu0 %9639
      %9641 = vrot.lane.b32.xlu0 %v9134, 24
      %v9642 = vpop.permute.xlu0 %9641
      %9643 = vrot.lane.b32.xlu0 %v9135, 24
      %v9644 = vpop.permute.xlu0 %9643
      %9645 = vrot.lane.b32.xlu0 %v9136, 24
      %v9646 = vpop.permute.xlu0 %9645
      %9647 = vrot.lane.b32.xlu0 %v9137, 24
      %v9648 = vpop.permute.xlu0 %9647
      %9649 = vrot.lane.b32.xlu0 %v9138, 24
      %v9650 = vpop.permute.xlu0 %9649
      %9651 = vrot.lane.b32.xlu0 %v9139, 24
      %v9652 = vpop.permute.xlu0 %9651
      %9717 = vrot.lane.b32.xlu0 %v9140, 32
      %v9718 = vpop.permute.xlu0 %9717
      %9719 = vrot.lane.b32.xlu0 %v9141, 32
      %v9720 = vpop.permute.xlu0 %9719
      %9721 = vrot.lane.b32.xlu0 %v9142, 32
      %v9722 = vpop.permute.xlu0 %9721
      %9723 = vrot.lane.b32.xlu0 %v9143, 32
      %v9724 = vpop.permute.xlu0 %9723
      %9725 = vrot.lane.b32.xlu0 %v9144, 32
      %v9726 = vpop.permute.xlu0 %9725
      %9727 = vrot.lane.b32.xlu0 %v9145, 32
      %v9728 = vpop.permute.xlu0 %9727
      %9729 = vrot.lane.b32.xlu0 %v9146, 32
      %v9730 = vpop.permute.xlu0 %9729
      %9731 = vrot.lane.b32.xlu0 %v9147, 32
      %v9732 = vpop.permute.xlu0 %9731
      %9733 = vrot.lane.b32.xlu0 %v9148, 32
      %v9734 = vpop.permute.xlu0 %9733
      %9735 = vrot.lane.b32.xlu0 %v9149, 32
      %v9736 = vpop.permute.xlu0 %9735
      %9737 = vrot.lane.b32.xlu0 %v9150, 32
      %v9738 = vpop.permute.xlu0 %9737
      %9739 = vrot.lane.b32.xlu0 %v9151, 32
      %v9740 = vpop.permute.xlu0 %9739
      %9741 = vrot.lane.b32.xlu0 %v9152, 32
      %v9742 = vpop.permute.xlu0 %9741
      %9743 = vrot.lane.b32.xlu0 %v9153, 32
      %v9744 = vpop.permute.xlu0 %9743
      %9745 = vrot.lane.b32.xlu0 %v9154, 32
      %v9746 = vpop.permute.xlu0 %9745
      %9747 = vrot.lane.b32.xlu0 %v9155, 32
      %v9748 = vpop.permute.xlu0 %9747
      %9749 = vrot.lane.b32.xlu0 %v9156, 32
      %v9750 = vpop.permute.xlu0 %9749
      %9751 = vrot.lane.b32.xlu0 %v9157, 32
      %v9752 = vpop.permute.xlu0 %9751
      %9753 = vrot.lane.b32.xlu0 %v9158, 32
      %v9754 = vpop.permute.xlu0 %9753
      %9755 = vrot.lane.b32.xlu0 %v9159, 32
      %v9756 = vpop.permute.xlu0 %9755
      %9757 = vrot.lane.b32.xlu0 %v9160, 32
      %v9758 = vpop.permute.xlu0 %9757
      %9759 = vrot.lane.b32.xlu0 %v9161, 32
      %v9760 = vpop.permute.xlu0 %9759
      %9761 = vrot.lane.b32.xlu0 %v9162, 32
      %v9762 = vpop.permute.xlu0 %9761
      %9763 = vrot.lane.b32.xlu0 %v9163, 32
      %v9764 = vpop.permute.xlu0 %9763
      %9765 = vrot.lane.b32.xlu0 %v9164, 32
      %v9766 = vpop.permute.xlu0 %9765
      %9767 = vrot.lane.b32.xlu0 %v9165, 32
      %v9768 = vpop.permute.xlu0 %9767
      %9769 = vrot.lane.b32.xlu0 %v9166, 32
      %v9770 = vpop.permute.xlu0 %9769
      %9771 = vrot.lane.b32.xlu0 %v9167, 32
      %v9772 = vpop.permute.xlu0 %9771
      %9773 = vrot.lane.b32.xlu0 %v9168, 32
      %v9774 = vpop.permute.xlu0 %9773
      %9775 = vrot.lane.b32.xlu0 %v9169, 32
      %v9776 = vpop.permute.xlu0 %9775
      %9777 = vrot.lane.b32.xlu0 %v9170, 32
      %v9778 = vpop.permute.xlu0 %9777
      %9779 = vrot.lane.b32.xlu0 %v9171, 32
      %v9780 = vpop.permute.xlu0 %9779
      %9845 = vrot.lane.b32.xlu0 %v9172, 40
      %v9846 = vpop.permute.xlu0 %9845
      %9847 = vrot.lane.b32.xlu0 %v9173, 40
      %v9848 = vpop.permute.xlu0 %9847
      %9849 = vrot.lane.b32.xlu0 %v9174, 40
      %v9850 = vpop.permute.xlu0 %9849
      %9851 = vrot.lane.b32.xlu0 %v9175, 40
      %v9852 = vpop.permute.xlu0 %9851
      %9853 = vrot.lane.b32.xlu0 %v9176, 40
      %v9854 = vpop.permute.xlu0 %9853
      %9855 = vrot.lane.b32.xlu0 %v9177, 40
      %v9856 = vpop.permute.xlu0 %9855
      %9857 = vrot.lane.b32.xlu0 %v9178, 40
      %v9858 = vpop.permute.xlu0 %9857
      %9859 = vrot.lane.b32.xlu0 %v9179, 40
      %v9860 = vpop.permute.xlu0 %9859
      %9861 = vrot.lane.b32.xlu0 %v9180, 40
      %v9862 = vpop.permute.xlu0 %9861
      %9863 = vrot.lane.b32.xlu0 %v9181, 40
      %v9864 = vpop.permute.xlu0 %9863
      %9865 = vrot.lane.b32.xlu0 %v9182, 40
      %v9866 = vpop.permute.xlu0 %9865
      %9867 = vrot.lane.b32.xlu0 %v9183, 40
      %v9868 = vpop.permute.xlu0 %9867
      %9869 = vrot.lane.b32.xlu0 %v9184, 40
      %v9870 = vpop.permute.xlu0 %9869
      %9871 = vrot.lane.b32.xlu0 %v9185, 40
      %v9872 = vpop.permute.xlu0 %9871
      %9873 = vrot.lane.b32.xlu0 %v9186, 40
      %v9874 = vpop.permute.xlu0 %9873
      %9875 = vrot.lane.b32.xlu0 %v9187, 40
      %v9876 = vpop.permute.xlu0 %9875
      %9877 = vrot.lane.b32.xlu0 %v9188, 40
      %v9878 = vpop.permute.xlu0 %9877
      %9879 = vrot.lane.b32.xlu0 %v9189, 40
      %v9880 = vpop.permute.xlu0 %9879
      %9881 = vrot.lane.b32.xlu0 %v9190, 40
      %v9882 = vpop.permute.xlu0 %9881
      %9883 = vrot.lane.b32.xlu0 %v9191, 40
      %v9884 = vpop.permute.xlu0 %9883
      %9885 = vrot.lane.b32.xlu0 %v9192, 40
      %v9886 = vpop.permute.xlu0 %9885
      %9887 = vrot.lane.b32.xlu0 %v9193, 40
      %v9888 = vpop.permute.xlu0 %9887
      %9889 = vrot.lane.b32.xlu0 %v9194, 40
      %v9890 = vpop.permute.xlu0 %9889
      %9891 = vrot.lane.b32.xlu0 %v9195, 40
      %v9892 = vpop.permute.xlu0 %9891
      %9893 = vrot.lane.b32.xlu0 %v9196, 40
      %v9894 = vpop.permute.xlu0 %9893
      %9895 = vrot.lane.b32.xlu0 %v9197, 40
      %v9896 = vpop.permute.xlu0 %9895
      %9897 = vrot.lane.b32.xlu0 %v9198, 40
      %v9898 = vpop.permute.xlu0 %9897
      %9899 = vrot.lane.b32.xlu0 %v9199, 40
      %v9900 = vpop.permute.xlu0 %9899
      %9901 = vrot.lane.b32.xlu0 %v9200, 40
      %v9902 = vpop.permute.xlu0 %9901
      %9903 = vrot.lane.b32.xlu0 %v9201, 40
      %v9904 = vpop.permute.xlu0 %9903
      %9905 = vrot.lane.b32.xlu0 %v9202, 40
      %v9906 = vpop.permute.xlu0 %9905
      %9907 = vrot.lane.b32.xlu0 %v9203, 40
      %v9908 = vpop.permute.xlu0 %9907
      %9973 = vrot.lane.b32.xlu0 %v9205, 48
      %v9974 = vpop.permute.xlu0 %9973
      %9975 = vrot.lane.b32.xlu0 %v9206, 48
      %v9976 = vpop.permute.xlu0 %9975
      %9977 = vrot.lane.b32.xlu0 %v9207, 48
      %v9978 = vpop.permute.xlu0 %9977
      %9979 = vrot.lane.b32.xlu0 %v9208, 48
      %v9980 = vpop.permute.xlu0 %9979
      %9981 = vrot.lane.b32.xlu0 %v9209, 48
      %v9982 = vpop.permute.xlu0 %9981
      %9983 = vrot.lane.b32.xlu0 %v9210, 48
      %v9984 = vpop.permute.xlu0 %9983
      %9985 = vrot.lane.b32.xlu0 %v9211, 48
      %v9986 = vpop.permute.xlu0 %9985
      %9987 = vrot.lane.b32.xlu0 %v9212, 48
      %v9988 = vpop.permute.xlu0 %9987
      %9989 = vrot.lane.b32.xlu0 %v9213, 48
      %v9990 = vpop.permute.xlu0 %9989
      %9991 = vrot.lane.b32.xlu0 %v9214, 48
      %v9992 = vpop.permute.xlu0 %9991
      %9993 = vrot.lane.b32.xlu0 %v9215, 48
      %v9994 = vpop.permute.xlu0 %9993
      %9995 = vrot.lane.b32.xlu0 %v9216, 48
      %v9996 = vpop.permute.xlu0 %9995
      %9997 = vrot.lane.b32.xlu0 %v9217, 48
      %v9998 = vpop.permute.xlu0 %9997
      %9999 = vrot.lane.b32.xlu0 %v9218, 48
      %v10000 = vpop.permute.xlu0 %9999
      %10001 = vrot.lane.b32.xlu0 %v9219, 48
      %v10002 = vpop.permute.xlu0 %10001
      %10003 = vrot.lane.b32.xlu0 %v9220, 48
      %v10004 = vpop.permute.xlu0 %10003
      %10005 = vrot.lane.b32.xlu0 %v9221, 48
      %v10006 = vpop.permute.xlu0 %10005
      %10007 = vrot.lane.b32.xlu0 %v9222, 48
      %v10008 = vpop.permute.xlu0 %10007
      %10009 = vrot.lane.b32.xlu0 %v9223, 48
      %v10010 = vpop.permute.xlu0 %10009
      %10011 = vrot.lane.b32.xlu0 %v9224, 48
      %v10012 = vpop.permute.xlu0 %10011
      %10013 = vrot.lane.b32.xlu0 %v9225, 48
      %v10014 = vpop.permute.xlu0 %10013
      %10015 = vrot.lane.b32.xlu0 %v9226, 48
      %v10016 = vpop.permute.xlu0 %10015
      %10017 = vrot.lane.b32.xlu0 %v9227, 48
      %v10018 = vpop.permute.xlu0 %10017
      %10019 = vrot.lane.b32.xlu0 %v9228, 48
      %v10020 = vpop.permute.xlu0 %10019
      %10021 = vrot.lane.b32.xlu0 %v9229, 48
      %v10022 = vpop.permute.xlu0 %10021
      %10023 = vrot.lane.b32.xlu0 %v9230, 48
      %v10024 = vpop.permute.xlu0 %10023
      %10025 = vrot.lane.b32.xlu0 %v9231, 48
      %v10026 = vpop.permute.xlu0 %10025
      %10027 = vrot.lane.b32.xlu0 %v9232, 48
      %v10028 = vpop.permute.xlu0 %10027
      %10029 = vrot.lane.b32.xlu0 %v9233, 48
      %v10030 = vpop.permute.xlu0 %10029
      %10031 = vrot.lane.b32.xlu0 %v9234, 48
      %v10032 = vpop.permute.xlu0 %10031
      %10033 = vrot.lane.b32.xlu0 %v9235, 48
      %v10034 = vpop.permute.xlu0 %10033
      %10035 = vrot.lane.b32.xlu0 %v9236, 48
      %v10036 = vpop.permute.xlu0 %10035
      %10101 = vrot.lane.b32.xlu0 %v9237, 56
      %v10102 = vpop.permute.xlu0 %10101
      %10103 = vrot.lane.b32.xlu0 %v9238, 56
      %v10104 = vpop.permute.xlu0 %10103
      %10105 = vrot.lane.b32.xlu0 %v9239, 56
      %v10106 = vpop.permute.xlu0 %10105
      %10107 = vrot.lane.b32.xlu0 %v9240, 56
      %v10108 = vpop.permute.xlu0 %10107
      %10109 = vrot.lane.b32.xlu0 %v9241, 56
      %v10110 = vpop.permute.xlu0 %10109
      %10111 = vrot.lane.b32.xlu0 %v9242, 56
      %v10112 = vpop.permute.xlu0 %10111
      %10113 = vrot.lane.b32.xlu0 %v9243, 56
      %v10114 = vpop.permute.xlu0 %10113
      %10115 = vrot.lane.b32.xlu0 %v9244, 56
      %v10116 = vpop.permute.xlu0 %10115
      %10117 = vrot.lane.b32.xlu0 %v9245, 56
      %v10118 = vpop.permute.xlu0 %10117
      %10119 = vrot.lane.b32.xlu0 %v9246, 56
      %v10120 = vpop.permute.xlu0 %10119
      %10121 = vrot.lane.b32.xlu0 %v9247, 56
      %v10122 = vpop.permute.xlu0 %10121
      %10123 = vrot.lane.b32.xlu0 %v9248, 56
      %v10124 = vpop.permute.xlu0 %10123
      %10125 = vrot.lane.b32.xlu0 %v9249, 56
      %v10126 = vpop.permute.xlu0 %10125
      %10127 = vrot.lane.b32.xlu0 %v9250, 56
      %v10128 = vpop.permute.xlu0 %10127
      %10129 = vrot.lane.b32.xlu0 %v9251, 56
      %v10130 = vpop.permute.xlu0 %10129
      %10131 = vrot.lane.b32.xlu0 %v9252, 56
      %v10132 = vpop.permute.xlu0 %10131
      %10133 = vrot.lane.b32.xlu0 %v9253, 56
      %v10134 = vpop.permute.xlu0 %10133
      %10135 = vrot.lane.b32.xlu0 %v9254, 56
      %v10136 = vpop.permute.xlu0 %10135
      %10137 = vrot.lane.b32.xlu0 %v9255, 56
      %v10138 = vpop.permute.xlu0 %10137
      %10139 = vrot.lane.b32.xlu0 %v9256, 56
      %v10140 = vpop.permute.xlu0 %10139
      %10141 = vrot.lane.b32.xlu0 %v9257, 56
      %v10142 = vpop.permute.xlu0 %10141
      %10143 = vrot.lane.b32.xlu0 %v9258, 56
      %v10144 = vpop.permute.xlu0 %10143
      %10145 = vrot.lane.b32.xlu0 %v9259, 56
      %v10146 = vpop.permute.xlu0 %10145
      %10147 = vrot.lane.b32.xlu0 %v9260, 56
      %v10148 = vpop.permute.xlu0 %10147
      %10149 = vrot.lane.b32.xlu0 %v9261, 56
      %v10150 = vpop.permute.xlu0 %10149
      %10151 = vrot.lane.b32.xlu0 %v9262, 56
      %v10152 = vpop.permute.xlu0 %10151
      %10153 = vrot.lane.b32.xlu0 %v9263, 56
      %v10154 = vpop.permute.xlu0 %10153
      %10155 = vrot.lane.b32.xlu0 %v9264, 56
      %v10156 = vpop.permute.xlu0 %10155
      %10157 = vrot.lane.b32.xlu0 %v9265, 56
      %v10158 = vpop.permute.xlu0 %10157
      %10159 = vrot.lane.b32.xlu0 %v9266, 56
      %v10160 = vpop.permute.xlu0 %10159
      %10161 = vrot.lane.b32.xlu0 %v9267, 56
      %v10162 = vpop.permute.xlu0 %10161
      %10163 = vrot.lane.b32.xlu0 %v9268, 56
      %v10164 = vpop.permute.xlu0 %10163
      %10229 = vrot.lane.b32.xlu0 %v9269, 64
      %v10230 = vpop.permute.xlu0 %10229
      %10231 = vrot.lane.b32.xlu0 %v9270, 64
      %v10232 = vpop.permute.xlu0 %10231
      %10233 = vrot.lane.b32.xlu0 %v9271, 64
      %v10234 = vpop.permute.xlu0 %10233
      %10235 = vrot.lane.b32.xlu0 %v9272, 64
      %v10236 = vpop.permute.xlu0 %10235
      %10237 = vrot.lane.b32.xlu0 %v9273, 64
      %v10238 = vpop.permute.xlu0 %10237
      %10239 = vrot.lane.b32.xlu0 %v9274, 64
      %v10240 = vpop.permute.xlu0 %10239
      %10241 = vrot.lane.b32.xlu0 %v9275, 64
      %v10242 = vpop.permute.xlu0 %10241
      %10243 = vrot.lane.b32.xlu0 %v9276, 64
      %v10244 = vpop.permute.xlu0 %10243
      %10245 = vrot.lane.b32.xlu0 %v9277, 64
      %v10246 = vpop.permute.xlu0 %10245
      %10247 = vrot.lane.b32.xlu0 %v9278, 64
      %v10248 = vpop.permute.xlu0 %10247
      %10249 = vrot.lane.b32.xlu0 %v9279, 64
      %v10250 = vpop.permute.xlu0 %10249
      %10251 = vrot.lane.b32.xlu0 %v9280, 64
      %v10252 = vpop.permute.xlu0 %10251
      %10253 = vrot.lane.b32.xlu0 %v9281, 64
      %v10254 = vpop.permute.xlu0 %10253
      %10255 = vrot.lane.b32.xlu0 %v9282, 64
      %v10256 = vpop.permute.xlu0 %10255
      %10257 = vrot.lane.b32.xlu0 %v9283, 64
      %v10258 = vpop.permute.xlu0 %10257
      %10259 = vrot.lane.b32.xlu0 %v9284, 64
      %v10260 = vpop.permute.xlu0 %10259
      %10261 = vrot.lane.b32.xlu0 %v9285, 64
      %v10262 = vpop.permute.xlu0 %10261
      %10263 = vrot.lane.b32.xlu0 %v9286, 64
      %v10264 = vpop.permute.xlu0 %10263
      %10265 = vrot.lane.b32.xlu0 %v9287, 64
      %v10266 = vpop.permute.xlu0 %10265
      %10267 = vrot.lane.b32.xlu0 %v9288, 64
      %v10268 = vpop.permute.xlu0 %10267
      %10269 = vrot.lane.b32.xlu0 %v9289, 64
      %v10270 = vpop.permute.xlu0 %10269
      %10271 = vrot.lane.b32.xlu0 %v9290, 64
      %v10272 = vpop.permute.xlu0 %10271
      %10273 = vrot.lane.b32.xlu0 %v9291, 64
      %v10274 = vpop.permute.xlu0 %10273
      %10275 = vrot.lane.b32.xlu0 %v9292, 64
      %v10276 = vpop.permute.xlu0 %10275
      %10277 = vrot.lane.b32.xlu0 %v9293, 64
      %v10278 = vpop.permute.xlu0 %10277
      %10279 = vrot.lane.b32.xlu0 %v9294, 64
      %v10280 = vpop.permute.xlu0 %10279
      %10281 = vrot.lane.b32.xlu0 %v9295, 64
      %v10282 = vpop.permute.xlu0 %10281
      %10283 = vrot.lane.b32.xlu0 %v9296, 64
      %v10284 = vpop.permute.xlu0 %10283
      %10285 = vrot.lane.b32.xlu0 %v9297, 64
      %v10286 = vpop.permute.xlu0 %10285
      %10287 = vrot.lane.b32.xlu0 %v9298, 64
      %v10288 = vpop.permute.xlu0 %10287
      %10289 = vrot.lane.b32.xlu0 %v9299, 64
      %v10290 = vpop.permute.xlu0 %10289
      %10291 = vrot.lane.b32.xlu0 %v9300, 64
      %v10292 = vpop.permute.xlu0 %10291
      %v10325 = vsel %vm473, %v9012, %v9334
      %v10326 = vsel %vm473, %v9013, %v9336
      %v10327 = vsel %vm473, %v9014, %v9338
      %v10328 = vsel %vm473, %v9015, %v9340
      %v10329 = vsel %vm473, %v9016, %v9342
      %v10330 = vsel %vm473, %v9017, %v9344
      %v10331 = vsel %vm473, %v9018, %v9346
      %v10332 = vsel %vm473, %v9019, %v9348
      %v10333 = vsel %vm473, %v9020, %v9350
      %v10334 = vsel %vm473, %v9021, %v9352
      %v10335 = vsel %vm473, %v9022, %v9354
      %v10336 = vsel %vm473, %v9023, %v9356
      %v10337 = vsel %vm473, %v9024, %v9358
      %v10338 = vsel %vm473, %v9025, %v9360
      %v10339 = vsel %vm473, %v9026, %v9362
      %v10340 = vsel %vm473, %v9027, %v9364
      %v10341 = vsel %vm473, %v9028, %v9366
      %v10342 = vsel %vm473, %v9029, %v9368
      %v10343 = vsel %vm473, %v9030, %v9370
      %v10344 = vsel %vm473, %v9031, %v9372
      %v10345 = vsel %vm473, %v9032, %v9374
      %v10346 = vsel %vm473, %v9033, %v9376
      %v10347 = vsel %vm473, %v9034, %v9378
      %v10348 = vsel %vm473, %v9035, %v9380
      %v10349 = vsel %vm473, %v9036, %v9382
      %v10350 = vsel %vm473, %v9037, %v9384
      %v10351 = vsel %vm473, %v9038, %v9386
      %v10352 = vsel %vm473, %v9039, %v9388
      %v10353 = vsel %vm473, %v9040, %v9390
      %v10354 = vsel %vm473, %v9041, %v9392
      %v10355 = vsel %vm473, %v9042, %v9394
      %v10356 = vsel %vm473, %v9043, %v9396
      %v10357 = vsel %vm1957, %v10325, %v9462
      %v10358 = vsel %vm1957, %v10326, %v9464
      %v10359 = vsel %vm1957, %v10327, %v9466
      %v10360 = vsel %vm1957, %v10328, %v9468
      %v10361 = vsel %vm1957, %v10329, %v9470
      %v10362 = vsel %vm1957, %v10330, %v9472
      %v10363 = vsel %vm1957, %v10331, %v9474
      %v10364 = vsel %vm1957, %v10332, %v9476
      %v10365 = vsel %vm1957, %v10333, %v9478
      %v10366 = vsel %vm1957, %v10334, %v9480
      %v10367 = vsel %vm1957, %v10335, %v9482
      %v10368 = vsel %vm1957, %v10336, %v9484
      %v10369 = vsel %vm1957, %v10337, %v9486
      %v10370 = vsel %vm1957, %v10338, %v9488
      %v10371 = vsel %vm1957, %v10339, %v9490
      %v10372 = vsel %vm1957, %v10340, %v9492
      %v10373 = vsel %vm1957, %v10341, %v9494
      %v10374 = vsel %vm1957, %v10342, %v9496
      %v10375 = vsel %vm1957, %v10343, %v9498
      %v10376 = vsel %vm1957, %v10344, %v9500
      %v10377 = vsel %vm1957, %v10345, %v9502
      %v10378 = vsel %vm1957, %v10346, %v9504
      %v10379 = vsel %vm1957, %v10347, %v9506
      %v10380 = vsel %vm1957, %v10348, %v9508
      %v10381 = vsel %vm1957, %v10349, %v9510
      %v10382 = vsel %vm1957, %v10350, %v9512
      %v10383 = vsel %vm1957, %v10351, %v9514
      %v10384 = vsel %vm1957, %v10352, %v9516
      %v10385 = vsel %vm1957, %v10353, %v9518
      %v10386 = vsel %vm1957, %v10354, %v9520
      %v10387 = vsel %vm1957, %v10355, %v9522
      %v10388 = vsel %vm1957, %v10356, %v9524
      %v10389 = vsel %vm1990, %v10357, %v9590
      %v10390 = vsel %vm1990, %v10358, %v9592
      %v10391 = vsel %vm1990, %v10359, %v9594
      %v10392 = vsel %vm1990, %v10360, %v9596
      %v10393 = vsel %vm1990, %v10361, %v9598
      %v10394 = vsel %vm1990, %v10362, %v9600
      %v10395 = vsel %vm1990, %v10363, %v9602
      %v10396 = vsel %vm1990, %v10364, %v9604
      %v10397 = vsel %vm1990, %v10365, %v9606
      %v10398 = vsel %vm1990, %v10366, %v9608
      %v10399 = vsel %vm1990, %v10367, %v9610
      %v10400 = vsel %vm1990, %v10368, %v9612
      %v10401 = vsel %vm1990, %v10369, %v9614
      %v10402 = vsel %vm1990, %v10370, %v9616
      %v10403 = vsel %vm1990, %v10371, %v9618
      %v10404 = vsel %vm1990, %v10372, %v9620
      %v10405 = vsel %vm1990, %v10373, %v9622
      %v10406 = vsel %vm1990, %v10374, %v9624
      %v10407 = vsel %vm1990, %v10375, %v9626
      %v10408 = vsel %vm1990, %v10376, %v9628
      %v10409 = vsel %vm1990, %v10377, %v9630
      %v10410 = vsel %vm1990, %v10378, %v9632
      %v10411 = vsel %vm1990, %v10379, %v9634
      %v10412 = vsel %vm1990, %v10380, %v9636
      %v10413 = vsel %vm1990, %v10381, %v9638
      %v10414 = vsel %vm1990, %v10382, %v9640
      %v10415 = vsel %vm1990, %v10383, %v9642
      %v10416 = vsel %vm1990, %v10384, %v9644
      %v10417 = vsel %vm1990, %v10385, %v9646
      %v10418 = vsel %vm1990, %v10386, %v9648
      %v10419 = vsel %vm1990, %v10387, %v9650
      %v10420 = vsel %vm1990, %v10388, %v9652
      %v10421 = vsel %vm2023, %v10389, %v9718
      %v10422 = vsel %vm2023, %v10390, %v9720
      %v10423 = vsel %vm2023, %v10391, %v9722
      %v10424 = vsel %vm2023, %v10392, %v9724
      %v10425 = vsel %vm2023, %v10393, %v9726
      %v10426 = vsel %vm2023, %v10394, %v9728
      %v10427 = vsel %vm2023, %v10395, %v9730
      %v10428 = vsel %vm2023, %v10396, %v9732
      %v10429 = vsel %vm2023, %v10397, %v9734
      %v10430 = vsel %vm2023, %v10398, %v9736
      %v10431 = vsel %vm2023, %v10399, %v9738
      %v10432 = vsel %vm2023, %v10400, %v9740
      %v10433 = vsel %vm2023, %v10401, %v9742
      %v10434 = vsel %vm2023, %v10402, %v9744
      %v10435 = vsel %vm2023, %v10403, %v9746
      %v10436 = vsel %vm2023, %v10404, %v9748
      %v10437 = vsel %vm2023, %v10405, %v9750
      %v10438 = vsel %vm2023, %v10406, %v9752
      %v10439 = vsel %vm2023, %v10407, %v9754
      %v10440 = vsel %vm2023, %v10408, %v9756
      %v10441 = vsel %vm2023, %v10409, %v9758
      %v10442 = vsel %vm2023, %v10410, %v9760
      %v10443 = vsel %vm2023, %v10411, %v9762
      %v10444 = vsel %vm2023, %v10412, %v9764
      %v10445 = vsel %vm2023, %v10413, %v9766
      %v10446 = vsel %vm2023, %v10414, %v9768
      %v10447 = vsel %vm2023, %v10415, %v9770
      %v10448 = vsel %vm2023, %v10416, %v9772
      %v10449 = vsel %vm2023, %v10417, %v9774
      %v10450 = vsel %vm2023, %v10418, %v9776
      %v10451 = vsel %vm2023, %v10419, %v9778
      %v10452 = vsel %vm2023, %v10420, %v9780
      %v10453 = vsel %vm2056, %v10421, %v9846
      %v10454 = vsel %vm2056, %v10422, %v9848
      %v10455 = vsel %vm2056, %v10423, %v9850
      %v10456 = vsel %vm2056, %v10424, %v9852
      %v10457 = vsel %vm2056, %v10425, %v9854
      %v10458 = vsel %vm2056, %v10426, %v9856
      %v10459 = vsel %vm2056, %v10427, %v9858
      %v10460 = vsel %vm2056, %v10428, %v9860
      %v10461 = vsel %vm2056, %v10429, %v9862
      %v10462 = vsel %vm2056, %v10430, %v9864
      %v10463 = vsel %vm2056, %v10431, %v9866
      %v10464 = vsel %vm2056, %v10432, %v9868
      %v10465 = vsel %vm2056, %v10433, %v9870
      %v10466 = vsel %vm2056, %v10434, %v9872
      %v10467 = vsel %vm2056, %v10435, %v9874
      %v10468 = vsel %vm2056, %v10436, %v9876
      %v10469 = vsel %vm2056, %v10437, %v9878
      %v10470 = vsel %vm2056, %v10438, %v9880
      %v10471 = vsel %vm2056, %v10439, %v9882
      %v10472 = vsel %vm2056, %v10440, %v9884
      %v10473 = vsel %vm2056, %v10441, %v9886
      %v10474 = vsel %vm2056, %v10442, %v9888
      %v10475 = vsel %vm2056, %v10443, %v9890
      %v10476 = vsel %vm2056, %v10444, %v9892
      %v10477 = vsel %vm2056, %v10445, %v9894
      %v10478 = vsel %vm2056, %v10446, %v9896
      %v10479 = vsel %vm2056, %v10447, %v9898
      %v10480 = vsel %vm2056, %v10448, %v9900
      %v10481 = vsel %vm2056, %v10449, %v9902
      %v10482 = vsel %vm2056, %v10450, %v9904
      %v10483 = vsel %vm2056, %v10451, %v9906
      %v10484 = vsel %vm2056, %v10452, %v9908
      %v10485 = vsel %vm2089, %v10453, %v9974
      %v10486 = vsel %vm2089, %v10454, %v9976
      %v10487 = vsel %vm2089, %v10455, %v9978
      %v10488 = vsel %vm2089, %v10456, %v9980
      %v10489 = vsel %vm2089, %v10457, %v9982
      %v10490 = vsel %vm2089, %v10458, %v9984
      %v10491 = vsel %vm2089, %v10459, %v9986
      %v10492 = vsel %vm2089, %v10460, %v9988
      %v10493 = vsel %vm2089, %v10461, %v9990
      %v10494 = vsel %vm2089, %v10462, %v9992
      %v10495 = vsel %vm2089, %v10463, %v9994
      %v10496 = vsel %vm2089, %v10464, %v9996
      %v10497 = vsel %vm2089, %v10465, %v9998
      %v10498 = vsel %vm2089, %v10466, %v10000
      %v10499 = vsel %vm2089, %v10467, %v10002
      %v10500 = vsel %vm2089, %v10468, %v10004
      %v10501 = vsel %vm2089, %v10469, %v10006
      %v10502 = vsel %vm2089, %v10470, %v10008
      %v10503 = vsel %vm2089, %v10471, %v10010
      %v10504 = vsel %vm2089, %v10472, %v10012
      %v10505 = vsel %vm2089, %v10473, %v10014
      %v10506 = vsel %vm2089, %v10474, %v10016
      %v10507 = vsel %vm2089, %v10475, %v10018
      %v10508 = vsel %vm2089, %v10476, %v10020
      %v10509 = vsel %vm2089, %v10477, %v10022
      %v10510 = vsel %vm2089, %v10478, %v10024
      %v10511 = vsel %vm2089, %v10479, %v10026
      %v10512 = vsel %vm2089, %v10480, %v10028
      %v10513 = vsel %vm2089, %v10481, %v10030
      %v10514 = vsel %vm2089, %v10482, %v10032
      %v10515 = vsel %vm2089, %v10483, %v10034
      %v10516 = vsel %vm2089, %v10484, %v10036
      %v10517 = vsel %vm2122, %v10485, %v10102
      %v10518 = vsel %vm2122, %v10486, %v10104
      %v10519 = vsel %vm2122, %v10487, %v10106
      %v10520 = vsel %vm2122, %v10488, %v10108
      %v10521 = vsel %vm2122, %v10489, %v10110
      %v10522 = vsel %vm2122, %v10490, %v10112
      %v10523 = vsel %vm2122, %v10491, %v10114
      %v10524 = vsel %vm2122, %v10492, %v10116
      %v10525 = vsel %vm2122, %v10493, %v10118
      %v10526 = vsel %vm2122, %v10494, %v10120
      %v10527 = vsel %vm2122, %v10495, %v10122
      %v10528 = vsel %vm2122, %v10496, %v10124
      %v10529 = vsel %vm2122, %v10497, %v10126
      %v10530 = vsel %vm2122, %v10498, %v10128
      %v10531 = vsel %vm2122, %v10499, %v10130
      %v10532 = vsel %vm2122, %v10500, %v10132
      %v10533 = vsel %vm2122, %v10501, %v10134
      %v10534 = vsel %vm2122, %v10502, %v10136
      %v10535 = vsel %vm2122, %v10503, %v10138
      %v10536 = vsel %vm2122, %v10504, %v10140
      %v10537 = vsel %vm2122, %v10505, %v10142
      %v10538 = vsel %vm2122, %v10506, %v10144
      %v10539 = vsel %vm2122, %v10507, %v10146
      %v10540 = vsel %vm2122, %v10508, %v10148
      %v10541 = vsel %vm2122, %v10509, %v10150
      %v10542 = vsel %vm2122, %v10510, %v10152
      %v10543 = vsel %vm2122, %v10511, %v10154
      %v10544 = vsel %vm2122, %v10512, %v10156
      %v10545 = vsel %vm2122, %v10513, %v10158
      %v10546 = vsel %vm2122, %v10514, %v10160
      %v10547 = vsel %vm2122, %v10515, %v10162
      %v10548 = vsel %vm2122, %v10516, %v10164
      %v10549 = vsel %vm2155, %v10517, %v10230
      %v10550 = vsel %vm2155, %v10518, %v10232
      %v10551 = vsel %vm2155, %v10519, %v10234
      %v10552 = vsel %vm2155, %v10520, %v10236
      %v10553 = vsel %vm2155, %v10521, %v10238
      %v10554 = vsel %vm2155, %v10522, %v10240
      %v10555 = vsel %vm2155, %v10523, %v10242
      %v10556 = vsel %vm2155, %v10524, %v10244
      %v10557 = vsel %vm2155, %v10525, %v10246
      %v10558 = vsel %vm2155, %v10526, %v10248
      %v10559 = vsel %vm2155, %v10527, %v10250
      %v10560 = vsel %vm2155, %v10528, %v10252
      %v10561 = vsel %vm2155, %v10529, %v10254
      %v10562 = vsel %vm2155, %v10530, %v10256
      %v10563 = vsel %vm2155, %v10531, %v10258
      %v10564 = vsel %vm2155, %v10532, %v10260
      %v10565 = vsel %vm2155, %v10533, %v10262
      %v10566 = vsel %vm2155, %v10534, %v10264
      %v10567 = vsel %vm2155, %v10535, %v10266
      %v10568 = vsel %vm2155, %v10536, %v10268
      %v10569 = vsel %vm2155, %v10537, %v10270
      %v10570 = vsel %vm2155, %v10538, %v10272
      %v10571 = vsel %vm2155, %v10539, %v10274
      %v10572 = vsel %vm2155, %v10540, %v10276
      %v10573 = vsel %vm2155, %v10541, %v10278
      %v10574 = vsel %vm2155, %v10542, %v10280
      %v10575 = vsel %vm2155, %v10543, %v10282
      %v10576 = vsel %vm2155, %v10544, %v10284
      %v10577 = vsel %vm2155, %v10545, %v10286
      %v10578 = vsel %vm2155, %v10546, %v10288
      %v10579 = vsel %vm2155, %v10547, %v10290
      %v10580 = vsel %vm2155, %v10548, %v10292
      %v10581 = vld [vmem:[%s9] sm:$0xff]
      %v10582 = vld [vmem:[%s9 + $0x8] sm:$0xff]
      %v10583 = vld [vmem:[%s9 + $0x10] sm:$0xff]
      %v10584 = vld [vmem:[%s9 + $0x18] sm:$0xff]
      %v10585 = vld [vmem:[%s9 + $0x20] sm:$0xff]
      %v10586 = vld [vmem:[%s9 + $0x28] sm:$0xff]
      %v10587 = vld [vmem:[%s9 + $0x30] sm:$0xff]
      %v10588 = vld [vmem:[%s9 + $0x38] sm:$0xff]
      %v10589 = vld [vmem:[%s9 + $0x40] sm:$0xff]
      %v10590 = vld [vmem:[%s10] sm:$0x1]
      %v10592 = vlaneseq
      %v10593 = vshrl.u32 %v10592, 7
      %v10594 = vsub.s32 0, %v10593
      %v10595 = vrot.slane %v10590, %v10594
      %v10598 = vsel %vm2204, %v10549, 0
      %v10601 = vsel %vm2204, %v10550, 0
      %v10604 = vsel %vm2204, %v10551, 0
      %v10607 = vsel %vm2204, %v10552, 0
      %v10610 = vsel %vm2204, %v10553, 0
      %v10613 = vsel %vm2204, %v10554, 0
      %v10616 = vsel %vm2204, %v10555, 0
      %v10619 = vsel %vm2204, %v10556, 0
      %v10622 = vsel %vm2204, %v10557, 0
      %v10625 = vsel %vm2204, %v10558, 0
      %v10628 = vsel %vm2204, %v10559, 0
      %v10631 = vsel %vm2204, %v10560, 0
      %v10634 = vsel %vm2204, %v10561, 0
      %v10637 = vsel %vm2204, %v10562, 0
      %v10640 = vsel %vm2204, %v10563, 0
      %v10643 = vsel %vm2204, %v10564, 0
      %v10646 = vsel %vm2204, %v10565, 0
      %v10649 = vsel %vm2204, %v10566, 0
      %v10652 = vsel %vm2204, %v10567, 0
      %v10655 = vsel %vm2204, %v10568, 0
      %v10658 = vsel %vm2204, %v10569, 0
      %v10661 = vsel %vm2204, %v10570, 0
      %v10664 = vsel %vm2204, %v10571, 0
      %v10667 = vsel %vm2204, %v10572, 0
      %v10670 = vsel %vm2204, %v10573, 0
      %v10673 = vsel %vm2204, %v10574, 0
      %v10676 = vsel %vm2204, %v10575, 0
      %v10679 = vsel %vm2204, %v10576, 0
      %v10682 = vsel %vm2204, %v10577, 0
      %v10685 = vsel %vm2204, %v10578, 0
      %v10688 = vsel %vm2204, %v10579, 0
      %v10691 = vsel %vm2204, %v10580, 0
      %10693 = vmatprep.subr.mxu0 0.0
      %10694 = vmatpush1.msra.mxu0 %v10581
      %10695 = vmatprep.subr.mxu0 0.0
      %10696 = vmatpush1.msra.mxu0 %v10582
      %10697 = vmatprep.subr.mxu0 0.0
      %10698 = vmatpush1.msra.mxu0 %v10583
      %10699 = vmatprep.subr.mxu0 0.0
      %10700 = vmatpush1.msra.mxu0 %v10584
      %10701 = vmatprep.subr.mxu0 0.0
      %10702 = vmatpush1.msra.mxu0 %v10585
      %10703 = vmatprep.subr.mxu0 0.0
      %10704 = vmatpush1.msra.mxu0 %v10586
      %10705 = vmatprep.subr.mxu0 0.0
      %10706 = vmatpush1.msra.mxu0 %v10587
      %10707 = vmatprep.subr.mxu0 0.0
      %10708 = vmatpush1.msra.mxu0 %v10588
      %10709 = vmatprep.subr.mxu0 0.0
      %10710 = vmatpush1.msra.mxu0 %v10589
      %10711 = vmatprep.subr.mxu0 0.0
      %10712 = vmatpush1.msra.mxu0 0.0
      %10713 = vmatprep.subr.mxu0 0.0
      %10714 = vmatpush1.msra.mxu0 0.0
      %10715 = vmatprep.subr.mxu0 0.0
      %10716 = vmatpush1.msra.mxu0 0.0
      %10717 = vmatprep.subr.mxu0 0.0
      %10718 = vmatpush1.msra.mxu0 0.0
      %10719 = vmatprep.subr.mxu0 0.0
      %10720 = vmatpush1.msra.mxu0 0.0
      %10721 = vmatprep.subr.mxu0 0.0
      %10722 = vmatpush1.msra.mxu0 0.0
      %10723 = vmatprep.subr.mxu0 0.0
      %10724 = vmatpush1.msra.mxu0 0.0
      %10725 = vmatprep.subr.mxu0 0.0
      %10726 = vmatpush1.msra.mxu0 0.0
      %10727 = vmatprep.subr.mxu0 0.0
      %10728 = vmatpush1.msra.mxu0 0.0
      %10729 = vmatprep.subr.mxu0 0.0
      %10730 = vmatpush1.msra.mxu0 0.0
      %10731 = vmatprep.subr.mxu0 0.0
      %10732 = vmatpush1.msra.mxu0 0.0
      %10733 = vmatprep.subr.mxu0 0.0
      %10734 = vmatpush1.msra.mxu0 0.0
      %10735 = vmatprep.subr.mxu0 0.0
      %10736 = vmatpush1.msra.mxu0 0.0
      %10737 = vmatprep.subr.mxu0 0.0
      %10738 = vmatpush1.msra.mxu0 0.0
      %10739 = vmatprep.subr.mxu0 0.0
      %10740 = vmatpush1.msra.mxu0 0.0
      %10741 = vmatprep.subr.mxu0 0.0
      %10742 = vmatpush1.msra.mxu0 0.0
      %10743 = vmatprep.subr.mxu0 0.0
      %10744 = vmatpush1.msra.mxu0 0.0
      %10745 = vmatprep.subr.mxu0 0.0
      %10746 = vmatpush1.msra.mxu0 0.0
      %10747 = vmatprep.subr.mxu0 0.0
      %10748 = vmatpush1.msra.mxu0 0.0
      %10749 = vmatprep.subr.mxu0 0.0
      %10750 = vmatpush1.msra.mxu0 0.0
      %10751 = vmatprep.subr.mxu0 0.0
      %10752 = vmatpush1.msra.mxu0 0.0
      %10753 = vmatprep.subr.mxu0 0.0
      %10754 = vmatpush1.msra.mxu0 0.0
      %10755 = vmatprep.subr.mxu0 0.0
      %10756 = vmatpush1.msra.mxu0 0.0
      %10757 = vmatprep.mubr.f32.mxu0 0.0
      %10758 = vmatmul.mubr.f32.gmra.mrb[0].mxu0 %v10598
      %v10759 = vpop.f32.mrb[0].mxu0
      %v10760 = vadd.f32 %v10595, %v10759
      %v10761 = vpop.f32.mrb[0].mxu0
      %10762 = vmatprep.mubr.f32.mxu0 0.0
      %10763 = vmatmul.mubr.f32.gmra.mrb[0].mxu0 %v10601
      %v10764 = vpop.f32.mrb[0].mxu0
      %v10765 = vadd.f32 %v10595, %v10764
      %v10766 = vpop.f32.mrb[0].mxu0
      %10767 = vmatprep.mubr.f32.mxu0 0.0
      %10768 = vmatmul.mubr.f32.gmra.mrb[0].mxu0 %v10604
      %v10769 = vpop.f32.mrb[0].mxu0
      %v10770 = vadd.f32 %v10595, %v10769
      %v10771 = vpop.f32.mrb[0].mxu0
      %10772 = vmatprep.mubr.f32.mxu0 0.0
      %10773 = vmatmul.mubr.f32.gmra.mrb[0].mxu0 %v10607
      %v10774 = vpop.f32.mrb[0].mxu0
      %v10775 = vadd.f32 %v10595, %v10774
      %v10776 = vpop.f32.mrb[0].mxu0
      %10777 = vmatprep.mubr.f32.mxu0 0.0
      %10778 = vmatmul.mubr.f32.gmra.mrb[0].mxu0 %v10610
      %v10779 = vpop.f32.mrb[0].mxu0
      %v10780 = vadd.f32 %v10595, %v10779
      %v10781 = vpop.f32.mrb[0].mxu0
      %10782 = vmatprep.mubr.f32.mxu0 0.0
      %10783 = vmatmul.mubr.f32.gmra.mrb[0].mxu0 %v10613
      %v10784 = vpop.f32.mrb[0].mxu0
      %v10785 = vadd.f32 %v10595, %v10784
      %v10786 = vpop.f32.mrb[0].mxu0
      %10787 = vmatprep.mubr.f32.mxu0 0.0
      %10788 = vmatmul.mubr.f32.gmra.mrb[0].mxu0 %v10616
      %v10789 = vpop.f32.mrb[0].mxu0
      %v10790 = vadd.f32 %v10595, %v10789
      %v10791 = vpop.f32.mrb[0].mxu0
      %10792 = vmatprep.mubr.f32.mxu0 0.0
      %10793 = vmatmul.mubr.f32.gmra.mrb[0].mxu0 %v10619
      %v10794 = vpop.f32.mrb[0].mxu0
      %v10795 = vadd.f32 %v10595, %v10794
      %v10796 = vpop.f32.mrb[0].mxu0
      %10797 = vmatprep.mubr.f32.mxu0 0.0
      %10798 = vmatmul.mubr.f32.gmra.mrb[0].mxu0 %v10622
      %v10799 = vpop.f32.mrb[0].mxu0
      %v10800 = vadd.f32 %v10595, %v10799
      %v10801 = vpop.f32.mrb[0].mxu0
      %10802 = vmatprep.mubr.f32.mxu0 0.0
      %10803 = vmatmul.mubr.f32.gmra.mrb[0].mxu0 %v10625
      %v10804 = vpop.f32.mrb[0].mxu0
      %v10805 = vadd.f32 %v10595, %v10804
      %v10806 = vpop.f32.mrb[0].mxu0
      %10807 = vmatprep.mubr.f32.mxu0 0.0
      %10808 = vmatmul.mubr.f32.gmra.mrb[0].mxu0 %v10628
      %v10809 = vpop.f32.mrb[0].mxu0
      %v10810 = vadd.f32 %v10595, %v10809
      %v10811 = vpop.f32.mrb[0].mxu0
      %10812 = vmatprep.mubr.f32.mxu0 0.0
      %10813 = vmatmul.mubr.f32.gmra.mrb[0].mxu0 %v10631
      %v10814 = vpop.f32.mrb[0].mxu0
      %v10815 = vadd.f32 %v10595, %v10814
      %v10816 = vpop.f32.mrb[0].mxu0
      %10817 = vmatprep.mubr.f32.mxu0 0.0
      %10818 = vmatmul.mubr.f32.gmra.mrb[0].mxu0 %v10634
      %v10819 = vpop.f32.mrb[0].mxu0
      %v10820 = vadd.f32 %v10595, %v10819
      %v10821 = vpop.f32.mrb[0].mxu0
      %10822 = vmatprep.mubr.f32.mxu0 0.0
      %10823 = vmatmul.mubr.f32.gmra.mrb[0].mxu0 %v10637
      %v10824 = vpop.f32.mrb[0].mxu0
      %v10825 = vadd.f32 %v10595, %v10824
      %v10826 = vpop.f32.mrb[0].mxu0
      %10827 = vmatprep.mubr.f32.mxu0 0.0
      %10828 = vmatmul.mubr.f32.gmra.mrb[0].mxu0 %v10640
      %v10829 = vpop.f32.mrb[0].mxu0
      %v10830 = vadd.f32 %v10595, %v10829
      %v10831 = vpop.f32.mrb[0].mxu0
      %10832 = vmatprep.mubr.f32.mxu0 0.0
      %10833 = vmatmul.mubr.f32.gmra.mrb[0].mxu0 %v10643
      %v10834 = vpop.f32.mrb[0].mxu0
      %v10835 = vadd.f32 %v10595, %v10834
      %v10836 = vpop.f32.mrb[0].mxu0
      %10837 = vmatprep.mubr.f32.mxu0 0.0
      %10838 = vmatmul.mubr.f32.gmra.mrb[0].mxu0 %v10646
      %v10839 = vpop.f32.mrb[0].mxu0
      %v10840 = vadd.f32 %v10595, %v10839
      %v10841 = vpop.f32.mrb[0].mxu0
      %10842 = vmatprep.mubr.f32.mxu0 0.0
      %10843 = vmatmul.mubr.f32.gmra.mrb[0].mxu0 %v10649
      %v10844 = vpop.f32.mrb[0].mxu0
      %v10845 = vadd.f32 %v10595, %v10844
      %v10846 = vpop.f32.mrb[0].mxu0
      %10847 = vmatprep.mubr.f32.mxu0 0.0
      %10848 = vmatmul.mubr.f32.gmra.mrb[0].mxu0 %v10652
      %v10849 = vpop.f32.mrb[0].mxu0
      %v10850 = vadd.f32 %v10595, %v10849
      %v10851 = vpop.f32.mrb[0].mxu0
      %10852 = vmatprep.mubr.f32.mxu0 0.0
      %10853 = vmatmul.mubr.f32.gmra.mrb[0].mxu0 %v10655
      %v10854 = vpop.f32.mrb[0].mxu0
      %v10855 = vadd.f32 %v10595, %v10854
      %v10856 = vpop.f32.mrb[0].mxu0
      %10857 = vmatprep.mubr.f32.mxu0 0.0
      %10858 = vmatmul.mubr.f32.gmra.mrb[0].mxu0 %v10658
      %v10859 = vpop.f32.mrb[0].mxu0
      %v10860 = vadd.f32 %v10595, %v10859
      %v10861 = vpop.f32.mrb[0].mxu0
      %10862 = vmatprep.mubr.f32.mxu0 0.0
      %10863 = vmatmul.mubr.f32.gmra.mrb[0].mxu0 %v10661
      %v10864 = vpop.f32.mrb[0].mxu0
      %v10865 = vadd.f32 %v10595, %v10864
      %v10866 = vpop.f32.mrb[0].mxu0
      %10867 = vmatprep.mubr.f32.mxu0 0.0
      %10868 = vmatmul.mubr.f32.gmra.mrb[0].mxu0 %v10664
      %v10869 = vpop.f32.mrb[0].mxu0
      %v10870 = vadd.f32 %v10595, %v10869
      %v10871 = vpop.f32.mrb[0].mxu0
      %10872 = vmatprep.mubr.f32.mxu0 0.0
      %10873 = vmatmul.mubr.f32.gmra.mrb[0].mxu0 %v10667
      %v10874 = vpop.f32.mrb[0].mxu0
      %v10875 = vadd.f32 %v10595, %v10874
      %v10876 = vpop.f32.mrb[0].mxu0
      %10877 = vmatprep.mubr.f32.mxu0 0.0
      %10878 = vmatmul.mubr.f32.gmra.mrb[0].mxu0 %v10670
      %v10879 = vpop.f32.mrb[0].mxu0
      %v10880 = vadd.f32 %v10595, %v10879
      %v10881 = vpop.f32.mrb[0].mxu0
      %10882 = vmatprep.mubr.f32.mxu0 0.0
      %10883 = vmatmul.mubr.f32.gmra.mrb[0].mxu0 %v10673
      %v10884 = vpop.f32.mrb[0].mxu0
      %v10885 = vadd.f32 %v10595, %v10884
      %v10886 = vpop.f32.mrb[0].mxu0
      %10887 = vmatprep.mubr.f32.mxu0 0.0
      %10888 = vmatmul.mubr.f32.gmra.mrb[0].mxu0 %v10676
      %v10889 = vpop.f32.mrb[0].mxu0
      %v10890 = vadd.f32 %v10595, %v10889
      %v10891 = vpop.f32.mrb[0].mxu0
      %10892 = vmatprep.mubr.f32.mxu0 0.0
      %10893 = vmatmul.mubr.f32.gmra.mrb[0].mxu0 %v10679
      %v10894 = vpop.f32.mrb[0].mxu0
      %v10895 = vadd.f32 %v10595, %v10894
      %v10896 = vpop.f32.mrb[0].mxu0
      %10897 = vmatprep.mubr.f32.mxu0 0.0
      %10898 = vmatmul.mubr.f32.gmra.mrb[0].mxu0 %v10682
      %v10899 = vpop.f32.mrb[0].mxu0
      %v10900 = vadd.f32 %v10595, %v10899
      %v10901 = vpop.f32.mrb[0].mxu0
      %10902 = vmatprep.mubr.f32.mxu0 0.0
      %10903 = vmatmul.mubr.f32.gmra.mrb[0].mxu0 %v10685
      %v10904 = vpop.f32.mrb[0].mxu0
      %v10905 = vadd.f32 %v10595, %v10904
      %v10906 = vpop.f32.mrb[0].mxu0
      %10907 = vmatprep.mubr.f32.mxu0 0.0
      %10908 = vmatmul.mubr.f32.gmra.mrb[0].mxu0 %v10688
      %v10909 = vpop.f32.mrb[0].mxu0
      %v10910 = vadd.f32 %v10595, %v10909
      %v10911 = vpop.f32.mrb[0].mxu0
      %10912 = vmatprep.mubr.f32.mxu0 0.0
      %10913 = vmatmul.mubr.f32.gmra.mrb[0].mxu0 %v10691
      %v10914 = vpop.f32.mrb[0].mxu0
      %v10915 = vadd.f32 %v10595, %v10914
      %v10916 = vpop.f32.mrb[0].mxu0
      %10917 = vdwg.mxu0
      %10950 = vrot.lane.b32.xlu0 %v6580, 8
      %v10951 = vpop.permute.xlu0 %10950
      %10952 = vrot.lane.b32.xlu0 %v6585, 8
      %v10953 = vpop.permute.xlu0 %10952
      %10954 = vrot.lane.b32.xlu0 %v6590, 8
      %v10955 = vpop.permute.xlu0 %10954
      %10956 = vrot.lane.b32.xlu0 %v6595, 8
      %v10957 = vpop.permute.xlu0 %10956
      %10958 = vrot.lane.b32.xlu0 %v6600, 8
      %v10959 = vpop.permute.xlu0 %10958
      %10960 = vrot.lane.b32.xlu0 %v6605, 8
      %v10961 = vpop.permute.xlu0 %10960
      %10962 = vrot.lane.b32.xlu0 %v6610, 8
      %v10963 = vpop.permute.xlu0 %10962
      %10964 = vrot.lane.b32.xlu0 %v6615, 8
      %v10965 = vpop.permute.xlu0 %10964
      %10966 = vrot.lane.b32.xlu0 %v6620, 8
      %v10967 = vpop.permute.xlu0 %10966
      %10968 = vrot.lane.b32.xlu0 %v6625, 8
      %v10969 = vpop.permute.xlu0 %10968
      %10970 = vrot.lane.b32.xlu0 %v6630, 8
      %v10971 = vpop.permute.xlu0 %10970
      %10972 = vrot.lane.b32.xlu0 %v6635, 8
      %v10973 = vpop.permute.xlu0 %10972
      %10974 = vrot.lane.b32.xlu0 %v6640, 8
      %v10975 = vpop.permute.xlu0 %10974
      %10976 = vrot.lane.b32.xlu0 %v6645, 8
      %v10977 = vpop.permute.xlu0 %10976
      %10978 = vrot.lane.b32.xlu0 %v6650, 8
      %v10979 = vpop.permute.xlu0 %10978
      %10980 = vrot.lane.b32.xlu0 %v6655, 8
      %v10981 = vpop.permute.xlu0 %10980
      %10982 = vrot.lane.b32.xlu0 %v6660, 8
      %v10983 = vpop.permute.xlu0 %10982
      %10984 = vrot.lane.b32.xlu0 %v6665, 8
      %v10985 = vpop.permute.xlu0 %10984
      %10986 = vrot.lane.b32.xlu0 %v6670, 8
      %v10987 = vpop.permute.xlu0 %10986
      %10988 = vrot.lane.b32.xlu0 %v6675, 8
      %v10989 = vpop.permute.xlu0 %10988
      %10990 = vrot.lane.b32.xlu0 %v6680, 8
      %v10991 = vpop.permute.xlu0 %10990
      %10992 = vrot.lane.b32.xlu0 %v6685, 8
      %v10993 = vpop.permute.xlu0 %10992
      %10994 = vrot.lane.b32.xlu0 %v6690, 8
      %v10995 = vpop.permute.xlu0 %10994
      %10996 = vrot.lane.b32.xlu0 %v6695, 8
      %v10997 = vpop.permute.xlu0 %10996
      %10998 = vrot.lane.b32.xlu0 %v6700, 8
      %v10999 = vpop.permute.xlu0 %10998
      %11000 = vrot.lane.b32.xlu0 %v6705, 8
      %v11001 = vpop.permute.xlu0 %11000
      %11002 = vrot.lane.b32.xlu0 %v6710, 8
      %v11003 = vpop.permute.xlu0 %11002
      %11004 = vrot.lane.b32.xlu0 %v6715, 8
      %v11005 = vpop.permute.xlu0 %11004
      %11006 = vrot.lane.b32.xlu0 %v6720, 8
      %v11007 = vpop.permute.xlu0 %11006
      %11008 = vrot.lane.b32.xlu0 %v6725, 8
      %v11009 = vpop.permute.xlu0 %11008
      %11010 = vrot.lane.b32.xlu0 %v6730, 8
      %v11011 = vpop.permute.xlu0 %11010
      %11012 = vrot.lane.b32.xlu0 %v6735, 8
      %v11013 = vpop.permute.xlu0 %11012
      %11078 = vrot.lane.b32.xlu0 %v10760, 16
      %v11079 = vpop.permute.xlu0 %11078
      %11080 = vrot.lane.b32.xlu0 %v10765, 16
      %v11081 = vpop.permute.xlu0 %11080
      %11082 = vrot.lane.b32.xlu0 %v10770, 16
      %v11083 = vpop.permute.xlu0 %11082
      %11084 = vrot.lane.b32.xlu0 %v10775, 16
      %v11085 = vpop.permute.xlu0 %11084
      %11086 = vrot.lane.b32.xlu0 %v10780, 16
      %v11087 = vpop.permute.xlu0 %11086
      %11088 = vrot.lane.b32.xlu0 %v10785, 16
      %v11089 = vpop.permute.xlu0 %11088
      %11090 = vrot.lane.b32.xlu0 %v10790, 16
      %v11091 = vpop.permute.xlu0 %11090
      %11092 = vrot.lane.b32.xlu0 %v10795, 16
      %v11093 = vpop.permute.xlu0 %11092
      %11094 = vrot.lane.b32.xlu0 %v10800, 16
      %v11095 = vpop.permute.xlu0 %11094
      %11096 = vrot.lane.b32.xlu0 %v10805, 16
      %v11097 = vpop.permute.xlu0 %11096
      %11098 = vrot.lane.b32.xlu0 %v10810, 16
      %v11099 = vpop.permute.xlu0 %11098
      %11100 = vrot.lane.b32.xlu0 %v10815, 16
      %v11101 = vpop.permute.xlu0 %11100
      %11102 = vrot.lane.b32.xlu0 %v10820, 16
      %v11103 = vpop.permute.xlu0 %11102
      %11104 = vrot.lane.b32.xlu0 %v10825, 16
      %v11105 = vpop.permute.xlu0 %11104
      %11106 = vrot.lane.b32.xlu0 %v10830, 16
      %v11107 = vpop.permute.xlu0 %11106
      %11108 = vrot.lane.b32.xlu0 %v10835, 16
      %v11109 = vpop.permute.xlu0 %11108
      %11110 = vrot.lane.b32.xlu0 %v10840, 16
      %v11111 = vpop.permute.xlu0 %11110
      %11112 = vrot.lane.b32.xlu0 %v10845, 16
      %v11113 = vpop.permute.xlu0 %11112
      %11114 = vrot.lane.b32.xlu0 %v10850, 16
      %v11115 = vpop.permute.xlu0 %11114
      %11116 = vrot.lane.b32.xlu0 %v10855, 16
      %v11117 = vpop.permute.xlu0 %11116
      %11118 = vrot.lane.b32.xlu0 %v10860, 16
      %v11119 = vpop.permute.xlu0 %11118
      %11120 = vrot.lane.b32.xlu0 %v10865, 16
      %v11121 = vpop.permute.xlu0 %11120
      %11122 = vrot.lane.b32.xlu0 %v10870, 16
      %v11123 = vpop.permute.xlu0 %11122
      %11124 = vrot.lane.b32.xlu0 %v10875, 16
      %v11125 = vpop.permute.xlu0 %11124
      %11126 = vrot.lane.b32.xlu0 %v10880, 16
      %v11127 = vpop.permute.xlu0 %11126
      %11128 = vrot.lane.b32.xlu0 %v10885, 16
      %v11129 = vpop.permute.xlu0 %11128
      %11130 = vrot.lane.b32.xlu0 %v10890, 16
      %v11131 = vpop.permute.xlu0 %11130
      %11132 = vrot.lane.b32.xlu0 %v10895, 16
      %v11133 = vpop.permute.xlu0 %11132
      %11134 = vrot.lane.b32.xlu0 %v10900, 16
      %v11135 = vpop.permute.xlu0 %11134
      %11136 = vrot.lane.b32.xlu0 %v10905, 16
      %v11137 = vpop.permute.xlu0 %11136
      %11138 = vrot.lane.b32.xlu0 %v10910, 16
      %v11139 = vpop.permute.xlu0 %11138
      %11140 = vrot.lane.b32.xlu0 %v10915, 16
      %v11141 = vpop.permute.xlu0 %11140
      %v11174 = vsel %vm473, %v4411, %v10951
      %v11175 = vsel %vm473, %v4416, %v10953
      %v11176 = vsel %vm473, %v4421, %v10955
      %v11177 = vsel %vm473, %v4426, %v10957
      %v11178 = vsel %vm473, %v4431, %v10959
      %v11179 = vsel %vm473, %v4436, %v10961
      %v11180 = vsel %vm473, %v4441, %v10963
      %v11181 = vsel %vm473, %v4446, %v10965
      %v11182 = vsel %vm473, %v4451, %v10967
      %v11183 = vsel %vm473, %v4456, %v10969
      %v11184 = vsel %vm473, %v4461, %v10971
      %v11185 = vsel %vm473, %v4466, %v10973
      %v11186 = vsel %vm473, %v4471, %v10975
      %v11187 = vsel %vm473, %v4476, %v10977
      %v11188 = vsel %vm473, %v4481, %v10979
      %v11189 = vsel %vm473, %v4486, %v10981
      %v11190 = vsel %vm473, %v4491, %v10983
      %v11191 = vsel %vm473, %v4496, %v10985
      %v11192 = vsel %vm473, %v4501, %v10987
      %v11193 = vsel %vm473, %v4506, %v10989
      %v11194 = vsel %vm473, %v4511, %v10991
      %v11195 = vsel %vm473, %v4516, %v10993
      %v11196 = vsel %vm473, %v4521, %v10995
      %v11197 = vsel %vm473, %v4526, %v10997
      %v11198 = vsel %vm473, %v4531, %v10999
      %v11199 = vsel %vm473, %v4536, %v11001
      %v11200 = vsel %vm473, %v4541, %v11003
      %v11201 = vsel %vm473, %v4546, %v11005
      %v11202 = vsel %vm473, %v4551, %v11007
      %v11203 = vsel %vm473, %v4556, %v11009
      %v11204 = vsel %vm473, %v4561, %v11011
      %v11205 = vsel %vm473, %v4566, %v11013
      %v11206 = vsel %vm1957, %v11174, %v11079
      %v11207 = vsel %vm1957, %v11175, %v11081
      %v11208 = vsel %vm1957, %v11176, %v11083
      %v11209 = vsel %vm1957, %v11177, %v11085
      %v11210 = vsel %vm1957, %v11178, %v11087
      %v11211 = vsel %vm1957, %v11179, %v11089
      %v11212 = vsel %vm1957, %v11180, %v11091
      %v11213 = vsel %vm1957, %v11181, %v11093
      %v11214 = vsel %vm1957, %v11182, %v11095
      %v11215 = vsel %vm1957, %v11183, %v11097
      %v11216 = vsel %vm1957, %v11184, %v11099
      %v11217 = vsel %vm1957, %v11185, %v11101
      %v11218 = vsel %vm1957, %v11186, %v11103
      %v11219 = vsel %vm1957, %v11187, %v11105
      %v11220 = vsel %vm1957, %v11188, %v11107
      %v11221 = vsel %vm1957, %v11189, %v11109
      %v11222 = vsel %vm1957, %v11190, %v11111
      %v11223 = vsel %vm1957, %v11191, %v11113
      %v11224 = vsel %vm1957, %v11192, %v11115
      %v11225 = vsel %vm1957, %v11193, %v11117
      %v11226 = vsel %vm1957, %v11194, %v11119
      %v11227 = vsel %vm1957, %v11195, %v11121
      %v11228 = vsel %vm1957, %v11196, %v11123
      %v11229 = vsel %vm1957, %v11197, %v11125
      %v11230 = vsel %vm1957, %v11198, %v11127
      %v11231 = vsel %vm1957, %v11199, %v11129
      %v11232 = vsel %vm1957, %v11200, %v11131
      %v11233 = vsel %vm1957, %v11201, %v11133
      %v11234 = vsel %vm1957, %v11202, %v11135
      %v11235 = vsel %vm1957, %v11203, %v11137
      %v11236 = vsel %vm1957, %v11204, %v11139
      %v11237 = vsel %vm1957, %v11205, %v11141
      %v11238 = vld [vmem:[%s11] sm:$0xff]
      %v11239 = vld [vmem:[%s11 + $0x8] sm:$0xff]
      %v11240 = vld [vmem:[%s11 + $0x10] sm:$0xff]
      %v11241 = vld [vmem:[%s12] sm:$0x1]
      %v11243 = vlaneseq
      %v11244 = vshrl.u32 %v11243, 7
      %v11245 = vsub.s32 0, %v11244
      %v11246 = vrot.slane %v11241, %v11245
      %v11249 = vsel %vm1990, %v11206, 0
      %v11252 = vsel %vm1990, %v11207, 0
      %v11255 = vsel %vm1990, %v11208, 0
      %v11258 = vsel %vm1990, %v11209, 0
      %v11261 = vsel %vm1990, %v11210, 0
      %v11264 = vsel %vm1990, %v11211, 0
      %v11267 = vsel %vm1990, %v11212, 0
      %v11270 = vsel %vm1990, %v11213, 0
      %v11273 = vsel %vm1990, %v11214, 0
      %v11276 = vsel %vm1990, %v11215, 0
      %v11279 = vsel %vm1990, %v11216, 0
      %v11282 = vsel %vm1990, %v11217, 0
      %v11285 = vsel %vm1990, %v11218, 0
      %v11288 = vsel %vm1990, %v11219, 0
      %v11291 = vsel %vm1990, %v11220, 0
      %v11294 = vsel %vm1990, %v11221, 0
      %v11297 = vsel %vm1990, %v11222, 0
      %v11300 = vsel %vm1990, %v11223, 0
      %v11303 = vsel %vm1990, %v11224, 0
      %v11306 = vsel %vm1990, %v11225, 0
      %v11309 = vsel %vm1990, %v11226, 0
      %v11312 = vsel %vm1990, %v11227, 0
      %v11315 = vsel %vm1990, %v11228, 0
      %v11318 = vsel %vm1990, %v11229, 0
      %v11321 = vsel %vm1990, %v11230, 0
      %v11324 = vsel %vm1990, %v11231, 0
      %v11327 = vsel %vm1990, %v11232, 0
      %v11330 = vsel %vm1990, %v11233, 0
      %v11333 = vsel %vm1990, %v11234, 0
      %v11336 = vsel %vm1990, %v11235, 0
      %v11339 = vsel %vm1990, %v11236, 0
      %v11342 = vsel %vm1990, %v11237, 0
      %11344 = vmatprep.subr.mxu0 0.0
      %11345 = vmatpush1.msra.mxu0 %v11238
      %11346 = vmatprep.subr.mxu0 0.0
      %11347 = vmatpush1.msra.mxu0 %v11239
      %11348 = vmatprep.subr.mxu0 0.0
      %11349 = vmatpush1.msra.mxu0 %v11240
      %11350 = vmatprep.subr.mxu0 0.0
      %11351 = vmatpush1.msra.mxu0 0.0
      %11352 = vmatprep.subr.mxu0 0.0
      %11353 = vmatpush1.msra.mxu0 0.0
      %11354 = vmatprep.subr.mxu0 0.0
      %11355 = vmatpush1.msra.mxu0 0.0
      %11356 = vmatprep.subr.mxu0 0.0
      %11357 = vmatpush1.msra.mxu0 0.0
      %11358 = vmatprep.subr.mxu0 0.0
      %11359 = vmatpush1.msra.mxu0 0.0
      %11360 = vmatprep.subr.mxu0 0.0
      %11361 = vmatpush1.msra.mxu0 0.0
      %11362 = vmatprep.subr.mxu0 0.0
      %11363 = vmatpush1.msra.mxu0 0.0
      %11364 = vmatprep.subr.mxu0 0.0
      %11365 = vmatpush1.msra.mxu0 0.0
      %11366 = vmatprep.subr.mxu0 0.0
      %11367 = vmatpush1.msra.mxu0 0.0
      %11368 = vmatprep.subr.mxu0 0.0
      %11369 = vmatpush1.msra.mxu0 0.0
      %11370 = vmatprep.subr.mxu0 0.0
      %11371 = vmatpush1.msra.mxu0 0.0
      %11372 = vmatprep.subr.mxu0 0.0
      %11373 = vmatpush1.msra.mxu0 0.0
      %11374 = vmatprep.subr.mxu0 0.0
      %11375 = vmatpush1.msra.mxu0 0.0
      %11376 = vmatprep.subr.mxu0 0.0
      %11377 = vmatpush1.msra.mxu0 0.0
      %11378 = vmatprep.subr.mxu0 0.0
      %11379 = vmatpush1.msra.mxu0 0.0
      %11380 = vmatprep.subr.mxu0 0.0
      %11381 = vmatpush1.msra.mxu0 0.0
      %11382 = vmatprep.subr.mxu0 0.0
      %11383 = vmatpush1.msra.mxu0 0.0
      %11384 = vmatprep.subr.mxu0 0.0
      %11385 = vmatpush1.msra.mxu0 0.0
      %11386 = vmatprep.subr.mxu0 0.0
      %11387 = vmatpush1.msra.mxu0 0.0
      %11388 = vmatprep.subr.mxu0 0.0
      %11389 = vmatpush1.msra.mxu0 0.0
      %11390 = vmatprep.subr.mxu0 0.0
      %11391 = vmatpush1.msra.mxu0 0.0
      %11392 = vmatprep.subr.mxu0 0.0
      %11393 = vmatpush1.msra.mxu0 0.0
      %11394 = vmatprep.subr.mxu0 0.0
      %11395 = vmatpush1.msra.mxu0 0.0
      %11396 = vmatprep.subr.mxu0 0.0
      %11397 = vmatpush1.msra.mxu0 0.0
      %11398 = vmatprep.subr.mxu0 0.0
      %11399 = vmatpush1.msra.mxu0 0.0
      %11400 = vmatprep.subr.mxu0 0.0
      %11401 = vmatpush1.msra.mxu0 0.0
      %11402 = vmatprep.subr.mxu0 0.0
      %11403 = vmatpush1.msra.mxu0 0.0
      %11404 = vmatprep.subr.mxu0 0.0
      %11405 = vmatpush1.msra.mxu0 0.0
      %11406 = vmatprep.subr.mxu0 0.0
      %11407 = vmatpush1.msra.mxu0 0.0
      %11408 = vmatprep.mubr.f32.mxu0 0.0
      %11409 = vmatmul.mubr.f32.gmra.mrb[0].mxu0 %v11249
      %v11410 = vpop.f32.mrb[0].mxu0
      %v11411 = vadd.f32 %v11246, %v11410
      %v11412 = vpop.f32.mrb[0].mxu0
      %11413 = vmatprep.mubr.f32.mxu0 0.0
      %11414 = vmatmul.mubr.f32.gmra.mrb[0].mxu0 %v11252
      %v11415 = vpop.f32.mrb[0].mxu0
      %v11416 = vadd.f32 %v11246, %v11415
      %v11417 = vpop.f32.mrb[0].mxu0
      %11418 = vmatprep.mubr.f32.mxu0 0.0
      %11419 = vmatmul.mubr.f32.gmra.mrb[0].mxu0 %v11255
      %v11420 = vpop.f32.mrb[0].mxu0
      %v11421 = vadd.f32 %v11246, %v11420
      %v11422 = vpop.f32.mrb[0].mxu0
      %11423 = vmatprep.mubr.f32.mxu0 0.0
      %11424 = vmatmul.mubr.f32.gmra.mrb[0].mxu0 %v11258
      %v11425 = vpop.f32.mrb[0].mxu0
      %v11426 = vadd.f32 %v11246, %v11425
      %v11427 = vpop.f32.mrb[0].mxu0
      %11428 = vmatprep.mubr.f32.mxu0 0.0
      %11429 = vmatmul.mubr.f32.gmra.mrb[0].mxu0 %v11261
      %v11430 = vpop.f32.mrb[0].mxu0
      %v11431 = vadd.f32 %v11246, %v11430
      %v11432 = vpop.f32.mrb[0].mxu0
      %11433 = vmatprep.mubr.f32.mxu0 0.0
      %11434 = vmatmul.mubr.f32.gmra.mrb[0].mxu0 %v11264
      %v11435 = vpop.f32.mrb[0].mxu0
      %v11436 = vadd.f32 %v11246, %v11435
      %v11437 = vpop.f32.mrb[0].mxu0
      %11438 = vmatprep.mubr.f32.mxu0 0.0
      %11439 = vmatmul.mubr.f32.gmra.mrb[0].mxu0 %v11267
      %v11440 = vpop.f32.mrb[0].mxu0
      %v11441 = vadd.f32 %v11246, %v11440
      %v11442 = vpop.f32.mrb[0].mxu0
      %11443 = vmatprep.mubr.f32.mxu0 0.0
      %11444 = vmatmul.mubr.f32.gmra.mrb[0].mxu0 %v11270
      %v11445 = vpop.f32.mrb[0].mxu0
      %v11446 = vadd.f32 %v11246, %v11445
      %v11447 = vpop.f32.mrb[0].mxu0
      %11448 = vmatprep.mubr.f32.mxu0 0.0
      %11449 = vmatmul.mubr.f32.gmra.mrb[0].mxu0 %v11273
      %v11450 = vpop.f32.mrb[0].mxu0
      %v11451 = vadd.f32 %v11246, %v11450
      %v11452 = vpop.f32.mrb[0].mxu0
      %11453 = vmatprep.mubr.f32.mxu0 0.0
      %11454 = vmatmul.mubr.f32.gmra.mrb[0].mxu0 %v11276
      %v11455 = vpop.f32.mrb[0].mxu0
      %v11456 = vadd.f32 %v11246, %v11455
      %v11457 = vpop.f32.mrb[0].mxu0
      %11458 = vmatprep.mubr.f32.mxu0 0.0
      %11459 = vmatmul.mubr.f32.gmra.mrb[0].mxu0 %v11279
      %v11460 = vpop.f32.mrb[0].mxu0
      %v11461 = vadd.f32 %v11246, %v11460
      %v11462 = vpop.f32.mrb[0].mxu0
      %11463 = vmatprep.mubr.f32.mxu0 0.0
      %11464 = vmatmul.mubr.f32.gmra.mrb[0].mxu0 %v11282
      %v11465 = vpop.f32.mrb[0].mxu0
      %v11466 = vadd.f32 %v11246, %v11465
      %v11467 = vpop.f32.mrb[0].mxu0
      %11468 = vmatprep.mubr.f32.mxu0 0.0
      %11469 = vmatmul.mubr.f32.gmra.mrb[0].mxu0 %v11285
      %v11470 = vpop.f32.mrb[0].mxu0
      %v11471 = vadd.f32 %v11246, %v11470
      %v11472 = vpop.f32.mrb[0].mxu0
      %11473 = vmatprep.mubr.f32.mxu0 0.0
      %11474 = vmatmul.mubr.f32.gmra.mrb[0].mxu0 %v11288
      %v11475 = vpop.f32.mrb[0].mxu0
      %v11476 = vadd.f32 %v11246, %v11475
      %v11477 = vpop.f32.mrb[0].mxu0
      %11478 = vmatprep.mubr.f32.mxu0 0.0
      %11479 = vmatmul.mubr.f32.gmra.mrb[0].mxu0 %v11291
      %v11480 = vpop.f32.mrb[0].mxu0
      %v11481 = vadd.f32 %v11246, %v11480
      %v11482 = vpop.f32.mrb[0].mxu0
      %11483 = vmatprep.mubr.f32.mxu0 0.0
      %11484 = vmatmul.mubr.f32.gmra.mrb[0].mxu0 %v11294
      %v11485 = vpop.f32.mrb[0].mxu0
      %v11486 = vadd.f32 %v11246, %v11485
      %v11487 = vpop.f32.mrb[0].mxu0
      %11488 = vmatprep.mubr.f32.mxu0 0.0
      %11489 = vmatmul.mubr.f32.gmra.mrb[0].mxu0 %v11297
      %v11490 = vpop.f32.mrb[0].mxu0
      %v11491 = vadd.f32 %v11246, %v11490
      %v11492 = vpop.f32.mrb[0].mxu0
      %11493 = vmatprep.mubr.f32.mxu0 0.0
      %11494 = vmatmul.mubr.f32.gmra.mrb[0].mxu0 %v11300
      %v11495 = vpop.f32.mrb[0].mxu0
      %v11496 = vadd.f32 %v11246, %v11495
      %v11497 = vpop.f32.mrb[0].mxu0
      %11498 = vmatprep.mubr.f32.mxu0 0.0
      %11499 = vmatmul.mubr.f32.gmra.mrb[0].mxu0 %v11303
      %v11500 = vpop.f32.mrb[0].mxu0
      %v11501 = vadd.f32 %v11246, %v11500
      %v11502 = vpop.f32.mrb[0].mxu0
      %11503 = vmatprep.mubr.f32.mxu0 0.0
      %11504 = vmatmul.mubr.f32.gmra.mrb[0].mxu0 %v11306
      %v11505 = vpop.f32.mrb[0].mxu0
      %v11506 = vadd.f32 %v11246, %v11505
      %v11507 = vpop.f32.mrb[0].mxu0
      %11508 = vmatprep.mubr.f32.mxu0 0.0
      %11509 = vmatmul.mubr.f32.gmra.mrb[0].mxu0 %v11309
      %v11510 = vpop.f32.mrb[0].mxu0
      %v11511 = vadd.f32 %v11246, %v11510
      %v11512 = vpop.f32.mrb[0].mxu0
      %11513 = vmatprep.mubr.f32.mxu0 0.0
      %11514 = vmatmul.mubr.f32.gmra.mrb[0].mxu0 %v11312
      %v11515 = vpop.f32.mrb[0].mxu0
      %v11516 = vadd.f32 %v11246, %v11515
      %v11517 = vpop.f32.mrb[0].mxu0
      %11518 = vmatprep.mubr.f32.mxu0 0.0
      %11519 = vmatmul.mubr.f32.gmra.mrb[0].mxu0 %v11315
      %v11520 = vpop.f32.mrb[0].mxu0
      %v11521 = vadd.f32 %v11246, %v11520
      %v11522 = vpop.f32.mrb[0].mxu0
      %11523 = vmatprep.mubr.f32.mxu0 0.0
      %11524 = vmatmul.mubr.f32.gmra.mrb[0].mxu0 %v11318
      %v11525 = vpop.f32.mrb[0].mxu0
      %v11526 = vadd.f32 %v11246, %v11525
      %v11527 = vpop.f32.mrb[0].mxu0
      %11528 = vmatprep.mubr.f32.mxu0 0.0
      %11529 = vmatmul.mubr.f32.gmra.mrb[0].mxu0 %v11321
      %v11530 = vpop.f32.mrb[0].mxu0
      %v11531 = vadd.f32 %v11246, %v11530
      %v11532 = vpop.f32.mrb[0].mxu0
      %11533 = vmatprep.mubr.f32.mxu0 0.0
      %11534 = vmatmul.mubr.f32.gmra.mrb[0].mxu0 %v11324
      %v11535 = vpop.f32.mrb[0].mxu0
      %v11536 = vadd.f32 %v11246, %v11535
      %v11537 = vpop.f32.mrb[0].mxu0
      %11538 = vmatprep.mubr.f32.mxu0 0.0
      %11539 = vmatmul.mubr.f32.gmra.mrb[0].mxu0 %v11327
      %v11540 = vpop.f32.mrb[0].mxu0
      %v11541 = vadd.f32 %v11246, %v11540
      %v11542 = vpop.f32.mrb[0].mxu0
      %11543 = vmatprep.mubr.f32.mxu0 0.0
      %11544 = vmatmul.mubr.f32.gmra.mrb[0].mxu0 %v11330
      %v11545 = vpop.f32.mrb[0].mxu0
      %v11546 = vadd.f32 %v11246, %v11545
      %v11547 = vpop.f32.mrb[0].mxu0
      %11548 = vmatprep.mubr.f32.mxu0 0.0
      %11549 = vmatmul.mubr.f32.gmra.mrb[0].mxu0 %v11333
      %v11550 = vpop.f32.mrb[0].mxu0
      %v11551 = vadd.f32 %v11246, %v11550
      %v11552 = vpop.f32.mrb[0].mxu0
      %11553 = vmatprep.mubr.f32.mxu0 0.0
      %11554 = vmatmul.mubr.f32.gmra.mrb[0].mxu0 %v11336
      %v11555 = vpop.f32.mrb[0].mxu0
      %v11556 = vadd.f32 %v11246, %v11555
      %v11557 = vpop.f32.mrb[0].mxu0
      %11558 = vmatprep.mubr.f32.mxu0 0.0
      %11559 = vmatmul.mubr.f32.gmra.mrb[0].mxu0 %v11339
      %v11560 = vpop.f32.mrb[0].mxu0
      %v11561 = vadd.f32 %v11246, %v11560
      %v11562 = vpop.f32.mrb[0].mxu0
      %11563 = vmatprep.mubr.f32.mxu0 0.0
      %11564 = vmatmul.mubr.f32.gmra.mrb[0].mxu0 %v11342
      %v11565 = vpop.f32.mrb[0].mxu0
      %v11566 = vadd.f32 %v11246, %v11565
      %v11567 = vpop.f32.mrb[0].mxu0
      %11568 = vdwg.mxu0
      %v11569 = vadd.f32 %v2368, %v11411
      %v11570 = vadd.f32 %v2373, %v11416
      %v11571 = vadd.f32 %v2378, %v11421
      %v11572 = vadd.f32 %v2383, %v11426
      %v11573 = vadd.f32 %v2388, %v11431
      %v11574 = vadd.f32 %v2393, %v11436
      %v11575 = vadd.f32 %v2398, %v11441
      %v11576 = vadd.f32 %v2403, %v11446
      %v11577 = vadd.f32 %v2408, %v11451
      %v11578 = vadd.f32 %v2413, %v11456
      %v11579 = vadd.f32 %v2418, %v11461
      %v11580 = vadd.f32 %v2423, %v11466
      %v11581 = vadd.f32 %v2428, %v11471
      %v11582 = vadd.f32 %v2433, %v11476
      %v11583 = vadd.f32 %v2438, %v11481
      %v11584 = vadd.f32 %v2443, %v11486
      %v11585 = vadd.f32 %v2448, %v11491
      %v11586 = vadd.f32 %v2453, %v11496
      %v11587 = vadd.f32 %v2458, %v11501
      %v11588 = vadd.f32 %v2463, %v11506
      %v11589 = vadd.f32 %v2468, %v11511
      %v11590 = vadd.f32 %v2473, %v11516
      %v11591 = vadd.f32 %v2478, %v11521
      %v11592 = vadd.f32 %v2483, %v11526
      %v11593 = vadd.f32 %v2488, %v11531
      %v11594 = vadd.f32 %v2493, %v11536
      %v11595 = vadd.f32 %v2498, %v11541
      %v11596 = vadd.f32 %v2503, %v11546
      %v11597 = vadd.f32 %v2508, %v11551
      %v11598 = vadd.f32 %v2513, %v11556
      %v11599 = vadd.f32 %v2518, %v11561
      %v11600 = vadd.f32 %v2523, %v11566
      %v11601 = vadd.f32 %v11569, %v441
      %v11602 = vadd.f32 %v11570, %v442
      %v11603 = vadd.f32 %v11571, %v443
      %v11604 = vadd.f32 %v11572, %v444
      %v11605 = vadd.f32 %v11573, %v445
      %v11606 = vadd.f32 %v11574, %v446
      %v11607 = vadd.f32 %v11575, %v447
      %v11608 = vadd.f32 %v11576, %v448
      %v11609 = vadd.f32 %v11577, %v449
      %v11610 = vadd.f32 %v11578, %v450
      %v11611 = vadd.f32 %v11579, %v451
      %v11612 = vadd.f32 %v11580, %v452
      %v11613 = vadd.f32 %v11581, %v453
      %v11614 = vadd.f32 %v11582, %v454
      %v11615 = vadd.f32 %v11583, %v455
      %v11616 = vadd.f32 %v11584, %v456
      %v11617 = vadd.f32 %v11585, %v457
      %v11618 = vadd.f32 %v11586, %v458
      %v11619 = vadd.f32 %v11587, %v459
      %v11620 = vadd.f32 %v11588, %v460
      %v11621 = vadd.f32 %v11589, %v461
      %v11622 = vadd.f32 %v11590, %v462
      %v11623 = vadd.f32 %v11591, %v463
      %v11624 = vadd.f32 %v11592, %v464
      %v11625 = vadd.f32 %v11593, %v465
      %v11626 = vadd.f32 %v11594, %v466
      %v11627 = vadd.f32 %v11595, %v467
      %v11628 = vadd.f32 %v11596, %v468
      %v11629 = vadd.f32 %v11597, %v469
      %v11630 = vadd.f32 %v11598, %v470
      %v11631 = vadd.f32 %v11599, %v471
      %v11632 = vadd.f32 %v11600, %v472
      %11633 = vst.msk [vmem:[%s440] sm:$0xff] %vm473, %v11601
      %11634 = vst.msk [vmem:[%s440 + $0x8] sm:$0xff] %vm473, %v11602
      %11635 = vst.msk [vmem:[%s440 + $0x10] sm:$0xff] %vm473, %v11603
      %11636 = vst.msk [vmem:[%s440 + $0x18] sm:$0xff] %vm473, %v11604
      %11637 = vst.msk [vmem:[%s440 + $0x20] sm:$0xff] %vm473, %v11605
      %11638 = vst.msk [vmem:[%s440 + $0x28] sm:$0xff] %vm473, %v11606
      %11639 = vst.msk [vmem:[%s440 + $0x30] sm:$0xff] %vm473, %v11607
      %11640 = vst.msk [vmem:[%s440 + $0x38] sm:$0xff] %vm473, %v11608
      %11641 = vst.msk [vmem:[%s440 + $0x40] sm:$0xff] %vm473, %v11609
      %11642 = vst.msk [vmem:[%s440 + $0x48] sm:$0xff] %vm473, %v11610
      %11643 = vst.msk [vmem:[%s440 + $0x50] sm:$0xff] %vm473, %v11611
      %11644 = vst.msk [vmem:[%s440 + $0x58] sm:$0xff] %vm473, %v11612
      %11645 = vst.msk [vmem:[%s440 + $0x60] sm:$0xff] %vm473, %v11613
      %11646 = vst.msk [vmem:[%s440 + $0x68] sm:$0xff] %vm473, %v11614
      %11647 = vst.msk [vmem:[%s440 + $0x70] sm:$0xff] %vm473, %v11615
      %11648 = vst.msk [vmem:[%s440 + $0x78] sm:$0xff] %vm473, %v11616
      %11649 = vst.msk [vmem:[%s440 + $0x80] sm:$0xff] %vm473, %v11617
      %11650 = vst.msk [vmem:[%s440 + $0x88] sm:$0xff] %vm473, %v11618
      %11651 = vst.msk [vmem:[%s440 + $0x90] sm:$0xff] %vm473, %v11619
      %11652 = vst.msk [vmem:[%s440 + $0x98] sm:$0xff] %vm473, %v11620
      %11653 = vst.msk [vmem:[%s440 + $0xa0] sm:$0xff] %vm473, %v11621
      %11654 = vst.msk [vmem:[%s440 + $0xa8] sm:$0xff] %vm473, %v11622
      %11655 = vst.msk [vmem:[%s440 + $0xb0] sm:$0xff] %vm473, %v11623
      %11656 = vst.msk [vmem:[%s440 + $0xb8] sm:$0xff] %vm473, %v11624
      %11657 = vst.msk [vmem:[%s440 + $0xc0] sm:$0xff] %vm473, %v11625
      %11658 = vst.msk [vmem:[%s440 + $0xc8] sm:$0xff] %vm473, %v11626
      %11659 = vst.msk [vmem:[%s440 + $0xd0] sm:$0xff] %vm473, %v11627
      %11660 = vst.msk [vmem:[%s440 + $0xd8] sm:$0xff] %vm473, %v11628
      %11661 = vst.msk [vmem:[%s440 + $0xe0] sm:$0xff] %vm473, %v11629
      %11662 = vst.msk [vmem:[%s440 + $0xe8] sm:$0xff] %vm473, %v11630
      %11663 = vst.msk [vmem:[%s440 + $0xf0] sm:$0xff] %vm473, %v11631
      %11664 = vst.msk [vmem:[%s440 + $0xf8] sm:$0xff] %vm473, %v11632
      %p11665 = scmp.lt.s32.totalorder %s24, 1
      %s11666 = scalar_select %p11665, %s24, 1
      %s11667 = smul.addr %s11666, 32
      %s11668 = smul.addr %s11667, 8
      %s11669 = scalar_lea.vmem %s13, %s11668
      // Predicated region
      $region73: #{tpu_custom_call.1} parent=71 // pred_check
        %p11670 = pneg %p320
      $region74: #{tpu_custom_call.1} parent=71 // pred_check_branch
        %11672 = sbr.rel (%p11670) target = $region76
      $region75: #{tpu_custom_call.1} parent=71 // pred_region
        _
      $region76: #{tpu_custom_call.1} parent=71 // pred_fallthru
        _
    $region72: #{tpu_custom_call.1} parent=5 // pred_fallthru
      _
    %p11673 = scmp.le.s32.totalorder 2, %s19
    // Predicated region
    $region77: #{tpu_custom_call.1} parent=5 // pred_check
      %p11674 = pneg %p11673
    $region78: #{tpu_custom_call.1} parent=5 // pred_check_branch
      %11676 = sbr.rel (%p11674) target = $region80
    $region79: #{tpu_custom_call.1} parent=5 // pred_region
      %s11677 = ssub.s32 %s19, 2
      // Predicated region
      $region81: #{tpu_custom_call.1} parent=79 // pred_check
        %p11678 = pneg %p326
      $region82: #{tpu_custom_call.1} parent=79 // pred_check_branch
        %11680 = sbr.rel (%p11678) target = $region84
      $region83: #{tpu_custom_call.1} parent=79 // pred_region
        %p11681 = scmp.lt.s32.totalorder %s25, 1
        %s11682 = scalar_select %p11681, %s25, 1
        %s11683 = smul.addr %s11682, 32
        %s11684 = smul.addr %s11683, 8
        %s11685 = scalar_lea.vmem %s13, %s11684
      $region84: #{tpu_custom_call.1} parent=79 // pred_fallthru
        _
    $region80: #{tpu_custom_call.1} parent=5 // pred_fallthru
      _
  $region6: #{tpu_custom_call.1} parent=0 // loop_footer
    %s23 = sadd.s32 1, %s19
  $region7: #{tpu_custom_call.1} parent=0 // loop_footer_branch
    %18 = sbr.rel target = $region3
  $region8: #{tpu_custom_call.1} parent=0 // loop_exit
    _

</llo_original>
